<compile_context>
chip_gen: v7x
topology: tpu7x:2x2x1
jax: 0.10.0
libtpu: 0.0.40
codegen_flags: <defaults>
</compile_context>

<pallas_src>
import functools

import jax
import jax.numpy as jnp
from jax.experimental import pallas as pl
from jax.experimental.pallas import tpu as pltpu

LANE = 128                       # pad channel dims to a multiple of this
NEG_SLOPE = 0.1                  # LeakyReLU(0.1) as in the module
BN_EPS = 1e-5                    # torch BatchNorm2d default eps
COMPUTE_DTYPE = jnp.bfloat16     # MXU input dtype (accumulation stays f32)
ACT_DTYPE = jnp.bfloat16         # HBM dtype of intermediate activations


def _round_up(x, m):
    return (x + m - 1) // m * m


def _itemsize(dt):
    return jnp.dtype(dt).itemsize


@functools.lru_cache(maxsize=None)
def _vmem_limit_bytes():
    """Scoped-VMEM budget with headroom below physical per-core VMEM
    (~48 MiB on v7x which has 64 MiB; ~112 MiB on v5e/v6e which have 128)."""
    cap = 128 << 20
    try:
        info = pltpu.get_tpu_info()
        cap = int(getattr(info, "vmem_capacity_bytes", cap))
    except Exception:
        pass
    return int(min(max(cap - (16 << 20), 32 << 20), 112 << 20))


@functools.lru_cache(maxsize=None)
def _single_buffer_supported():
    """Probe whether pipeline_mode=pl.Buffered(1) (single-buffered constant
    operands) compiles and runs on this JAX/Pallas build."""
    try:
        spec = pl.BlockSpec((8, LANE), lambda i: (0, 0),
                            pipeline_mode=pl.Buffered(1))

        def _probe(x_ref, o_ref):
            o_ref[...] = x_ref[...] + 1.0

        f = pl.pallas_call(
            _probe,
            out_shape=jax.ShapeDtypeStruct((8, LANE), jnp.float32),
            grid=(2,),
            in_specs=[spec],
            out_specs=pl.BlockSpec((8, LANE), lambda i: (0, 0)),
        )
        jax.block_until_ready(f(jnp.zeros((8, LANE), jnp.float32)))
        return True
    except Exception:
        return False


def _const_spec(block_shape, index_map):
    """BlockSpec for an operand whose block index never changes: single-buffer
    it when supported (its second pipeline buffer is pure VMEM waste)."""
    if _single_buffer_supported():
        return pl.BlockSpec(block_shape, index_map, pipeline_mode=pl.Buffered(1))
    return pl.BlockSpec(block_shape, index_map)


def _pick_divisor(m, cap):
    """Largest divisor of m that is <= cap, preferring multiples of 8."""
    # TODO(synk): for awkward (prime-ish) m, switch to pl.cdiv + masked tail
    # tiles instead of falling back to tiny divisors.
    cap = max(1, min(m, cap))
    fallback = 1
    for t in range(cap, 0, -1):
        if m % t == 0:
            if t == m or t % 8 == 0:
                return t
            if fallback == 1:
                fallback = t
    return fallback


def _leaky(x):
    return jnp.where(x > 0, x, NEG_SLOPE * x)


# ---------------------------------------------------------------------------
# 1x1 conv with fused (previous-layer) BN+LeakyReLU on the input and partial
# BN statistics of the raw output as extra per-tile outputs.
# ---------------------------------------------------------------------------
def _conv1x1_kernel(x_ref, s_ref, b_ref, w_ref, o_ref, sum_ref, ssq_ref,
                    *, fuse_input_act):
    x = x_ref[...]                                           # (TM, Cin)
    if fuse_input_act:
        x = _leaky(x.astype(jnp.float32) * s_ref[...] + b_ref[...])
    lhs = x.astype(COMPUTE_DTYPE)
    y = jnp.dot(lhs, w_ref[...], preferred_element_type=jnp.float32)
    o_ref[...] = y.astype(o_ref.dtype)                       # bf16 activation
    sum_ref[0] = jnp.sum(y, axis=0, keepdims=True)           # f32 BN partials
    ssq_ref[0] = jnp.sum(y * y, axis=0, keepdims=True)


def conv1x1_fused(x_nhwc, scale, shift, w, *, fuse_input_act,
                  out_dtype=ACT_DTYPE):
    n, h, wdt, cin = x_nhwc.shape
    cout = w.shape[1]
    m = n * h * wdt
    budget = _vmem_limit_bytes()
    wbuf = cin * cout * _itemsize(w.dtype)
    wbuf *= 1 if _single_buffer_supported() else 2
    per_row = 2 * cin * _itemsize(x_nhwc.dtype) + 2 * cout * _itemsize(out_dtype)
    cap = max(8, (budget // 2 - wbuf) // per_row)
    tm = _pick_divisor(m, min(cap, 4096))
    t = m // tm
    if scale is None:
        scale = jnp.ones((1, cin), jnp.float32)
        shift = jnp.zeros((1, cin), jnp.float32)
    kern = functools.partial(_conv1x1_kernel, fuse_input_act=fuse_input_act)
    y, s, ss = pl.pallas_call(
        kern,
        out_shape=(jax.ShapeDtypeStruct((m, cout), out_dtype),
                   jax.ShapeDtypeStruct((t, 1, cout), jnp.float32),
                   jax.ShapeDtypeStruct((t, 1, cout), jnp.float32)),
        grid=(t,),
        in_specs=[pl.BlockSpec((tm, cin), lambda i: (i, 0)),
                  _const_spec((1, cin), lambda i: (0, 0)),
                  _const_spec((1, cin), lambda i: (0, 0)),
                  _const_spec((cin, cout), lambda i: (0, 0))],
        out_specs=(pl.BlockSpec((tm, cout), lambda i: (i, 0)),
                   pl.BlockSpec((1, 1, cout), lambda i: (i, 0, 0)),
                   pl.BlockSpec((1, 1, cout), lambda i: (i, 0, 0))),
        compiler_params=pltpu.CompilerParams(
            dimension_semantics=("parallel",),
            vmem_limit_bytes=budget),
    )(x_nhwc.reshape(m, cin), scale, shift, w)
    return y.reshape(n, h, wdt, cout), s, ss


# ---------------------------------------------------------------------------
# 3x3 conv (stride 1, pad 1) with fused input BN+LeakyReLU, per-row-tile halo
# slab in VMEM (kw shift folded into channels -> K = 3*Cin matmuls), and
# partial BN statistics.
# ---------------------------------------------------------------------------
def _conv3x3_kernel(x_ref, s_ref, b_ref, w_ref, o_ref, sum_ref, ssq_ref,
                    slab_ref, *, H, W, W2, TH, CIN, fuse_input_act):
    # x_ref   : (H, W, Cin)  full image (batch dim squeezed out)
    # w_ref   : (3, 3*Cin, Cout) -- w_ref[kh, kw*Cin + ci, co]
    # slab_ref: (TH+2, W2, 3*Cin) f32 scratch -- three kw-shifted, zero-haloed
    #           copies of the activated input rows, concatenated along channels
    r = pl.program_id(1)
    row0 = pl.multiple_of(r * TH, TH)
    cout = o_ref.shape[3]

    def activate(x):
        x = x.astype(jnp.float32)
        if fuse_input_act:
            x = _leaky(x * s_ref[...] + b_ref[...])
        return x

    def fill(dst, src_row, nrows):
        a = activate(x_ref[pl.ds(src_row, nrows), :, :])          # (nrows, W, Cin)
        slab_ref[dst:dst + nrows, 1:W + 1, 0:CIN] = a              # kw = 0
        slab_ref[dst:dst + nrows, 0:W, CIN:2 * CIN] = a            # kw = 1
        slab_ref[dst:dst + nrows, 0:W - 1, 2 * CIN:] = a[:, 1:W, :]  # kw = 2

    # Interior rows (always valid) + top/bottom halo rows (clamped source,
    # overwritten with zeros at the image boundary).
    fill(1, row0, TH)
    fill(0, jnp.maximum(row0 - 1, 0), 1)
    fill(TH + 1, jnp.minimum(row0 + TH, H - 1), 1)

    zrow = jnp.zeros((1, W2, 3 * CIN), jnp.float32)

    @pl.when(row0 == 0)
    def _top_pad():
        slab_ref[0:1, :, :] = zrow

    @pl.when(row0 + TH == H)
    def _bottom_pad():
        slab_ref[TH + 1:TH + 2, :, :] = zrow

    # Zero-pad columns that feed *kept* output columns (left pad of the kw=0
    # copy, right pad of the kw=2 copy).  Columns >= W only feed outputs that
    # are sliced away below, so they may keep stale data.
    zcol = jnp.zeros((TH + 2, 1, CIN), jnp.float32)
    slab_ref[:, 0:1, 0:CIN] = zcol
    slab_ref[:, W - 1:W, 2 * CIN:] = zcol

    # 3 matmuls with K = 3*Cin (kw folded into channels); rows shift with kh.
    acc = None
    for kh in range(3):
        lhs = slab_ref[kh:kh + TH, :, :].reshape(TH * W2, 3 * CIN)
        part = jnp.dot(lhs.astype(COMPUTE_DTYPE), w_ref[kh],
                       preferred_element_type=jnp.float32)
        acc = part if acc is None else acc + part
    y = acc.reshape(TH, W2, cout)[:, :W, :]                  # drop padded cols
    o_ref[0] = y.astype(o_ref.dtype)
    sum_ref[...] = jnp.sum(y, axis=(0, 1), keepdims=True)
    ssq_ref[...] = jnp.sum(y * y, axis=(0, 1), keepdims=True)


def _pick_row_block(h, w, w2, cin, cout, in_dtype, out_dtype, budget):
    wbuf = 9 * cin * cout * _itemsize(COMPUTE_DTYPE)
    wbuf *= 1 if _single_buffer_supported() else 2
    img = h * w * cin * _itemsize(in_dtype) * 2
    per_row = w2 * 3 * cin * 4 + 2 * w * cout * _itemsize(out_dtype)
    cap = max(4, (budget // 2 - wbuf - img) // per_row - 2)
    for t in (64, 32, 16, 8):
        if t <= cap and h % t == 0 and h // t >= 2:
            return t
    if h <= cap:
        return h
    return _pick_divisor(h, cap)


def conv3x3_fused(x_nhwc, scale, shift, w9, *, fuse_input_act=True,
                  out_dtype=ACT_DTYPE):
    n, h, w, cin = x_nhwc.shape
    cout = w9.shape[2]
    w2 = _round_up(w + 2, 8)                 # padded width, sublane-aligned
    budget = _vmem_limit_bytes()
    th = _pick_row_block(h, w, w2, cin, cout, x_nhwc.dtype, out_dtype, budget)
    r_steps = h // th
    if scale is None:
        scale = jnp.ones((1, cin), jnp.float32)
        shift = jnp.zeros((1, cin), jnp.float32)
    # (9, Cin, Cout) tap-major -> (3, 3*Cin, Cout) with kw folded into channels.
    w_r = w9.reshape(3, 3, cin, cout).reshape(3, 3 * cin, cout)
    kern = functools.partial(_conv3x3_kernel, H=h, W=w, W2=w2, TH=th, CIN=cin,
                             fuse_input_act=fuse_input_act)
    y, s, ss = pl.pallas_call(
        kern,
        out_shape=(jax.ShapeDtypeStruct((n, h, w, cout), out_dtype),
                   jax.ShapeDtypeStruct((n * r_steps, 1, cout), jnp.float32),
                   jax.ShapeDtypeStruct((n * r_steps, 1, cout), jnp.float32)),
        grid=(n, r_steps),
        in_specs=[pl.BlockSpec((None, h, w, cin), lambda b, r: (b, 0, 0, 0)),
                  _const_spec((1, cin), lambda b, r: (0, 0)),
                  _const_spec((1, cin), lambda b, r: (0, 0)),
                  _const_spec((3, 3 * cin, cout), lambda b, r: (0, 0, 0))],
        out_specs=(pl.BlockSpec((1, th, w, cout), lambda b, r: (b, r, 0, 0)),
                   pl.BlockSpec((1, 1, cout),
                                lambda b, r: (b * r_steps + r, 0, 0)),
                   pl.BlockSpec((1, 1, cout),
                                lambda b, r: (b * r_steps + r, 0, 0))),
        scratch_shapes=[pltpu.VMEM((th + 2, w2, 3 * cin), jnp.float32)],
        compiler_params=pltpu.CompilerParams(
            dimension_semantics=("parallel", "parallel"),
            vmem_limit_bytes=budget),
    )(x_nhwc, scale, shift, w_r)
    return y, s, ss


# ---------------------------------------------------------------------------
# BN scale/shift from partial statistics (training-mode batch stats, biased
# variance, eps=1e-5) -- tiny O(C) follow-up in plain JAX.
# ---------------------------------------------------------------------------
def _bn_affine(sum_parts, ssq_parts, count, gamma, beta):
    # TODO(synk): single-pass E[x^2]-E[x]^2 in f32 can lose precision for very
    # large N*H*W; a Welford-style combine of per-tile partials would be safer.
    s = jnp.sum(sum_parts, axis=(0, 1))
    ss = jnp.sum(ssq_parts, axis=(0, 1))
    mean = s / count
    var = jnp.maximum(ss / count - mean * mean, 0.0)
    scale = gamma * jax.lax.rsqrt(var + BN_EPS)
    shift = beta - mean * scale
    return scale.reshape(1, -1), shift.reshape(1, -1)


# ---------------------------------------------------------------------------
# Final (last layer's) BN + LeakyReLU, tiled elementwise.
# ---------------------------------------------------------------------------
def _bn_act_kernel(x_ref, s_ref, b_ref, o_ref):
    o_ref[...] = _leaky(x_ref[...].astype(jnp.float32) * s_ref[...] + b_ref[...])


def bn_act_apply(x_nhwc, scale, shift):
    # TODO(synk): fuse the final channel un-pad + NHWC->NCHW transpose here to
    # save an HBM pass (kept separate: a <128-wide last dim stores poorly).
    n, h, w, c = x_nhwc.shape
    m = n * h * w
    budget = _vmem_limit_bytes()
    per_row = 2 * c * _itemsize(x_nhwc.dtype) + 2 * c * 4
    tm = _pick_divisor(m, min(max(8, (budget // 2) // per_row), 4096))
    out = pl.pallas_call(
        _bn_act_kernel,
        out_shape=jax.ShapeDtypeStruct((m, c), jnp.float32),
        grid=(m // tm,),
        in_specs=[pl.BlockSpec((tm, c), lambda i: (i, 0)),
                  _const_spec((1, c), lambda i: (0, 0)),
                  _const_spec((1, c), lambda i: (0, 0))],
        out_specs=pl.BlockSpec((tm, c), lambda i: (i, 0)),
        compiler_params=pltpu.CompilerParams(
            dimension_semantics=("parallel",),
            vmem_limit_bytes=budget),
    )(x_nhwc.reshape(m, c), scale, shift)
    return out.reshape(n, h, w, c)


# ---------------------------------------------------------------------------
# Full ConvolutionalSet forward.
# ---------------------------------------------------------------------------
def _pad_layer_params(w, gamma, beta, ksize):
    """Zero-pad channel dims to a multiple of LANE (lane-dense blocks) and
    pre-cast weights to the bf16 MXU dtype."""
    if ksize == 1:
        w = w[None]                                       # (1, cin, cout)
    taps, cin, cout = w.shape
    cin_p, cout_p = _round_up(cin, LANE), _round_up(cout, LANE)
    w_p = jnp.zeros((taps, cin_p, cout_p), COMPUTE_DTYPE)
    w_p = w_p.at[:, :cin, :cout].set(w.astype(COMPUTE_DTYPE))
    gamma_p = jnp.ones((cout_p,), jnp.float32).at[:cout].set(gamma)
    beta_p = jnp.zeros((cout_p,), jnp.float32).at[:cout].set(beta)
    if ksize == 1:
        w_p = w_p[0]
    return w_p, gamma_p, beta_p


def convolutional_set(x_nchw, params):
    """params: list of (w, gamma, beta, ksize); channels-last conv weights:
    ksize==1 -> w: (Cin, Cout);  ksize==3 -> w: (9, Cin, Cout), tap = kh*3+kw."""
    n, c_in, h, w = x_nchw.shape
    c_out_final = params[-1][1].shape[0]
    x = jnp.transpose(x_nchw, (0, 2, 3, 1))               # NCHW -> NHWC
    x = jnp.pad(x, ((0, 0), (0, 0), (0, 0),
                    (0, _round_up(c_in, LANE) - c_in)))    # lane-pad channels
    count = float(n * h * w)                               # BN reduces over N,H,W
    scale = shift = None
    for li, (wgt, gamma, beta, ksize) in enumerate(params):
        w_p, gamma_p, beta_p = _pad_layer_params(wgt, gamma, beta, ksize)
        fuse = li > 0      # first layer's input has no preceding BN/activation
        if ksize == 1:
            x, s_parts, ss_parts = conv1x1_fused(x, scale, shift, w_p,
                                                 fuse_input_act=fuse)
        else:
            x, s_parts, ss_parts = conv3x3_fused(x, scale, shift, w_p,
                                                 fuse_input_act=fuse)
        scale, shift = _bn_affine(s_parts, ss_parts, count, gamma_p, beta_p)
    # TODO(synk): eval-mode BN (running mean/var) and running-stat momentum
    # updates are not reproduced (training-mode batch statistics only).
    y = bn_act_apply(x, scale, shift)                      # last layer's BN+act
    y = y[..., :c_out_final]
    return jnp.transpose(y, (0, 3, 1, 2))                  # NHWC -> NCHW


def init_params(key, in_channels, out_channels):
    dims = [(in_channels, out_channels, 1),
            (out_channels, in_channels, 3),
            (in_channels, out_channels, 1),
            (out_channels, in_channels, 3),
            (in_channels, out_channels, 1)]
    keys = jax.random.split(key, len(dims))
    params = []
    for k, (cin, cout, ksz) in zip(keys, dims):
        fan_in = cin * ksz * ksz
        wgt = jax.random.normal(k, (ksz * ksz, cin, cout),
                                jnp.float32) / jnp.sqrt(float(fan_in))
        if ksz == 1:
            wgt = wgt[0]
        gamma = jnp.ones((cout,), jnp.float32)             # torch BN default init
        beta = jnp.zeros((cout,), jnp.float32)
        params.append((wgt, gamma, beta, ksz))
    return params


# Pure-JAX reference (f32, unpadded channels) used to validate the Pallas path.
def _ref_forward(x_nchw, params):
    x = jnp.transpose(x_nchw, (0, 2, 3, 1))
    for (wgt, gamma, beta, ksize) in params:
        if ksize == 1:
            y = jnp.einsum('nhwc,cd->nhwd', x, wgt,
                           precision=jax.lax.Precision.HIGHEST)
        else:
            _, h_, w_, _ = x.shape
            xp = jnp.pad(x, ((0, 0), (1, 1), (1, 1), (0, 0)))
            y = 0.0
            for kh in range(3):
                for kw in range(3):
                    y = y + jnp.einsum('nhwc,cd->nhwd',
                                       xp[:, kh:kh + h_, kw:kw + w_, :],
                                       wgt[kh * 3 + kw],
                                       precision=jax.lax.Precision.HIGHEST)
        mean = jnp.mean(y, axis=(0, 1, 2))
        var = jnp.mean(jnp.square(y - mean), axis=(0, 1, 2))
        y = (y - mean) * jax.lax.rsqrt(var + BN_EPS) * gamma + beta
        x = jnp.where(y > 0, y, NEG_SLOPE * y)
    return jnp.transpose(x, (0, 3, 1, 2))


if __name__ == "__main__":
    key = jax.random.PRNGKey(0)
    kx, kp = jax.random.split(key)

    N, C_IN, H, W = 2, 4, 16, 16
    C_OUT = 8

    x = jax.random.normal(kx, (N, C_IN, H, W), jnp.float32)
    params = init_params(kp, C_IN, C_OUT)

    fwd = jax.jit(lambda xx: convolutional_set(xx, params))
    y = jax.block_until_ready(fwd(x))

    assert y.shape == (N, C_OUT, H, W), y.shape
    assert bool(jnp.isfinite(y).all())

    # bf16 MXU inputs + bf16 intermediate activations vs an f32 HIGHEST-precision
    # reference: per-layer relative error ~4e-3 compounds over 5 BN-normalized
    # layers, so tolerances are looser than a pure-f32 build would need.
    y_ref = jax.block_until_ready(jax.jit(lambda xx: _ref_forward(xx, params))(x))
    max_err = float(jnp.max(jnp.abs(y - y_ref)))
    rel_fro = float(jnp.linalg.norm(y - y_ref) / jnp.linalg.norm(y_ref))
    assert rel_fro < 5e-2, (rel_fro, max_err)
    assert jnp.allclose(y, y_ref, rtol=1e-1, atol=1e-1), (rel_fro, max_err)

    print("KERNEL_OK")
</pallas_src>

<mosaic_0001>
module attributes {stable_mosaic.version = 11 : i64} {
  func.func @_conv1x1_kernel(%arg0: i32, %arg1: memref<512x128xf32, #tpu.memory_space<vmem>>, %arg2: memref<1x128xf32, #tpu.memory_space<vmem>>, %arg3: memref<1x128xf32, #tpu.memory_space<vmem>>, %arg4: memref<128x128xbf16, #tpu.memory_space<vmem>>, %arg5: memref<512x128xbf16, #tpu.memory_space<vmem>>, %arg6: memref<1x1x128xf32, #tpu.memory_space<vmem>>, %arg7: memref<1x1x128xf32, #tpu.memory_space<vmem>>) attributes {dimension_semantics = [#tpu.dimension_semantics<parallel>], iteration_bounds = array<i64: 1>, scalar_prefetch = 0 : i64, scratch_operands = 0 : i64, tpu.core_type = #tpu.core_type<tc>, window_params = [{transform_indices = @transform_0, window_bounds = array<i64: 512, 128>}, {pipeline_mode = #tpu.pipeline_mode<synchronous>, transform_indices = @transform_1, window_bounds = array<i64: 1, 128>}, {pipeline_mode = #tpu.pipeline_mode<synchronous>, transform_indices = @transform_2, window_bounds = array<i64: 1, 128>}, {pipeline_mode = #tpu.pipeline_mode<synchronous>, transform_indices = @transform_3, window_bounds = array<i64: 128, 128>}, {transform_indices = @transform_4, window_bounds = array<i64: 512, 128>}, {transform_indices = @transform_5, window_bounds = array<i64: 1, 1, 128>}, {transform_indices = @transform_6, window_bounds = array<i64: 1, 1, 128>}]} {
    %c0 = arith.constant 0 : index
    %c0_0 = arith.constant 0 : index
    %0 = vector.load %arg1[%c0, %c0_0] : memref<512x128xf32, #tpu.memory_space<vmem>>, vector<512x128xf32>
    %1 = arith.truncf %0 : vector<512x128xf32> to vector<512x128xbf16>
    %c0_1 = arith.constant 0 : index
    %c0_2 = arith.constant 0 : index
    %2 = vector.load %arg4[%c0_1, %c0_2] : memref<128x128xbf16, #tpu.memory_space<vmem>>, vector<128x128xbf16>
    %cst = arith.constant dense<0.000000e+00> : vector<512x128xf32>
    %3 = tpu.matmul %1, %2, %cst {dimension_numbers = #tpu.dot_dimension_numbers<[1], [0], [0], [1], [0, 0, 1, 1], [], []>} : vector<512x128xbf16>, vector<128x128xbf16>, vector<512x128xf32> -> vector<512x128xf32>
    %4 = arith.truncf %3 : vector<512x128xf32> to vector<512x128xbf16>
    %c0_3 = arith.constant 0 : index
    %c0_4 = arith.constant 0 : index
    %5 = vector.load %arg5[%c0_3, %c0_4] : memref<512x128xbf16, #tpu.memory_space<vmem>>, vector<512x128xbf16>
    tpu.vector_store %arg5[%c0_3, %c0_4], %4 {strides = array<i32>} : memref<512x128xbf16, #tpu.memory_space<vmem>>, vector<512x128xbf16>,
    %cst_5 = arith.constant dense<0.000000e+00> : vector<128xf32>
    %6 = vector.multi_reduction <add>, %3, %cst_5 [0] : vector<512x128xf32> to vector<128xf32>
    %7 = vector.shape_cast %6 : vector<128xf32> to vector<1x128xf32>
    %c0_6 = arith.constant 0 : index
    %c0_7 = arith.constant 0 : index
    %c0_8 = arith.constant 0 : index
    %8 = vector.load %arg6[%c0_6, %c0_7, %c0_8] : memref<1x1x128xf32, #tpu.memory_space<vmem>>, vector<1x1x128xf32>
    %9 = vector.shape_cast %8 : vector<1x1x128xf32> to vector<1x128xf32>
    %10 = vector.shape_cast %7 : vector<1x128xf32> to vector<1x1x128xf32>
    tpu.vector_store %arg6[%c0_6, %c0_7, %c0_8], %10 {strides = array<i32>} : memref<1x1x128xf32, #tpu.memory_space<vmem>>, vector<1x1x128xf32>,
    %11 = arith.mulf %3, %3 : vector<512x128xf32>
    %cst_9 = arith.constant dense<0.000000e+00> : vector<128xf32>
    %12 = vector.multi_reduction <add>, %11, %cst_9 [0] : vector<512x128xf32> to vector<128xf32>
    %13 = vector.shape_cast %12 : vector<128xf32> to vector<1x128xf32>
    %c0_10 = arith.constant 0 : index
    %c0_11 = arith.constant 0 : index
    %c0_12 = arith.constant 0 : index
    %14 = vector.load %arg7[%c0_10, %c0_11, %c0_12] : memref<1x1x128xf32, #tpu.memory_space<vmem>>, vector<1x1x128xf32>
    %15 = vector.shape_cast %14 : vector<1x1x128xf32> to vector<1x128xf32>
    %16 = vector.shape_cast %13 : vector<1x128xf32> to vector<1x1x128xf32>
    tpu.vector_store %arg7[%c0_10, %c0_11, %c0_12], %16 {strides = array<i32>} : memref<1x1x128xf32, #tpu.memory_space<vmem>>, vector<1x1x128xf32>,
    return
  }
  func.func @transform_0(%arg0: i32) -> (i32, i32) {
    %c0_i32 = arith.constant 0 : i32
    %c0_i32_0 = arith.constant 0 : i32
    return %arg0, %c0_i32 : i32, i32
  }
  func.func @transform_1(%arg0: i32) -> (i32, i32) {
    %c0_i32 = arith.constant 0 : i32
    %c0_i32_0 = arith.constant 0 : i32
    %c0_i32_1 = arith.constant 0 : i32
    return %c0_i32, %c0_i32_0 : i32, i32
  }
  func.func @transform_2(%arg0: i32) -> (i32, i32) {
    %c0_i32 = arith.constant 0 : i32
    %c0_i32_0 = arith.constant 0 : i32
    %c0_i32_1 = arith.constant 0 : i32
    return %c0_i32, %c0_i32_0 : i32, i32
  }
  func.func @transform_3(%arg0: i32) -> (i32, i32) {
    %c0_i32 = arith.constant 0 : i32
    %c0_i32_0 = arith.constant 0 : i32
    %c0_i32_1 = arith.constant 0 : i32
    return %c0_i32, %c0_i32_0 : i32, i32
  }
  func.func @transform_4(%arg0: i32) -> (i32, i32) {
    %c0_i32 = arith.constant 0 : i32
    %c0_i32_0 = arith.constant 0 : i32
    return %arg0, %c0_i32 : i32, i32
  }
  func.func @transform_5(%arg0: i32) -> (i32, i32, i32) {
    %c0_i32 = arith.constant 0 : i32
    %c0_i32_0 = arith.constant 0 : i32
    %c0_i32_1 = arith.constant 0 : i32
    return %arg0, %c0_i32, %c0_i32_0 : i32, i32, i32
  }
  func.func @transform_6(%arg0: i32) -> (i32, i32, i32) {
    %c0_i32 = arith.constant 0 : i32
    %c0_i32_0 = arith.constant 0 : i32
    %c0_i32_1 = arith.constant 0 : i32
    return %arg0, %c0_i32, %c0_i32_0 : i32, i32, i32
  }
}

module attributes {stable_mosaic.version = 11 : i64} {
  func.func @_conv3x3_kernel(%arg0: i32, %arg1: i32, %arg2: memref<1x16x16x128xbf16, #tpu.memory_space<vmem>>, %arg3: memref<1x128xf32, #tpu.memory_space<vmem>>, %arg4: memref<1x128xf32, #tpu.memory_space<vmem>>, %arg5: memref<3x384x128xbf16, #tpu.memory_space<vmem>>, %arg6: memref<1x8x16x128xbf16, #tpu.memory_space<vmem>>, %arg7: memref<1x1x128xf32, #tpu.memory_space<vmem>>, %arg8: memref<1x1x128xf32, #tpu.memory_space<vmem>>, %arg9: memref<10x24x384xf32, #tpu.memory_space<vmem>>) attributes {dimension_semantics = [#tpu.dimension_semantics<parallel>, #tpu.dimension_semantics<parallel>], iteration_bounds = array<i64: 2, 2>, scalar_prefetch = 0 : i64, scratch_operands = 1 : i64, tpu.core_type = #tpu.core_type<tc>, window_params = [{transform_indices = @transform_0, window_bounds = array<i64: 1, 16, 16, 128>}, {pipeline_mode = #tpu.pipeline_mode<synchronous>, transform_indices = @transform_1, window_bounds = array<i64: 1, 128>}, {pipeline_mode = #tpu.pipeline_mode<synchronous>, transform_indices = @transform_2, window_bounds = array<i64: 1, 128>}, {pipeline_mode = #tpu.pipeline_mode<synchronous>, transform_indices = @transform_3, window_bounds = array<i64: 3, 384, 128>}, {transform_indices = @transform_4, window_bounds = array<i64: 1, 8, 16, 128>}, {transform_indices = @transform_5, window_bounds = array<i64: 1, 1, 128>}, {transform_indices = @transform_6, window_bounds = array<i64: 1, 1, 128>}]} {
    %c8_i32 = arith.constant 8 : i32
    %0 = arith.muli %arg1, %c8_i32 : i32
    %1 = tpu.assume_multiple %0, 8 : i32
    %c0 = arith.constant 0 : index
    %2 = arith.index_cast %1 : i32 to index
    %c0_0 = arith.constant 0 : index
    %c0_1 = arith.constant 0 : index
    %3 = vector.load %arg2[%c0, %2, %c0_0, %c0_1] : memref<1x16x16x128xbf16, #tpu.memory_space<vmem>>, vector<1x8x16x128xbf16>
    %4 = vector.shape_cast %3 : vector<1x8x16x128xbf16> to vector<8x16x128xbf16>
    %5 = arith.extf %4 : vector<8x16x128xbf16> to vector<8x16x128xf32>
    %c0_2 = arith.constant 0 : index
    %c0_3 = arith.constant 0 : index
    %6 = vector.load %arg3[%c0_2, %c0_3] : memref<1x128xf32, #tpu.memory_space<vmem>>, vector<1x128xf32>
    %7 = vector.shape_cast %6 : vector<1x128xf32> to vector<1x1x128xf32>
    %8 = vector.broadcast %7 : vector<1x1x128xf32> to vector<8x16x128xf32>
    %9 = arith.mulf %5, %8 : vector<8x16x128xf32>
    %c0_4 = arith.constant 0 : index
    %c0_5 = arith.constant 0 : index
    %10 = vector.load %arg4[%c0_4, %c0_5] : memref<1x128xf32, #tpu.memory_space<vmem>>, vector<1x128xf32>
    %11 = vector.shape_cast %10 : vector<1x128xf32> to vector<1x1x128xf32>
    %12 = vector.broadcast %11 : vector<1x1x128xf32> to vector<8x16x128xf32>
    %13 = arith.addf %9, %12 : vector<8x16x128xf32>
    %cst = arith.constant 0.000000e+00 : f32
    %14 = vector.broadcast %cst : f32 to vector<8x16x128xf32>
    %15 = arith.cmpf ogt, %13, %14 : vector<8x16x128xf32>
    %cst_6 = arith.constant 1.000000e-01 : f32
    %16 = vector.broadcast %cst_6 : f32 to vector<8x16x128xf32>
    %17 = arith.mulf %16, %13 : vector<8x16x128xf32>
    %18 = arith.select %15, %13, %17 : vector<8x16x128xi1>, vector<8x16x128xf32>
    %c1 = arith.constant 1 : index
    %c1_7 = arith.constant 1 : index
    %c0_8 = arith.constant 0 : index
    %19 = vector.load %arg9[%c1, %c1_7, %c0_8] : memref<10x24x384xf32, #tpu.memory_space<vmem>>, vector<8x16x128xf32>
    tpu.vector_store %arg9[%c1, %c1_7, %c0_8], %18 {strides = array<i32>} : memref<10x24x384xf32, #tpu.memory_space<vmem>>, vector<8x16x128xf32>,
    %c1_9 = arith.constant 1 : index
    %c0_10 = arith.constant 0 : index
    %c128 = arith.constant 128 : index
    %20 = vector.load %arg9[%c1_9, %c0_10, %c128] : memref<10x24x384xf32, #tpu.memory_space<vmem>>, vector<8x16x128xf32>
    tpu.vector_store %arg9[%c1_9, %c0_10, %c128], %18 {strides = array<i32>} : memref<10x24x384xf32, #tpu.memory_space<vmem>>, vector<8x16x128xf32>,
    %21 = vector.extract_strided_slice %18 {offsets = [0, 1, 0], sizes = [8, 15, 128], strides = [1, 1, 1]} : vector<8x16x128xf32> to vector<8x15x128xf32>
    %c1_11 = arith.constant 1 : index
    %c0_12 = arith.constant 0 : index
    %c256 = arith.constant 256 : index
    %22 = vector.load %arg9[%c1_11, %c0_12, %c256] : memref<10x24x384xf32, #tpu.memory_space<vmem>>, vector<8x15x128xf32>
    tpu.vector_store %arg9[%c1_11, %c0_12, %c256], %21 {strides = array<i32>} : memref<10x24x384xf32, #tpu.memory_space<vmem>>, vector<8x15x128xf32>,
    %c1_i32 = arith.constant 1 : i32
    %23 = arith.subi %1, %c1_i32 : i32
    %c0_i32 = arith.constant 0 : i32
    %24 = arith.maxsi %23, %c0_i32 : i32
    %c0_13 = arith.constant 0 : index
    %25 = arith.index_cast %24 : i32 to index
    %c0_14 = arith.constant 0 : index
    %c0_15 = arith.constant 0 : index
    %26 = vector.load %arg2[%c0_13, %25, %c0_14, %c0_15] : memref<1x16x16x128xbf16, #tpu.memory_space<vmem>>, vector<1x1x16x128xbf16>
    %27 = vector.shape_cast %26 : vector<1x1x16x128xbf16> to vector<1x16x128xbf16>
    %28 = arith.extf %27 : vector<1x16x128xbf16> to vector<1x16x128xf32>
    %c0_16 = arith.constant 0 : index
    %c0_17 = arith.constant 0 : index
    %29 = vector.load %arg3[%c0_16, %c0_17] : memref<1x128xf32, #tpu.memory_space<vmem>>, vector<1x128xf32>
    %30 = vector.shape_cast %29 : vector<1x128xf32> to vector<1x1x128xf32>
    %31 = vector.broadcast %30 : vector<1x1x128xf32> to vector<1x16x128xf32>
    %32 = arith.mulf %28, %31 : vector<1x16x128xf32>
    %c0_18 = arith.constant 0 : index
    %c0_19 = arith.constant 0 : index
    %33 = vector.load %arg4[%c0_18, %c0_19] : memref<1x128xf32, #tpu.memory_space<vmem>>, vector<1x128xf32>
    %34 = vector.shape_cast %33 : vector<1x128xf32> to vector<1x1x128xf32>
    %35 = vector.broadcast %34 : vector<1x1x128xf32> to vector<1x16x128xf32>
    %36 = arith.addf %32, %35 : vector<1x16x128xf32>
    %cst_20 = arith.constant 0.000000e+00 : f32
    %37 = vector.broadcast %cst_20 : f32 to vector<1x16x128xf32>
    %38 = arith.cmpf ogt, %36, %37 : vector<1x16x128xf32>
    %cst_21 = arith.constant 1.000000e-01 : f32
    %39 = vector.broadcast %cst_21 : f32 to vector<1x16x128xf32>
    %40 = arith.mulf %39, %36 : vector<1x16x128xf32>
    %41 = arith.select %38, %36, %40 : vector<1x16x128xi1>, vector<1x16x128xf32>
    %c0_22 = arith.constant 0 : index
    %c1_23 = arith.constant 1 : index
    %c0_24 = arith.constant 0 : index
    %42 = vector.load %arg9[%c0_22, %c1_23, %c0_24] : memref<10x24x384xf32, #tpu.memory_space<vmem>>, vector<1x16x128xf32>
    tpu.vector_store %arg9[%c0_22, %c1_23, %c0_24], %41 {strides = array<i32>} : memref<10x24x384xf32, #tpu.memory_space<vmem>>, vector<1x16x128xf32>,
    %c0_25 = arith.constant 0 : index
    %c0_26 = arith.constant 0 : index
    %c128_27 = arith.constant 128 : index
    %43 = vector.load %arg9[%c0_25, %c0_26, %c128_27] : memref<10x24x384xf32, #tpu.memory_space<vmem>>, vector<1x16x128xf32>
    tpu.vector_store %arg9[%c0_25, %c0_26, %c128_27], %41 {strides = array<i32>} : memref<10x24x384xf32, #tpu.memory_space<vmem>>, vector<1x16x128xf32>,
    %44 = vector.extract_strided_slice %41 {offsets = [0, 1, 0], sizes = [1, 15, 128], strides = [1, 1, 1]} : vector<1x16x128xf32> to vector<1x15x128xf32>
    %c0_28 = arith.constant 0 : index
    %c0_29 = arith.constant 0 : index
    %c256_30 = arith.constant 256 : index
    %45 = vector.load %arg9[%c0_28, %c0_29, %c256_30] : memref<10x24x384xf32, #tpu.memory_space<vmem>>, vector<1x15x128xf32>
    tpu.vector_store %arg9[%c0_28, %c0_29, %c256_30], %44 {strides = array<i32>} : memref<10x24x384xf32, #tpu.memory_space<vmem>>, vector<1x15x128xf32>,
    %c8_i32_31 = arith.constant 8 : i32
    %46 = arith.addi %1, %c8_i32_31 : i32
    %c15_i32 = arith.constant 15 : i32
    %47 = arith.minsi %46, %c15_i32 : i32
    %c0_32 = arith.constant 0 : index
    %48 = arith.index_cast %47 : i32 to index
    %c0_33 = arith.constant 0 : index
    %c0_34 = arith.constant 0 : index
    %49 = vector.load %arg2[%c0_32, %48, %c0_33, %c0_34] : memref<1x16x16x128xbf16, #tpu.memory_space<vmem>>, vector<1x1x16x128xbf16>
    %50 = vector.shape_cast %49 : vector<1x1x16x128xbf16> to vector<1x16x128xbf16>
    %51 = arith.extf %50 : vector<1x16x128xbf16> to vector<1x16x128xf32>
    %c0_35 = arith.constant 0 : index
    %c0_36 = arith.constant 0 : index
    %52 = vector.load %arg3[%c0_35, %c0_36] : memref<1x128xf32, #tpu.memory_space<vmem>>, vector<1x128xf32>
    %53 = vector.shape_cast %52 : vector<1x128xf32> to vector<1x1x128xf32>
    %54 = vector.broadcast %53 : vector<1x1x128xf32> to vector<1x16x128xf32>
    %55 = arith.mulf %51, %54 : vector<1x16x128xf32>
    %c0_37 = arith.constant 0 : index
    %c0_38 = arith.constant 0 : index
    %56 = vector.load %arg4[%c0_37, %c0_38] : memref<1x128xf32, #tpu.memory_space<vmem>>, vector<1x128xf32>
    %57 = vector.shape_cast %56 : vector<1x128xf32> to vector<1x1x128xf32>
    %58 = vector.broadcast %57 : vector<1x1x128xf32> to vector<1x16x128xf32>
    %59 = arith.addf %55, %58 : vector<1x16x128xf32>
    %cst_39 = arith.constant 0.000000e+00 : f32
    %60 = vector.broadcast %cst_39 : f32 to vector<1x16x128xf32>
    %61 = arith.cmpf ogt, %59, %60 : vector<1x16x128xf32>
    %cst_40 = arith.constant 1.000000e-01 : f32
    %62 = vector.broadcast %cst_40 : f32 to vector<1x16x128xf32>
    %63 = arith.mulf %62, %59 : vector<1x16x128xf32>
    %64 = arith.select %61, %59, %63 : vector<1x16x128xi1>, vector<1x16x128xf32>
    %c9 = arith.constant 9 : index
    %c1_41 = arith.constant 1 : index
    %c0_42 = arith.constant 0 : index
    %65 = vector.load %arg9[%c9, %c1_41, %c0_42] : memref<10x24x384xf32, #tpu.memory_space<vmem>>, vector<1x16x128xf32>
    tpu.vector_store %arg9[%c9, %c1_41, %c0_42], %64 {strides = array<i32>} : memref<10x24x384xf32, #tpu.memory_space<vmem>>, vector<1x16x128xf32>,
    %c9_43 = arith.constant 9 : index
    %c0_44 = arith.constant 0 : index
    %c128_45 = arith.constant 128 : index
    %66 = vector.load %arg9[%c9_43, %c0_44, %c128_45] : memref<10x24x384xf32, #tpu.memory_space<vmem>>, vector<1x16x128xf32>
    tpu.vector_store %arg9[%c9_43, %c0_44, %c128_45], %64 {strides = array<i32>} : memref<10x24x384xf32, #tpu.memory_space<vmem>>, vector<1x16x128xf32>,
    %67 = vector.extract_strided_slice %64 {offsets = [0, 1, 0], sizes = [1, 15, 128], strides = [1, 1, 1]} : vector<1x16x128xf32> to vector<1x15x128xf32>
    %c9_46 = arith.constant 9 : index
    %c0_47 = arith.constant 0 : index
    %c256_48 = arith.constant 256 : index
    %68 = vector.load %arg9[%c9_46, %c0_47, %c256_48] : memref<10x24x384xf32, #tpu.memory_space<vmem>>, vector<1x15x128xf32>
    tpu.vector_store %arg9[%c9_46, %c0_47, %c256_48], %67 {strides = array<i32>} : memref<10x24x384xf32, #tpu.memory_space<vmem>>, vector<1x15x128xf32>,
    %cst_49 = arith.constant 0.000000e+00 : f32
    %69 = vector.broadcast %cst_49 : f32 to vector<1x24x384xf32>
    %c0_i32_50 = arith.constant 0 : i32
    %70 = arith.cmpi eq, %1, %c0_i32_50 : i32
    %71 = arith.extui %70 : i1 to i32
    %c0_i32_51 = arith.constant 0 : i32
    %72 = arith.cmpi ne, %71, %c0_i32_51 : i32
    scf.if %72 {
      %c0_92 = arith.constant 0 : index
      %c0_93 = arith.constant 0 : index
      %c0_94 = arith.constant 0 : index
      %113 = vector.load %arg9[%c0_92, %c0_93, %c0_94] : memref<10x24x384xf32, #tpu.memory_space<vmem>>, vector<1x24x384xf32>
      tpu.vector_store %arg9[%c0_92, %c0_93, %c0_94], %69 {strides = array<i32>} : memref<10x24x384xf32, #tpu.memory_space<vmem>>, vector<1x24x384xf32>,
    } else {
    }
    %c8_i32_52 = arith.constant 8 : i32
    %73 = arith.addi %1, %c8_i32_52 : i32
    %c16_i32 = arith.constant 16 : i32
    %74 = arith.cmpi eq, %73, %c16_i32 : i32
    %75 = arith.extui %74 : i1 to i32
    %c0_i32_53 = arith.constant 0 : i32
    %76 = arith.cmpi ne, %75, %c0_i32_53 : i32
    scf.if %76 {
      %c9_92 = arith.constant 9 : index
      %c0_93 = arith.constant 0 : index
      %c0_94 = arith.constant 0 : index
      %113 = vector.load %arg9[%c9_92, %c0_93, %c0_94] : memref<10x24x384xf32, #tpu.memory_space<vmem>>, vector<1x24x384xf32>
      tpu.vector_store %arg9[%c9_92, %c0_93, %c0_94], %69 {strides = array<i32>} : memref<10x24x384xf32, #tpu.memory_space<vmem>>, vector<1x24x384xf32>,
    } else {
    }
    %cst_54 = arith.constant 0.000000e+00 : f32
    %77 = vector.broadcast %cst_54 : f32 to vector<10x1x128xf32>
    %c0_55 = arith.constant 0 : index
    %c0_56 = arith.constant 0 : index
    %c0_57 = arith.constant 0 : index
    %78 = vector.load %arg9[%c0_55, %c0_56, %c0_57] : memref<10x24x384xf32, #tpu.memory_space<vmem>>, vector<10x1x128xf32>
    tpu.vector_store %arg9[%c0_55, %c0_56, %c0_57], %77 {strides = array<i32>} : memref<10x24x384xf32, #tpu.memory_space<vmem>>, vector<10x1x128xf32>,
    %c0_58 = arith.constant 0 : index
    %c15 = arith.constant 15 : index
    %c256_59 = arith.constant 256 : index
    %79 = vector.load %arg9[%c0_58, %c15, %c256_59] : memref<10x24x384xf32, #tpu.memory_space<vmem>>, vector<10x1x128xf32>
    tpu.vector_store %arg9[%c0_58, %c15, %c256_59], %77 {strides = array<i32>} : memref<10x24x384xf32, #tpu.memory_space<vmem>>, vector<10x1x128xf32>,
    %c0_60 = arith.constant 0 : index
    %c0_61 = arith.constant 0 : index
    %c0_62 = arith.constant 0 : index
    %80 = vector.load %arg9[%c0_60, %c0_61, %c0_62] : memref<10x24x384xf32, #tpu.memory_space<vmem>>, vector<8x24x384xf32>
    %81 = vector.shape_cast %80 : vector<8x24x384xf32> to vector<192x384xf32>
    %82 = arith.truncf %81 : vector<192x384xf32> to vector<192x384xbf16>
    %c0_63 = arith.constant 0 : index
    %c0_64 = arith.constant 0 : index
    %c0_65 = arith.constant 0 : index
    %83 = vector.load %arg5[%c0_63, %c0_64, %c0_65] : memref<3x384x128xbf16, #tpu.memory_space<vmem>>, vector<1x384x128xbf16>
    %84 = vector.shape_cast %83 : vector<1x384x128xbf16> to vector<384x128xbf16>
    %cst_66 = arith.constant dense<0.000000e+00> : vector<192x128xf32>
    %85 = tpu.matmul %82, %84, %cst_66 {dimension_numbers = #tpu.dot_dimension_numbers<[1], [0], [0], [1], [0, 0, 1, 1], [], []>} : vector<192x384xbf16>, vector<384x128xbf16>, vector<192x128xf32> -> vector<192x128xf32>
    %c1_67 = arith.constant 1 : index
    %c0_68 = arith.constant 0 : index
    %c0_69 = arith.constant 0 : index
    %86 = vector.load %arg9[%c1_67, %c0_68, %c0_69] : memref<10x24x384xf32, #tpu.memory_space<vmem>>, vector<8x24x384xf32>
    %87 = vector.shape_cast %86 : vector<8x24x384xf32> to vector<192x384xf32>
    %88 = arith.truncf %87 : vector<192x384xf32> to vector<192x384xbf16>
    %c1_70 = arith.constant 1 : index
    %c0_71 = arith.constant 0 : index
    %c0_72 = arith.constant 0 : index
    %89 = vector.load %arg5[%c1_70, %c0_71, %c0_72] : memref<3x384x128xbf16, #tpu.memory_space<vmem>>, vector<1x384x128xbf16>
    %90 = vector.shape_cast %89 : vector<1x384x128xbf16> to vector<384x128xbf16>
    %cst_73 = arith.constant dense<0.000000e+00> : vector<192x128xf32>
    %91 = tpu.matmul %88, %90, %cst_73 {dimension_numbers = #tpu.dot_dimension_numbers<[1], [0], [0], [1], [0, 0, 1, 1], [], []>} : vector<192x384xbf16>, vector<384x128xbf16>, vector<192x128xf32> -> vector<192x128xf32>
    %92 = arith.addf %85, %91 : vector<192x128xf32>
    %c2 = arith.constant 2 : index
    %c0_74 = arith.constant 0 : index
    %c0_75 = arith.constant 0 : index
    %93 = vector.load %arg9[%c2, %c0_74, %c0_75] : memref<10x24x384xf32, #tpu.memory_space<vmem>>, vector<8x24x384xf32>
    %94 = vector.shape_cast %93 : vector<8x24x384xf32> to vector<192x384xf32>
    %95 = arith.truncf %94 : vector<192x384xf32> to vector<192x384xbf16>
    %c2_76 = arith.constant 2 : index
    %c0_77 = arith.constant 0 : index
    %c0_78 = arith.constant 0 : index
    %96 = vector.load %arg5[%c2_76, %c0_77, %c0_78] : memref<3x384x128xbf16, #tpu.memory_space<vmem>>, vector<1x384x128xbf16>
    %97 = vector.shape_cast %96 : vector<1x384x128xbf16> to vector<384x128xbf16>
    %cst_79 = arith.constant dense<0.000000e+00> : vector<192x128xf32>
    %98 = tpu.matmul %95, %97, %cst_79 {dimension_numbers = #tpu.dot_dimension_numbers<[1], [0], [0], [1], [0, 0, 1, 1], [], []>} : vector<192x384xbf16>, vector<384x128xbf16>, vector<192x128xf32> -> vector<192x128xf32>
    %99 = arith.addf %92, %98 : vector<192x128xf32>
    %100 = vector.shape_cast %99 : vector<192x128xf32> to vector<8x24x128xf32>
    %101 = vector.extract_strided_slice %100 {offsets = [0, 0, 0], sizes = [8, 16, 128], strides = [1, 1, 1]} : vector<8x24x128xf32> to vector<8x16x128xf32>
    %102 = arith.truncf %101 : vector<8x16x128xf32> to vector<8x16x128xbf16>
    %c0_80 = arith.constant 0 : index
    %c0_81 = arith.constant 0 : index
    %c0_82 = arith.constant 0 : index
    %c0_83 = arith.constant 0 : index
    %103 = vector.load %arg6[%c0_80, %c0_81, %c0_82, %c0_83] : memref<1x8x16x128xbf16, #tpu.memory_space<vmem>>, vector<1x8x16x128xbf16>
    %104 = vector.shape_cast %103 : vector<1x8x16x128xbf16> to vector<8x16x128xbf16>
    %105 = vector.shape_cast %102 : vector<8x16x128xbf16> to vector<1x8x16x128xbf16>
    tpu.vector_store %arg6[%c0_80, %c0_81, %c0_82, %c0_83], %105 {strides = array<i32>} : memref<1x8x16x128xbf16, #tpu.memory_space<vmem>>, vector<1x8x16x128xbf16>,
    %cst_84 = arith.constant dense<0.000000e+00> : vector<128xf32>
    %106 = vector.multi_reduction <add>, %101, %cst_84 [0, 1] : vector<8x16x128xf32> to vector<128xf32>
    %107 = vector.shape_cast %106 : vector<128xf32> to vector<1x1x128xf32>
    %c0_85 = arith.constant 0 : index
    %c0_86 = arith.constant 0 : index
    %c0_87 = arith.constant 0 : index
    %108 = vector.load %arg7[%c0_85, %c0_86, %c0_87] : memref<1x1x128xf32, #tpu.memory_space<vmem>>, vector<1x1x128xf32>
    tpu.vector_store %arg7[%c0_85, %c0_86, %c0_87], %107 {strides = array<i32>} : memref<1x1x128xf32, #tpu.memory_space<vmem>>, vector<1x1x128xf32>,
    %109 = arith.mulf %101, %101 : vector<8x16x128xf32>
    %cst_88 = arith.constant dense<0.000000e+00> : vector<128xf32>
    %110 = vector.multi_reduction <add>, %109, %cst_88 [0, 1] : vector<8x16x128xf32> to vector<128xf32>
    %111 = vector.shape_cast %110 : vector<128xf32> to vector<1x1x128xf32>
    %c0_89 = arith.constant 0 : index
    %c0_90 = arith.constant 0 : index
    %c0_91 = arith.constant 0 : index
    %112 = vector.load %arg8[%c0_89, %c0_90, %c0_91] : memref<1x1x128xf32, #tpu.memory_space<vmem>>, vector<1x1x128xf32>
    tpu.vector_store %arg8[%c0_89, %c0_90, %c0_91], %111 {strides = array<i32>} : memref<1x1x128xf32, #tpu.memory_space<vmem>>, vector<1x1x128xf32>,
    return
  }
  func.func @transform_0(%arg0: i32, %arg1: i32) -> (i32, i32, i32, i32) {
    %c0_i32 = arith.constant 0 : i32
    %c0_i32_0 = arith.constant 0 : i32
    %c0_i32_1 = arith.constant 0 : i32
    %c0_i32_2 = arith.constant 0 : i32
    return %arg0, %c0_i32, %c0_i32_0, %c0_i32_1 : i32, i32, i32, i32
  }
  func.func @transform_1(%arg0: i32, %arg1: i32) -> (i32, i32) {
    %c0_i32 = arith.constant 0 : i32
    %c0_i32_0 = arith.constant 0 : i32
    %c0_i32_1 = arith.constant 0 : i32
    return %c0_i32, %c0_i32_0 : i32, i32
  }
  func.func @transform_2(%arg0: i32, %arg1: i32) -> (i32, i32) {
    %c0_i32 = arith.constant 0 : i32
    %c0_i32_0 = arith.constant 0 : i32
    %c0_i32_1 = arith.constant 0 : i32
    return %c0_i32, %c0_i32_0 : i32, i32
  }
  func.func @transform_3(%arg0: i32, %arg1: i32) -> (i32, i32, i32) {
    %c0_i32 = arith.constant 0 : i32
    %c0_i32_0 = arith.constant 0 : i32
    %c0_i32_1 = arith.constant 0 : i32
    %c0_i32_2 = arith.constant 0 : i32
    return %c0_i32, %c0_i32_0, %c0_i32_1 : i32, i32, i32
  }
  func.func @transform_4(%arg0: i32, %arg1: i32) -> (i32, i32, i32, i32) {
    %c0_i32 = arith.constant 0 : i32
    %c0_i32_0 = arith.constant 0 : i32
    %c0_i32_1 = arith.constant 0 : i32
    return %arg0, %arg1, %c0_i32, %c0_i32_0 : i32, i32, i32, i32
  }
  func.func @transform_5(%arg0: i32, %arg1: i32) -> (i32, i32, i32) {
    %c2_i32 = arith.constant 2 : i32
    %0 = arith.muli %arg0, %c2_i32 : i32
    %1 = arith.addi %0, %arg1 : i32
    %c0_i32 = arith.constant 0 : i32
    %c0_i32_0 = arith.constant 0 : i32
    %c0_i32_1 = arith.constant 0 : i32
    return %1, %c0_i32, %c0_i32_0 : i32, i32, i32
  }
  func.func @transform_6(%arg0: i32, %arg1: i32) -> (i32, i32, i32) {
    %c2_i32 = arith.constant 2 : i32
    %0 = arith.muli %arg0, %c2_i32 : i32
    %1 = arith.addi %0, %arg1 : i32
    %c0_i32 = arith.constant 0 : i32
    %c0_i32_0 = arith.constant 0 : i32
    %c0_i32_1 = arith.constant 0 : i32
    return %1, %c0_i32, %c0_i32_0 : i32, i32, i32
  }
}

module attributes {stable_mosaic.version = 11 : i64} {
  func.func @_bn_act_kernel(%arg0: i32, %arg1: memref<512x128xbf16, #tpu.memory_space<vmem>>, %arg2: memref<1x128xf32, #tpu.memory_space<vmem>>, %arg3: memref<1x128xf32, #tpu.memory_space<vmem>>, %arg4: memref<512x128xf32, #tpu.memory_space<vmem>>) attributes {dimension_semantics = [#tpu.dimension_semantics<parallel>], iteration_bounds = array<i64: 1>, scalar_prefetch = 0 : i64, scratch_operands = 0 : i64, tpu.core_type = #tpu.core_type<tc>, window_params = [{transform_indices = @transform_0, window_bounds = array<i64: 512, 128>}, {pipeline_mode = #tpu.pipeline_mode<synchronous>, transform_indices = @transform_1, window_bounds = array<i64: 1, 128>}, {pipeline_mode = #tpu.pipeline_mode<synchronous>, transform_indices = @transform_2, window_bounds = array<i64: 1, 128>}, {transform_indices = @transform_3, window_bounds = array<i64: 512, 128>}]} {
    %c0 = arith.constant 0 : index
    %c0_0 = arith.constant 0 : index
    %0 = vector.load %arg1[%c0, %c0_0] : memref<512x128xbf16, #tpu.memory_space<vmem>>, vector<512x128xbf16>
    %1 = arith.extf %0 : vector<512x128xbf16> to vector<512x128xf32>
    %c0_1 = arith.constant 0 : index
    %c0_2 = arith.constant 0 : index
    %2 = vector.load %arg2[%c0_1, %c0_2] : memref<1x128xf32, #tpu.memory_space<vmem>>, vector<1x128xf32>
    %3 = vector.broadcast %2 : vector<1x128xf32> to vector<512x128xf32>
    %4 = arith.mulf %1, %3 : vector<512x128xf32>
    %c0_3 = arith.constant 0 : index
    %c0_4 = arith.constant 0 : index
    %5 = vector.load %arg3[%c0_3, %c0_4] : memref<1x128xf32, #tpu.memory_space<vmem>>, vector<1x128xf32>
    %6 = vector.broadcast %5 : vector<1x128xf32> to vector<512x128xf32>
    %7 = arith.addf %4, %6 : vector<512x128xf32>
    %cst = arith.constant 0.000000e+00 : f32
    %8 = vector.broadcast %cst : f32 to vector<512x128xf32>
    %9 = arith.cmpf ogt, %7, %8 : vector<512x128xf32>
    %cst_5 = arith.constant 1.000000e-01 : f32
    %10 = vector.broadcast %cst_5 : f32 to vector<512x128xf32>
    %11 = arith.mulf %10, %7 : vector<512x128xf32>
    %12 = arith.select %9, %7, %11 : vector<512x128xi1>, vector<512x128xf32>
    %c0_6 = arith.constant 0 : index
    %c0_7 = arith.constant 0 : index
    %13 = vector.load %arg4[%c0_6, %c0_7] : memref<512x128xf32, #tpu.memory_space<vmem>>, vector<512x128xf32>
    tpu.vector_store %arg4[%c0_6, %c0_7], %12 {strides = array<i32>} : memref<512x128xf32, #tpu.memory_space<vmem>>, vector<512x128xf32>,
    return
  }
  func.func @transform_0(%arg0: i32) -> (i32, i32) {
    %c0_i32 = arith.constant 0 : i32
    %c0_i32_0 = arith.constant 0 : i32
    return %arg0, %c0_i32 : i32, i32
  }
  func.func @transform_1(%arg0: i32) -> (i32, i32) {
    %c0_i32 = arith.constant 0 : i32
    %c0_i32_0 = arith.constant 0 : i32
    %c0_i32_1 = arith.constant 0 : i32
    return %c0_i32, %c0_i32_0 : i32, i32
  }
  func.func @transform_2(%arg0: i32) -> (i32, i32) {
    %c0_i32 = arith.constant 0 : i32
    %c0_i32_0 = arith.constant 0 : i32
    %c0_i32_1 = arith.constant 0 : i32
    return %c0_i32, %c0_i32_0 : i32, i32
  }
  func.func @transform_3(%arg0: i32) -> (i32, i32) {
    %c0_i32 = arith.constant 0 : i32
    %c0_i32_0 = arith.constant 0 : i32
    return %arg0, %c0_i32 : i32, i32
  }
}

module attributes {stable_mosaic.version = 11 : i64} {
  func.func @_conv1x1_kernel(%arg0: i32, %arg1: memref<512x128xbf16, #tpu.memory_space<vmem>>, %arg2: memref<1x128xf32, #tpu.memory_space<vmem>>, %arg3: memref<1x128xf32, #tpu.memory_space<vmem>>, %arg4: memref<128x128xbf16, #tpu.memory_space<vmem>>, %arg5: memref<512x128xbf16, #tpu.memory_space<vmem>>, %arg6: memref<1x1x128xf32, #tpu.memory_space<vmem>>, %arg7: memref<1x1x128xf32, #tpu.memory_space<vmem>>) attributes {dimension_semantics = [#tpu.dimension_semantics<parallel>], iteration_bounds = array<i64: 1>, scalar_prefetch = 0 : i64, scratch_operands = 0 : i64, tpu.core_type = #tpu.core_type<tc>, window_params = [{transform_indices = @transform_0, window_bounds = array<i64: 512, 128>}, {pipeline_mode = #tpu.pipeline_mode<synchronous>, transform_indices = @transform_1, window_bounds = array<i64: 1, 128>}, {pipeline_mode = #tpu.pipeline_mode<synchronous>, transform_indices = @transform_2, window_bounds = array<i64: 1, 128>}, {pipeline_mode = #tpu.pipeline_mode<synchronous>, transform_indices = @transform_3, window_bounds = array<i64: 128, 128>}, {transform_indices = @transform_4, window_bounds = array<i64: 512, 128>}, {transform_indices = @transform_5, window_bounds = array<i64: 1, 1, 128>}, {transform_indices = @transform_6, window_bounds = array<i64: 1, 1, 128>}]} {
    %c0 = arith.constant 0 : index
    %c0_0 = arith.constant 0 : index
    %0 = vector.load %arg1[%c0, %c0_0] : memref<512x128xbf16, #tpu.memory_space<vmem>>, vector<512x128xbf16>
    %1 = arith.extf %0 : vector<512x128xbf16> to vector<512x128xf32>
    %c0_1 = arith.constant 0 : index
    %c0_2 = arith.constant 0 : index
    %2 = vector.load %arg2[%c0_1, %c0_2] : memref<1x128xf32, #tpu.memory_space<vmem>>, vector<1x128xf32>
    %3 = vector.broadcast %2 : vector<1x128xf32> to vector<512x128xf32>
    %4 = arith.mulf %1, %3 : vector<512x128xf32>
    %c0_3 = arith.constant 0 : index
    %c0_4 = arith.constant 0 : index
    %5 = vector.load %arg3[%c0_3, %c0_4] : memref<1x128xf32, #tpu.memory_space<vmem>>, vector<1x128xf32>
    %6 = vector.broadcast %5 : vector<1x128xf32> to vector<512x128xf32>
    %7 = arith.addf %4, %6 : vector<512x128xf32>
    %cst = arith.constant 0.000000e+00 : f32
    %8 = vector.broadcast %cst : f32 to vector<512x128xf32>
    %9 = arith.cmpf ogt, %7, %8 : vector<512x128xf32>
    %cst_5 = arith.constant 1.000000e-01 : f32
    %10 = vector.broadcast %cst_5 : f32 to vector<512x128xf32>
    %11 = arith.mulf %10, %7 : vector<512x128xf32>
    %12 = arith.select %9, %7, %11 : vector<512x128xi1>, vector<512x128xf32>
    %13 = arith.truncf %12 : vector<512x128xf32> to vector<512x128xbf16>
    %c0_6 = arith.constant 0 : index
    %c0_7 = arith.constant 0 : index
    %14 = vector.load %arg4[%c0_6, %c0_7] : memref<128x128xbf16, #tpu.memory_space<vmem>>, vector<128x128xbf16>
    %cst_8 = arith.constant dense<0.000000e+00> : vector<512x128xf32>
    %15 = tpu.matmul %13, %14, %cst_8 {dimension_numbers = #tpu.dot_dimension_numbers<[1], [0], [0], [1], [0, 0, 1, 1], [], []>} : vector<512x128xbf16>, vector<128x128xbf16>, vector<512x128xf32> -> vector<512x128xf32>
    %16 = arith.truncf %15 : vector<512x128xf32> to vector<512x128xbf16>
    %c0_9 = arith.constant 0 : index
    %c0_10 = arith.constant 0 : index
    %17 = vector.load %arg5[%c0_9, %c0_10] : memref<512x128xbf16, #tpu.memory_space<vmem>>, vector<512x128xbf16>
    tpu.vector_store %arg5[%c0_9, %c0_10], %16 {strides = array<i32>} : memref<512x128xbf16, #tpu.memory_space<vmem>>, vector<512x128xbf16>,
    %cst_11 = arith.constant dense<0.000000e+00> : vector<128xf32>
    %18 = vector.multi_reduction <add>, %15, %cst_11 [0] : vector<512x128xf32> to vector<128xf32>
    %19 = vector.shape_cast %18 : vector<128xf32> to vector<1x128xf32>
    %c0_12 = arith.constant 0 : index
    %c0_13 = arith.constant 0 : index
    %c0_14 = arith.constant 0 : index
    %20 = vector.load %arg6[%c0_12, %c0_13, %c0_14] : memref<1x1x128xf32, #tpu.memory_space<vmem>>, vector<1x1x128xf32>
    %21 = vector.shape_cast %20 : vector<1x1x128xf32> to vector<1x128xf32>
    %22 = vector.shape_cast %19 : vector<1x128xf32> to vector<1x1x128xf32>
    tpu.vector_store %arg6[%c0_12, %c0_13, %c0_14], %22 {strides = array<i32>} : memref<1x1x128xf32, #tpu.memory_space<vmem>>, vector<1x1x128xf32>,
    %23 = arith.mulf %15, %15 : vector<512x128xf32>
    %cst_15 = arith.constant dense<0.000000e+00> : vector<128xf32>
    %24 = vector.multi_reduction <add>, %23, %cst_15 [0] : vector<512x128xf32> to vector<128xf32>
    %25 = vector.shape_cast %24 : vector<128xf32> to vector<1x128xf32>
    %c0_16 = arith.constant 0 : index
    %c0_17 = arith.constant 0 : index
    %c0_18 = arith.constant 0 : index
    %26 = vector.load %arg7[%c0_16, %c0_17, %c0_18] : memref<1x1x128xf32, #tpu.memory_space<vmem>>, vector<1x1x128xf32>
    %27 = vector.shape_cast %26 : vector<1x1x128xf32> to vector<1x128xf32>
    %28 = vector.shape_cast %25 : vector<1x128xf32> to vector<1x1x128xf32>
    tpu.vector_store %arg7[%c0_16, %c0_17, %c0_18], %28 {strides = array<i32>} : memref<1x1x128xf32, #tpu.memory_space<vmem>>, vector<1x1x128xf32>,
    return
  }
  func.func @transform_0(%arg0: i32) -> (i32, i32) {
    %c0_i32 = arith.constant 0 : i32
    %c0_i32_0 = arith.constant 0 : i32
    return %arg0, %c0_i32 : i32, i32
  }
  func.func @transform_1(%arg0: i32) -> (i32, i32) {
    %c0_i32 = arith.constant 0 : i32
    %c0_i32_0 = arith.constant 0 : i32
    %c0_i32_1 = arith.constant 0 : i32
    return %c0_i32, %c0_i32_0 : i32, i32
  }
  func.func @transform_2(%arg0: i32) -> (i32, i32) {
    %c0_i32 = arith.constant 0 : i32
    %c0_i32_0 = arith.constant 0 : i32
    %c0_i32_1 = arith.constant 0 : i32
    return %c0_i32, %c0_i32_0 : i32, i32
  }
  func.func @transform_3(%arg0: i32) -> (i32, i32) {
    %c0_i32 = arith.constant 0 : i32
    %c0_i32_0 = arith.constant 0 : i32
    %c0_i32_1 = arith.constant 0 : i32
    return %c0_i32, %c0_i32_0 : i32, i32
  }
  func.func @transform_4(%arg0: i32) -> (i32, i32) {
    %c0_i32 = arith.constant 0 : i32
    %c0_i32_0 = arith.constant 0 : i32
    return %arg0, %c0_i32 : i32, i32
  }
  func.func @transform_5(%arg0: i32) -> (i32, i32, i32) {
    %c0_i32 = arith.constant 0 : i32
    %c0_i32_0 = arith.constant 0 : i32
    %c0_i32_1 = arith.constant 0 : i32
    return %arg0, %c0_i32, %c0_i32_0 : i32, i32, i32
  }
  func.func @transform_6(%arg0: i32) -> (i32, i32, i32) {
    %c0_i32 = arith.constant 0 : i32
    %c0_i32_0 = arith.constant 0 : i32
    %c0_i32_1 = arith.constant 0 : i32
    return %arg0, %c0_i32, %c0_i32_0 : i32, i32, i32
  }
}

</mosaic_0001>

<llo_original>
// kernel: _lambda_.6
$region0: #{_lambda_.6}
  #allocation0 [shape = 'u32[]', space=smem, size = 0x4, offset = 0x4, fixed_abs, tag = 'smem constant byte address 0x4 - core index']
  #allocation1 [shape = 'u32[144,128]{1,0:T(1,128)}', space=vmem, size = 0x12000, scoped, tag = 'internal scratch']
  %s0 = inlined_call_operand.hbm [shape: f32[512,128], index: 0, kind: input, shape index: {}]
  %s1 = inlined_call_operand.hbm [shape: f32[1,128], index: 1, kind: input, shape index: {}]
  %s2 = inlined_call_operand.hbm [shape: f32[1,128], index: 2, kind: input, shape index: {}]
  %s3 = inlined_call_operand.hbm [shape: bf16[128,128], index: 3, kind: input, shape index: {}]
  %s4 = inlined_call_operand.hbm [shape: bf16[512,128], index: 4, kind: output, shape index: {0}]
  %s5 = inlined_call_operand.hbm [shape: f32[1,1,128], index: 5, kind: output, shape index: {1}]
  %s6 = inlined_call_operand.hbm [shape: f32[1,1,128], index: 6, kind: output, shape index: {2}]
  %7 = xla_tuple %s4, %s5, %s6
  %s8 = sld [smem:[#allocation0]]
  $region58: #{_lambda_.6} parent=0
    _
  %s10 = ssub.s32 1, %s8
  %s11 = scalar_select 0, %s10, %s8
  $region1: #{_lambda_.6} parent=0
    #allocation2 [shape = 'u8[262144]{0}', space=vmem, size = 0x40000, scoped, tag = 'input window, operand 0, single buffered']
    #allocation3 [shape = 's32[1]{0}', space=sflag, size = 0x4, scoped, tag = 'scoped memory for _lambda_.6']
    #allocation4 [shape = 's32[1]{0}', space=sflag, size = 0x4, scoped, tag = 'scoped memory for _lambda_.6']
    #allocation5 [shape = 'u8[512]{0}', space=vmem, size = 0x400, scoped, tag = 'input window, operand 1, single buffered']
    #allocation6 [shape = 's32[1]{0}', space=sflag, size = 0x4, scoped, tag = 'scoped memory for _lambda_.6']
    #allocation7 [shape = 'u8[512]{0}', space=vmem, size = 0x400, scoped, tag = 'input window, operand 2, single buffered']
    #allocation8 [shape = 'u8[32768]{0}', space=vmem, size = 0x8000, scoped, tag = 'input window, operand 3, single buffered']
    #allocation9 [shape = 's32[1]{0}', space=sflag, size = 0x4, scoped, tag = 'scoped memory for _lambda_.6']
    #allocation10 [shape = 'u8[131072]{0}', space=vmem, size = 0x20000, scoped, tag = 'output window, operand 0, single buffered']
    #allocation11 [shape = 'u8[512]{0}', space=vmem, size = 0x400, scoped, tag = 'output window, operand 1, single buffered']
    #allocation12 [shape = 's32[1]{0}', space=sflag, size = 0x4, scoped, tag = 'scoped memory for _lambda_.6']
    #allocation13 [shape = 'u8[512]{0}', space=vmem, size = 0x400, scoped, tag = 'output window, operand 2, single buffered']
    %12 = vsyncpa [#allocation3], 0
    %13 = vsyncpa [#allocation6], 0
    %14 = vsyncpa [#allocation9], 0
    %15 = vsyncpa [#allocation4], 0
    %16 = vsyncpa [#allocation12], 0
    // Predicated region
    $region2: #{_lambda_.6} parent=1 // pred_check
      _
    $region3: #{_lambda_.6} parent=1 // pred_check_branch
      %18 = sbr.rel (0) target = $region5
    $region4: #{_lambda_.6} parent=1 // pred_region
      %s20 = ssub.s32 8192, 8192
      %21 = vsyncadd [#allocation3], %s20
      %s22 = sshll.u32 [#allocation2], 4
      %s23 = int_to_ptr.vmem [resolvable:$true] %s22
      %28 = dma.hbm_to_vmem [thread:$0]  %s0, 8192, %s23, [#allocation3], 128, 128, 8
    $region5: #{_lambda_.6} parent=1 // pred_fallthru
      _
    // Predicated region
    $region6: #{_lambda_.6} parent=1 // pred_check
      _
    $region7: #{_lambda_.6} parent=1 // pred_check_branch
      %30 = sbr.rel (0) target = $region9
    $region8: #{_lambda_.6} parent=1 // pred_region
      %s32 = ssub.s32 16, 16
      %33 = vsyncadd [#allocation6], %s32
      %s35 = sshll.u32 [#allocation5], 4
      %s36 = int_to_ptr.vmem [resolvable:$true] %s35
      %38 = dma.hbm_to_vmem [thread:$0]  %s1, 16, %s36, [#allocation6]
    $region9: #{_lambda_.6} parent=1 // pred_fallthru
      _
    // Predicated region
    $region10: #{_lambda_.6} parent=1 // pred_check
      _
    $region11: #{_lambda_.6} parent=1 // pred_check_branch
      %40 = sbr.rel (0) target = $region13
    $region12: #{_lambda_.6} parent=1 // pred_region
      %s42 = ssub.s32 16, 16
      %43 = vsyncadd [#allocation6], %s42
      %s45 = sshll.u32 [#allocation7], 4
      %s46 = int_to_ptr.vmem [resolvable:$true] %s45
      %48 = dma.hbm_to_vmem [thread:$0]  %s2, 16, %s46, [#allocation6]
    $region13: #{_lambda_.6} parent=1 // pred_fallthru
      _
    // Predicated region
    $region14: #{_lambda_.6} parent=1 // pred_check
      _
    $region15: #{_lambda_.6} parent=1 // pred_check_branch
      %50 = sbr.rel (0) target = $region17
    $region16: #{_lambda_.6} parent=1 // pred_region
      %s52 = ssub.s32 1024, 1024
      %53 = vsyncadd [#allocation9], %s52
      %s54 = sshll.u32 [#allocation8], 4
      %s55 = int_to_ptr.vmem [resolvable:$true] %s54
      %60 = dma.hbm_to_vmem [thread:$0]  %s3, 1024, %s55, [#allocation9], 64, 64, 4
    $region17: #{_lambda_.6} parent=1 // pred_fallthru
      _
    // Predicated region
    $region18: #{_lambda_.6} parent=1 // pred_check
      _
    $region19: #{_lambda_.6} parent=1 // pred_check_branch
      %62 = sbr.rel (0) target = $region21
    $region20: #{_lambda_.6} parent=1 // pred_region
      %63 = dma.done [#allocation3], 8192
    $region21: #{_lambda_.6} parent=1 // pred_fallthru
      _
    // Predicated region
    $region22: #{_lambda_.6} parent=1 // pred_check
      _
    $region23: #{_lambda_.6} parent=1 // pred_check_branch
      %65 = sbr.rel (0) target = $region25
    $region24: #{_lambda_.6} parent=1 // pred_region
      %66 = dma.done [#allocation6], 16
    $region25: #{_lambda_.6} parent=1 // pred_fallthru
      _
    // Predicated region
    $region26: #{_lambda_.6} parent=1 // pred_check
      _
    $region27: #{_lambda_.6} parent=1 // pred_check_branch
      %68 = sbr.rel (0) target = $region29
    $region28: #{_lambda_.6} parent=1 // pred_region
      %69 = dma.done [#allocation6], 16
    $region29: #{_lambda_.6} parent=1 // pred_fallthru
      _
    // Predicated region
    $region30: #{_lambda_.6} parent=1 // pred_check
      _
    $region31: #{_lambda_.6} parent=1 // pred_check_branch
      %71 = sbr.rel (0) target = $region33
    $region32: #{_lambda_.6} parent=1 // pred_region
      %72 = dma.done [#allocation9], 1024
    $region33: #{_lambda_.6} parent=1 // pred_fallthru
      _
    %v74 = vld [vmem:[#allocation2] sm:$0xff]
    %v75 = vld [vmem:[#allocation2 + $0x8] sm:$0xff]
    %v76 = vld [vmem:[#allocation2 + $0x10] sm:$0xff]
    %v77 = vld [vmem:[#allocation2 + $0x18] sm:$0xff]
    %v78 = vld [vmem:[#allocation2 + $0x20] sm:$0xff]
    %v79 = vld [vmem:[#allocation2 + $0x28] sm:$0xff]
    %v80 = vld [vmem:[#allocation2 + $0x30] sm:$0xff]
    %v81 = vld [vmem:[#allocation2 + $0x38] sm:$0xff]
    %v82 = vld [vmem:[#allocation2 + $0x40] sm:$0xff]
    %v83 = vld [vmem:[#allocation2 + $0x48] sm:$0xff]
    %v84 = vld [vmem:[#allocation2 + $0x50] sm:$0xff]
    %v85 = vld [vmem:[#allocation2 + $0x58] sm:$0xff]
    %v86 = vld [vmem:[#allocation2 + $0x60] sm:$0xff]
    %v87 = vld [vmem:[#allocation2 + $0x68] sm:$0xff]
    %v88 = vld [vmem:[#allocation2 + $0x70] sm:$0xff]
    %v89 = vld [vmem:[#allocation2 + $0x78] sm:$0xff]
    %v90 = vld [vmem:[#allocation2 + $0x80] sm:$0xff]
    %v91 = vld [vmem:[#allocation2 + $0x88] sm:$0xff]
    %v92 = vld [vmem:[#allocation2 + $0x90] sm:$0xff]
    %v93 = vld [vmem:[#allocation2 + $0x98] sm:$0xff]
    %v94 = vld [vmem:[#allocation2 + $0xa0] sm:$0xff]
    %v95 = vld [vmem:[#allocation2 + $0xa8] sm:$0xff]
    %v96 = vld [vmem:[#allocation2 + $0xb0] sm:$0xff]
    %v97 = vld [vmem:[#allocation2 + $0xb8] sm:$0xff]
    %v98 = vld [vmem:[#allocation2 + $0xc0] sm:$0xff]
    %v99 = vld [vmem:[#allocation2 + $0xc8] sm:$0xff]
    %v100 = vld [vmem:[#allocation2 + $0xd0] sm:$0xff]
    %v101 = vld [vmem:[#allocation2 + $0xd8] sm:$0xff]
    %v102 = vld [vmem:[#allocation2 + $0xe0] sm:$0xff]
    %v103 = vld [vmem:[#allocation2 + $0xe8] sm:$0xff]
    %v104 = vld [vmem:[#allocation2 + $0xf0] sm:$0xff]
    %v105 = vld [vmem:[#allocation2 + $0xf8] sm:$0xff]
    %v106 = vld [vmem:[#allocation2 + $0x100] sm:$0xff]
    %v107 = vld [vmem:[#allocation2 + $0x108] sm:$0xff]
    %v108 = vld [vmem:[#allocation2 + $0x110] sm:$0xff]
    %v109 = vld [vmem:[#allocation2 + $0x118] sm:$0xff]
    %v110 = vld [vmem:[#allocation2 + $0x120] sm:$0xff]
    %v111 = vld [vmem:[#allocation2 + $0x128] sm:$0xff]
    %v112 = vld [vmem:[#allocation2 + $0x130] sm:$0xff]
    %v113 = vld [vmem:[#allocation2 + $0x138] sm:$0xff]
    %v114 = vld [vmem:[#allocation2 + $0x140] sm:$0xff]
    %v115 = vld [vmem:[#allocation2 + $0x148] sm:$0xff]
    %v116 = vld [vmem:[#allocation2 + $0x150] sm:$0xff]
    %v117 = vld [vmem:[#allocation2 + $0x158] sm:$0xff]
    %v118 = vld [vmem:[#allocation2 + $0x160] sm:$0xff]
    %v119 = vld [vmem:[#allocation2 + $0x168] sm:$0xff]
    %v120 = vld [vmem:[#allocation2 + $0x170] sm:$0xff]
    %v121 = vld [vmem:[#allocation2 + $0x178] sm:$0xff]
    %v122 = vld [vmem:[#allocation2 + $0x180] sm:$0xff]
    %v123 = vld [vmem:[#allocation2 + $0x188] sm:$0xff]
    %v124 = vld [vmem:[#allocation2 + $0x190] sm:$0xff]
    %v125 = vld [vmem:[#allocation2 + $0x198] sm:$0xff]
    %v126 = vld [vmem:[#allocation2 + $0x1a0] sm:$0xff]
    %v127 = vld [vmem:[#allocation2 + $0x1a8] sm:$0xff]
    %v128 = vld [vmem:[#allocation2 + $0x1b0] sm:$0xff]
    %v129 = vld [vmem:[#allocation2 + $0x1b8] sm:$0xff]
    %v130 = vld [vmem:[#allocation2 + $0x1c0] sm:$0xff]
    %v131 = vld [vmem:[#allocation2 + $0x1c8] sm:$0xff]
    %v132 = vld [vmem:[#allocation2 + $0x1d0] sm:$0xff]
    %v133 = vld [vmem:[#allocation2 + $0x1d8] sm:$0xff]
    %v134 = vld [vmem:[#allocation2 + $0x1e0] sm:$0xff]
    %v135 = vld [vmem:[#allocation2 + $0x1e8] sm:$0xff]
    %v136 = vld [vmem:[#allocation2 + $0x1f0] sm:$0xff]
    %v137 = vld [vmem:[#allocation2 + $0x1f8] sm:$0xff]
    %v138 = vpack.c.bf16 %v75, %v74
    %v139 = vpack.c.bf16 %v77, %v76
    %v140 = vpack.c.bf16 %v79, %v78
    %v141 = vpack.c.bf16 %v81, %v80
    %v142 = vpack.c.bf16 %v83, %v82
    %v143 = vpack.c.bf16 %v85, %v84
    %v144 = vpack.c.bf16 %v87, %v86
    %v145 = vpack.c.bf16 %v89, %v88
    %v146 = vpack.c.bf16 %v91, %v90
    %v147 = vpack.c.bf16 %v93, %v92
    %v148 = vpack.c.bf16 %v95, %v94
    %v149 = vpack.c.bf16 %v97, %v96
    %v150 = vpack.c.bf16 %v99, %v98
    %v151 = vpack.c.bf16 %v101, %v100
    %v152 = vpack.c.bf16 %v103, %v102
    %v153 = vpack.c.bf16 %v105, %v104
    %v154 = vpack.c.bf16 %v107, %v106
    %v155 = vpack.c.bf16 %v109, %v108
    %v156 = vpack.c.bf16 %v111, %v110
    %v157 = vpack.c.bf16 %v113, %v112
    %v158 = vpack.c.bf16 %v115, %v114
    %v159 = vpack.c.bf16 %v117, %v116
    %v160 = vpack.c.bf16 %v119, %v118
    %v161 = vpack.c.bf16 %v121, %v120
    %v162 = vpack.c.bf16 %v123, %v122
    %v163 = vpack.c.bf16 %v125, %v124
    %v164 = vpack.c.bf16 %v127, %v126
    %v165 = vpack.c.bf16 %v129, %v128
    %v166 = vpack.c.bf16 %v131, %v130
    %v167 = vpack.c.bf16 %v133, %v132
    %v168 = vpack.c.bf16 %v135, %v134
    %v169 = vpack.c.bf16 %v137, %v136
    %v170 = vld [vmem:[#allocation8] sm:$0xf]
    %v171 = vld [vmem:[#allocation8 + $0x4] sm:$0xf]
    %v172 = vld [vmem:[#allocation8 + $0x8] sm:$0xf]
    %v173 = vld [vmem:[#allocation8 + $0xc] sm:$0xf]
    %v174 = vld [vmem:[#allocation8 + $0x10] sm:$0xf]
    %v175 = vld [vmem:[#allocation8 + $0x14] sm:$0xf]
    %v176 = vld [vmem:[#allocation8 + $0x18] sm:$0xf]
    %v177 = vld [vmem:[#allocation8 + $0x1c] sm:$0xf]
    %v178 = vld [vmem:[#allocation8 + $0x20] sm:$0xf]
    %v179 = vld [vmem:[#allocation8 + $0x24] sm:$0xf]
    %v180 = vld [vmem:[#allocation8 + $0x28] sm:$0xf]
    %v181 = vld [vmem:[#allocation8 + $0x2c] sm:$0xf]
    %v182 = vld [vmem:[#allocation8 + $0x30] sm:$0xf]
    %v183 = vld [vmem:[#allocation8 + $0x34] sm:$0xf]
    %v184 = vld [vmem:[#allocation8 + $0x38] sm:$0xf]
    %v185 = vld [vmem:[#allocation8 + $0x3c] sm:$0xf]
    %v202 = vunpack.c.l.b16 %v170
    %v203 = vunpack.c.l.b16 %v171
    %v204 = vunpack.c.l.b16 %v172
    %v205 = vunpack.c.l.b16 %v173
    %v206 = vunpack.c.l.b16 %v174
    %v207 = vunpack.c.l.b16 %v175
    %v208 = vunpack.c.l.b16 %v176
    %v209 = vunpack.c.l.b16 %v177
    %v210 = vunpack.c.l.b16 %v178
    %v211 = vunpack.c.l.b16 %v179
    %v212 = vunpack.c.l.b16 %v180
    %v213 = vunpack.c.l.b16 %v181
    %v214 = vunpack.c.l.b16 %v182
    %v215 = vunpack.c.l.b16 %v183
    %v216 = vunpack.c.l.b16 %v184
    %v217 = vunpack.c.l.b16 %v185
    %v218 = vpack.c.b16 %v203, %v202
    %v219 = vpack.c.b16 %v205, %v204
    %v220 = vpack.c.b16 %v207, %v206
    %v221 = vpack.c.b16 %v209, %v208
    %v222 = vpack.c.b16 %v211, %v210
    %v223 = vpack.c.b16 %v213, %v212
    %v224 = vpack.c.b16 %v215, %v214
    %v225 = vpack.c.b16 %v217, %v216
    %234 = vmatprep.subr.bf16.mxu0 0
    %235 = vmatpush1.bf16.msra.mxu0 %v218
    %236 = vmatprep.subr.bf16.mxu0 0
    %237 = vmatpush1.bf16.msra.mxu0 %v219
    %238 = vmatprep.subr.bf16.mxu0 0
    %239 = vmatpush1.bf16.msra.mxu0 %v220
    %240 = vmatprep.subr.bf16.mxu0 0
    %241 = vmatpush1.bf16.msra.mxu0 %v221
    %242 = vmatprep.subr.bf16.mxu0 0
    %243 = vmatpush1.bf16.msra.mxu0 %v222
    %244 = vmatprep.subr.bf16.mxu0 0
    %245 = vmatpush1.bf16.msra.mxu0 %v223
    %246 = vmatprep.subr.bf16.mxu0 0
    %247 = vmatpush1.bf16.msra.mxu0 %v224
    %248 = vmatprep.subr.bf16.mxu0 0
    %249 = vmatpush1.bf16.msra.mxu0 %v225
    %250 = vmatprep.subr.bf16.mxu0 0
    %251 = vmatpush1.bf16.msra.mxu0 0
    %252 = vmatprep.subr.bf16.mxu0 0
    %253 = vmatpush1.bf16.msra.mxu0 0
    %254 = vmatprep.subr.bf16.mxu0 0
    %255 = vmatpush1.bf16.msra.mxu0 0
    %256 = vmatprep.subr.bf16.mxu0 0
    %257 = vmatpush1.bf16.msra.mxu0 0
    %258 = vmatprep.subr.bf16.mxu0 0
    %259 = vmatpush1.bf16.msra.mxu0 0
    %260 = vmatprep.subr.bf16.mxu0 0
    %261 = vmatpush1.bf16.msra.mxu0 0
    %262 = vmatprep.subr.bf16.mxu0 0
    %263 = vmatpush1.bf16.msra.mxu0 0
    %264 = vmatprep.subr.bf16.mxu0 0
    %265 = vmatpush1.bf16.msra.mxu0 0
    %266 = vmatprep.mubr.bf16.mxu0 0
    %267 = vmatmul.mubr.bf16.gmra.mrb[0].mxu0 %v138
    %v268 = vpop.f32.mrb[0].mxu0
    %v269 = vadd.f32 0.0, %v268
    %v270 = vpop.f32.mrb[0].mxu0
    %v271 = vpop.f32.mrb[0].mxu0
    %v272 = vadd.f32 0.0, %v271
    %v273 = vpop.f32.mrb[0].mxu0
    %274 = vmatprep.mubr.bf16.mxu0 0
    %275 = vmatmul.mubr.bf16.gmra.mrb[0].mxu0 %v139
    %v276 = vpop.f32.mrb[0].mxu0
    %v277 = vadd.f32 0.0, %v276
    %v278 = vpop.f32.mrb[0].mxu0
    %v279 = vpop.f32.mrb[0].mxu0
    %v280 = vadd.f32 0.0, %v279
    %v281 = vpop.f32.mrb[0].mxu0
    %282 = vmatprep.mubr.bf16.mxu0 0
    %283 = vmatmul.mubr.bf16.gmra.mrb[0].mxu0 %v140
    %v284 = vpop.f32.mrb[0].mxu0
    %v285 = vadd.f32 0.0, %v284
    %v286 = vpop.f32.mrb[0].mxu0
    %v287 = vpop.f32.mrb[0].mxu0
    %v288 = vadd.f32 0.0, %v287
    %v289 = vpop.f32.mrb[0].mxu0
    %290 = vmatprep.mubr.bf16.mxu0 0
    %291 = vmatmul.mubr.bf16.gmra.mrb[0].mxu0 %v141
    %v292 = vpop.f32.mrb[0].mxu0
    %v293 = vadd.f32 0.0, %v292
    %v294 = vpop.f32.mrb[0].mxu0
    %v295 = vpop.f32.mrb[0].mxu0
    %v296 = vadd.f32 0.0, %v295
    %v297 = vpop.f32.mrb[0].mxu0
    %298 = vmatprep.mubr.bf16.mxu0 0
    %299 = vmatmul.mubr.bf16.gmra.mrb[0].mxu0 %v142
    %v300 = vpop.f32.mrb[0].mxu0
    %v301 = vadd.f32 0.0, %v300
    %v302 = vpop.f32.mrb[0].mxu0
    %v303 = vpop.f32.mrb[0].mxu0
    %v304 = vadd.f32 0.0, %v303
    %v305 = vpop.f32.mrb[0].mxu0
    %306 = vmatprep.mubr.bf16.mxu0 0
    %307 = vmatmul.mubr.bf16.gmra.mrb[0].mxu0 %v143
    %v308 = vpop.f32.mrb[0].mxu0
    %v309 = vadd.f32 0.0, %v308
    %v310 = vpop.f32.mrb[0].mxu0
    %v311 = vpop.f32.mrb[0].mxu0
    %v312 = vadd.f32 0.0, %v311
    %v313 = vpop.f32.mrb[0].mxu0
    %314 = vmatprep.mubr.bf16.mxu0 0
    %315 = vmatmul.mubr.bf16.gmra.mrb[0].mxu0 %v144
    %v316 = vpop.f32.mrb[0].mxu0
    %v317 = vadd.f32 0.0, %v316
    %v318 = vpop.f32.mrb[0].mxu0
    %v319 = vpop.f32.mrb[0].mxu0
    %v320 = vadd.f32 0.0, %v319
    %v321 = vpop.f32.mrb[0].mxu0
    %322 = vmatprep.mubr.bf16.mxu0 0
    %323 = vmatmul.mubr.bf16.gmra.mrb[0].mxu0 %v145
    %v324 = vpop.f32.mrb[0].mxu0
    %v325 = vadd.f32 0.0, %v324
    %v326 = vpop.f32.mrb[0].mxu0
    %v327 = vpop.f32.mrb[0].mxu0
    %v328 = vadd.f32 0.0, %v327
    %v329 = vpop.f32.mrb[0].mxu0
    %330 = vmatprep.mubr.bf16.mxu0 0
    %331 = vmatmul.mubr.bf16.gmra.mrb[0].mxu0 %v146
    %v332 = vpop.f32.mrb[0].mxu0
    %v333 = vadd.f32 0.0, %v332
    %v334 = vpop.f32.mrb[0].mxu0
    %v335 = vpop.f32.mrb[0].mxu0
    %v336 = vadd.f32 0.0, %v335
    %v337 = vpop.f32.mrb[0].mxu0
    %338 = vmatprep.mubr.bf16.mxu0 0
    %339 = vmatmul.mubr.bf16.gmra.mrb[0].mxu0 %v147
    %v340 = vpop.f32.mrb[0].mxu0
    %v341 = vadd.f32 0.0, %v340
    %v342 = vpop.f32.mrb[0].mxu0
    %v343 = vpop.f32.mrb[0].mxu0
    %v344 = vadd.f32 0.0, %v343
    %v345 = vpop.f32.mrb[0].mxu0
    %346 = vmatprep.mubr.bf16.mxu0 0
    %347 = vmatmul.mubr.bf16.gmra.mrb[0].mxu0 %v148
    %v348 = vpop.f32.mrb[0].mxu0
    %v349 = vadd.f32 0.0, %v348
    %v350 = vpop.f32.mrb[0].mxu0
    %v351 = vpop.f32.mrb[0].mxu0
    %v352 = vadd.f32 0.0, %v351
    %v353 = vpop.f32.mrb[0].mxu0
    %354 = vmatprep.mubr.bf16.mxu0 0
    %355 = vmatmul.mubr.bf16.gmra.mrb[0].mxu0 %v149
    %v356 = vpop.f32.mrb[0].mxu0
    %v357 = vadd.f32 0.0, %v356
    %v358 = vpop.f32.mrb[0].mxu0
    %v359 = vpop.f32.mrb[0].mxu0
    %v360 = vadd.f32 0.0, %v359
    %v361 = vpop.f32.mrb[0].mxu0
    %362 = vmatprep.mubr.bf16.mxu0 0
    %363 = vmatmul.mubr.bf16.gmra.mrb[0].mxu0 %v150
    %v364 = vpop.f32.mrb[0].mxu0
    %v365 = vadd.f32 0.0, %v364
    %v366 = vpop.f32.mrb[0].mxu0
    %v367 = vpop.f32.mrb[0].mxu0
    %v368 = vadd.f32 0.0, %v367
    %v369 = vpop.f32.mrb[0].mxu0
    %370 = vmatprep.mubr.bf16.mxu0 0
    %371 = vmatmul.mubr.bf16.gmra.mrb[0].mxu0 %v151
    %v372 = vpop.f32.mrb[0].mxu0
    %v373 = vadd.f32 0.0, %v372
    %v374 = vpop.f32.mrb[0].mxu0
    %v375 = vpop.f32.mrb[0].mxu0
    %v376 = vadd.f32 0.0, %v375
    %v377 = vpop.f32.mrb[0].mxu0
    %378 = vmatprep.mubr.bf16.mxu0 0
    %379 = vmatmul.mubr.bf16.gmra.mrb[0].mxu0 %v152
    %v380 = vpop.f32.mrb[0].mxu0
    %v381 = vadd.f32 0.0, %v380
    %v382 = vpop.f32.mrb[0].mxu0
    %v383 = vpop.f32.mrb[0].mxu0
    %v384 = vadd.f32 0.0, %v383
    %v385 = vpop.f32.mrb[0].mxu0
    %386 = vmatprep.mubr.bf16.mxu0 0
    %387 = vmatmul.mubr.bf16.gmra.mrb[0].mxu0 %v153
    %v388 = vpop.f32.mrb[0].mxu0
    %v389 = vadd.f32 0.0, %v388
    %v390 = vpop.f32.mrb[0].mxu0
    %v391 = vpop.f32.mrb[0].mxu0
    %v392 = vadd.f32 0.0, %v391
    %v393 = vpop.f32.mrb[0].mxu0
    %394 = vmatprep.mubr.bf16.mxu0 0
    %395 = vmatmul.mubr.bf16.gmra.mrb[0].mxu0 %v154
    %v396 = vpop.f32.mrb[0].mxu0
    %v397 = vadd.f32 0.0, %v396
    %v398 = vpop.f32.mrb[0].mxu0
    %v399 = vpop.f32.mrb[0].mxu0
    %v400 = vadd.f32 0.0, %v399
    %v401 = vpop.f32.mrb[0].mxu0
    %402 = vmatprep.mubr.bf16.mxu0 0
    %403 = vmatmul.mubr.bf16.gmra.mrb[0].mxu0 %v155
    %v404 = vpop.f32.mrb[0].mxu0
    %v405 = vadd.f32 0.0, %v404
    %v406 = vpop.f32.mrb[0].mxu0
    %v407 = vpop.f32.mrb[0].mxu0
    %v408 = vadd.f32 0.0, %v407
    %v409 = vpop.f32.mrb[0].mxu0
    %410 = vmatprep.mubr.bf16.mxu0 0
    %411 = vmatmul.mubr.bf16.gmra.mrb[0].mxu0 %v156
    %v412 = vpop.f32.mrb[0].mxu0
    %v413 = vadd.f32 0.0, %v412
    %v414 = vpop.f32.mrb[0].mxu0
    %v415 = vpop.f32.mrb[0].mxu0
    %v416 = vadd.f32 0.0, %v415
    %v417 = vpop.f32.mrb[0].mxu0
    %418 = vmatprep.mubr.bf16.mxu0 0
    %419 = vmatmul.mubr.bf16.gmra.mrb[0].mxu0 %v157
    %v420 = vpop.f32.mrb[0].mxu0
    %v421 = vadd.f32 0.0, %v420
    %v422 = vpop.f32.mrb[0].mxu0
    %v423 = vpop.f32.mrb[0].mxu0
    %v424 = vadd.f32 0.0, %v423
    %v425 = vpop.f32.mrb[0].mxu0
    %426 = vmatprep.mubr.bf16.mxu0 0
    %427 = vmatmul.mubr.bf16.gmra.mrb[0].mxu0 %v158
    %v428 = vpop.f32.mrb[0].mxu0
    %v429 = vadd.f32 0.0, %v428
    %v430 = vpop.f32.mrb[0].mxu0
    %v431 = vpop.f32.mrb[0].mxu0
    %v432 = vadd.f32 0.0, %v431
    %v433 = vpop.f32.mrb[0].mxu0
    %434 = vmatprep.mubr.bf16.mxu0 0
    %435 = vmatmul.mubr.bf16.gmra.mrb[0].mxu0 %v159
    %v436 = vpop.f32.mrb[0].mxu0
    %v437 = vadd.f32 0.0, %v436
    %v438 = vpop.f32.mrb[0].mxu0
    %v439 = vpop.f32.mrb[0].mxu0
    %v440 = vadd.f32 0.0, %v439
    %v441 = vpop.f32.mrb[0].mxu0
    %442 = vmatprep.mubr.bf16.mxu0 0
    %443 = vmatmul.mubr.bf16.gmra.mrb[0].mxu0 %v160
    %v444 = vpop.f32.mrb[0].mxu0
    %v445 = vadd.f32 0.0, %v444
    %v446 = vpop.f32.mrb[0].mxu0
    %v447 = vpop.f32.mrb[0].mxu0
    %v448 = vadd.f32 0.0, %v447
    %v449 = vpop.f32.mrb[0].mxu0
    %450 = vmatprep.mubr.bf16.mxu0 0
    %451 = vmatmul.mubr.bf16.gmra.mrb[0].mxu0 %v161
    %v452 = vpop.f32.mrb[0].mxu0
    %v453 = vadd.f32 0.0, %v452
    %v454 = vpop.f32.mrb[0].mxu0
    %v455 = vpop.f32.mrb[0].mxu0
    %v456 = vadd.f32 0.0, %v455
    %v457 = vpop.f32.mrb[0].mxu0
    %458 = vmatprep.mubr.bf16.mxu0 0
    %459 = vmatmul.mubr.bf16.gmra.mrb[0].mxu0 %v162
    %v460 = vpop.f32.mrb[0].mxu0
    %v461 = vadd.f32 0.0, %v460
    %v462 = vpop.f32.mrb[0].mxu0
    %v463 = vpop.f32.mrb[0].mxu0
    %v464 = vadd.f32 0.0, %v463
    %v465 = vpop.f32.mrb[0].mxu0
    %466 = vmatprep.mubr.bf16.mxu0 0
    %467 = vmatmul.mubr.bf16.gmra.mrb[0].mxu0 %v163
    %v468 = vpop.f32.mrb[0].mxu0
    %v469 = vadd.f32 0.0, %v468
    %v470 = vpop.f32.mrb[0].mxu0
    %v471 = vpop.f32.mrb[0].mxu0
    %v472 = vadd.f32 0.0, %v471
    %v473 = vpop.f32.mrb[0].mxu0
    %474 = vmatprep.mubr.bf16.mxu0 0
    %475 = vmatmul.mubr.bf16.gmra.mrb[0].mxu0 %v164
    %v476 = vpop.f32.mrb[0].mxu0
    %v477 = vadd.f32 0.0, %v476
    %v478 = vpop.f32.mrb[0].mxu0
    %v479 = vpop.f32.mrb[0].mxu0
    %v480 = vadd.f32 0.0, %v479
    %v481 = vpop.f32.mrb[0].mxu0
    %482 = vmatprep.mubr.bf16.mxu0 0
    %483 = vmatmul.mubr.bf16.gmra.mrb[0].mxu0 %v165
    %v484 = vpop.f32.mrb[0].mxu0
    %v485 = vadd.f32 0.0, %v484
    %v486 = vpop.f32.mrb[0].mxu0
    %v487 = vpop.f32.mrb[0].mxu0
    %v488 = vadd.f32 0.0, %v487
    %v489 = vpop.f32.mrb[0].mxu0
    %490 = vmatprep.mubr.bf16.mxu0 0
    %491 = vmatmul.mubr.bf16.gmra.mrb[0].mxu0 %v166
    %v492 = vpop.f32.mrb[0].mxu0
    %v493 = vadd.f32 0.0, %v492
    %v494 = vpop.f32.mrb[0].mxu0
    %v495 = vpop.f32.mrb[0].mxu0
    %v496 = vadd.f32 0.0, %v495
    %v497 = vpop.f32.mrb[0].mxu0
    %498 = vmatprep.mubr.bf16.mxu0 0
    %499 = vmatmul.mubr.bf16.gmra.mrb[0].mxu0 %v167
    %v500 = vpop.f32.mrb[0].mxu0
    %v501 = vadd.f32 0.0, %v500
    %v502 = vpop.f32.mrb[0].mxu0
    %v503 = vpop.f32.mrb[0].mxu0
    %v504 = vadd.f32 0.0, %v503
    %v505 = vpop.f32.mrb[0].mxu0
    %506 = vmatprep.mubr.bf16.mxu0 0
    %507 = vmatmul.mubr.bf16.gmra.mrb[0].mxu0 %v168
    %v508 = vpop.f32.mrb[0].mxu0
    %v509 = vadd.f32 0.0, %v508
    %v510 = vpop.f32.mrb[0].mxu0
    %v511 = vpop.f32.mrb[0].mxu0
    %v512 = vadd.f32 0.0, %v511
    %v513 = vpop.f32.mrb[0].mxu0
    %514 = vmatprep.mubr.bf16.mxu0 0
    %515 = vmatmul.mubr.bf16.gmra.mrb[0].mxu0 %v169
    %v516 = vpop.f32.mrb[0].mxu0
    %v517 = vadd.f32 0.0, %v516
    %v518 = vpop.f32.mrb[0].mxu0
    %v519 = vpop.f32.mrb[0].mxu0
    %v520 = vadd.f32 0.0, %v519
    %v521 = vpop.f32.mrb[0].mxu0
    %522 = vdwg.mxu0
    %v523 = vpack.c.bf16 %v272, %v269
    %v524 = vpack.c.bf16 %v280, %v277
    %v525 = vpack.c.bf16 %v288, %v285
    %v526 = vpack.c.bf16 %v296, %v293
    %v527 = vpack.c.bf16 %v304, %v301
    %v528 = vpack.c.bf16 %v312, %v309
    %v529 = vpack.c.bf16 %v320, %v317
    %v530 = vpack.c.bf16 %v328, %v325
    %v531 = vpack.c.bf16 %v336, %v333
    %v532 = vpack.c.bf16 %v344, %v341
    %v533 = vpack.c.bf16 %v352, %v349
    %v534 = vpack.c.bf16 %v360, %v357
    %v535 = vpack.c.bf16 %v368, %v365
    %v536 = vpack.c.bf16 %v376, %v373
    %v537 = vpack.c.bf16 %v384, %v381
    %v538 = vpack.c.bf16 %v392, %v389
    %v539 = vpack.c.bf16 %v400, %v397
    %v540 = vpack.c.bf16 %v408, %v405
    %v541 = vpack.c.bf16 %v416, %v413
    %v542 = vpack.c.bf16 %v424, %v421
    %v543 = vpack.c.bf16 %v432, %v429
    %v544 = vpack.c.bf16 %v440, %v437
    %v545 = vpack.c.bf16 %v448, %v445
    %v546 = vpack.c.bf16 %v456, %v453
    %v547 = vpack.c.bf16 %v464, %v461
    %v548 = vpack.c.bf16 %v472, %v469
    %v549 = vpack.c.bf16 %v480, %v477
    %v550 = vpack.c.bf16 %v488, %v485
    %v551 = vpack.c.bf16 %v496, %v493
    %v552 = vpack.c.bf16 %v504, %v501
    %v553 = vpack.c.bf16 %v512, %v509
    %v554 = vpack.c.bf16 %v520, %v517
    %v587 = vunpack.c.l.b16 %v523
    %v588 = vunpack.c.h.b16 %v523
    %v589 = vunpack.c.l.b16 %v524
    %v590 = vunpack.c.h.b16 %v524
    %v591 = vunpack.c.l.b16 %v525
    %v592 = vunpack.c.h.b16 %v525
    %v593 = vunpack.c.l.b16 %v526
    %v594 = vunpack.c.h.b16 %v526
    %v595 = vunpack.c.l.b16 %v527
    %v596 = vunpack.c.h.b16 %v527
    %v597 = vunpack.c.l.b16 %v528
    %v598 = vunpack.c.h.b16 %v528
    %v599 = vunpack.c.l.b16 %v529
    %v600 = vunpack.c.h.b16 %v529
    %v601 = vunpack.c.l.b16 %v530
    %v602 = vunpack.c.h.b16 %v530
    %v603 = vunpack.c.l.b16 %v531
    %v604 = vunpack.c.h.b16 %v531
    %v605 = vunpack.c.l.b16 %v532
    %v606 = vunpack.c.h.b16 %v532
    %v607 = vunpack.c.l.b16 %v533
    %v608 = vunpack.c.h.b16 %v533
    %v609 = vunpack.c.l.b16 %v534
    %v610 = vunpack.c.h.b16 %v534
    %v611 = vunpack.c.l.b16 %v535
    %v612 = vunpack.c.h.b16 %v535
    %v613 = vunpack.c.l.b16 %v536
    %v614 = vunpack.c.h.b16 %v536
    %v615 = vunpack.c.l.b16 %v537
    %v616 = vunpack.c.h.b16 %v537
    %v617 = vunpack.c.l.b16 %v538
    %v618 = vunpack.c.h.b16 %v538
    %v619 = vunpack.c.l.b16 %v539
    %v620 = vunpack.c.h.b16 %v539
    %v621 = vunpack.c.l.b16 %v540
    %v622 = vunpack.c.h.b16 %v540
    %v623 = vunpack.c.l.b16 %v541
    %v624 = vunpack.c.h.b16 %v541
    %v625 = vunpack.c.l.b16 %v542
    %v626 = vunpack.c.h.b16 %v542
    %v627 = vunpack.c.l.b16 %v543
    %v628 = vunpack.c.h.b16 %v543
    %v629 = vunpack.c.l.b16 %v544
    %v630 = vunpack.c.h.b16 %v544
    %v631 = vunpack.c.l.b16 %v545
    %v632 = vunpack.c.h.b16 %v545
    %v633 = vunpack.c.l.b16 %v546
    %v634 = vunpack.c.h.b16 %v546
    %v635 = vunpack.c.l.b16 %v547
    %v636 = vunpack.c.h.b16 %v547
    %v637 = vunpack.c.l.b16 %v548
    %v638 = vunpack.c.h.b16 %v548
    %v639 = vunpack.c.l.b16 %v549
    %v640 = vunpack.c.h.b16 %v549
    %v641 = vunpack.c.l.b16 %v550
    %v642 = vunpack.c.h.b16 %v550
    %v643 = vunpack.c.l.b16 %v551
    %v644 = vunpack.c.h.b16 %v551
    %v645 = vunpack.c.l.b16 %v552
    %v646 = vunpack.c.h.b16 %v552
    %v647 = vunpack.c.l.b16 %v553
    %v648 = vunpack.c.h.b16 %v553
    %v649 = vunpack.c.l.b16 %v554
    %v650 = vunpack.c.h.b16 %v554
    %v651 = vpack.c.b16 %v587, %v587
    %v652 = vpack.c.b16 %v588, %v588
    %v653 = vpack.c.b16 %v589, %v589
    %v654 = vpack.c.b16 %v590, %v590
    %v655 = vpack.c.b16 %v591, %v591
    %v656 = vpack.c.b16 %v592, %v592
    %v657 = vpack.c.b16 %v593, %v593
    %v658 = vpack.c.b16 %v594, %v594
    %v659 = vpack.c.b16 %v595, %v595
    %v660 = vpack.c.b16 %v596, %v596
    %v661 = vpack.c.b16 %v597, %v597
    %v662 = vpack.c.b16 %v598, %v598
    %v663 = vpack.c.b16 %v599, %v599
    %v664 = vpack.c.b16 %v600, %v600
    %v665 = vpack.c.b16 %v601, %v601
    %v666 = vpack.c.b16 %v602, %v602
    %v667 = vpack.c.b16 %v603, %v603
    %v668 = vpack.c.b16 %v604, %v604
    %v669 = vpack.c.b16 %v605, %v605
    %v670 = vpack.c.b16 %v606, %v606
    %v671 = vpack.c.b16 %v607, %v607
    %v672 = vpack.c.b16 %v608, %v608
    %v673 = vpack.c.b16 %v609, %v609
    %v674 = vpack.c.b16 %v610, %v610
    %v675 = vpack.c.b16 %v611, %v611
    %v676 = vpack.c.b16 %v612, %v612
    %v677 = vpack.c.b16 %v613, %v613
    %v678 = vpack.c.b16 %v614, %v614
    %v679 = vpack.c.b16 %v615, %v615
    %v680 = vpack.c.b16 %v616, %v616
    %v681 = vpack.c.b16 %v617, %v617
    %v682 = vpack.c.b16 %v618, %v618
    %v683 = vpack.c.b16 %v619, %v619
    %v684 = vpack.c.b16 %v620, %v620
    %v685 = vpack.c.b16 %v621, %v621
    %v686 = vpack.c.b16 %v622, %v622
    %v687 = vpack.c.b16 %v623, %v623
    %v688 = vpack.c.b16 %v624, %v624
    %v689 = vpack.c.b16 %v625, %v625
    %v690 = vpack.c.b16 %v626, %v626
    %v691 = vpack.c.b16 %v627, %v627
    %v692 = vpack.c.b16 %v628, %v628
    %v693 = vpack.c.b16 %v629, %v629
    %v694 = vpack.c.b16 %v630, %v630
    %v695 = vpack.c.b16 %v631, %v631
    %v696 = vpack.c.b16 %v632, %v632
    %v697 = vpack.c.b16 %v633, %v633
    %v698 = vpack.c.b16 %v634, %v634
    %v699 = vpack.c.b16 %v635, %v635
    %v700 = vpack.c.b16 %v636, %v636
    %v701 = vpack.c.b16 %v637, %v637
    %v702 = vpack.c.b16 %v638, %v638
    %v703 = vpack.c.b16 %v639, %v639
    %v704 = vpack.c.b16 %v640, %v640
    %v705 = vpack.c.b16 %v641, %v641
    %v706 = vpack.c.b16 %v642, %v642
    %v707 = vpack.c.b16 %v643, %v643
    %v708 = vpack.c.b16 %v644, %v644
    %v709 = vpack.c.b16 %v645, %v645
    %v710 = vpack.c.b16 %v646, %v646
    %v711 = vpack.c.b16 %v647, %v647
    %v712 = vpack.c.b16 %v648, %v648
    %v713 = vpack.c.b16 %v649, %v649
    %v714 = vpack.c.b16 %v650, %v650
    %779 = vst [vmem:[#allocation10] sm:$0xf] %v651
    %780 = vst [vmem:[#allocation10 + $0x4] sm:$0xf] %v652
    %781 = vst [vmem:[#allocation10 + $0x8] sm:$0xf] %v653
    %782 = vst [vmem:[#allocation10 + $0xc] sm:$0xf] %v654
    %783 = vst [vmem:[#allocation10 + $0x10] sm:$0xf] %v655
    %784 = vst [vmem:[#allocation10 + $0x14] sm:$0xf] %v656
    %785 = vst [vmem:[#allocation10 + $0x18] sm:$0xf] %v657
    %786 = vst [vmem:[#allocation10 + $0x1c] sm:$0xf] %v658
    %787 = vst [vmem:[#allocation10 + $0x20] sm:$0xf] %v659
    %788 = vst [vmem:[#allocation10 + $0x24] sm:$0xf] %v660
    %789 = vst [vmem:[#allocation10 + $0x28] sm:$0xf] %v661
    %790 = vst [vmem:[#allocation10 + $0x2c] sm:$0xf] %v662
    %791 = vst [vmem:[#allocation10 + $0x30] sm:$0xf] %v663
    %792 = vst [vmem:[#allocation10 + $0x34] sm:$0xf] %v664
    %793 = vst [vmem:[#allocation10 + $0x38] sm:$0xf] %v665
    %794 = vst [vmem:[#allocation10 + $0x3c] sm:$0xf] %v666
    %795 = vst [vmem:[#allocation10 + $0x40] sm:$0xf] %v667
    %796 = vst [vmem:[#allocation10 + $0x44] sm:$0xf] %v668
    %797 = vst [vmem:[#allocation10 + $0x48] sm:$0xf] %v669
    %798 = vst [vmem:[#allocation10 + $0x4c] sm:$0xf] %v670
    %799 = vst [vmem:[#allocation10 + $0x50] sm:$0xf] %v671
    %800 = vst [vmem:[#allocation10 + $0x54] sm:$0xf] %v672
    %801 = vst [vmem:[#allocation10 + $0x58] sm:$0xf] %v673
    %802 = vst [vmem:[#allocation10 + $0x5c] sm:$0xf] %v674
    %803 = vst [vmem:[#allocation10 + $0x60] sm:$0xf] %v675
    %804 = vst [vmem:[#allocation10 + $0x64] sm:$0xf] %v676
    %805 = vst [vmem:[#allocation10 + $0x68] sm:$0xf] %v677
    %806 = vst [vmem:[#allocation10 + $0x6c] sm:$0xf] %v678
    %807 = vst [vmem:[#allocation10 + $0x70] sm:$0xf] %v679
    %808 = vst [vmem:[#allocation10 + $0x74] sm:$0xf] %v680
    %809 = vst [vmem:[#allocation10 + $0x78] sm:$0xf] %v681
    %810 = vst [vmem:[#allocation10 + $0x7c] sm:$0xf] %v682
    %811 = vst [vmem:[#allocation10 + $0x80] sm:$0xf] %v683
    %812 = vst [vmem:[#allocation10 + $0x84] sm:$0xf] %v684
    %813 = vst [vmem:[#allocation10 + $0x88] sm:$0xf] %v685
    %814 = vst [vmem:[#allocation10 + $0x8c] sm:$0xf] %v686
    %815 = vst [vmem:[#allocation10 + $0x90] sm:$0xf] %v687
    %816 = vst [vmem:[#allocation10 + $0x94] sm:$0xf] %v688
    %817 = vst [vmem:[#allocation10 + $0x98] sm:$0xf] %v689
    %818 = vst [vmem:[#allocation10 + $0x9c] sm:$0xf] %v690
    %819 = vst [vmem:[#allocation10 + $0xa0] sm:$0xf] %v691
    %820 = vst [vmem:[#allocation10 + $0xa4] sm:$0xf] %v692
    %821 = vst [vmem:[#allocation10 + $0xa8] sm:$0xf] %v693
    %822 = vst [vmem:[#allocation10 + $0xac] sm:$0xf] %v694
    %823 = vst [vmem:[#allocation10 + $0xb0] sm:$0xf] %v695
    %824 = vst [vmem:[#allocation10 + $0xb4] sm:$0xf] %v696
    %825 = vst [vmem:[#allocation10 + $0xb8] sm:$0xf] %v697
    %826 = vst [vmem:[#allocation10 + $0xbc] sm:$0xf] %v698
    %827 = vst [vmem:[#allocation10 + $0xc0] sm:$0xf] %v699
    %828 = vst [vmem:[#allocation10 + $0xc4] sm:$0xf] %v700
    %829 = vst [vmem:[#allocation10 + $0xc8] sm:$0xf] %v701
    %830 = vst [vmem:[#allocation10 + $0xcc] sm:$0xf] %v702
    %831 = vst [vmem:[#allocation10 + $0xd0] sm:$0xf] %v703
    %832 = vst [vmem:[#allocation10 + $0xd4] sm:$0xf] %v704
    %833 = vst [vmem:[#allocation10 + $0xd8] sm:$0xf] %v705
    %834 = vst [vmem:[#allocation10 + $0xdc] sm:$0xf] %v706
    %835 = vst [vmem:[#allocation10 + $0xe0] sm:$0xf] %v707
    %836 = vst [vmem:[#allocation10 + $0xe4] sm:$0xf] %v708
    %837 = vst [vmem:[#allocation10 + $0xe8] sm:$0xf] %v709
    %838 = vst [vmem:[#allocation10 + $0xec] sm:$0xf] %v710
    %839 = vst [vmem:[#allocation10 + $0xf0] sm:$0xf] %v711
    %840 = vst [vmem:[#allocation10 + $0xf4] sm:$0xf] %v712
    %841 = vst [vmem:[#allocation10 + $0xf8] sm:$0xf] %v713
    %842 = vst [vmem:[#allocation10 + $0xfc] sm:$0xf] %v714
    %v843 = vadd.f32 %v269, %v272
    %v844 = vadd.f32 %v843, %v277
    %v845 = vadd.f32 %v844, %v280
    %v846 = vadd.f32 %v845, %v285
    %v847 = vadd.f32 %v846, %v288
    %v848 = vadd.f32 %v847, %v293
    %v849 = vadd.f32 %v848, %v296
    %v850 = vadd.f32 %v849, %v301
    %v851 = vadd.f32 %v850, %v304
    %v852 = vadd.f32 %v851, %v309
    %v853 = vadd.f32 %v852, %v312
    %v854 = vadd.f32 %v853, %v317
    %v855 = vadd.f32 %v854, %v320
    %v856 = vadd.f32 %v855, %v325
    %v857 = vadd.f32 %v856, %v328
    %v858 = vadd.f32 %v857, %v333
    %v859 = vadd.f32 %v858, %v336
    %v860 = vadd.f32 %v859, %v341
    %v861 = vadd.f32 %v860, %v344
    %v862 = vadd.f32 %v861, %v349
    %v863 = vadd.f32 %v862, %v352
    %v864 = vadd.f32 %v863, %v357
    %v865 = vadd.f32 %v864, %v360
    %v866 = vadd.f32 %v865, %v365
    %v867 = vadd.f32 %v866, %v368
    %v868 = vadd.f32 %v867, %v373
    %v869 = vadd.f32 %v868, %v376
    %v870 = vadd.f32 %v869, %v381
    %v871 = vadd.f32 %v870, %v384
    %v872 = vadd.f32 %v871, %v389
    %v873 = vadd.f32 %v872, %v392
    %v874 = vadd.f32 %v873, %v397
    %v875 = vadd.f32 %v874, %v400
    %v876 = vadd.f32 %v875, %v405
    %v877 = vadd.f32 %v876, %v408
    %v878 = vadd.f32 %v877, %v413
    %v879 = vadd.f32 %v878, %v416
    %v880 = vadd.f32 %v879, %v421
    %v881 = vadd.f32 %v880, %v424
    %v882 = vadd.f32 %v881, %v429
    %v883 = vadd.f32 %v882, %v432
    %v884 = vadd.f32 %v883, %v437
    %v885 = vadd.f32 %v884, %v440
    %v886 = vadd.f32 %v885, %v445
    %v887 = vadd.f32 %v886, %v448
    %v888 = vadd.f32 %v887, %v453
    %v889 = vadd.f32 %v888, %v456
    %v890 = vadd.f32 %v889, %v461
    %v891 = vadd.f32 %v890, %v464
    %v892 = vadd.f32 %v891, %v469
    %v893 = vadd.f32 %v892, %v472
    %v894 = vadd.f32 %v893, %v477
    %v895 = vadd.f32 %v894, %v480
    %v896 = vadd.f32 %v895, %v485
    %v897 = vadd.f32 %v896, %v488
    %v898 = vadd.f32 %v897, %v493
    %v899 = vadd.f32 %v898, %v496
    %v900 = vadd.f32 %v899, %v501
    %v901 = vadd.f32 %v900, %v504
    %v902 = vadd.f32 %v901, %v509
    %v903 = vadd.f32 %v902, %v512
    %v904 = vadd.f32 %v903, %v517
    %v905 = vadd.f32 %v904, %v520
    %v906 = vrot.slane %v905, 4
    %v907 = vadd.f32 %v905, %v906
    %v908 = vrot.slane %v907, 2
    %v909 = vadd.f32 %v907, %v908
    %v910 = vrot.slane %v909, 1
    %v911 = vadd.f32 %v909, %v910
    %912 = vst [vmem:[#allocation11] sm:$0x1] %v911
    %v913 = vmul.f32 %v269, %v269
    %v914 = vmul.f32 %v272, %v272
    %v915 = vmul.f32 %v277, %v277
    %v916 = vmul.f32 %v280, %v280
    %v917 = vmul.f32 %v285, %v285
    %v918 = vmul.f32 %v288, %v288
    %v919 = vmul.f32 %v293, %v293
    %v920 = vmul.f32 %v296, %v296
    %v921 = vmul.f32 %v301, %v301
    %v922 = vmul.f32 %v304, %v304
    %v923 = vmul.f32 %v309, %v309
    %v924 = vmul.f32 %v312, %v312
    %v925 = vmul.f32 %v317, %v317
    %v926 = vmul.f32 %v320, %v320
    %v927 = vmul.f32 %v325, %v325
    %v928 = vmul.f32 %v328, %v328
    %v929 = vmul.f32 %v333, %v333
    %v930 = vmul.f32 %v336, %v336
    %v931 = vmul.f32 %v341, %v341
    %v932 = vmul.f32 %v344, %v344
    %v933 = vmul.f32 %v349, %v349
    %v934 = vmul.f32 %v352, %v352
    %v935 = vmul.f32 %v357, %v357
    %v936 = vmul.f32 %v360, %v360
    %v937 = vmul.f32 %v365, %v365
    %v938 = vmul.f32 %v368, %v368
    %v939 = vmul.f32 %v373, %v373
    %v940 = vmul.f32 %v376, %v376
    %v941 = vmul.f32 %v381, %v381
    %v942 = vmul.f32 %v384, %v384
    %v943 = vmul.f32 %v389, %v389
    %v944 = vmul.f32 %v392, %v392
    %v945 = vmul.f32 %v397, %v397
    %v946 = vmul.f32 %v400, %v400
    %v947 = vmul.f32 %v405, %v405
    %v948 = vmul.f32 %v408, %v408
    %v949 = vmul.f32 %v413, %v413
    %v950 = vmul.f32 %v416, %v416
    %v951 = vmul.f32 %v421, %v421
    %v952 = vmul.f32 %v424, %v424
    %v953 = vmul.f32 %v429, %v429
    %v954 = vmul.f32 %v432, %v432
    %v955 = vmul.f32 %v437, %v437
    %v956 = vmul.f32 %v440, %v440
    %v957 = vmul.f32 %v445, %v445
    %v958 = vmul.f32 %v448, %v448
    %v959 = vmul.f32 %v453, %v453
    %v960 = vmul.f32 %v456, %v456
    %v961 = vmul.f32 %v461, %v461
    %v962 = vmul.f32 %v464, %v464
    %v963 = vmul.f32 %v469, %v469
    %v964 = vmul.f32 %v472, %v472
    %v965 = vmul.f32 %v477, %v477
    %v966 = vmul.f32 %v480, %v480
    %v967 = vmul.f32 %v485, %v485
    %v968 = vmul.f32 %v488, %v488
    %v969 = vmul.f32 %v493, %v493
    %v970 = vmul.f32 %v496, %v496
    %v971 = vmul.f32 %v501, %v501
    %v972 = vmul.f32 %v504, %v504
    %v973 = vmul.f32 %v509, %v509
    %v974 = vmul.f32 %v512, %v512
    %v975 = vmul.f32 %v517, %v517
    %v976 = vmul.f32 %v520, %v520
    %v977 = vadd.f32 %v913, %v914
    %v978 = vadd.f32 %v977, %v915
    %v979 = vadd.f32 %v978, %v916
    %v980 = vadd.f32 %v979, %v917
    %v981 = vadd.f32 %v980, %v918
    %v982 = vadd.f32 %v981, %v919
    %v983 = vadd.f32 %v982, %v920
    %v984 = vadd.f32 %v983, %v921
    %v985 = vadd.f32 %v984, %v922
    %v986 = vadd.f32 %v985, %v923
    %v987 = vadd.f32 %v986, %v924
    %v988 = vadd.f32 %v987, %v925
    %v989 = vadd.f32 %v988, %v926
    %v990 = vadd.f32 %v989, %v927
    %v991 = vadd.f32 %v990, %v928
    %v992 = vadd.f32 %v991, %v929
    %v993 = vadd.f32 %v992, %v930
    %v994 = vadd.f32 %v993, %v931
    %v995 = vadd.f32 %v994, %v932
    %v996 = vadd.f32 %v995, %v933
    %v997 = vadd.f32 %v996, %v934
    %v998 = vadd.f32 %v997, %v935
    %v999 = vadd.f32 %v998, %v936
    %v1000 = vadd.f32 %v999, %v937
    %v1001 = vadd.f32 %v1000, %v938
    %v1002 = vadd.f32 %v1001, %v939
    %v1003 = vadd.f32 %v1002, %v940
    %v1004 = vadd.f32 %v1003, %v941
    %v1005 = vadd.f32 %v1004, %v942
    %v1006 = vadd.f32 %v1005, %v943
    %v1007 = vadd.f32 %v1006, %v944
    %v1008 = vadd.f32 %v1007, %v945
    %v1009 = vadd.f32 %v1008, %v946
    %v1010 = vadd.f32 %v1009, %v947
    %v1011 = vadd.f32 %v1010, %v948
    %v1012 = vadd.f32 %v1011, %v949
    %v1013 = vadd.f32 %v1012, %v950
    %v1014 = vadd.f32 %v1013, %v951
    %v1015 = vadd.f32 %v1014, %v952
    %v1016 = vadd.f32 %v1015, %v953
    %v1017 = vadd.f32 %v1016, %v954
    %v1018 = vadd.f32 %v1017, %v955
    %v1019 = vadd.f32 %v1018, %v956
    %v1020 = vadd.f32 %v1019, %v957
    %v1021 = vadd.f32 %v1020, %v958
    %v1022 = vadd.f32 %v1021, %v959
    %v1023 = vadd.f32 %v1022, %v960
    %v1024 = vadd.f32 %v1023, %v961
    %v1025 = vadd.f32 %v1024, %v962
    %v1026 = vadd.f32 %v1025, %v963
    %v1027 = vadd.f32 %v1026, %v964
    %v1028 = vadd.f32 %v1027, %v965
    %v1029 = vadd.f32 %v1028, %v966
    %v1030 = vadd.f32 %v1029, %v967
    %v1031 = vadd.f32 %v1030, %v968
    %v1032 = vadd.f32 %v1031, %v969
    %v1033 = vadd.f32 %v1032, %v970
    %v1034 = vadd.f32 %v1033, %v971
    %v1035 = vadd.f32 %v1034, %v972
    %v1036 = vadd.f32 %v1035, %v973
    %v1037 = vadd.f32 %v1036, %v974
    %v1038 = vadd.f32 %v1037, %v975
    %v1039 = vadd.f32 %v1038, %v976
    %v1040 = vrot.slane %v1039, 4
    %v1041 = vadd.f32 %v1039, %v1040
    %v1042 = vrot.slane %v1041, 2
    %v1043 = vadd.f32 %v1041, %v1042
    %v1044 = vrot.slane %v1043, 1
    %v1045 = vadd.f32 %v1043, %v1044
    %1046 = vst [vmem:[#allocation13] sm:$0x1] %v1045
    // Predicated region
    $region34: #{_lambda_.6} parent=1 // pred_check
      _
    $region35: #{_lambda_.6} parent=1 // pred_check_branch
      %1048 = sbr.rel (0) target = $region37
    $region36: #{_lambda_.6} parent=1 // pred_region
      %s1050 = ssub.s32 4096, 4096
      %1051 = vsyncadd [#allocation4], %s1050
      %s1052 = sshll.u32 [#allocation10], 4
      %s1053 = int_to_ptr.vmem [resolvable:$true] %s1052
      %1058 = dma.vmem_to_hbm [thread:$0]  %s1053, 4096, %s4, [#allocation4], 64, 64, 4
    $region37: #{_lambda_.6} parent=1 // pred_fallthru
      _
    // Predicated region
    $region38: #{_lambda_.6} parent=1 // pred_check
      _
    $region39: #{_lambda_.6} parent=1 // pred_check_branch
      %1060 = sbr.rel (0) target = $region41
    $region40: #{_lambda_.6} parent=1 // pred_region
      %s1062 = ssub.s32 16, 16
      %1063 = vsyncadd [#allocation12], %s1062
      %s1065 = sshll.u32 [#allocation11], 4
      %s1066 = int_to_ptr.vmem [resolvable:$true] %s1065
      %1068 = dma.vmem_to_hbm [thread:$0]  %s1066, 16, %s5, [#allocation12]
    $region41: #{_lambda_.6} parent=1 // pred_fallthru
      _
    // Predicated region
    $region42: #{_lambda_.6} parent=1 // pred_check
      _
    $region43: #{_lambda_.6} parent=1 // pred_check_branch
      %1070 = sbr.rel (0) target = $region45
    $region44: #{_lambda_.6} parent=1 // pred_region
      %s1072 = ssub.s32 16, 16
      %1073 = vsyncadd [#allocation12], %s1072
      %s1075 = sshll.u32 [#allocation13], 4
      %s1076 = int_to_ptr.vmem [resolvable:$true] %s1075
      %1078 = dma.vmem_to_hbm [thread:$0]  %s1076, 16, %s6, [#allocation12]
    $region45: #{_lambda_.6} parent=1 // pred_fallthru
      _
    // Predicated region
    $region46: #{_lambda_.6} parent=1 // pred_check
      _
    $region47: #{_lambda_.6} parent=1 // pred_check_branch
      %1080 = sbr.rel (0) target = $region49
    $region48: #{_lambda_.6} parent=1 // pred_region
      %1081 = dma.done [#allocation4], 4096
    $region49: #{_lambda_.6} parent=1 // pred_fallthru
      _
    // Predicated region
    $region50: #{_lambda_.6} parent=1 // pred_check
      _
    $region51: #{_lambda_.6} parent=1 // pred_check_branch
      %1083 = sbr.rel (0) target = $region53
    $region52: #{_lambda_.6} parent=1 // pred_region
      %1084 = dma.done [#allocation12], 16
    $region53: #{_lambda_.6} parent=1 // pred_fallthru
      _
    // Predicated region
    $region54: #{_lambda_.6} parent=1 // pred_check
      _
    $region55: #{_lambda_.6} parent=1 // pred_check_branch
      %1086 = sbr.rel (0) target = $region57
    $region56: #{_lambda_.6} parent=1 // pred_region
      %1087 = dma.done [#allocation12], 16
    $region57: #{_lambda_.6} parent=1 // pred_fallthru
      _
    %1088 = vsyncpa [#allocation3], 1
    %1089 = vsyncpa [#allocation6], 1
    %1090 = vsyncpa [#allocation9], 1
    %1091 = vsyncpa [#allocation4], 1
    %1092 = vsyncpa [#allocation12], 1

// kernel: _lambda_.11
$region0: #{_lambda_.11}
  #allocation0 [shape = 'u32[]', space=smem, size = 0x4, offset = 0x4, fixed_abs, tag = 'smem constant byte address 0x4 - core index']
  #allocation1 [shape = 'u32[144,128]{1,0:T(1,128)}', space=vmem, size = 0x12000, scoped, tag = 'internal scratch']
  %s0 = inlined_call_operand.hbm [shape: bf16[512,128], index: 0, kind: input, shape index: {}]
  %s1 = inlined_call_operand.hbm [shape: f32[1,128], index: 1, kind: input, shape index: {}]
  %s2 = inlined_call_operand.hbm [shape: f32[1,128], index: 2, kind: input, shape index: {}]
  %s3 = inlined_call_operand.hbm [shape: f32[512,128], index: 3, kind: output, shape index: {}]
  %s4 = sld [smem:[#allocation0]]
  $region34: #{_lambda_.11} parent=0
    _
  %s6 = ssub.s32 1, %s4
  %s7 = scalar_select 0, %s6, %s4
  $region1: #{_lambda_.11} parent=0
    #allocation2 [shape = 'u8[131072]{0}', space=vmem, size = 0x20000, scoped, tag = 'input window, operand 0, single buffered']
    #allocation3 [shape = 's32[1]{0}', space=sflag, size = 0x4, scoped, tag = 'scoped memory for _lambda_.11']
    #allocation4 [shape = 's32[1]{0}', space=sflag, size = 0x4, scoped, tag = 'scoped memory for _lambda_.11']
    #allocation5 [shape = 'u8[512]{0}', space=vmem, size = 0x400, scoped, tag = 'input window, operand 1, single buffered']
    #allocation6 [shape = 's32[1]{0}', space=sflag, size = 0x4, scoped, tag = 'scoped memory for _lambda_.11']
    #allocation7 [shape = 'u8[512]{0}', space=vmem, size = 0x400, scoped, tag = 'input window, operand 2, single buffered']
    #allocation8 [shape = 'u8[262144]{0}', space=vmem, size = 0x40000, scoped, tag = 'output window, operand 0, single buffered']
    %8 = vsyncpa [#allocation3], 0
    %9 = vsyncpa [#allocation6], 0
    %10 = vsyncpa [#allocation4], 0
    // Predicated region
    $region2: #{_lambda_.11} parent=1 // pred_check
      _
    $region3: #{_lambda_.11} parent=1 // pred_check_branch
      %12 = sbr.rel (0) target = $region5
    $region4: #{_lambda_.11} parent=1 // pred_region
      %s14 = ssub.s32 4096, 4096
      %15 = vsyncadd [#allocation3], %s14
      %s16 = sshll.u32 [#allocation2], 4
      %s17 = int_to_ptr.vmem [resolvable:$true] %s16
      %22 = dma.hbm_to_vmem [thread:$0]  %s0, 4096, %s17, [#allocation3], 64, 64, 4
    $region5: #{_lambda_.11} parent=1 // pred_fallthru
      _
    // Predicated region
    $region6: #{_lambda_.11} parent=1 // pred_check
      _
    $region7: #{_lambda_.11} parent=1 // pred_check_branch
      %24 = sbr.rel (0) target = $region9
    $region8: #{_lambda_.11} parent=1 // pred_region
      %s26 = ssub.s32 16, 16
      %27 = vsyncadd [#allocation6], %s26
      %s29 = sshll.u32 [#allocation5], 4
      %s30 = int_to_ptr.vmem [resolvable:$true] %s29
      %32 = dma.hbm_to_vmem [thread:$0]  %s1, 16, %s30, [#allocation6]
    $region9: #{_lambda_.11} parent=1 // pred_fallthru
      _
    // Predicated region
    $region10: #{_lambda_.11} parent=1 // pred_check
      _
    $region11: #{_lambda_.11} parent=1 // pred_check_branch
      %34 = sbr.rel (0) target = $region13
    $region12: #{_lambda_.11} parent=1 // pred_region
      %s36 = ssub.s32 16, 16
      %37 = vsyncadd [#allocation6], %s36
      %s39 = sshll.u32 [#allocation7], 4
      %s40 = int_to_ptr.vmem [resolvable:$true] %s39
      %42 = dma.hbm_to_vmem [thread:$0]  %s2, 16, %s40, [#allocation6]
    $region13: #{_lambda_.11} parent=1 // pred_fallthru
      _
    // Predicated region
    $region14: #{_lambda_.11} parent=1 // pred_check
      _
    $region15: #{_lambda_.11} parent=1 // pred_check_branch
      %44 = sbr.rel (0) target = $region17
    $region16: #{_lambda_.11} parent=1 // pred_region
      %45 = dma.done [#allocation3], 4096
    $region17: #{_lambda_.11} parent=1 // pred_fallthru
      _
    // Predicated region
    $region18: #{_lambda_.11} parent=1 // pred_check
      _
    $region19: #{_lambda_.11} parent=1 // pred_check_branch
      %47 = sbr.rel (0) target = $region21
    $region20: #{_lambda_.11} parent=1 // pred_region
      %48 = dma.done [#allocation6], 16
    $region21: #{_lambda_.11} parent=1 // pred_fallthru
      _
    // Predicated region
    $region22: #{_lambda_.11} parent=1 // pred_check
      _
    $region23: #{_lambda_.11} parent=1 // pred_check_branch
      %50 = sbr.rel (0) target = $region25
    $region24: #{_lambda_.11} parent=1 // pred_region
      %51 = dma.done [#allocation6], 16
    $region25: #{_lambda_.11} parent=1 // pred_fallthru
      _
    %v52 = vld [vmem:[#allocation2] sm:$0xf]
    %v53 = vld [vmem:[#allocation2 + $0x4] sm:$0xf]
    %v54 = vld [vmem:[#allocation2 + $0x8] sm:$0xf]
    %v55 = vld [vmem:[#allocation2 + $0xc] sm:$0xf]
    %v56 = vld [vmem:[#allocation2 + $0x10] sm:$0xf]
    %v57 = vld [vmem:[#allocation2 + $0x14] sm:$0xf]
    %v58 = vld [vmem:[#allocation2 + $0x18] sm:$0xf]
    %v59 = vld [vmem:[#allocation2 + $0x1c] sm:$0xf]
    %v60 = vld [vmem:[#allocation2 + $0x20] sm:$0xf]
    %v61 = vld [vmem:[#allocation2 + $0x24] sm:$0xf]
    %v62 = vld [vmem:[#allocation2 + $0x28] sm:$0xf]
    %v63 = vld [vmem:[#allocation2 + $0x2c] sm:$0xf]
    %v64 = vld [vmem:[#allocation2 + $0x30] sm:$0xf]
    %v65 = vld [vmem:[#allocation2 + $0x34] sm:$0xf]
    %v66 = vld [vmem:[#allocation2 + $0x38] sm:$0xf]
    %v67 = vld [vmem:[#allocation2 + $0x3c] sm:$0xf]
    %v68 = vld [vmem:[#allocation2 + $0x40] sm:$0xf]
    %v69 = vld [vmem:[#allocation2 + $0x44] sm:$0xf]
    %v70 = vld [vmem:[#allocation2 + $0x48] sm:$0xf]
    %v71 = vld [vmem:[#allocation2 + $0x4c] sm:$0xf]
    %v72 = vld [vmem:[#allocation2 + $0x50] sm:$0xf]
    %v73 = vld [vmem:[#allocation2 + $0x54] sm:$0xf]
    %v74 = vld [vmem:[#allocation2 + $0x58] sm:$0xf]
    %v75 = vld [vmem:[#allocation2 + $0x5c] sm:$0xf]
    %v76 = vld [vmem:[#allocation2 + $0x60] sm:$0xf]
    %v77 = vld [vmem:[#allocation2 + $0x64] sm:$0xf]
    %v78 = vld [vmem:[#allocation2 + $0x68] sm:$0xf]
    %v79 = vld [vmem:[#allocation2 + $0x6c] sm:$0xf]
    %v80 = vld [vmem:[#allocation2 + $0x70] sm:$0xf]
    %v81 = vld [vmem:[#allocation2 + $0x74] sm:$0xf]
    %v82 = vld [vmem:[#allocation2 + $0x78] sm:$0xf]
    %v83 = vld [vmem:[#allocation2 + $0x7c] sm:$0xf]
    %v84 = vld [vmem:[#allocation2 + $0x80] sm:$0xf]
    %v85 = vld [vmem:[#allocation2 + $0x84] sm:$0xf]
    %v86 = vld [vmem:[#allocation2 + $0x88] sm:$0xf]
    %v87 = vld [vmem:[#allocation2 + $0x8c] sm:$0xf]
    %v88 = vld [vmem:[#allocation2 + $0x90] sm:$0xf]
    %v89 = vld [vmem:[#allocation2 + $0x94] sm:$0xf]
    %v90 = vld [vmem:[#allocation2 + $0x98] sm:$0xf]
    %v91 = vld [vmem:[#allocation2 + $0x9c] sm:$0xf]
    %v92 = vld [vmem:[#allocation2 + $0xa0] sm:$0xf]
    %v93 = vld [vmem:[#allocation2 + $0xa4] sm:$0xf]
    %v94 = vld [vmem:[#allocation2 + $0xa8] sm:$0xf]
    %v95 = vld [vmem:[#allocation2 + $0xac] sm:$0xf]
    %v96 = vld [vmem:[#allocation2 + $0xb0] sm:$0xf]
    %v97 = vld [vmem:[#allocation2 + $0xb4] sm:$0xf]
    %v98 = vld [vmem:[#allocation2 + $0xb8] sm:$0xf]
    %v99 = vld [vmem:[#allocation2 + $0xbc] sm:$0xf]
    %v100 = vld [vmem:[#allocation2 + $0xc0] sm:$0xf]
    %v101 = vld [vmem:[#allocation2 + $0xc4] sm:$0xf]
    %v102 = vld [vmem:[#allocation2 + $0xc8] sm:$0xf]
    %v103 = vld [vmem:[#allocation2 + $0xcc] sm:$0xf]
    %v104 = vld [vmem:[#allocation2 + $0xd0] sm:$0xf]
    %v105 = vld [vmem:[#allocation2 + $0xd4] sm:$0xf]
    %v106 = vld [vmem:[#allocation2 + $0xd8] sm:$0xf]
    %v107 = vld [vmem:[#allocation2 + $0xdc] sm:$0xf]
    %v108 = vld [vmem:[#allocation2 + $0xe0] sm:$0xf]
    %v109 = vld [vmem:[#allocation2 + $0xe4] sm:$0xf]
    %v110 = vld [vmem:[#allocation2 + $0xe8] sm:$0xf]
    %v111 = vld [vmem:[#allocation2 + $0xec] sm:$0xf]
    %v112 = vld [vmem:[#allocation2 + $0xf0] sm:$0xf]
    %v113 = vld [vmem:[#allocation2 + $0xf4] sm:$0xf]
    %v114 = vld [vmem:[#allocation2 + $0xf8] sm:$0xf]
    %v115 = vld [vmem:[#allocation2 + $0xfc] sm:$0xf]
    %v116 = vunpack.c.l.bf16 %v52
    %v117 = vunpack.c.l.bf16 %v53
    %v118 = vunpack.c.l.bf16 %v54
    %v119 = vunpack.c.l.bf16 %v55
    %v120 = vunpack.c.l.bf16 %v56
    %v121 = vunpack.c.l.bf16 %v57
    %v122 = vunpack.c.l.bf16 %v58
    %v123 = vunpack.c.l.bf16 %v59
    %v124 = vunpack.c.l.bf16 %v60
    %v125 = vunpack.c.l.bf16 %v61
    %v126 = vunpack.c.l.bf16 %v62
    %v127 = vunpack.c.l.bf16 %v63
    %v128 = vunpack.c.l.bf16 %v64
    %v129 = vunpack.c.l.bf16 %v65
    %v130 = vunpack.c.l.bf16 %v66
    %v131 = vunpack.c.l.bf16 %v67
    %v132 = vunpack.c.l.bf16 %v68
    %v133 = vunpack.c.l.bf16 %v69
    %v134 = vunpack.c.l.bf16 %v70
    %v135 = vunpack.c.l.bf16 %v71
    %v136 = vunpack.c.l.bf16 %v72
    %v137 = vunpack.c.l.bf16 %v73
    %v138 = vunpack.c.l.bf16 %v74
    %v139 = vunpack.c.l.bf16 %v75
    %v140 = vunpack.c.l.bf16 %v76
    %v141 = vunpack.c.l.bf16 %v77
    %v142 = vunpack.c.l.bf16 %v78
    %v143 = vunpack.c.l.bf16 %v79
    %v144 = vunpack.c.l.bf16 %v80
    %v145 = vunpack.c.l.bf16 %v81
    %v146 = vunpack.c.l.bf16 %v82
    %v147 = vunpack.c.l.bf16 %v83
    %v148 = vunpack.c.l.bf16 %v84
    %v149 = vunpack.c.l.bf16 %v85
    %v150 = vunpack.c.l.bf16 %v86
    %v151 = vunpack.c.l.bf16 %v87
    %v152 = vunpack.c.l.bf16 %v88
    %v153 = vunpack.c.l.bf16 %v89
    %v154 = vunpack.c.l.bf16 %v90
    %v155 = vunpack.c.l.bf16 %v91
    %v156 = vunpack.c.l.bf16 %v92
    %v157 = vunpack.c.l.bf16 %v93
    %v158 = vunpack.c.l.bf16 %v94
    %v159 = vunpack.c.l.bf16 %v95
    %v160 = vunpack.c.l.bf16 %v96
    %v161 = vunpack.c.l.bf16 %v97
    %v162 = vunpack.c.l.bf16 %v98
    %v163 = vunpack.c.l.bf16 %v99
    %v164 = vunpack.c.l.bf16 %v100
    %v165 = vunpack.c.l.bf16 %v101
    %v166 = vunpack.c.l.bf16 %v102
    %v167 = vunpack.c.l.bf16 %v103
    %v168 = vunpack.c.l.bf16 %v104
    %v169 = vunpack.c.l.bf16 %v105
    %v170 = vunpack.c.l.bf16 %v106
    %v171 = vunpack.c.l.bf16 %v107
    %v172 = vunpack.c.l.bf16 %v108
    %v173 = vunpack.c.l.bf16 %v109
    %v174 = vunpack.c.l.bf16 %v110
    %v175 = vunpack.c.l.bf16 %v111
    %v176 = vunpack.c.l.bf16 %v112
    %v177 = vunpack.c.l.bf16 %v113
    %v178 = vunpack.c.l.bf16 %v114
    %v179 = vunpack.c.l.bf16 %v115
    %v180 = vld [vmem:[#allocation5] sm:$0x1]
    %v182 = vlaneseq
    %v183 = vshrl.u32 %v182, 7
    %v184 = vsub.s32 0, %v183
    %v185 = vrot.slane %v180, %v184
    %v187 = vmul.f32 %v116, %v185
    %v188 = vmul.f32 %v117, %v185
    %v189 = vmul.f32 %v118, %v185
    %v190 = vmul.f32 %v119, %v185
    %v191 = vmul.f32 %v120, %v185
    %v192 = vmul.f32 %v121, %v185
    %v193 = vmul.f32 %v122, %v185
    %v194 = vmul.f32 %v123, %v185
    %v195 = vmul.f32 %v124, %v185
    %v196 = vmul.f32 %v125, %v185
    %v197 = vmul.f32 %v126, %v185
    %v198 = vmul.f32 %v127, %v185
    %v199 = vmul.f32 %v128, %v185
    %v200 = vmul.f32 %v129, %v185
    %v201 = vmul.f32 %v130, %v185
    %v202 = vmul.f32 %v131, %v185
    %v203 = vmul.f32 %v132, %v185
    %v204 = vmul.f32 %v133, %v185
    %v205 = vmul.f32 %v134, %v185
    %v206 = vmul.f32 %v135, %v185
    %v207 = vmul.f32 %v136, %v185
    %v208 = vmul.f32 %v137, %v185
    %v209 = vmul.f32 %v138, %v185
    %v210 = vmul.f32 %v139, %v185
    %v211 = vmul.f32 %v140, %v185
    %v212 = vmul.f32 %v141, %v185
    %v213 = vmul.f32 %v142, %v185
    %v214 = vmul.f32 %v143, %v185
    %v215 = vmul.f32 %v144, %v185
    %v216 = vmul.f32 %v145, %v185
    %v217 = vmul.f32 %v146, %v185
    %v218 = vmul.f32 %v147, %v185
    %v219 = vmul.f32 %v148, %v185
    %v220 = vmul.f32 %v149, %v185
    %v221 = vmul.f32 %v150, %v185
    %v222 = vmul.f32 %v151, %v185
    %v223 = vmul.f32 %v152, %v185
    %v224 = vmul.f32 %v153, %v185
    %v225 = vmul.f32 %v154, %v185
    %v226 = vmul.f32 %v155, %v185
    %v227 = vmul.f32 %v156, %v185
    %v228 = vmul.f32 %v157, %v185
    %v229 = vmul.f32 %v158, %v185
    %v230 = vmul.f32 %v159, %v185
    %v231 = vmul.f32 %v160, %v185
    %v232 = vmul.f32 %v161, %v185
    %v233 = vmul.f32 %v162, %v185
    %v234 = vmul.f32 %v163, %v185
    %v235 = vmul.f32 %v164, %v185
    %v236 = vmul.f32 %v165, %v185
    %v237 = vmul.f32 %v166, %v185
    %v238 = vmul.f32 %v167, %v185
    %v239 = vmul.f32 %v168, %v185
    %v240 = vmul.f32 %v169, %v185
    %v241 = vmul.f32 %v170, %v185
    %v242 = vmul.f32 %v171, %v185
    %v243 = vmul.f32 %v172, %v185
    %v244 = vmul.f32 %v173, %v185
    %v245 = vmul.f32 %v174, %v185
    %v246 = vmul.f32 %v175, %v185
    %v247 = vmul.f32 %v176, %v185
    %v248 = vmul.f32 %v177, %v185
    %v249 = vmul.f32 %v178, %v185
    %v250 = vmul.f32 %v179, %v185
    %v251 = vld [vmem:[#allocation7] sm:$0x1]
    %v253 = vlaneseq
    %v254 = vshrl.u32 %v253, 7
    %v255 = vsub.s32 0, %v254
    %v256 = vrot.slane %v251, %v255
    %v258 = vadd.f32 %v187, %v256
    %v259 = vadd.f32 %v188, %v256
    %v260 = vadd.f32 %v189, %v256
    %v261 = vadd.f32 %v190, %v256
    %v262 = vadd.f32 %v191, %v256
    %v263 = vadd.f32 %v192, %v256
    %v264 = vadd.f32 %v193, %v256
    %v265 = vadd.f32 %v194, %v256
    %v266 = vadd.f32 %v195, %v256
    %v267 = vadd.f32 %v196, %v256
    %v268 = vadd.f32 %v197, %v256
    %v269 = vadd.f32 %v198, %v256
    %v270 = vadd.f32 %v199, %v256
    %v271 = vadd.f32 %v200, %v256
    %v272 = vadd.f32 %v201, %v256
    %v273 = vadd.f32 %v202, %v256
    %v274 = vadd.f32 %v203, %v256
    %v275 = vadd.f32 %v204, %v256
    %v276 = vadd.f32 %v205, %v256
    %v277 = vadd.f32 %v206, %v256
    %v278 = vadd.f32 %v207, %v256
    %v279 = vadd.f32 %v208, %v256
    %v280 = vadd.f32 %v209, %v256
    %v281 = vadd.f32 %v210, %v256
    %v282 = vadd.f32 %v211, %v256
    %v283 = vadd.f32 %v212, %v256
    %v284 = vadd.f32 %v213, %v256
    %v285 = vadd.f32 %v214, %v256
    %v286 = vadd.f32 %v215, %v256
    %v287 = vadd.f32 %v216, %v256
    %v288 = vadd.f32 %v217, %v256
    %v289 = vadd.f32 %v218, %v256
    %v290 = vadd.f32 %v219, %v256
    %v291 = vadd.f32 %v220, %v256
    %v292 = vadd.f32 %v221, %v256
    %v293 = vadd.f32 %v222, %v256
    %v294 = vadd.f32 %v223, %v256
    %v295 = vadd.f32 %v224, %v256
    %v296 = vadd.f32 %v225, %v256
    %v297 = vadd.f32 %v226, %v256
    %v298 = vadd.f32 %v227, %v256
    %v299 = vadd.f32 %v228, %v256
    %v300 = vadd.f32 %v229, %v256
    %v301 = vadd.f32 %v230, %v256
    %v302 = vadd.f32 %v231, %v256
    %v303 = vadd.f32 %v232, %v256
    %v304 = vadd.f32 %v233, %v256
    %v305 = vadd.f32 %v234, %v256
    %v306 = vadd.f32 %v235, %v256
    %v307 = vadd.f32 %v236, %v256
    %v308 = vadd.f32 %v237, %v256
    %v309 = vadd.f32 %v238, %v256
    %v310 = vadd.f32 %v239, %v256
    %v311 = vadd.f32 %v240, %v256
    %v312 = vadd.f32 %v241, %v256
    %v313 = vadd.f32 %v242, %v256
    %v314 = vadd.f32 %v243, %v256
    %v315 = vadd.f32 %v244, %v256
    %v316 = vadd.f32 %v245, %v256
    %v317 = vadd.f32 %v246, %v256
    %v318 = vadd.f32 %v247, %v256
    %v319 = vadd.f32 %v248, %v256
    %v320 = vadd.f32 %v249, %v256
    %v321 = vadd.f32 %v250, %v256
    %vm322 = vcmp.gt.f32.partialorder %v258, 0.0
    %vm323 = vcmp.gt.f32.partialorder %v259, 0.0
    %vm324 = vcmp.gt.f32.partialorder %v260, 0.0
    %vm325 = vcmp.gt.f32.partialorder %v261, 0.0
    %vm326 = vcmp.gt.f32.partialorder %v262, 0.0
    %vm327 = vcmp.gt.f32.partialorder %v263, 0.0
    %vm328 = vcmp.gt.f32.partialorder %v264, 0.0
    %vm329 = vcmp.gt.f32.partialorder %v265, 0.0
    %vm330 = vcmp.gt.f32.partialorder %v266, 0.0
    %vm331 = vcmp.gt.f32.partialorder %v267, 0.0
    %vm332 = vcmp.gt.f32.partialorder %v268, 0.0
    %vm333 = vcmp.gt.f32.partialorder %v269, 0.0
    %vm334 = vcmp.gt.f32.partialorder %v270, 0.0
    %vm335 = vcmp.gt.f32.partialorder %v271, 0.0
    %vm336 = vcmp.gt.f32.partialorder %v272, 0.0
    %vm337 = vcmp.gt.f32.partialorder %v273, 0.0
    %vm338 = vcmp.gt.f32.partialorder %v274, 0.0
    %vm339 = vcmp.gt.f32.partialorder %v275, 0.0
    %vm340 = vcmp.gt.f32.partialorder %v276, 0.0
    %vm341 = vcmp.gt.f32.partialorder %v277, 0.0
    %vm342 = vcmp.gt.f32.partialorder %v278, 0.0
    %vm343 = vcmp.gt.f32.partialorder %v279, 0.0
    %vm344 = vcmp.gt.f32.partialorder %v280, 0.0
    %vm345 = vcmp.gt.f32.partialorder %v281, 0.0
    %vm346 = vcmp.gt.f32.partialorder %v282, 0.0
    %vm347 = vcmp.gt.f32.partialorder %v283, 0.0
    %vm348 = vcmp.gt.f32.partialorder %v284, 0.0
    %vm349 = vcmp.gt.f32.partialorder %v285, 0.0
    %vm350 = vcmp.gt.f32.partialorder %v286, 0.0
    %vm351 = vcmp.gt.f32.partialorder %v287, 0.0
    %vm352 = vcmp.gt.f32.partialorder %v288, 0.0
    %vm353 = vcmp.gt.f32.partialorder %v289, 0.0
    %vm354 = vcmp.gt.f32.partialorder %v290, 0.0
    %vm355 = vcmp.gt.f32.partialorder %v291, 0.0
    %vm356 = vcmp.gt.f32.partialorder %v292, 0.0
    %vm357 = vcmp.gt.f32.partialorder %v293, 0.0
    %vm358 = vcmp.gt.f32.partialorder %v294, 0.0
    %vm359 = vcmp.gt.f32.partialorder %v295, 0.0
    %vm360 = vcmp.gt.f32.partialorder %v296, 0.0
    %vm361 = vcmp.gt.f32.partialorder %v297, 0.0
    %vm362 = vcmp.gt.f32.partialorder %v298, 0.0
    %vm363 = vcmp.gt.f32.partialorder %v299, 0.0
    %vm364 = vcmp.gt.f32.partialorder %v300, 0.0
    %vm365 = vcmp.gt.f32.partialorder %v301, 0.0
    %vm366 = vcmp.gt.f32.partialorder %v302, 0.0
    %vm367 = vcmp.gt.f32.partialorder %v303, 0.0
    %vm368 = vcmp.gt.f32.partialorder %v304, 0.0
    %vm369 = vcmp.gt.f32.partialorder %v305, 0.0
    %vm370 = vcmp.gt.f32.partialorder %v306, 0.0
    %vm371 = vcmp.gt.f32.partialorder %v307, 0.0
    %vm372 = vcmp.gt.f32.partialorder %v308, 0.0
    %vm373 = vcmp.gt.f32.partialorder %v309, 0.0
    %vm374 = vcmp.gt.f32.partialorder %v310, 0.0
    %vm375 = vcmp.gt.f32.partialorder %v311, 0.0
    %vm376 = vcmp.gt.f32.partialorder %v312, 0.0
    %vm377 = vcmp.gt.f32.partialorder %v313, 0.0
    %vm378 = vcmp.gt.f32.partialorder %v314, 0.0
    %vm379 = vcmp.gt.f32.partialorder %v315, 0.0
    %vm380 = vcmp.gt.f32.partialorder %v316, 0.0
    %vm381 = vcmp.gt.f32.partialorder %v317, 0.0
    %vm382 = vcmp.gt.f32.partialorder %v318, 0.0
    %vm383 = vcmp.gt.f32.partialorder %v319, 0.0
    %vm384 = vcmp.gt.f32.partialorder %v320, 0.0
    %vm385 = vcmp.gt.f32.partialorder %v321, 0.0
    %v386 = vmul.f32 %v258, 0.1
    %v387 = vmul.f32 %v259, 0.1
    %v388 = vmul.f32 %v260, 0.1
    %v389 = vmul.f32 %v261, 0.1
    %v390 = vmul.f32 %v262, 0.1
    %v391 = vmul.f32 %v263, 0.1
    %v392 = vmul.f32 %v264, 0.1
    %v393 = vmul.f32 %v265, 0.1
    %v394 = vmul.f32 %v266, 0.1
    %v395 = vmul.f32 %v267, 0.1
    %v396 = vmul.f32 %v268, 0.1
    %v397 = vmul.f32 %v269, 0.1
    %v398 = vmul.f32 %v270, 0.1
    %v399 = vmul.f32 %v271, 0.1
    %v400 = vmul.f32 %v272, 0.1
    %v401 = vmul.f32 %v273, 0.1
    %v402 = vmul.f32 %v274, 0.1
    %v403 = vmul.f32 %v275, 0.1
    %v404 = vmul.f32 %v276, 0.1
    %v405 = vmul.f32 %v277, 0.1
    %v406 = vmul.f32 %v278, 0.1
    %v407 = vmul.f32 %v279, 0.1
    %v408 = vmul.f32 %v280, 0.1
    %v409 = vmul.f32 %v281, 0.1
    %v410 = vmul.f32 %v282, 0.1
    %v411 = vmul.f32 %v283, 0.1
    %v412 = vmul.f32 %v284, 0.1
    %v413 = vmul.f32 %v285, 0.1
    %v414 = vmul.f32 %v286, 0.1
    %v415 = vmul.f32 %v287, 0.1
    %v416 = vmul.f32 %v288, 0.1
    %v417 = vmul.f32 %v289, 0.1
    %v418 = vmul.f32 %v290, 0.1
    %v419 = vmul.f32 %v291, 0.1
    %v420 = vmul.f32 %v292, 0.1
    %v421 = vmul.f32 %v293, 0.1
    %v422 = vmul.f32 %v294, 0.1
    %v423 = vmul.f32 %v295, 0.1
    %v424 = vmul.f32 %v296, 0.1
    %v425 = vmul.f32 %v297, 0.1
    %v426 = vmul.f32 %v298, 0.1
    %v427 = vmul.f32 %v299, 0.1
    %v428 = vmul.f32 %v300, 0.1
    %v429 = vmul.f32 %v301, 0.1
    %v430 = vmul.f32 %v302, 0.1
    %v431 = vmul.f32 %v303, 0.1
    %v432 = vmul.f32 %v304, 0.1
    %v433 = vmul.f32 %v305, 0.1
    %v434 = vmul.f32 %v306, 0.1
    %v435 = vmul.f32 %v307, 0.1
    %v436 = vmul.f32 %v308, 0.1
    %v437 = vmul.f32 %v309, 0.1
    %v438 = vmul.f32 %v310, 0.1
    %v439 = vmul.f32 %v311, 0.1
    %v440 = vmul.f32 %v312, 0.1
    %v441 = vmul.f32 %v313, 0.1
    %v442 = vmul.f32 %v314, 0.1
    %v443 = vmul.f32 %v315, 0.1
    %v444 = vmul.f32 %v316, 0.1
    %v445 = vmul.f32 %v317, 0.1
    %v446 = vmul.f32 %v318, 0.1
    %v447 = vmul.f32 %v319, 0.1
    %v448 = vmul.f32 %v320, 0.1
    %v449 = vmul.f32 %v321, 0.1
    %v450 = vsel %vm322, %v258, %v386
    %v451 = vsel %vm323, %v259, %v387
    %v452 = vsel %vm324, %v260, %v388
    %v453 = vsel %vm325, %v261, %v389
    %v454 = vsel %vm326, %v262, %v390
    %v455 = vsel %vm327, %v263, %v391
    %v456 = vsel %vm328, %v264, %v392
    %v457 = vsel %vm329, %v265, %v393
    %v458 = vsel %vm330, %v266, %v394
    %v459 = vsel %vm331, %v267, %v395
    %v460 = vsel %vm332, %v268, %v396
    %v461 = vsel %vm333, %v269, %v397
    %v462 = vsel %vm334, %v270, %v398
    %v463 = vsel %vm335, %v271, %v399
    %v464 = vsel %vm336, %v272, %v400
    %v465 = vsel %vm337, %v273, %v401
    %v466 = vsel %vm338, %v274, %v402
    %v467 = vsel %vm339, %v275, %v403
    %v468 = vsel %vm340, %v276, %v404
    %v469 = vsel %vm341, %v277, %v405
    %v470 = vsel %vm342, %v278, %v406
    %v471 = vsel %vm343, %v279, %v407
    %v472 = vsel %vm344, %v280, %v408
    %v473 = vsel %vm345, %v281, %v409
    %v474 = vsel %vm346, %v282, %v410
    %v475 = vsel %vm347, %v283, %v411
    %v476 = vsel %vm348, %v284, %v412
    %v477 = vsel %vm349, %v285, %v413
    %v478 = vsel %vm350, %v286, %v414
    %v479 = vsel %vm351, %v287, %v415
    %v480 = vsel %vm352, %v288, %v416
    %v481 = vsel %vm353, %v289, %v417
    %v482 = vsel %vm354, %v290, %v418
    %v483 = vsel %vm355, %v291, %v419
    %v484 = vsel %vm356, %v292, %v420
    %v485 = vsel %vm357, %v293, %v421
    %v486 = vsel %vm358, %v294, %v422
    %v487 = vsel %vm359, %v295, %v423
    %v488 = vsel %vm360, %v296, %v424
    %v489 = vsel %vm361, %v297, %v425
    %v490 = vsel %vm362, %v298, %v426
    %v491 = vsel %vm363, %v299, %v427
    %v492 = vsel %vm364, %v300, %v428
    %v493 = vsel %vm365, %v301, %v429
    %v494 = vsel %vm366, %v302, %v430
    %v495 = vsel %vm367, %v303, %v431
    %v496 = vsel %vm368, %v304, %v432
    %v497 = vsel %vm369, %v305, %v433
    %v498 = vsel %vm370, %v306, %v434
    %v499 = vsel %vm371, %v307, %v435
    %v500 = vsel %vm372, %v308, %v436
    %v501 = vsel %vm373, %v309, %v437
    %v502 = vsel %vm374, %v310, %v438
    %v503 = vsel %vm375, %v311, %v439
    %v504 = vsel %vm376, %v312, %v440
    %v505 = vsel %vm377, %v313, %v441
    %v506 = vsel %vm378, %v314, %v442
    %v507 = vsel %vm379, %v315, %v443
    %v508 = vsel %vm380, %v316, %v444
    %v509 = vsel %vm381, %v317, %v445
    %v510 = vsel %vm382, %v318, %v446
    %v511 = vsel %vm383, %v319, %v447
    %v512 = vsel %vm384, %v320, %v448
    %v513 = vsel %vm385, %v321, %v449
    %514 = vst [vmem:[#allocation8] sm:$0xff] %v450
    %515 = vst [vmem:[#allocation8 + $0x8] sm:$0xff] %v451
    %516 = vst [vmem:[#allocation8 + $0x10] sm:$0xff] %v452
    %517 = vst [vmem:[#allocation8 + $0x18] sm:$0xff] %v453
    %518 = vst [vmem:[#allocation8 + $0x20] sm:$0xff] %v454
    %519 = vst [vmem:[#allocation8 + $0x28] sm:$0xff] %v455
    %520 = vst [vmem:[#allocation8 + $0x30] sm:$0xff] %v456
    %521 = vst [vmem:[#allocation8 + $0x38] sm:$0xff] %v457
    %522 = vst [vmem:[#allocation8 + $0x40] sm:$0xff] %v458
    %523 = vst [vmem:[#allocation8 + $0x48] sm:$0xff] %v459
    %524 = vst [vmem:[#allocation8 + $0x50] sm:$0xff] %v460
    %525 = vst [vmem:[#allocation8 + $0x58] sm:$0xff] %v461
    %526 = vst [vmem:[#allocation8 + $0x60] sm:$0xff] %v462
    %527 = vst [vmem:[#allocation8 + $0x68] sm:$0xff] %v463
    %528 = vst [vmem:[#allocation8 + $0x70] sm:$0xff] %v464
    %529 = vst [vmem:[#allocation8 + $0x78] sm:$0xff] %v465
    %530 = vst [vmem:[#allocation8 + $0x80] sm:$0xff] %v466
    %531 = vst [vmem:[#allocation8 + $0x88] sm:$0xff] %v467
    %532 = vst [vmem:[#allocation8 + $0x90] sm:$0xff] %v468
    %533 = vst [vmem:[#allocation8 + $0x98] sm:$0xff] %v469
    %534 = vst [vmem:[#allocation8 + $0xa0] sm:$0xff] %v470
    %535 = vst [vmem:[#allocation8 + $0xa8] sm:$0xff] %v471
    %536 = vst [vmem:[#allocation8 + $0xb0] sm:$0xff] %v472
    %537 = vst [vmem:[#allocation8 + $0xb8] sm:$0xff] %v473
    %538 = vst [vmem:[#allocation8 + $0xc0] sm:$0xff] %v474
    %539 = vst [vmem:[#allocation8 + $0xc8] sm:$0xff] %v475
    %540 = vst [vmem:[#allocation8 + $0xd0] sm:$0xff] %v476
    %541 = vst [vmem:[#allocation8 + $0xd8] sm:$0xff] %v477
    %542 = vst [vmem:[#allocation8 + $0xe0] sm:$0xff] %v478
    %543 = vst [vmem:[#allocation8 + $0xe8] sm:$0xff] %v479
    %544 = vst [vmem:[#allocation8 + $0xf0] sm:$0xff] %v480
    %545 = vst [vmem:[#allocation8 + $0xf8] sm:$0xff] %v481
    %546 = vst [vmem:[#allocation8 + $0x100] sm:$0xff] %v482
    %547 = vst [vmem:[#allocation8 + $0x108] sm:$0xff] %v483
    %548 = vst [vmem:[#allocation8 + $0x110] sm:$0xff] %v484
    %549 = vst [vmem:[#allocation8 + $0x118] sm:$0xff] %v485
    %550 = vst [vmem:[#allocation8 + $0x120] sm:$0xff] %v486
    %551 = vst [vmem:[#allocation8 + $0x128] sm:$0xff] %v487
    %552 = vst [vmem:[#allocation8 + $0x130] sm:$0xff] %v488
    %553 = vst [vmem:[#allocation8 + $0x138] sm:$0xff] %v489
    %554 = vst [vmem:[#allocation8 + $0x140] sm:$0xff] %v490
    %555 = vst [vmem:[#allocation8 + $0x148] sm:$0xff] %v491
    %556 = vst [vmem:[#allocation8 + $0x150] sm:$0xff] %v492
    %557 = vst [vmem:[#allocation8 + $0x158] sm:$0xff] %v493
    %558 = vst [vmem:[#allocation8 + $0x160] sm:$0xff] %v494
    %559 = vst [vmem:[#allocation8 + $0x168] sm:$0xff] %v495
    %560 = vst [vmem:[#allocation8 + $0x170] sm:$0xff] %v496
    %561 = vst [vmem:[#allocation8 + $0x178] sm:$0xff] %v497
    %562 = vst [vmem:[#allocation8 + $0x180] sm:$0xff] %v498
    %563 = vst [vmem:[#allocation8 + $0x188] sm:$0xff] %v499
    %564 = vst [vmem:[#allocation8 + $0x190] sm:$0xff] %v500
    %565 = vst [vmem:[#allocation8 + $0x198] sm:$0xff] %v501
    %566 = vst [vmem:[#allocation8 + $0x1a0] sm:$0xff] %v502
    %567 = vst [vmem:[#allocation8 + $0x1a8] sm:$0xff] %v503
    %568 = vst [vmem:[#allocation8 + $0x1b0] sm:$0xff] %v504
    %569 = vst [vmem:[#allocation8 + $0x1b8] sm:$0xff] %v505
    %570 = vst [vmem:[#allocation8 + $0x1c0] sm:$0xff] %v506
    %571 = vst [vmem:[#allocation8 + $0x1c8] sm:$0xff] %v507
    %572 = vst [vmem:[#allocation8 + $0x1d0] sm:$0xff] %v508
    %573 = vst [vmem:[#allocation8 + $0x1d8] sm:$0xff] %v509
    %574 = vst [vmem:[#allocation8 + $0x1e0] sm:$0xff] %v510
    %575 = vst [vmem:[#allocation8 + $0x1e8] sm:$0xff] %v511
    %576 = vst [vmem:[#allocation8 + $0x1f0] sm:$0xff] %v512
    %577 = vst [vmem:[#allocation8 + $0x1f8] sm:$0xff] %v513
    // Predicated region
    $region26: #{_lambda_.11} parent=1 // pred_check
      _
    $region27: #{_lambda_.11} parent=1 // pred_check_branch
      %579 = sbr.rel (0) target = $region29
    $region28: #{_lambda_.11} parent=1 // pred_region
      %s581 = ssub.s32 8192, 8192
      %582 = vsyncadd [#allocation4], %s581
      %s583 = sshll.u32 [#allocation8], 4
      %s584 = int_to_ptr.vmem [resolvable:$true] %s583
      %589 = dma.vmem_to_hbm [thread:$0]  %s584, 8192, %s3, [#allocation4], 128, 128, 8
    $region29: #{_lambda_.11} parent=1 // pred_fallthru
      _
    // Predicated region
    $region30: #{_lambda_.11} parent=1 // pred_check
      _
    $region31: #{_lambda_.11} parent=1 // pred_check_branch
      %591 = sbr.rel (0) target = $region33
    $region32: #{_lambda_.11} parent=1 // pred_region
      %592 = dma.done [#allocation4], 8192
    $region33: #{_lambda_.11} parent=1 // pred_fallthru
      _
    %593 = vsyncpa [#allocation3], 1
    %594 = vsyncpa [#allocation6], 1
    %595 = vsyncpa [#allocation4], 1

// kernel: _lambda_.8
$region0: #{_lambda_.8}
  #allocation0 [shape = 'u32[]', space=smem, size = 0x4, offset = 0x4, fixed_abs, tag = 'smem constant byte address 0x4 - core index']
  #allocation1 [shape = 'u32[144,128]{1,0:T(1,128)}', space=vmem, size = 0x12000, scoped, tag = 'internal scratch']
  %s0 = inlined_call_operand.hbm [shape: bf16[512,128], index: 0, kind: input, shape index: {}]
  %s1 = inlined_call_operand.hbm [shape: f32[1,128], index: 1, kind: input, shape index: {}]
  %s2 = inlined_call_operand.hbm [shape: f32[1,128], index: 2, kind: input, shape index: {}]
  %s3 = inlined_call_operand.hbm [shape: bf16[128,128], index: 3, kind: input, shape index: {}]
  %s4 = inlined_call_operand.hbm [shape: bf16[512,128], index: 4, kind: output, shape index: {0}]
  %s5 = inlined_call_operand.hbm [shape: f32[1,1,128], index: 5, kind: output, shape index: {1}]
  %s6 = inlined_call_operand.hbm [shape: f32[1,1,128], index: 6, kind: output, shape index: {2}]
  %7 = xla_tuple %s4, %s5, %s6
  %s8 = sld [smem:[#allocation0]]
  $region58: #{_lambda_.8} parent=0
    _
  %s10 = ssub.s32 1, %s8
  %s11 = scalar_select 0, %s10, %s8
  $region1: #{_lambda_.8} parent=0
    #allocation2 [shape = 'u8[131072]{0}', space=vmem, size = 0x20000, scoped, tag = 'input window, operand 0, single buffered']
    #allocation3 [shape = 's32[1]{0}', space=sflag, size = 0x4, scoped, tag = 'scoped memory for _lambda_.8']
    #allocation4 [shape = 's32[1]{0}', space=sflag, size = 0x4, scoped, tag = 'scoped memory for _lambda_.8']
    #allocation5 [shape = 'u8[512]{0}', space=vmem, size = 0x400, scoped, tag = 'input window, operand 1, single buffered']
    #allocation6 [shape = 's32[1]{0}', space=sflag, size = 0x4, scoped, tag = 'scoped memory for _lambda_.8']
    #allocation7 [shape = 'u8[512]{0}', space=vmem, size = 0x400, scoped, tag = 'input window, operand 2, single buffered']
    #allocation8 [shape = 'u8[32768]{0}', space=vmem, size = 0x8000, scoped, tag = 'input window, operand 3, single buffered']
    #allocation9 [shape = 's32[1]{0}', space=sflag, size = 0x4, scoped, tag = 'scoped memory for _lambda_.8']
    #allocation10 [shape = 'u8[131072]{0}', space=vmem, size = 0x20000, scoped, tag = 'output window, operand 0, single buffered']
    #allocation11 [shape = 'u8[512]{0}', space=vmem, size = 0x400, scoped, tag = 'output window, operand 1, single buffered']
    #allocation12 [shape = 's32[1]{0}', space=sflag, size = 0x4, scoped, tag = 'scoped memory for _lambda_.8']
    #allocation13 [shape = 'u8[512]{0}', space=vmem, size = 0x400, scoped, tag = 'output window, operand 2, single buffered']
    %12 = vsyncpa [#allocation3], 0
    %13 = vsyncpa [#allocation6], 0
    %14 = vsyncpa [#allocation9], 0
    %15 = vsyncpa [#allocation4], 0
    %16 = vsyncpa [#allocation12], 0
    // Predicated region
    $region2: #{_lambda_.8} parent=1 // pred_check
      _
    $region3: #{_lambda_.8} parent=1 // pred_check_branch
      %18 = sbr.rel (0) target = $region5
    $region4: #{_lambda_.8} parent=1 // pred_region
      %s20 = ssub.s32 4096, 4096
      %21 = vsyncadd [#allocation3], %s20
      %s22 = sshll.u32 [#allocation2], 4
      %s23 = int_to_ptr.vmem [resolvable:$true] %s22
      %28 = dma.hbm_to_vmem [thread:$0]  %s0, 4096, %s23, [#allocation3], 64, 64, 4
    $region5: #{_lambda_.8} parent=1 // pred_fallthru
      _
    // Predicated region
    $region6: #{_lambda_.8} parent=1 // pred_check
      _
    $region7: #{_lambda_.8} parent=1 // pred_check_branch
      %30 = sbr.rel (0) target = $region9
    $region8: #{_lambda_.8} parent=1 // pred_region
      %s32 = ssub.s32 16, 16
      %33 = vsyncadd [#allocation6], %s32
      %s35 = sshll.u32 [#allocation5], 4
      %s36 = int_to_ptr.vmem [resolvable:$true] %s35
      %38 = dma.hbm_to_vmem [thread:$0]  %s1, 16, %s36, [#allocation6]
    $region9: #{_lambda_.8} parent=1 // pred_fallthru
      _
    // Predicated region
    $region10: #{_lambda_.8} parent=1 // pred_check
      _
    $region11: #{_lambda_.8} parent=1 // pred_check_branch
      %40 = sbr.rel (0) target = $region13
    $region12: #{_lambda_.8} parent=1 // pred_region
      %s42 = ssub.s32 16, 16
      %43 = vsyncadd [#allocation6], %s42
      %s45 = sshll.u32 [#allocation7], 4
      %s46 = int_to_ptr.vmem [resolvable:$true] %s45
      %48 = dma.hbm_to_vmem [thread:$0]  %s2, 16, %s46, [#allocation6]
    $region13: #{_lambda_.8} parent=1 // pred_fallthru
      _
    // Predicated region
    $region14: #{_lambda_.8} parent=1 // pred_check
      _
    $region15: #{_lambda_.8} parent=1 // pred_check_branch
      %50 = sbr.rel (0) target = $region17
    $region16: #{_lambda_.8} parent=1 // pred_region
      %s52 = ssub.s32 1024, 1024
      %53 = vsyncadd [#allocation9], %s52
      %s54 = sshll.u32 [#allocation8], 4
      %s55 = int_to_ptr.vmem [resolvable:$true] %s54
      %60 = dma.hbm_to_vmem [thread:$0]  %s3, 1024, %s55, [#allocation9], 64, 64, 4
    $region17: #{_lambda_.8} parent=1 // pred_fallthru
      _
    // Predicated region
    $region18: #{_lambda_.8} parent=1 // pred_check
      _
    $region19: #{_lambda_.8} parent=1 // pred_check_branch
      %62 = sbr.rel (0) target = $region21
    $region20: #{_lambda_.8} parent=1 // pred_region
      %63 = dma.done [#allocation3], 4096
    $region21: #{_lambda_.8} parent=1 // pred_fallthru
      _
    // Predicated region
    $region22: #{_lambda_.8} parent=1 // pred_check
      _
    $region23: #{_lambda_.8} parent=1 // pred_check_branch
      %65 = sbr.rel (0) target = $region25
    $region24: #{_lambda_.8} parent=1 // pred_region
      %66 = dma.done [#allocation6], 16
    $region25: #{_lambda_.8} parent=1 // pred_fallthru
      _
    // Predicated region
    $region26: #{_lambda_.8} parent=1 // pred_check
      _
    $region27: #{_lambda_.8} parent=1 // pred_check_branch
      %68 = sbr.rel (0) target = $region29
    $region28: #{_lambda_.8} parent=1 // pred_region
      %69 = dma.done [#allocation6], 16
    $region29: #{_lambda_.8} parent=1 // pred_fallthru
      _
    // Predicated region
    $region30: #{_lambda_.8} parent=1 // pred_check
      _
    $region31: #{_lambda_.8} parent=1 // pred_check_branch
      %71 = sbr.rel (0) target = $region33
    $region32: #{_lambda_.8} parent=1 // pred_region
      %72 = dma.done [#allocation9], 1024
    $region33: #{_lambda_.8} parent=1 // pred_fallthru
      _
    %v74 = vld [vmem:[#allocation2] sm:$0xf]
    %v75 = vld [vmem:[#allocation2 + $0x4] sm:$0xf]
    %v76 = vld [vmem:[#allocation2 + $0x8] sm:$0xf]
    %v77 = vld [vmem:[#allocation2 + $0xc] sm:$0xf]
    %v78 = vld [vmem:[#allocation2 + $0x10] sm:$0xf]
    %v79 = vld [vmem:[#allocation2 + $0x14] sm:$0xf]
    %v80 = vld [vmem:[#allocation2 + $0x18] sm:$0xf]
    %v81 = vld [vmem:[#allocation2 + $0x1c] sm:$0xf]
    %v82 = vld [vmem:[#allocation2 + $0x20] sm:$0xf]
    %v83 = vld [vmem:[#allocation2 + $0x24] sm:$0xf]
    %v84 = vld [vmem:[#allocation2 + $0x28] sm:$0xf]
    %v85 = vld [vmem:[#allocation2 + $0x2c] sm:$0xf]
    %v86 = vld [vmem:[#allocation2 + $0x30] sm:$0xf]
    %v87 = vld [vmem:[#allocation2 + $0x34] sm:$0xf]
    %v88 = vld [vmem:[#allocation2 + $0x38] sm:$0xf]
    %v89 = vld [vmem:[#allocation2 + $0x3c] sm:$0xf]
    %v90 = vld [vmem:[#allocation2 + $0x40] sm:$0xf]
    %v91 = vld [vmem:[#allocation2 + $0x44] sm:$0xf]
    %v92 = vld [vmem:[#allocation2 + $0x48] sm:$0xf]
    %v93 = vld [vmem:[#allocation2 + $0x4c] sm:$0xf]
    %v94 = vld [vmem:[#allocation2 + $0x50] sm:$0xf]
    %v95 = vld [vmem:[#allocation2 + $0x54] sm:$0xf]
    %v96 = vld [vmem:[#allocation2 + $0x58] sm:$0xf]
    %v97 = vld [vmem:[#allocation2 + $0x5c] sm:$0xf]
    %v98 = vld [vmem:[#allocation2 + $0x60] sm:$0xf]
    %v99 = vld [vmem:[#allocation2 + $0x64] sm:$0xf]
    %v100 = vld [vmem:[#allocation2 + $0x68] sm:$0xf]
    %v101 = vld [vmem:[#allocation2 + $0x6c] sm:$0xf]
    %v102 = vld [vmem:[#allocation2 + $0x70] sm:$0xf]
    %v103 = vld [vmem:[#allocation2 + $0x74] sm:$0xf]
    %v104 = vld [vmem:[#allocation2 + $0x78] sm:$0xf]
    %v105 = vld [vmem:[#allocation2 + $0x7c] sm:$0xf]
    %v106 = vld [vmem:[#allocation2 + $0x80] sm:$0xf]
    %v107 = vld [vmem:[#allocation2 + $0x84] sm:$0xf]
    %v108 = vld [vmem:[#allocation2 + $0x88] sm:$0xf]
    %v109 = vld [vmem:[#allocation2 + $0x8c] sm:$0xf]
    %v110 = vld [vmem:[#allocation2 + $0x90] sm:$0xf]
    %v111 = vld [vmem:[#allocation2 + $0x94] sm:$0xf]
    %v112 = vld [vmem:[#allocation2 + $0x98] sm:$0xf]
    %v113 = vld [vmem:[#allocation2 + $0x9c] sm:$0xf]
    %v114 = vld [vmem:[#allocation2 + $0xa0] sm:$0xf]
    %v115 = vld [vmem:[#allocation2 + $0xa4] sm:$0xf]
    %v116 = vld [vmem:[#allocation2 + $0xa8] sm:$0xf]
    %v117 = vld [vmem:[#allocation2 + $0xac] sm:$0xf]
    %v118 = vld [vmem:[#allocation2 + $0xb0] sm:$0xf]
    %v119 = vld [vmem:[#allocation2 + $0xb4] sm:$0xf]
    %v120 = vld [vmem:[#allocation2 + $0xb8] sm:$0xf]
    %v121 = vld [vmem:[#allocation2 + $0xbc] sm:$0xf]
    %v122 = vld [vmem:[#allocation2 + $0xc0] sm:$0xf]
    %v123 = vld [vmem:[#allocation2 + $0xc4] sm:$0xf]
    %v124 = vld [vmem:[#allocation2 + $0xc8] sm:$0xf]
    %v125 = vld [vmem:[#allocation2 + $0xcc] sm:$0xf]
    %v126 = vld [vmem:[#allocation2 + $0xd0] sm:$0xf]
    %v127 = vld [vmem:[#allocation2 + $0xd4] sm:$0xf]
    %v128 = vld [vmem:[#allocation2 + $0xd8] sm:$0xf]
    %v129 = vld [vmem:[#allocation2 + $0xdc] sm:$0xf]
    %v130 = vld [vmem:[#allocation2 + $0xe0] sm:$0xf]
    %v131 = vld [vmem:[#allocation2 + $0xe4] sm:$0xf]
    %v132 = vld [vmem:[#allocation2 + $0xe8] sm:$0xf]
    %v133 = vld [vmem:[#allocation2 + $0xec] sm:$0xf]
    %v134 = vld [vmem:[#allocation2 + $0xf0] sm:$0xf]
    %v135 = vld [vmem:[#allocation2 + $0xf4] sm:$0xf]
    %v136 = vld [vmem:[#allocation2 + $0xf8] sm:$0xf]
    %v137 = vld [vmem:[#allocation2 + $0xfc] sm:$0xf]
    %v138 = vunpack.c.l.bf16 %v74
    %v139 = vunpack.c.l.bf16 %v75
    %v140 = vunpack.c.l.bf16 %v76
    %v141 = vunpack.c.l.bf16 %v77
    %v142 = vunpack.c.l.bf16 %v78
    %v143 = vunpack.c.l.bf16 %v79
    %v144 = vunpack.c.l.bf16 %v80
    %v145 = vunpack.c.l.bf16 %v81
    %v146 = vunpack.c.l.bf16 %v82
    %v147 = vunpack.c.l.bf16 %v83
    %v148 = vunpack.c.l.bf16 %v84
    %v149 = vunpack.c.l.bf16 %v85
    %v150 = vunpack.c.l.bf16 %v86
    %v151 = vunpack.c.l.bf16 %v87
    %v152 = vunpack.c.l.bf16 %v88
    %v153 = vunpack.c.l.bf16 %v89
    %v154 = vunpack.c.l.bf16 %v90
    %v155 = vunpack.c.l.bf16 %v91
    %v156 = vunpack.c.l.bf16 %v92
    %v157 = vunpack.c.l.bf16 %v93
    %v158 = vunpack.c.l.bf16 %v94
    %v159 = vunpack.c.l.bf16 %v95
    %v160 = vunpack.c.l.bf16 %v96
    %v161 = vunpack.c.l.bf16 %v97
    %v162 = vunpack.c.l.bf16 %v98
    %v163 = vunpack.c.l.bf16 %v99
    %v164 = vunpack.c.l.bf16 %v100
    %v165 = vunpack.c.l.bf16 %v101
    %v166 = vunpack.c.l.bf16 %v102
    %v167 = vunpack.c.l.bf16 %v103
    %v168 = vunpack.c.l.bf16 %v104
    %v169 = vunpack.c.l.bf16 %v105
    %v170 = vunpack.c.l.bf16 %v106
    %v171 = vunpack.c.l.bf16 %v107
    %v172 = vunpack.c.l.bf16 %v108
    %v173 = vunpack.c.l.bf16 %v109
    %v174 = vunpack.c.l.bf16 %v110
    %v175 = vunpack.c.l.bf16 %v111
    %v176 = vunpack.c.l.bf16 %v112
    %v177 = vunpack.c.l.bf16 %v113
    %v178 = vunpack.c.l.bf16 %v114
    %v179 = vunpack.c.l.bf16 %v115
    %v180 = vunpack.c.l.bf16 %v116
    %v181 = vunpack.c.l.bf16 %v117
    %v182 = vunpack.c.l.bf16 %v118
    %v183 = vunpack.c.l.bf16 %v119
    %v184 = vunpack.c.l.bf16 %v120
    %v185 = vunpack.c.l.bf16 %v121
    %v186 = vunpack.c.l.bf16 %v122
    %v187 = vunpack.c.l.bf16 %v123
    %v188 = vunpack.c.l.bf16 %v124
    %v189 = vunpack.c.l.bf16 %v125
    %v190 = vunpack.c.l.bf16 %v126
    %v191 = vunpack.c.l.bf16 %v127
    %v192 = vunpack.c.l.bf16 %v128
    %v193 = vunpack.c.l.bf16 %v129
    %v194 = vunpack.c.l.bf16 %v130
    %v195 = vunpack.c.l.bf16 %v131
    %v196 = vunpack.c.l.bf16 %v132
    %v197 = vunpack.c.l.bf16 %v133
    %v198 = vunpack.c.l.bf16 %v134
    %v199 = vunpack.c.l.bf16 %v135
    %v200 = vunpack.c.l.bf16 %v136
    %v201 = vunpack.c.l.bf16 %v137
    %v202 = vld [vmem:[#allocation5] sm:$0x1]
    %v204 = vlaneseq
    %v205 = vshrl.u32 %v204, 7
    %v206 = vsub.s32 0, %v205
    %v207 = vrot.slane %v202, %v206
    %v209 = vmul.f32 %v138, %v207
    %v210 = vmul.f32 %v139, %v207
    %v211 = vmul.f32 %v140, %v207
    %v212 = vmul.f32 %v141, %v207
    %v213 = vmul.f32 %v142, %v207
    %v214 = vmul.f32 %v143, %v207
    %v215 = vmul.f32 %v144, %v207
    %v216 = vmul.f32 %v145, %v207
    %v217 = vmul.f32 %v146, %v207
    %v218 = vmul.f32 %v147, %v207
    %v219 = vmul.f32 %v148, %v207
    %v220 = vmul.f32 %v149, %v207
    %v221 = vmul.f32 %v150, %v207
    %v222 = vmul.f32 %v151, %v207
    %v223 = vmul.f32 %v152, %v207
    %v224 = vmul.f32 %v153, %v207
    %v225 = vmul.f32 %v154, %v207
    %v226 = vmul.f32 %v155, %v207
    %v227 = vmul.f32 %v156, %v207
    %v228 = vmul.f32 %v157, %v207
    %v229 = vmul.f32 %v158, %v207
    %v230 = vmul.f32 %v159, %v207
    %v231 = vmul.f32 %v160, %v207
    %v232 = vmul.f32 %v161, %v207
    %v233 = vmul.f32 %v162, %v207
    %v234 = vmul.f32 %v163, %v207
    %v235 = vmul.f32 %v164, %v207
    %v236 = vmul.f32 %v165, %v207
    %v237 = vmul.f32 %v166, %v207
    %v238 = vmul.f32 %v167, %v207
    %v239 = vmul.f32 %v168, %v207
    %v240 = vmul.f32 %v169, %v207
    %v241 = vmul.f32 %v170, %v207
    %v242 = vmul.f32 %v171, %v207
    %v243 = vmul.f32 %v172, %v207
    %v244 = vmul.f32 %v173, %v207
    %v245 = vmul.f32 %v174, %v207
    %v246 = vmul.f32 %v175, %v207
    %v247 = vmul.f32 %v176, %v207
    %v248 = vmul.f32 %v177, %v207
    %v249 = vmul.f32 %v178, %v207
    %v250 = vmul.f32 %v179, %v207
    %v251 = vmul.f32 %v180, %v207
    %v252 = vmul.f32 %v181, %v207
    %v253 = vmul.f32 %v182, %v207
    %v254 = vmul.f32 %v183, %v207
    %v255 = vmul.f32 %v184, %v207
    %v256 = vmul.f32 %v185, %v207
    %v257 = vmul.f32 %v186, %v207
    %v258 = vmul.f32 %v187, %v207
    %v259 = vmul.f32 %v188, %v207
    %v260 = vmul.f32 %v189, %v207
    %v261 = vmul.f32 %v190, %v207
    %v262 = vmul.f32 %v191, %v207
    %v263 = vmul.f32 %v192, %v207
    %v264 = vmul.f32 %v193, %v207
    %v265 = vmul.f32 %v194, %v207
    %v266 = vmul.f32 %v195, %v207
    %v267 = vmul.f32 %v196, %v207
    %v268 = vmul.f32 %v197, %v207
    %v269 = vmul.f32 %v198, %v207
    %v270 = vmul.f32 %v199, %v207
    %v271 = vmul.f32 %v200, %v207
    %v272 = vmul.f32 %v201, %v207
    %v273 = vld [vmem:[#allocation7] sm:$0x1]
    %v275 = vlaneseq
    %v276 = vshrl.u32 %v275, 7
    %v277 = vsub.s32 0, %v276
    %v278 = vrot.slane %v273, %v277
    %v280 = vadd.f32 %v209, %v278
    %v281 = vadd.f32 %v210, %v278
    %v282 = vadd.f32 %v211, %v278
    %v283 = vadd.f32 %v212, %v278
    %v284 = vadd.f32 %v213, %v278
    %v285 = vadd.f32 %v214, %v278
    %v286 = vadd.f32 %v215, %v278
    %v287 = vadd.f32 %v216, %v278
    %v288 = vadd.f32 %v217, %v278
    %v289 = vadd.f32 %v218, %v278
    %v290 = vadd.f32 %v219, %v278
    %v291 = vadd.f32 %v220, %v278
    %v292 = vadd.f32 %v221, %v278
    %v293 = vadd.f32 %v222, %v278
    %v294 = vadd.f32 %v223, %v278
    %v295 = vadd.f32 %v224, %v278
    %v296 = vadd.f32 %v225, %v278
    %v297 = vadd.f32 %v226, %v278
    %v298 = vadd.f32 %v227, %v278
    %v299 = vadd.f32 %v228, %v278
    %v300 = vadd.f32 %v229, %v278
    %v301 = vadd.f32 %v230, %v278
    %v302 = vadd.f32 %v231, %v278
    %v303 = vadd.f32 %v232, %v278
    %v304 = vadd.f32 %v233, %v278
    %v305 = vadd.f32 %v234, %v278
    %v306 = vadd.f32 %v235, %v278
    %v307 = vadd.f32 %v236, %v278
    %v308 = vadd.f32 %v237, %v278
    %v309 = vadd.f32 %v238, %v278
    %v310 = vadd.f32 %v239, %v278
    %v311 = vadd.f32 %v240, %v278
    %v312 = vadd.f32 %v241, %v278
    %v313 = vadd.f32 %v242, %v278
    %v314 = vadd.f32 %v243, %v278
    %v315 = vadd.f32 %v244, %v278
    %v316 = vadd.f32 %v245, %v278
    %v317 = vadd.f32 %v246, %v278
    %v318 = vadd.f32 %v247, %v278
    %v319 = vadd.f32 %v248, %v278
    %v320 = vadd.f32 %v249, %v278
    %v321 = vadd.f32 %v250, %v278
    %v322 = vadd.f32 %v251, %v278
    %v323 = vadd.f32 %v252, %v278
    %v324 = vadd.f32 %v253, %v278
    %v325 = vadd.f32 %v254, %v278
    %v326 = vadd.f32 %v255, %v278
    %v327 = vadd.f32 %v256, %v278
    %v328 = vadd.f32 %v257, %v278
    %v329 = vadd.f32 %v258, %v278
    %v330 = vadd.f32 %v259, %v278
    %v331 = vadd.f32 %v260, %v278
    %v332 = vadd.f32 %v261, %v278
    %v333 = vadd.f32 %v262, %v278
    %v334 = vadd.f32 %v263, %v278
    %v335 = vadd.f32 %v264, %v278
    %v336 = vadd.f32 %v265, %v278
    %v337 = vadd.f32 %v266, %v278
    %v338 = vadd.f32 %v267, %v278
    %v339 = vadd.f32 %v268, %v278
    %v340 = vadd.f32 %v269, %v278
    %v341 = vadd.f32 %v270, %v278
    %v342 = vadd.f32 %v271, %v278
    %v343 = vadd.f32 %v272, %v278
    %vm344 = vcmp.gt.f32.partialorder %v280, 0.0
    %vm345 = vcmp.gt.f32.partialorder %v281, 0.0
    %vm346 = vcmp.gt.f32.partialorder %v282, 0.0
    %vm347 = vcmp.gt.f32.partialorder %v283, 0.0
    %vm348 = vcmp.gt.f32.partialorder %v284, 0.0
    %vm349 = vcmp.gt.f32.partialorder %v285, 0.0
    %vm350 = vcmp.gt.f32.partialorder %v286, 0.0
    %vm351 = vcmp.gt.f32.partialorder %v287, 0.0
    %vm352 = vcmp.gt.f32.partialorder %v288, 0.0
    %vm353 = vcmp.gt.f32.partialorder %v289, 0.0
    %vm354 = vcmp.gt.f32.partialorder %v290, 0.0
    %vm355 = vcmp.gt.f32.partialorder %v291, 0.0
    %vm356 = vcmp.gt.f32.partialorder %v292, 0.0
    %vm357 = vcmp.gt.f32.partialorder %v293, 0.0
    %vm358 = vcmp.gt.f32.partialorder %v294, 0.0
    %vm359 = vcmp.gt.f32.partialorder %v295, 0.0
    %vm360 = vcmp.gt.f32.partialorder %v296, 0.0
    %vm361 = vcmp.gt.f32.partialorder %v297, 0.0
    %vm362 = vcmp.gt.f32.partialorder %v298, 0.0
    %vm363 = vcmp.gt.f32.partialorder %v299, 0.0
    %vm364 = vcmp.gt.f32.partialorder %v300, 0.0
    %vm365 = vcmp.gt.f32.partialorder %v301, 0.0
    %vm366 = vcmp.gt.f32.partialorder %v302, 0.0
    %vm367 = vcmp.gt.f32.partialorder %v303, 0.0
    %vm368 = vcmp.gt.f32.partialorder %v304, 0.0
    %vm369 = vcmp.gt.f32.partialorder %v305, 0.0
    %vm370 = vcmp.gt.f32.partialorder %v306, 0.0
    %vm371 = vcmp.gt.f32.partialorder %v307, 0.0
    %vm372 = vcmp.gt.f32.partialorder %v308, 0.0
    %vm373 = vcmp.gt.f32.partialorder %v309, 0.0
    %vm374 = vcmp.gt.f32.partialorder %v310, 0.0
    %vm375 = vcmp.gt.f32.partialorder %v311, 0.0
    %vm376 = vcmp.gt.f32.partialorder %v312, 0.0
    %vm377 = vcmp.gt.f32.partialorder %v313, 0.0
    %vm378 = vcmp.gt.f32.partialorder %v314, 0.0
    %vm379 = vcmp.gt.f32.partialorder %v315, 0.0
    %vm380 = vcmp.gt.f32.partialorder %v316, 0.0
    %vm381 = vcmp.gt.f32.partialorder %v317, 0.0
    %vm382 = vcmp.gt.f32.partialorder %v318, 0.0
    %vm383 = vcmp.gt.f32.partialorder %v319, 0.0
    %vm384 = vcmp.gt.f32.partialorder %v320, 0.0
    %vm385 = vcmp.gt.f32.partialorder %v321, 0.0
    %vm386 = vcmp.gt.f32.partialorder %v322, 0.0
    %vm387 = vcmp.gt.f32.partialorder %v323, 0.0
    %vm388 = vcmp.gt.f32.partialorder %v324, 0.0
    %vm389 = vcmp.gt.f32.partialorder %v325, 0.0
    %vm390 = vcmp.gt.f32.partialorder %v326, 0.0
    %vm391 = vcmp.gt.f32.partialorder %v327, 0.0
    %vm392 = vcmp.gt.f32.partialorder %v328, 0.0
    %vm393 = vcmp.gt.f32.partialorder %v329, 0.0
    %vm394 = vcmp.gt.f32.partialorder %v330, 0.0
    %vm395 = vcmp.gt.f32.partialorder %v331, 0.0
    %vm396 = vcmp.gt.f32.partialorder %v332, 0.0
    %vm397 = vcmp.gt.f32.partialorder %v333, 0.0
    %vm398 = vcmp.gt.f32.partialorder %v334, 0.0
    %vm399 = vcmp.gt.f32.partialorder %v335, 0.0
    %vm400 = vcmp.gt.f32.partialorder %v336, 0.0
    %vm401 = vcmp.gt.f32.partialorder %v337, 0.0
    %vm402 = vcmp.gt.f32.partialorder %v338, 0.0
    %vm403 = vcmp.gt.f32.partialorder %v339, 0.0
    %vm404 = vcmp.gt.f32.partialorder %v340, 0.0
    %vm405 = vcmp.gt.f32.partialorder %v341, 0.0
    %vm406 = vcmp.gt.f32.partialorder %v342, 0.0
    %vm407 = vcmp.gt.f32.partialorder %v343, 0.0
    %v408 = vmul.f32 %v280, 0.1
    %v409 = vmul.f32 %v281, 0.1
    %v410 = vmul.f32 %v282, 0.1
    %v411 = vmul.f32 %v283, 0.1
    %v412 = vmul.f32 %v284, 0.1
    %v413 = vmul.f32 %v285, 0.1
    %v414 = vmul.f32 %v286, 0.1
    %v415 = vmul.f32 %v287, 0.1
    %v416 = vmul.f32 %v288, 0.1
    %v417 = vmul.f32 %v289, 0.1
    %v418 = vmul.f32 %v290, 0.1
    %v419 = vmul.f32 %v291, 0.1
    %v420 = vmul.f32 %v292, 0.1
    %v421 = vmul.f32 %v293, 0.1
    %v422 = vmul.f32 %v294, 0.1
    %v423 = vmul.f32 %v295, 0.1
    %v424 = vmul.f32 %v296, 0.1
    %v425 = vmul.f32 %v297, 0.1
    %v426 = vmul.f32 %v298, 0.1
    %v427 = vmul.f32 %v299, 0.1
    %v428 = vmul.f32 %v300, 0.1
    %v429 = vmul.f32 %v301, 0.1
    %v430 = vmul.f32 %v302, 0.1
    %v431 = vmul.f32 %v303, 0.1
    %v432 = vmul.f32 %v304, 0.1
    %v433 = vmul.f32 %v305, 0.1
    %v434 = vmul.f32 %v306, 0.1
    %v435 = vmul.f32 %v307, 0.1
    %v436 = vmul.f32 %v308, 0.1
    %v437 = vmul.f32 %v309, 0.1
    %v438 = vmul.f32 %v310, 0.1
    %v439 = vmul.f32 %v311, 0.1
    %v440 = vmul.f32 %v312, 0.1
    %v441 = vmul.f32 %v313, 0.1
    %v442 = vmul.f32 %v314, 0.1
    %v443 = vmul.f32 %v315, 0.1
    %v444 = vmul.f32 %v316, 0.1
    %v445 = vmul.f32 %v317, 0.1
    %v446 = vmul.f32 %v318, 0.1
    %v447 = vmul.f32 %v319, 0.1
    %v448 = vmul.f32 %v320, 0.1
    %v449 = vmul.f32 %v321, 0.1
    %v450 = vmul.f32 %v322, 0.1
    %v451 = vmul.f32 %v323, 0.1
    %v452 = vmul.f32 %v324, 0.1
    %v453 = vmul.f32 %v325, 0.1
    %v454 = vmul.f32 %v326, 0.1
    %v455 = vmul.f32 %v327, 0.1
    %v456 = vmul.f32 %v328, 0.1
    %v457 = vmul.f32 %v329, 0.1
    %v458 = vmul.f32 %v330, 0.1
    %v459 = vmul.f32 %v331, 0.1
    %v460 = vmul.f32 %v332, 0.1
    %v461 = vmul.f32 %v333, 0.1
    %v462 = vmul.f32 %v334, 0.1
    %v463 = vmul.f32 %v335, 0.1
    %v464 = vmul.f32 %v336, 0.1
    %v465 = vmul.f32 %v337, 0.1
    %v466 = vmul.f32 %v338, 0.1
    %v467 = vmul.f32 %v339, 0.1
    %v468 = vmul.f32 %v340, 0.1
    %v469 = vmul.f32 %v341, 0.1
    %v470 = vmul.f32 %v342, 0.1
    %v471 = vmul.f32 %v343, 0.1
    %v472 = vsel %vm344, %v280, %v408
    %v473 = vsel %vm345, %v281, %v409
    %v474 = vsel %vm346, %v282, %v410
    %v475 = vsel %vm347, %v283, %v411
    %v476 = vsel %vm348, %v284, %v412
    %v477 = vsel %vm349, %v285, %v413
    %v478 = vsel %vm350, %v286, %v414
    %v479 = vsel %vm351, %v287, %v415
    %v480 = vsel %vm352, %v288, %v416
    %v481 = vsel %vm353, %v289, %v417
    %v482 = vsel %vm354, %v290, %v418
    %v483 = vsel %vm355, %v291, %v419
    %v484 = vsel %vm356, %v292, %v420
    %v485 = vsel %vm357, %v293, %v421
    %v486 = vsel %vm358, %v294, %v422
    %v487 = vsel %vm359, %v295, %v423
    %v488 = vsel %vm360, %v296, %v424
    %v489 = vsel %vm361, %v297, %v425
    %v490 = vsel %vm362, %v298, %v426
    %v491 = vsel %vm363, %v299, %v427
    %v492 = vsel %vm364, %v300, %v428
    %v493 = vsel %vm365, %v301, %v429
    %v494 = vsel %vm366, %v302, %v430
    %v495 = vsel %vm367, %v303, %v431
    %v496 = vsel %vm368, %v304, %v432
    %v497 = vsel %vm369, %v305, %v433
    %v498 = vsel %vm370, %v306, %v434
    %v499 = vsel %vm371, %v307, %v435
    %v500 = vsel %vm372, %v308, %v436
    %v501 = vsel %vm373, %v309, %v437
    %v502 = vsel %vm374, %v310, %v438
    %v503 = vsel %vm375, %v311, %v439
    %v504 = vsel %vm376, %v312, %v440
    %v505 = vsel %vm377, %v313, %v441
    %v506 = vsel %vm378, %v314, %v442
    %v507 = vsel %vm379, %v315, %v443
    %v508 = vsel %vm380, %v316, %v444
    %v509 = vsel %vm381, %v317, %v445
    %v510 = vsel %vm382, %v318, %v446
    %v511 = vsel %vm383, %v319, %v447
    %v512 = vsel %vm384, %v320, %v448
    %v513 = vsel %vm385, %v321, %v449
    %v514 = vsel %vm386, %v322, %v450
    %v515 = vsel %vm387, %v323, %v451
    %v516 = vsel %vm388, %v324, %v452
    %v517 = vsel %vm389, %v325, %v453
    %v518 = vsel %vm390, %v326, %v454
    %v519 = vsel %vm391, %v327, %v455
    %v520 = vsel %vm392, %v328, %v456
    %v521 = vsel %vm393, %v329, %v457
    %v522 = vsel %vm394, %v330, %v458
    %v523 = vsel %vm395, %v331, %v459
    %v524 = vsel %vm396, %v332, %v460
    %v525 = vsel %vm397, %v333, %v461
    %v526 = vsel %vm398, %v334, %v462
    %v527 = vsel %vm399, %v335, %v463
    %v528 = vsel %vm400, %v336, %v464
    %v529 = vsel %vm401, %v337, %v465
    %v530 = vsel %vm402, %v338, %v466
    %v531 = vsel %vm403, %v339, %v467
    %v532 = vsel %vm404, %v340, %v468
    %v533 = vsel %vm405, %v341, %v469
    %v534 = vsel %vm406, %v342, %v470
    %v535 = vsel %vm407, %v343, %v471
    %v536 = vpack.c.bf16 %v473, %v472
    %v537 = vpack.c.bf16 %v475, %v474
    %v538 = vpack.c.bf16 %v477, %v476
    %v539 = vpack.c.bf16 %v479, %v478
    %v540 = vpack.c.bf16 %v481, %v480
    %v541 = vpack.c.bf16 %v483, %v482
    %v542 = vpack.c.bf16 %v485, %v484
    %v543 = vpack.c.bf16 %v487, %v486
    %v544 = vpack.c.bf16 %v489, %v488
    %v545 = vpack.c.bf16 %v491, %v490
    %v546 = vpack.c.bf16 %v493, %v492
    %v547 = vpack.c.bf16 %v495, %v494
    %v548 = vpack.c.bf16 %v497, %v496
    %v549 = vpack.c.bf16 %v499, %v498
    %v550 = vpack.c.bf16 %v501, %v500
    %v551 = vpack.c.bf16 %v503, %v502
    %v552 = vpack.c.bf16 %v505, %v504
    %v553 = vpack.c.bf16 %v507, %v506
    %v554 = vpack.c.bf16 %v509, %v508
    %v555 = vpack.c.bf16 %v511, %v510
    %v556 = vpack.c.bf16 %v513, %v512
    %v557 = vpack.c.bf16 %v515, %v514
    %v558 = vpack.c.bf16 %v517, %v516
    %v559 = vpack.c.bf16 %v519, %v518
    %v560 = vpack.c.bf16 %v521, %v520
    %v561 = vpack.c.bf16 %v523, %v522
    %v562 = vpack.c.bf16 %v525, %v524
    %v563 = vpack.c.bf16 %v527, %v526
    %v564 = vpack.c.bf16 %v529, %v528
    %v565 = vpack.c.bf16 %v531, %v530
    %v566 = vpack.c.bf16 %v533, %v532
    %v567 = vpack.c.bf16 %v535, %v534
    %v568 = vld [vmem:[#allocation8] sm:$0xf]
    %v569 = vld [vmem:[#allocation8 + $0x4] sm:$0xf]
    %v570 = vld [vmem:[#allocation8 + $0x8] sm:$0xf]
    %v571 = vld [vmem:[#allocation8 + $0xc] sm:$0xf]
    %v572 = vld [vmem:[#allocation8 + $0x10] sm:$0xf]
    %v573 = vld [vmem:[#allocation8 + $0x14] sm:$0xf]
    %v574 = vld [vmem:[#allocation8 + $0x18] sm:$0xf]
    %v575 = vld [vmem:[#allocation8 + $0x1c] sm:$0xf]
    %v576 = vld [vmem:[#allocation8 + $0x20] sm:$0xf]
    %v577 = vld [vmem:[#allocation8 + $0x24] sm:$0xf]
    %v578 = vld [vmem:[#allocation8 + $0x28] sm:$0xf]
    %v579 = vld [vmem:[#allocation8 + $0x2c] sm:$0xf]
    %v580 = vld [vmem:[#allocation8 + $0x30] sm:$0xf]
    %v581 = vld [vmem:[#allocation8 + $0x34] sm:$0xf]
    %v582 = vld [vmem:[#allocation8 + $0x38] sm:$0xf]
    %v583 = vld [vmem:[#allocation8 + $0x3c] sm:$0xf]
    %v600 = vunpack.c.l.b16 %v568
    %v601 = vunpack.c.l.b16 %v569
    %v602 = vunpack.c.l.b16 %v570
    %v603 = vunpack.c.l.b16 %v571
    %v604 = vunpack.c.l.b16 %v572
    %v605 = vunpack.c.l.b16 %v573
    %v606 = vunpack.c.l.b16 %v574
    %v607 = vunpack.c.l.b16 %v575
    %v608 = vunpack.c.l.b16 %v576
    %v609 = vunpack.c.l.b16 %v577
    %v610 = vunpack.c.l.b16 %v578
    %v611 = vunpack.c.l.b16 %v579
    %v612 = vunpack.c.l.b16 %v580
    %v613 = vunpack.c.l.b16 %v581
    %v614 = vunpack.c.l.b16 %v582
    %v615 = vunpack.c.l.b16 %v583
    %v616 = vpack.c.b16 %v601, %v600
    %v617 = vpack.c.b16 %v603, %v602
    %v618 = vpack.c.b16 %v605, %v604
    %v619 = vpack.c.b16 %v607, %v606
    %v620 = vpack.c.b16 %v609, %v608
    %v621 = vpack.c.b16 %v611, %v610
    %v622 = vpack.c.b16 %v613, %v612
    %v623 = vpack.c.b16 %v615, %v614
    %632 = vmatprep.subr.bf16.mxu0 0
    %633 = vmatpush1.bf16.msra.mxu0 %v616
    %634 = vmatprep.subr.bf16.mxu0 0
    %635 = vmatpush1.bf16.msra.mxu0 %v617
    %636 = vmatprep.subr.bf16.mxu0 0
    %637 = vmatpush1.bf16.msra.mxu0 %v618
    %638 = vmatprep.subr.bf16.mxu0 0
    %639 = vmatpush1.bf16.msra.mxu0 %v619
    %640 = vmatprep.subr.bf16.mxu0 0
    %641 = vmatpush1.bf16.msra.mxu0 %v620
    %642 = vmatprep.subr.bf16.mxu0 0
    %643 = vmatpush1.bf16.msra.mxu0 %v621
    %644 = vmatprep.subr.bf16.mxu0 0
    %645 = vmatpush1.bf16.msra.mxu0 %v622
    %646 = vmatprep.subr.bf16.mxu0 0
    %647 = vmatpush1.bf16.msra.mxu0 %v623
    %648 = vmatprep.subr.bf16.mxu0 0
    %649 = vmatpush1.bf16.msra.mxu0 0
    %650 = vmatprep.subr.bf16.mxu0 0
    %651 = vmatpush1.bf16.msra.mxu0 0
    %652 = vmatprep.subr.bf16.mxu0 0
    %653 = vmatpush1.bf16.msra.mxu0 0
    %654 = vmatprep.subr.bf16.mxu0 0
    %655 = vmatpush1.bf16.msra.mxu0 0
    %656 = vmatprep.subr.bf16.mxu0 0
    %657 = vmatpush1.bf16.msra.mxu0 0
    %658 = vmatprep.subr.bf16.mxu0 0
    %659 = vmatpush1.bf16.msra.mxu0 0
    %660 = vmatprep.subr.bf16.mxu0 0
    %661 = vmatpush1.bf16.msra.mxu0 0
    %662 = vmatprep.subr.bf16.mxu0 0
    %663 = vmatpush1.bf16.msra.mxu0 0
    %664 = vmatprep.mubr.bf16.mxu0 0
    %665 = vmatmul.mubr.bf16.gmra.mrb[0].mxu0 %v536
    %v666 = vpop.f32.mrb[0].mxu0
    %v667 = vadd.f32 0.0, %v666
    %v668 = vpop.f32.mrb[0].mxu0
    %v669 = vpop.f32.mrb[0].mxu0
    %v670 = vadd.f32 0.0, %v669
    %v671 = vpop.f32.mrb[0].mxu0
    %672 = vmatprep.mubr.bf16.mxu0 0
    %673 = vmatmul.mubr.bf16.gmra.mrb[0].mxu0 %v537
    %v674 = vpop.f32.mrb[0].mxu0
    %v675 = vadd.f32 0.0, %v674
    %v676 = vpop.f32.mrb[0].mxu0
    %v677 = vpop.f32.mrb[0].mxu0
    %v678 = vadd.f32 0.0, %v677
    %v679 = vpop.f32.mrb[0].mxu0
    %680 = vmatprep.mubr.bf16.mxu0 0
    %681 = vmatmul.mubr.bf16.gmra.mrb[0].mxu0 %v538
    %v682 = vpop.f32.mrb[0].mxu0
    %v683 = vadd.f32 0.0, %v682
    %v684 = vpop.f32.mrb[0].mxu0
    %v685 = vpop.f32.mrb[0].mxu0
    %v686 = vadd.f32 0.0, %v685
    %v687 = vpop.f32.mrb[0].mxu0
    %688 = vmatprep.mubr.bf16.mxu0 0
    %689 = vmatmul.mubr.bf16.gmra.mrb[0].mxu0 %v539
    %v690 = vpop.f32.mrb[0].mxu0
    %v691 = vadd.f32 0.0, %v690
    %v692 = vpop.f32.mrb[0].mxu0
    %v693 = vpop.f32.mrb[0].mxu0
    %v694 = vadd.f32 0.0, %v693
    %v695 = vpop.f32.mrb[0].mxu0
    %696 = vmatprep.mubr.bf16.mxu0 0
    %697 = vmatmul.mubr.bf16.gmra.mrb[0].mxu0 %v540
    %v698 = vpop.f32.mrb[0].mxu0
    %v699 = vadd.f32 0.0, %v698
    %v700 = vpop.f32.mrb[0].mxu0
    %v701 = vpop.f32.mrb[0].mxu0
    %v702 = vadd.f32 0.0, %v701
    %v703 = vpop.f32.mrb[0].mxu0
    %704 = vmatprep.mubr.bf16.mxu0 0
    %705 = vmatmul.mubr.bf16.gmra.mrb[0].mxu0 %v541
    %v706 = vpop.f32.mrb[0].mxu0
    %v707 = vadd.f32 0.0, %v706
    %v708 = vpop.f32.mrb[0].mxu0
    %v709 = vpop.f32.mrb[0].mxu0
    %v710 = vadd.f32 0.0, %v709
    %v711 = vpop.f32.mrb[0].mxu0
    %712 = vmatprep.mubr.bf16.mxu0 0
    %713 = vmatmul.mubr.bf16.gmra.mrb[0].mxu0 %v542
    %v714 = vpop.f32.mrb[0].mxu0
    %v715 = vadd.f32 0.0, %v714
    %v716 = vpop.f32.mrb[0].mxu0
    %v717 = vpop.f32.mrb[0].mxu0
    %v718 = vadd.f32 0.0, %v717
    %v719 = vpop.f32.mrb[0].mxu0
    %720 = vmatprep.mubr.bf16.mxu0 0
    %721 = vmatmul.mubr.bf16.gmra.mrb[0].mxu0 %v543
    %v722 = vpop.f32.mrb[0].mxu0
    %v723 = vadd.f32 0.0, %v722
    %v724 = vpop.f32.mrb[0].mxu0
    %v725 = vpop.f32.mrb[0].mxu0
    %v726 = vadd.f32 0.0, %v725
    %v727 = vpop.f32.mrb[0].mxu0
    %728 = vmatprep.mubr.bf16.mxu0 0
    %729 = vmatmul.mubr.bf16.gmra.mrb[0].mxu0 %v544
    %v730 = vpop.f32.mrb[0].mxu0
    %v731 = vadd.f32 0.0, %v730
    %v732 = vpop.f32.mrb[0].mxu0
    %v733 = vpop.f32.mrb[0].mxu0
    %v734 = vadd.f32 0.0, %v733
    %v735 = vpop.f32.mrb[0].mxu0
    %736 = vmatprep.mubr.bf16.mxu0 0
    %737 = vmatmul.mubr.bf16.gmra.mrb[0].mxu0 %v545
    %v738 = vpop.f32.mrb[0].mxu0
    %v739 = vadd.f32 0.0, %v738
    %v740 = vpop.f32.mrb[0].mxu0
    %v741 = vpop.f32.mrb[0].mxu0
    %v742 = vadd.f32 0.0, %v741
    %v743 = vpop.f32.mrb[0].mxu0
    %744 = vmatprep.mubr.bf16.mxu0 0
    %745 = vmatmul.mubr.bf16.gmra.mrb[0].mxu0 %v546
    %v746 = vpop.f32.mrb[0].mxu0
    %v747 = vadd.f32 0.0, %v746
    %v748 = vpop.f32.mrb[0].mxu0
    %v749 = vpop.f32.mrb[0].mxu0
    %v750 = vadd.f32 0.0, %v749
    %v751 = vpop.f32.mrb[0].mxu0
    %752 = vmatprep.mubr.bf16.mxu0 0
    %753 = vmatmul.mubr.bf16.gmra.mrb[0].mxu0 %v547
    %v754 = vpop.f32.mrb[0].mxu0
    %v755 = vadd.f32 0.0, %v754
    %v756 = vpop.f32.mrb[0].mxu0
    %v757 = vpop.f32.mrb[0].mxu0
    %v758 = vadd.f32 0.0, %v757
    %v759 = vpop.f32.mrb[0].mxu0
    %760 = vmatprep.mubr.bf16.mxu0 0
    %761 = vmatmul.mubr.bf16.gmra.mrb[0].mxu0 %v548
    %v762 = vpop.f32.mrb[0].mxu0
    %v763 = vadd.f32 0.0, %v762
    %v764 = vpop.f32.mrb[0].mxu0
    %v765 = vpop.f32.mrb[0].mxu0
    %v766 = vadd.f32 0.0, %v765
    %v767 = vpop.f32.mrb[0].mxu0
    %768 = vmatprep.mubr.bf16.mxu0 0
    %769 = vmatmul.mubr.bf16.gmra.mrb[0].mxu0 %v549
    %v770 = vpop.f32.mrb[0].mxu0
    %v771 = vadd.f32 0.0, %v770
    %v772 = vpop.f32.mrb[0].mxu0
    %v773 = vpop.f32.mrb[0].mxu0
    %v774 = vadd.f32 0.0, %v773
    %v775 = vpop.f32.mrb[0].mxu0
    %776 = vmatprep.mubr.bf16.mxu0 0
    %777 = vmatmul.mubr.bf16.gmra.mrb[0].mxu0 %v550
    %v778 = vpop.f32.mrb[0].mxu0
    %v779 = vadd.f32 0.0, %v778
    %v780 = vpop.f32.mrb[0].mxu0
    %v781 = vpop.f32.mrb[0].mxu0
    %v782 = vadd.f32 0.0, %v781
    %v783 = vpop.f32.mrb[0].mxu0
    %784 = vmatprep.mubr.bf16.mxu0 0
    %785 = vmatmul.mubr.bf16.gmra.mrb[0].mxu0 %v551
    %v786 = vpop.f32.mrb[0].mxu0
    %v787 = vadd.f32 0.0, %v786
    %v788 = vpop.f32.mrb[0].mxu0
    %v789 = vpop.f32.mrb[0].mxu0
    %v790 = vadd.f32 0.0, %v789
    %v791 = vpop.f32.mrb[0].mxu0
    %792 = vmatprep.mubr.bf16.mxu0 0
    %793 = vmatmul.mubr.bf16.gmra.mrb[0].mxu0 %v552
    %v794 = vpop.f32.mrb[0].mxu0
    %v795 = vadd.f32 0.0, %v794
    %v796 = vpop.f32.mrb[0].mxu0
    %v797 = vpop.f32.mrb[0].mxu0
    %v798 = vadd.f32 0.0, %v797
    %v799 = vpop.f32.mrb[0].mxu0
    %800 = vmatprep.mubr.bf16.mxu0 0
    %801 = vmatmul.mubr.bf16.gmra.mrb[0].mxu0 %v553
    %v802 = vpop.f32.mrb[0].mxu0
    %v803 = vadd.f32 0.0, %v802
    %v804 = vpop.f32.mrb[0].mxu0
    %v805 = vpop.f32.mrb[0].mxu0
    %v806 = vadd.f32 0.0, %v805
    %v807 = vpop.f32.mrb[0].mxu0
    %808 = vmatprep.mubr.bf16.mxu0 0
    %809 = vmatmul.mubr.bf16.gmra.mrb[0].mxu0 %v554
    %v810 = vpop.f32.mrb[0].mxu0
    %v811 = vadd.f32 0.0, %v810
    %v812 = vpop.f32.mrb[0].mxu0
    %v813 = vpop.f32.mrb[0].mxu0
    %v814 = vadd.f32 0.0, %v813
    %v815 = vpop.f32.mrb[0].mxu0
    %816 = vmatprep.mubr.bf16.mxu0 0
    %817 = vmatmul.mubr.bf16.gmra.mrb[0].mxu0 %v555
    %v818 = vpop.f32.mrb[0].mxu0
    %v819 = vadd.f32 0.0, %v818
    %v820 = vpop.f32.mrb[0].mxu0
    %v821 = vpop.f32.mrb[0].mxu0
    %v822 = vadd.f32 0.0, %v821
    %v823 = vpop.f32.mrb[0].mxu0
    %824 = vmatprep.mubr.bf16.mxu0 0
    %825 = vmatmul.mubr.bf16.gmra.mrb[0].mxu0 %v556
    %v826 = vpop.f32.mrb[0].mxu0
    %v827 = vadd.f32 0.0, %v826
    %v828 = vpop.f32.mrb[0].mxu0
    %v829 = vpop.f32.mrb[0].mxu0
    %v830 = vadd.f32 0.0, %v829
    %v831 = vpop.f32.mrb[0].mxu0
    %832 = vmatprep.mubr.bf16.mxu0 0
    %833 = vmatmul.mubr.bf16.gmra.mrb[0].mxu0 %v557
    %v834 = vpop.f32.mrb[0].mxu0
    %v835 = vadd.f32 0.0, %v834
    %v836 = vpop.f32.mrb[0].mxu0
    %v837 = vpop.f32.mrb[0].mxu0
    %v838 = vadd.f32 0.0, %v837
    %v839 = vpop.f32.mrb[0].mxu0
    %840 = vmatprep.mubr.bf16.mxu0 0
    %841 = vmatmul.mubr.bf16.gmra.mrb[0].mxu0 %v558
    %v842 = vpop.f32.mrb[0].mxu0
    %v843 = vadd.f32 0.0, %v842
    %v844 = vpop.f32.mrb[0].mxu0
    %v845 = vpop.f32.mrb[0].mxu0
    %v846 = vadd.f32 0.0, %v845
    %v847 = vpop.f32.mrb[0].mxu0
    %848 = vmatprep.mubr.bf16.mxu0 0
    %849 = vmatmul.mubr.bf16.gmra.mrb[0].mxu0 %v559
    %v850 = vpop.f32.mrb[0].mxu0
    %v851 = vadd.f32 0.0, %v850
    %v852 = vpop.f32.mrb[0].mxu0
    %v853 = vpop.f32.mrb[0].mxu0
    %v854 = vadd.f32 0.0, %v853
    %v855 = vpop.f32.mrb[0].mxu0
    %856 = vmatprep.mubr.bf16.mxu0 0
    %857 = vmatmul.mubr.bf16.gmra.mrb[0].mxu0 %v560
    %v858 = vpop.f32.mrb[0].mxu0
    %v859 = vadd.f32 0.0, %v858
    %v860 = vpop.f32.mrb[0].mxu0
    %v861 = vpop.f32.mrb[0].mxu0
    %v862 = vadd.f32 0.0, %v861
    %v863 = vpop.f32.mrb[0].mxu0
    %864 = vmatprep.mubr.bf16.mxu0 0
    %865 = vmatmul.mubr.bf16.gmra.mrb[0].mxu0 %v561
    %v866 = vpop.f32.mrb[0].mxu0
    %v867 = vadd.f32 0.0, %v866
    %v868 = vpop.f32.mrb[0].mxu0
    %v869 = vpop.f32.mrb[0].mxu0
    %v870 = vadd.f32 0.0, %v869
    %v871 = vpop.f32.mrb[0].mxu0
    %872 = vmatprep.mubr.bf16.mxu0 0
    %873 = vmatmul.mubr.bf16.gmra.mrb[0].mxu0 %v562
    %v874 = vpop.f32.mrb[0].mxu0
    %v875 = vadd.f32 0.0, %v874
    %v876 = vpop.f32.mrb[0].mxu0
    %v877 = vpop.f32.mrb[0].mxu0
    %v878 = vadd.f32 0.0, %v877
    %v879 = vpop.f32.mrb[0].mxu0
    %880 = vmatprep.mubr.bf16.mxu0 0
    %881 = vmatmul.mubr.bf16.gmra.mrb[0].mxu0 %v563
    %v882 = vpop.f32.mrb[0].mxu0
    %v883 = vadd.f32 0.0, %v882
    %v884 = vpop.f32.mrb[0].mxu0
    %v885 = vpop.f32.mrb[0].mxu0
    %v886 = vadd.f32 0.0, %v885
    %v887 = vpop.f32.mrb[0].mxu0
    %888 = vmatprep.mubr.bf16.mxu0 0
    %889 = vmatmul.mubr.bf16.gmra.mrb[0].mxu0 %v564
    %v890 = vpop.f32.mrb[0].mxu0
    %v891 = vadd.f32 0.0, %v890
    %v892 = vpop.f32.mrb[0].mxu0
    %v893 = vpop.f32.mrb[0].mxu0
    %v894 = vadd.f32 0.0, %v893
    %v895 = vpop.f32.mrb[0].mxu0
    %896 = vmatprep.mubr.bf16.mxu0 0
    %897 = vmatmul.mubr.bf16.gmra.mrb[0].mxu0 %v565
    %v898 = vpop.f32.mrb[0].mxu0
    %v899 = vadd.f32 0.0, %v898
    %v900 = vpop.f32.mrb[0].mxu0
    %v901 = vpop.f32.mrb[0].mxu0
    %v902 = vadd.f32 0.0, %v901
    %v903 = vpop.f32.mrb[0].mxu0
    %904 = vmatprep.mubr.bf16.mxu0 0
    %905 = vmatmul.mubr.bf16.gmra.mrb[0].mxu0 %v566
    %v906 = vpop.f32.mrb[0].mxu0
    %v907 = vadd.f32 0.0, %v906
    %v908 = vpop.f32.mrb[0].mxu0
    %v909 = vpop.f32.mrb[0].mxu0
    %v910 = vadd.f32 0.0, %v909
    %v911 = vpop.f32.mrb[0].mxu0
    %912 = vmatprep.mubr.bf16.mxu0 0
    %913 = vmatmul.mubr.bf16.gmra.mrb[0].mxu0 %v567
    %v914 = vpop.f32.mrb[0].mxu0
    %v915 = vadd.f32 0.0, %v914
    %v916 = vpop.f32.mrb[0].mxu0
    %v917 = vpop.f32.mrb[0].mxu0
    %v918 = vadd.f32 0.0, %v917
    %v919 = vpop.f32.mrb[0].mxu0
    %920 = vdwg.mxu0
    %v921 = vpack.c.bf16 %v670, %v667
    %v922 = vpack.c.bf16 %v678, %v675
    %v923 = vpack.c.bf16 %v686, %v683
    %v924 = vpack.c.bf16 %v694, %v691
    %v925 = vpack.c.bf16 %v702, %v699
    %v926 = vpack.c.bf16 %v710, %v707
    %v927 = vpack.c.bf16 %v718, %v715
    %v928 = vpack.c.bf16 %v726, %v723
    %v929 = vpack.c.bf16 %v734, %v731
    %v930 = vpack.c.bf16 %v742, %v739
    %v931 = vpack.c.bf16 %v750, %v747
    %v932 = vpack.c.bf16 %v758, %v755
    %v933 = vpack.c.bf16 %v766, %v763
    %v934 = vpack.c.bf16 %v774, %v771
    %v935 = vpack.c.bf16 %v782, %v779
    %v936 = vpack.c.bf16 %v790, %v787
    %v937 = vpack.c.bf16 %v798, %v795
    %v938 = vpack.c.bf16 %v806, %v803
    %v939 = vpack.c.bf16 %v814, %v811
    %v940 = vpack.c.bf16 %v822, %v819
    %v941 = vpack.c.bf16 %v830, %v827
    %v942 = vpack.c.bf16 %v838, %v835
    %v943 = vpack.c.bf16 %v846, %v843
    %v944 = vpack.c.bf16 %v854, %v851
    %v945 = vpack.c.bf16 %v862, %v859
    %v946 = vpack.c.bf16 %v870, %v867
    %v947 = vpack.c.bf16 %v878, %v875
    %v948 = vpack.c.bf16 %v886, %v883
    %v949 = vpack.c.bf16 %v894, %v891
    %v950 = vpack.c.bf16 %v902, %v899
    %v951 = vpack.c.bf16 %v910, %v907
    %v952 = vpack.c.bf16 %v918, %v915
    %v985 = vunpack.c.l.b16 %v921
    %v986 = vunpack.c.h.b16 %v921
    %v987 = vunpack.c.l.b16 %v922
    %v988 = vunpack.c.h.b16 %v922
    %v989 = vunpack.c.l.b16 %v923
    %v990 = vunpack.c.h.b16 %v923
    %v991 = vunpack.c.l.b16 %v924
    %v992 = vunpack.c.h.b16 %v924
    %v993 = vunpack.c.l.b16 %v925
    %v994 = vunpack.c.h.b16 %v925
    %v995 = vunpack.c.l.b16 %v926
    %v996 = vunpack.c.h.b16 %v926
    %v997 = vunpack.c.l.b16 %v927
    %v998 = vunpack.c.h.b16 %v927
    %v999 = vunpack.c.l.b16 %v928
    %v1000 = vunpack.c.h.b16 %v928
    %v1001 = vunpack.c.l.b16 %v929
    %v1002 = vunpack.c.h.b16 %v929
    %v1003 = vunpack.c.l.b16 %v930
    %v1004 = vunpack.c.h.b16 %v930
    %v1005 = vunpack.c.l.b16 %v931
    %v1006 = vunpack.c.h.b16 %v931
    %v1007 = vunpack.c.l.b16 %v932
    %v1008 = vunpack.c.h.b16 %v932
    %v1009 = vunpack.c.l.b16 %v933
    %v1010 = vunpack.c.h.b16 %v933
    %v1011 = vunpack.c.l.b16 %v934
    %v1012 = vunpack.c.h.b16 %v934
    %v1013 = vunpack.c.l.b16 %v935
    %v1014 = vunpack.c.h.b16 %v935
    %v1015 = vunpack.c.l.b16 %v936
    %v1016 = vunpack.c.h.b16 %v936
    %v1017 = vunpack.c.l.b16 %v937
    %v1018 = vunpack.c.h.b16 %v937
    %v1019 = vunpack.c.l.b16 %v938
    %v1020 = vunpack.c.h.b16 %v938
    %v1021 = vunpack.c.l.b16 %v939
    %v1022 = vunpack.c.h.b16 %v939
    %v1023 = vunpack.c.l.b16 %v940
    %v1024 = vunpack.c.h.b16 %v940
    %v1025 = vunpack.c.l.b16 %v941
    %v1026 = vunpack.c.h.b16 %v941
    %v1027 = vunpack.c.l.b16 %v942
    %v1028 = vunpack.c.h.b16 %v942
    %v1029 = vunpack.c.l.b16 %v943
    %v1030 = vunpack.c.h.b16 %v943
    %v1031 = vunpack.c.l.b16 %v944
    %v1032 = vunpack.c.h.b16 %v944
    %v1033 = vunpack.c.l.b16 %v945
    %v1034 = vunpack.c.h.b16 %v945
    %v1035 = vunpack.c.l.b16 %v946
    %v1036 = vunpack.c.h.b16 %v946
    %v1037 = vunpack.c.l.b16 %v947
    %v1038 = vunpack.c.h.b16 %v947
    %v1039 = vunpack.c.l.b16 %v948
    %v1040 = vunpack.c.h.b16 %v948
    %v1041 = vunpack.c.l.b16 %v949
    %v1042 = vunpack.c.h.b16 %v949
    %v1043 = vunpack.c.l.b16 %v950
    %v1044 = vunpack.c.h.b16 %v950
    %v1045 = vunpack.c.l.b16 %v951
    %v1046 = vunpack.c.h.b16 %v951
    %v1047 = vunpack.c.l.b16 %v952
    %v1048 = vunpack.c.h.b16 %v952
    %v1049 = vpack.c.b16 %v985, %v985
    %v1050 = vpack.c.b16 %v986, %v986
    %v1051 = vpack.c.b16 %v987, %v987
    %v1052 = vpack.c.b16 %v988, %v988
    %v1053 = vpack.c.b16 %v989, %v989
    %v1054 = vpack.c.b16 %v990, %v990
    %v1055 = vpack.c.b16 %v991, %v991
    %v1056 = vpack.c.b16 %v992, %v992
    %v1057 = vpack.c.b16 %v993, %v993
    %v1058 = vpack.c.b16 %v994, %v994
    %v1059 = vpack.c.b16 %v995, %v995
    %v1060 = vpack.c.b16 %v996, %v996
    %v1061 = vpack.c.b16 %v997, %v997
    %v1062 = vpack.c.b16 %v998, %v998
    %v1063 = vpack.c.b16 %v999, %v999
    %v1064 = vpack.c.b16 %v1000, %v1000
    %v1065 = vpack.c.b16 %v1001, %v1001
    %v1066 = vpack.c.b16 %v1002, %v1002
    %v1067 = vpack.c.b16 %v1003, %v1003
    %v1068 = vpack.c.b16 %v1004, %v1004
    %v1069 = vpack.c.b16 %v1005, %v1005
    %v1070 = vpack.c.b16 %v1006, %v1006
    %v1071 = vpack.c.b16 %v1007, %v1007
    %v1072 = vpack.c.b16 %v1008, %v1008
    %v1073 = vpack.c.b16 %v1009, %v1009
    %v1074 = vpack.c.b16 %v1010, %v1010
    %v1075 = vpack.c.b16 %v1011, %v1011
    %v1076 = vpack.c.b16 %v1012, %v1012
    %v1077 = vpack.c.b16 %v1013, %v1013
    %v1078 = vpack.c.b16 %v1014, %v1014
    %v1079 = vpack.c.b16 %v1015, %v1015
    %v1080 = vpack.c.b16 %v1016, %v1016
    %v1081 = vpack.c.b16 %v1017, %v1017
    %v1082 = vpack.c.b16 %v1018, %v1018
    %v1083 = vpack.c.b16 %v1019, %v1019
    %v1084 = vpack.c.b16 %v1020, %v1020
    %v1085 = vpack.c.b16 %v1021, %v1021
    %v1086 = vpack.c.b16 %v1022, %v1022
    %v1087 = vpack.c.b16 %v1023, %v1023
    %v1088 = vpack.c.b16 %v1024, %v1024
    %v1089 = vpack.c.b16 %v1025, %v1025
    %v1090 = vpack.c.b16 %v1026, %v1026
    %v1091 = vpack.c.b16 %v1027, %v1027
    %v1092 = vpack.c.b16 %v1028, %v1028
    %v1093 = vpack.c.b16 %v1029, %v1029
    %v1094 = vpack.c.b16 %v1030, %v1030
    %v1095 = vpack.c.b16 %v1031, %v1031
    %v1096 = vpack.c.b16 %v1032, %v1032
    %v1097 = vpack.c.b16 %v1033, %v1033
    %v1098 = vpack.c.b16 %v1034, %v1034
    %v1099 = vpack.c.b16 %v1035, %v1035
    %v1100 = vpack.c.b16 %v1036, %v1036
    %v1101 = vpack.c.b16 %v1037, %v1037
    %v1102 = vpack.c.b16 %v1038, %v1038
    %v1103 = vpack.c.b16 %v1039, %v1039
    %v1104 = vpack.c.b16 %v1040, %v1040
    %v1105 = vpack.c.b16 %v1041, %v1041
    %v1106 = vpack.c.b16 %v1042, %v1042
    %v1107 = vpack.c.b16 %v1043, %v1043
    %v1108 = vpack.c.b16 %v1044, %v1044
    %v1109 = vpack.c.b16 %v1045, %v1045
    %v1110 = vpack.c.b16 %v1046, %v1046
    %v1111 = vpack.c.b16 %v1047, %v1047
    %v1112 = vpack.c.b16 %v1048, %v1048
    %1177 = vst [vmem:[#allocation10] sm:$0xf] %v1049
    %1178 = vst [vmem:[#allocation10 + $0x4] sm:$0xf] %v1050
    %1179 = vst [vmem:[#allocation10 + $0x8] sm:$0xf] %v1051
    %1180 = vst [vmem:[#allocation10 + $0xc] sm:$0xf] %v1052
    %1181 = vst [vmem:[#allocation10 + $0x10] sm:$0xf] %v1053
    %1182 = vst [vmem:[#allocation10 + $0x14] sm:$0xf] %v1054
    %1183 = vst [vmem:[#allocation10 + $0x18] sm:$0xf] %v1055
    %1184 = vst [vmem:[#allocation10 + $0x1c] sm:$0xf] %v1056
    %1185 = vst [vmem:[#allocation10 + $0x20] sm:$0xf] %v1057
    %1186 = vst [vmem:[#allocation10 + $0x24] sm:$0xf] %v1058
    %1187 = vst [vmem:[#allocation10 + $0x28] sm:$0xf] %v1059
    %1188 = vst [vmem:[#allocation10 + $0x2c] sm:$0xf] %v1060
    %1189 = vst [vmem:[#allocation10 + $0x30] sm:$0xf] %v1061
    %1190 = vst [vmem:[#allocation10 + $0x34] sm:$0xf] %v1062
    %1191 = vst [vmem:[#allocation10 + $0x38] sm:$0xf] %v1063
    %1192 = vst [vmem:[#allocation10 + $0x3c] sm:$0xf] %v1064
    %1193 = vst [vmem:[#allocation10 + $0x40] sm:$0xf] %v1065
    %1194 = vst [vmem:[#allocation10 + $0x44] sm:$0xf] %v1066
    %1195 = vst [vmem:[#allocation10 + $0x48] sm:$0xf] %v1067
    %1196 = vst [vmem:[#allocation10 + $0x4c] sm:$0xf] %v1068
    %1197 = vst [vmem:[#allocation10 + $0x50] sm:$0xf] %v1069
    %1198 = vst [vmem:[#allocation10 + $0x54] sm:$0xf] %v1070
    %1199 = vst [vmem:[#allocation10 + $0x58] sm:$0xf] %v1071
    %1200 = vst [vmem:[#allocation10 + $0x5c] sm:$0xf] %v1072
    %1201 = vst [vmem:[#allocation10 + $0x60] sm:$0xf] %v1073
    %1202 = vst [vmem:[#allocation10 + $0x64] sm:$0xf] %v1074
    %1203 = vst [vmem:[#allocation10 + $0x68] sm:$0xf] %v1075
    %1204 = vst [vmem:[#allocation10 + $0x6c] sm:$0xf] %v1076
    %1205 = vst [vmem:[#allocation10 + $0x70] sm:$0xf] %v1077
    %1206 = vst [vmem:[#allocation10 + $0x74] sm:$0xf] %v1078
    %1207 = vst [vmem:[#allocation10 + $0x78] sm:$0xf] %v1079
    %1208 = vst [vmem:[#allocation10 + $0x7c] sm:$0xf] %v1080
    %1209 = vst [vmem:[#allocation10 + $0x80] sm:$0xf] %v1081
    %1210 = vst [vmem:[#allocation10 + $0x84] sm:$0xf] %v1082
    %1211 = vst [vmem:[#allocation10 + $0x88] sm:$0xf] %v1083
    %1212 = vst [vmem:[#allocation10 + $0x8c] sm:$0xf] %v1084
    %1213 = vst [vmem:[#allocation10 + $0x90] sm:$0xf] %v1085
    %1214 = vst [vmem:[#allocation10 + $0x94] sm:$0xf] %v1086
    %1215 = vst [vmem:[#allocation10 + $0x98] sm:$0xf] %v1087
    %1216 = vst [vmem:[#allocation10 + $0x9c] sm:$0xf] %v1088
    %1217 = vst [vmem:[#allocation10 + $0xa0] sm:$0xf] %v1089
    %1218 = vst [vmem:[#allocation10 + $0xa4] sm:$0xf] %v1090
    %1219 = vst [vmem:[#allocation10 + $0xa8] sm:$0xf] %v1091
    %1220 = vst [vmem:[#allocation10 + $0xac] sm:$0xf] %v1092
    %1221 = vst [vmem:[#allocation10 + $0xb0] sm:$0xf] %v1093
    %1222 = vst [vmem:[#allocation10 + $0xb4] sm:$0xf] %v1094
    %1223 = vst [vmem:[#allocation10 + $0xb8] sm:$0xf] %v1095
    %1224 = vst [vmem:[#allocation10 + $0xbc] sm:$0xf] %v1096
    %1225 = vst [vmem:[#allocation10 + $0xc0] sm:$0xf] %v1097
    %1226 = vst [vmem:[#allocation10 + $0xc4] sm:$0xf] %v1098
    %1227 = vst [vmem:[#allocation10 + $0xc8] sm:$0xf] %v1099
    %1228 = vst [vmem:[#allocation10 + $0xcc] sm:$0xf] %v1100
    %1229 = vst [vmem:[#allocation10 + $0xd0] sm:$0xf] %v1101
    %1230 = vst [vmem:[#allocation10 + $0xd4] sm:$0xf] %v1102
    %1231 = vst [vmem:[#allocation10 + $0xd8] sm:$0xf] %v1103
    %1232 = vst [vmem:[#allocation10 + $0xdc] sm:$0xf] %v1104
    %1233 = vst [vmem:[#allocation10 + $0xe0] sm:$0xf] %v1105
    %1234 = vst [vmem:[#allocation10 + $0xe4] sm:$0xf] %v1106
    %1235 = vst [vmem:[#allocation10 + $0xe8] sm:$0xf] %v1107
    %1236 = vst [vmem:[#allocation10 + $0xec] sm:$0xf] %v1108
    %1237 = vst [vmem:[#allocation10 + $0xf0] sm:$0xf] %v1109
    %1238 = vst [vmem:[#allocation10 + $0xf4] sm:$0xf] %v1110
    %1239 = vst [vmem:[#allocation10 + $0xf8] sm:$0xf] %v1111
    %1240 = vst [vmem:[#allocation10 + $0xfc] sm:$0xf] %v1112
    %v1241 = vadd.f32 %v667, %v670
    %v1242 = vadd.f32 %v1241, %v675
    %v1243 = vadd.f32 %v1242, %v678
    %v1244 = vadd.f32 %v1243, %v683
    %v1245 = vadd.f32 %v1244, %v686
    %v1246 = vadd.f32 %v1245, %v691
    %v1247 = vadd.f32 %v1246, %v694
    %v1248 = vadd.f32 %v1247, %v699
    %v1249 = vadd.f32 %v1248, %v702
    %v1250 = vadd.f32 %v1249, %v707
    %v1251 = vadd.f32 %v1250, %v710
    %v1252 = vadd.f32 %v1251, %v715
    %v1253 = vadd.f32 %v1252, %v718
    %v1254 = vadd.f32 %v1253, %v723
    %v1255 = vadd.f32 %v1254, %v726
    %v1256 = vadd.f32 %v1255, %v731
    %v1257 = vadd.f32 %v1256, %v734
    %v1258 = vadd.f32 %v1257, %v739
    %v1259 = vadd.f32 %v1258, %v742
    %v1260 = vadd.f32 %v1259, %v747
    %v1261 = vadd.f32 %v1260, %v750
    %v1262 = vadd.f32 %v1261, %v755
    %v1263 = vadd.f32 %v1262, %v758
    %v1264 = vadd.f32 %v1263, %v763
    %v1265 = vadd.f32 %v1264, %v766
    %v1266 = vadd.f32 %v1265, %v771
    %v1267 = vadd.f32 %v1266, %v774
    %v1268 = vadd.f32 %v1267, %v779
    %v1269 = vadd.f32 %v1268, %v782
    %v1270 = vadd.f32 %v1269, %v787
    %v1271 = vadd.f32 %v1270, %v790
    %v1272 = vadd.f32 %v1271, %v795
    %v1273 = vadd.f32 %v1272, %v798
    %v1274 = vadd.f32 %v1273, %v803
    %v1275 = vadd.f32 %v1274, %v806
    %v1276 = vadd.f32 %v1275, %v811
    %v1277 = vadd.f32 %v1276, %v814
    %v1278 = vadd.f32 %v1277, %v819
    %v1279 = vadd.f32 %v1278, %v822
    %v1280 = vadd.f32 %v1279, %v827
    %v1281 = vadd.f32 %v1280, %v830
    %v1282 = vadd.f32 %v1281, %v835
    %v1283 = vadd.f32 %v1282, %v838
    %v1284 = vadd.f32 %v1283, %v843
    %v1285 = vadd.f32 %v1284, %v846
    %v1286 = vadd.f32 %v1285, %v851
    %v1287 = vadd.f32 %v1286, %v854
    %v1288 = vadd.f32 %v1287, %v859
    %v1289 = vadd.f32 %v1288, %v862
    %v1290 = vadd.f32 %v1289, %v867
    %v1291 = vadd.f32 %v1290, %v870
    %v1292 = vadd.f32 %v1291, %v875
    %v1293 = vadd.f32 %v1292, %v878
    %v1294 = vadd.f32 %v1293, %v883
    %v1295 = vadd.f32 %v1294, %v886
    %v1296 = vadd.f32 %v1295, %v891
    %v1297 = vadd.f32 %v1296, %v894
    %v1298 = vadd.f32 %v1297, %v899
    %v1299 = vadd.f32 %v1298, %v902
    %v1300 = vadd.f32 %v1299, %v907
    %v1301 = vadd.f32 %v1300, %v910
    %v1302 = vadd.f32 %v1301, %v915
    %v1303 = vadd.f32 %v1302, %v918
    %v1304 = vrot.slane %v1303, 4
    %v1305 = vadd.f32 %v1303, %v1304
    %v1306 = vrot.slane %v1305, 2
    %v1307 = vadd.f32 %v1305, %v1306
    %v1308 = vrot.slane %v1307, 1
    %v1309 = vadd.f32 %v1307, %v1308
    %1310 = vst [vmem:[#allocation11] sm:$0x1] %v1309
    %v1311 = vmul.f32 %v667, %v667
    %v1312 = vmul.f32 %v670, %v670
    %v1313 = vmul.f32 %v675, %v675
    %v1314 = vmul.f32 %v678, %v678
    %v1315 = vmul.f32 %v683, %v683
    %v1316 = vmul.f32 %v686, %v686
    %v1317 = vmul.f32 %v691, %v691
    %v1318 = vmul.f32 %v694, %v694
    %v1319 = vmul.f32 %v699, %v699
    %v1320 = vmul.f32 %v702, %v702
    %v1321 = vmul.f32 %v707, %v707
    %v1322 = vmul.f32 %v710, %v710
    %v1323 = vmul.f32 %v715, %v715
    %v1324 = vmul.f32 %v718, %v718
    %v1325 = vmul.f32 %v723, %v723
    %v1326 = vmul.f32 %v726, %v726
    %v1327 = vmul.f32 %v731, %v731
    %v1328 = vmul.f32 %v734, %v734
    %v1329 = vmul.f32 %v739, %v739
    %v1330 = vmul.f32 %v742, %v742
    %v1331 = vmul.f32 %v747, %v747
    %v1332 = vmul.f32 %v750, %v750
    %v1333 = vmul.f32 %v755, %v755
    %v1334 = vmul.f32 %v758, %v758
    %v1335 = vmul.f32 %v763, %v763
    %v1336 = vmul.f32 %v766, %v766
    %v1337 = vmul.f32 %v771, %v771
    %v1338 = vmul.f32 %v774, %v774
    %v1339 = vmul.f32 %v779, %v779
    %v1340 = vmul.f32 %v782, %v782
    %v1341 = vmul.f32 %v787, %v787
    %v1342 = vmul.f32 %v790, %v790
    %v1343 = vmul.f32 %v795, %v795
    %v1344 = vmul.f32 %v798, %v798
    %v1345 = vmul.f32 %v803, %v803
    %v1346 = vmul.f32 %v806, %v806
    %v1347 = vmul.f32 %v811, %v811
    %v1348 = vmul.f32 %v814, %v814
    %v1349 = vmul.f32 %v819, %v819
    %v1350 = vmul.f32 %v822, %v822
    %v1351 = vmul.f32 %v827, %v827
    %v1352 = vmul.f32 %v830, %v830
    %v1353 = vmul.f32 %v835, %v835
    %v1354 = vmul.f32 %v838, %v838
    %v1355 = vmul.f32 %v843, %v843
    %v1356 = vmul.f32 %v846, %v846
    %v1357 = vmul.f32 %v851, %v851
    %v1358 = vmul.f32 %v854, %v854
    %v1359 = vmul.f32 %v859, %v859
    %v1360 = vmul.f32 %v862, %v862
    %v1361 = vmul.f32 %v867, %v867
    %v1362 = vmul.f32 %v870, %v870
    %v1363 = vmul.f32 %v875, %v875
    %v1364 = vmul.f32 %v878, %v878
    %v1365 = vmul.f32 %v883, %v883
    %v1366 = vmul.f32 %v886, %v886
    %v1367 = vmul.f32 %v891, %v891
    %v1368 = vmul.f32 %v894, %v894
    %v1369 = vmul.f32 %v899, %v899
    %v1370 = vmul.f32 %v902, %v902
    %v1371 = vmul.f32 %v907, %v907
    %v1372 = vmul.f32 %v910, %v910
    %v1373 = vmul.f32 %v915, %v915
    %v1374 = vmul.f32 %v918, %v918
    %v1375 = vadd.f32 %v1311, %v1312
    %v1376 = vadd.f32 %v1375, %v1313
    %v1377 = vadd.f32 %v1376, %v1314
    %v1378 = vadd.f32 %v1377, %v1315
    %v1379 = vadd.f32 %v1378, %v1316
    %v1380 = vadd.f32 %v1379, %v1317
    %v1381 = vadd.f32 %v1380, %v1318
    %v1382 = vadd.f32 %v1381, %v1319
    %v1383 = vadd.f32 %v1382, %v1320
    %v1384 = vadd.f32 %v1383, %v1321
    %v1385 = vadd.f32 %v1384, %v1322
    %v1386 = vadd.f32 %v1385, %v1323
    %v1387 = vadd.f32 %v1386, %v1324
    %v1388 = vadd.f32 %v1387, %v1325
    %v1389 = vadd.f32 %v1388, %v1326
    %v1390 = vadd.f32 %v1389, %v1327
    %v1391 = vadd.f32 %v1390, %v1328
    %v1392 = vadd.f32 %v1391, %v1329
    %v1393 = vadd.f32 %v1392, %v1330
    %v1394 = vadd.f32 %v1393, %v1331
    %v1395 = vadd.f32 %v1394, %v1332
    %v1396 = vadd.f32 %v1395, %v1333
    %v1397 = vadd.f32 %v1396, %v1334
    %v1398 = vadd.f32 %v1397, %v1335
    %v1399 = vadd.f32 %v1398, %v1336
    %v1400 = vadd.f32 %v1399, %v1337
    %v1401 = vadd.f32 %v1400, %v1338
    %v1402 = vadd.f32 %v1401, %v1339
    %v1403 = vadd.f32 %v1402, %v1340
    %v1404 = vadd.f32 %v1403, %v1341
    %v1405 = vadd.f32 %v1404, %v1342
    %v1406 = vadd.f32 %v1405, %v1343
    %v1407 = vadd.f32 %v1406, %v1344
    %v1408 = vadd.f32 %v1407, %v1345
    %v1409 = vadd.f32 %v1408, %v1346
    %v1410 = vadd.f32 %v1409, %v1347
    %v1411 = vadd.f32 %v1410, %v1348
    %v1412 = vadd.f32 %v1411, %v1349
    %v1413 = vadd.f32 %v1412, %v1350
    %v1414 = vadd.f32 %v1413, %v1351
    %v1415 = vadd.f32 %v1414, %v1352
    %v1416 = vadd.f32 %v1415, %v1353
    %v1417 = vadd.f32 %v1416, %v1354
    %v1418 = vadd.f32 %v1417, %v1355
    %v1419 = vadd.f32 %v1418, %v1356
    %v1420 = vadd.f32 %v1419, %v1357
    %v1421 = vadd.f32 %v1420, %v1358
    %v1422 = vadd.f32 %v1421, %v1359
    %v1423 = vadd.f32 %v1422, %v1360
    %v1424 = vadd.f32 %v1423, %v1361
    %v1425 = vadd.f32 %v1424, %v1362
    %v1426 = vadd.f32 %v1425, %v1363
    %v1427 = vadd.f32 %v1426, %v1364
    %v1428 = vadd.f32 %v1427, %v1365
    %v1429 = vadd.f32 %v1428, %v1366
    %v1430 = vadd.f32 %v1429, %v1367
    %v1431 = vadd.f32 %v1430, %v1368
    %v1432 = vadd.f32 %v1431, %v1369
    %v1433 = vadd.f32 %v1432, %v1370
    %v1434 = vadd.f32 %v1433, %v1371
    %v1435 = vadd.f32 %v1434, %v1372
    %v1436 = vadd.f32 %v1435, %v1373
    %v1437 = vadd.f32 %v1436, %v1374
    %v1438 = vrot.slane %v1437, 4
    %v1439 = vadd.f32 %v1437, %v1438
    %v1440 = vrot.slane %v1439, 2
    %v1441 = vadd.f32 %v1439, %v1440
    %v1442 = vrot.slane %v1441, 1
    %v1443 = vadd.f32 %v1441, %v1442
    %1444 = vst [vmem:[#allocation13] sm:$0x1] %v1443
    // Predicated region
    $region34: #{_lambda_.8} parent=1 // pred_check
      _
    $region35: #{_lambda_.8} parent=1 // pred_check_branch
      %1446 = sbr.rel (0) target = $region37
    $region36: #{_lambda_.8} parent=1 // pred_region
      %s1448 = ssub.s32 4096, 4096
      %1449 = vsyncadd [#allocation4], %s1448
      %s1450 = sshll.u32 [#allocation10], 4
      %s1451 = int_to_ptr.vmem [resolvable:$true] %s1450
      %1456 = dma.vmem_to_hbm [thread:$0]  %s1451, 4096, %s4, [#allocation4], 64, 64, 4
    $region37: #{_lambda_.8} parent=1 // pred_fallthru
      _
    // Predicated region
    $region38: #{_lambda_.8} parent=1 // pred_check
      _
    $region39: #{_lambda_.8} parent=1 // pred_check_branch
      %1458 = sbr.rel (0) target = $region41
    $region40: #{_lambda_.8} parent=1 // pred_region
      %s1460 = ssub.s32 16, 16
      %1461 = vsyncadd [#allocation12], %s1460
      %s1463 = sshll.u32 [#allocation11], 4
      %s1464 = int_to_ptr.vmem [resolvable:$true] %s1463
      %1466 = dma.vmem_to_hbm [thread:$0]  %s1464, 16, %s5, [#allocation12]
    $region41: #{_lambda_.8} parent=1 // pred_fallthru
      _
    // Predicated region
    $region42: #{_lambda_.8} parent=1 // pred_check
      _
    $region43: #{_lambda_.8} parent=1 // pred_check_branch
      %1468 = sbr.rel (0) target = $region45
    $region44: #{_lambda_.8} parent=1 // pred_region
      %s1470 = ssub.s32 16, 16
      %1471 = vsyncadd [#allocation12], %s1470
      %s1473 = sshll.u32 [#allocation13], 4
      %s1474 = int_to_ptr.vmem [resolvable:$true] %s1473
      %1476 = dma.vmem_to_hbm [thread:$0]  %s1474, 16, %s6, [#allocation12]
    $region45: #{_lambda_.8} parent=1 // pred_fallthru
      _
    // Predicated region
    $region46: #{_lambda_.8} parent=1 // pred_check
      _
    $region47: #{_lambda_.8} parent=1 // pred_check_branch
      %1478 = sbr.rel (0) target = $region49
    $region48: #{_lambda_.8} parent=1 // pred_region
      %1479 = dma.done [#allocation4], 4096
    $region49: #{_lambda_.8} parent=1 // pred_fallthru
      _
    // Predicated region
    $region50: #{_lambda_.8} parent=1 // pred_check
      _
    $region51: #{_lambda_.8} parent=1 // pred_check_branch
      %1481 = sbr.rel (0) target = $region53
    $region52: #{_lambda_.8} parent=1 // pred_region
      %1482 = dma.done [#allocation12], 16
    $region53: #{_lambda_.8} parent=1 // pred_fallthru
      _
    // Predicated region
    $region54: #{_lambda_.8} parent=1 // pred_check
      _
    $region55: #{_lambda_.8} parent=1 // pred_check_branch
      %1484 = sbr.rel (0) target = $region57
    $region56: #{_lambda_.8} parent=1 // pred_region
      %1485 = dma.done [#allocation12], 16
    $region57: #{_lambda_.8} parent=1 // pred_fallthru
      _
    %1486 = vsyncpa [#allocation3], 1
    %1487 = vsyncpa [#allocation6], 1
    %1488 = vsyncpa [#allocation9], 1
    %1489 = vsyncpa [#allocation4], 1
    %1490 = vsyncpa [#allocation12], 1

// kernel: _lambda_.7
$region0: #{_lambda_.7}
  #allocation0 [shape = 'u32[]', space=smem, size = 0x4, offset = 0x4, fixed_abs, tag = 'smem constant byte address 0x4 - core index']
  #allocation1 [shape = 'u32[144,128]{1,0:T(1,128)}', space=vmem, size = 0x12000, scoped, tag = 'internal scratch']
  #allocation2 [shape = 'f32[10,24,384]{2,1,0:T(8,128)}', space=vmem, size = 0x5a000, scoped, tag = 'scratch operand']
  %s0 = inlined_call_operand.hbm [shape: bf16[2,16,16,128], index: 0, kind: input, shape index: {}]
  %s1 = inlined_call_operand.hbm [shape: f32[1,128], index: 1, kind: input, shape index: {}]
  %s2 = inlined_call_operand.hbm [shape: f32[1,128], index: 2, kind: input, shape index: {}]
  %s3 = inlined_call_operand.hbm [shape: bf16[3,384,128], index: 3, kind: input, shape index: {}]
  %s4 = inlined_call_operand.hbm [shape: bf16[2,16,16,128], index: 4, kind: output, shape index: {0}]
  %s5 = inlined_call_operand.hbm [shape: f32[4,1,128], index: 5, kind: output, shape index: {1}]
  %s6 = inlined_call_operand.hbm [shape: f32[4,1,128], index: 6, kind: output, shape index: {2}]
  %7 = xla_tuple %s4, %s5, %s6
  %s8 = sld [smem:[#allocation0]]
  $region89: #{_lambda_.7} parent=0
    _
  %s10 = ssub.s32 1, %s8
  %s11 = scalar_select 0, %s10, %s8
  $region1: #{_lambda_.7} parent=0
    #allocation3 [shape = 'u8[131072]{0}', space=vmem, size = 0x20000, scoped, tag = 'input window, operand 0']
    #allocation4 [shape = 's32[2]{0}', space=sflag, size = 0x8, scoped, tag = 'scoped memory for _lambda_.7']
    #allocation5 [shape = 's32[2]{0}', space=sflag, size = 0x8, scoped, tag = 'scoped memory for _lambda_.7']
    #allocation6 [shape = 'u8[512]{0}', space=vmem, size = 0x400, scoped, tag = 'input window, operand 1, single buffered']
    #allocation7 [shape = 's32[1]{0}', space=sflag, size = 0x4, scoped, tag = 'scoped memory for _lambda_.7']
    #allocation8 [shape = 'u8[512]{0}', space=vmem, size = 0x400, scoped, tag = 'input window, operand 2, single buffered']
    #allocation9 [shape = 'u8[294912]{0}', space=vmem, size = 0x48000, scoped, tag = 'input window, operand 3, single buffered']
    #allocation10 [shape = 's32[1]{0}', space=sflag, size = 0x4, scoped, tag = 'scoped memory for _lambda_.7']
    #allocation11 [shape = 'u8[65536]{0}', space=vmem, size = 0x10000, scoped, tag = 'output window, operand 0']
    #allocation12 [shape = 'u8[1024]{0}', space=vmem, size = 0x400, scoped, tag = 'output window, operand 1']
    #allocation13 [shape = 's32[2]{0}', space=sflag, size = 0x8, scoped, tag = 'scoped memory for _lambda_.7']
    #allocation14 [shape = 'u8[1024]{0}', space=vmem, size = 0x400, scoped, tag = 'output window, operand 2']
    %12 = vsyncpa [#allocation4], 0
    %s13 = scalar_lea.sflag [#allocation4], 1
    %14 = vsyncpa %s13, 0
    %15 = vsyncpa [#allocation7], 0
    %16 = vsyncpa [#allocation10], 0
    %17 = vsyncpa [#allocation5], 0
    %s18 = scalar_lea.sflag [#allocation5], 1
    %19 = vsyncpa %s18, 0
    %20 = vsyncpa [#allocation13], 0
    %s21 = scalar_lea.sflag [#allocation13], 1
    %22 = vsyncpa %s21, 0
    loop: start=0, step=1, limit=6
    $region2: #{_lambda_.7} parent=1 // loop_pre_header
      _
    $region3: #{_lambda_.7} parent=1 // loop_header
      %s24 = sphi 0, %s28
      %p25 = scmp.ge.s32.totalorder %s24, 6
      %s31 = sphi 0, %s43
      %s32 = sphi 0, %s39
      %s33 = sphi 0, %s31
      %s34 = sphi 0, %s32
      %s35 = sphi 0, %s33
      %s36 = sphi 0, %s34
      %s46 = sphi 0, %s48
      %s49 = sphi 0, %s46
      %s50 = sphi 0, %s49
      %s66 = sphi 0, %s50
      %s70 = sphi 0, %s70
      %s72 = sphi 0, %s70
      %s73 = sphi 0, %s72
      %s87 = sphi 0, %s73
      %s91 = sphi 0, %s91
      %s93 = sphi 0, %s91
      %s94 = sphi 0, %s93
      %s108 = sphi 0, %s94
      %s112 = sphi 0, %s112
      %s114 = sphi 0, %s112
      %s115 = sphi 0, %s114
      %s129 = sphi 0, %s115
      %s137 = sphi 0, %s139
      %s140 = sphi 0, %s137
      %s141 = sphi 0, %s140
      %s157 = sphi 0, %s141
      %s167 = sphi 0, %s169
      %s170 = sphi 0, %s167
      %s171 = sphi 0, %s170
      %s187 = sphi 0, %s171
      %s197 = sphi 0, %s199
      %s200 = sphi 0, %s197
      %s201 = sphi 0, %s200
      %s217 = sphi 0, %s201
    $region4: #{_lambda_.7} parent=1 // loop_header_branch
      %27 = sbr.rel (%p25) target = $region8
    $region5: #{_lambda_.7} parent=1 // loop_body
      %s29 = ssub.s32 %s24, 1
      %s30 = ssub.s32 %s24, 2
      %s37 = sadd.s32 1, %s32
      %p38 = scmp.ge.s32.totalorder %s37, 2
      %s39 = scalar_select %p38, 0, %s37
      %s40 = sadd.s32 1, %s31
      %s41 = scalar_select %p38, %s40, %s31
      %p42 = scmp.ge.s32.totalorder %s41, 2
      %s43 = scalar_select %p42, 0, %s41
      %s44 = ssub.s32 %s31, %s43
      %p45 = scmp.eq.s32.totalorder %s44, 0
      %s47 = sadd.s32 %s46, 1
      %s48 = scalar_select %p45, %s46, %s47
      %p51 = pneg %p45
      %p52 = scmp.eq.s32.totalorder %s24, 3
      %p53 = por %p51, %p52
      %p54 = scmp.ne.s32.totalorder %s46, %s49
      %p55 = scmp.eq.s32.totalorder %s24, 0
      %p56 = por %p54, %p55
      %p57 = scmp.ne.s32.totalorder %s46, %s49
      %p58 = scmp.eq.s32.totalorder %s29, 3
      %p59 = por %p57, %p58
      %p60 = scmp.ne.s32.totalorder %s49, %s50
      %p61 = scmp.eq.s32.totalorder %s29, 0
      %p62 = por %p60, %p61
      %p63 = scmp.ne.s32.totalorder %s49, %s50
      %p64 = scmp.eq.s32.totalorder %s30, 3
      %p65 = por %p63, %p64
      %p67 = scmp.ne.s32.totalorder %s50, %s66
      %p68 = scmp.eq.s32.totalorder %s30, 0
      %p69 = por %p67, %p68
      %s71 = sadd.s32 %s70, 1
      %p74 = scmp.eq.s32.totalorder %s24, 3
      %p75 = scmp.ne.s32.totalorder %s70, %s72
      %p76 = scmp.eq.s32.totalorder %s24, 0
      %p77 = por %p75, %p76
      %p78 = scmp.ne.s32.totalorder %s70, %s72
      %p79 = scmp.eq.s32.totalorder %s29, 3
      %p80 = por %p78, %p79
      %p81 = scmp.ne.s32.totalorder %s72, %s73
      %p82 = scmp.eq.s32.totalorder %s29, 0
      %p83 = por %p81, %p82
      %p84 = scmp.ne.s32.totalorder %s72, %s73
      %p85 = scmp.eq.s32.totalorder %s30, 3
      %p86 = por %p84, %p85
      %p88 = scmp.ne.s32.totalorder %s73, %s87
      %p89 = scmp.eq.s32.totalorder %s30, 0
      %p90 = por %p88, %p89
      %s92 = sadd.s32 %s91, 1
      %p95 = scmp.eq.s32.totalorder %s24, 3
      %p96 = scmp.ne.s32.totalorder %s91, %s93
      %p97 = scmp.eq.s32.totalorder %s24, 0
      %p98 = por %p96, %p97
      %p99 = scmp.ne.s32.totalorder %s91, %s93
      %p100 = scmp.eq.s32.totalorder %s29, 3
      %p101 = por %p99, %p100
      %p102 = scmp.ne.s32.totalorder %s93, %s94
      %p103 = scmp.eq.s32.totalorder %s29, 0
      %p104 = por %p102, %p103
      %p105 = scmp.ne.s32.totalorder %s93, %s94
      %p106 = scmp.eq.s32.totalorder %s30, 3
      %p107 = por %p105, %p106
      %p109 = scmp.ne.s32.totalorder %s94, %s108
      %p110 = scmp.eq.s32.totalorder %s30, 0
      %p111 = por %p109, %p110
      %s113 = sadd.s32 %s112, 1
      %p116 = scmp.eq.s32.totalorder %s24, 3
      %p117 = scmp.ne.s32.totalorder %s112, %s114
      %p118 = scmp.eq.s32.totalorder %s24, 0
      %p119 = por %p117, %p118
      %p120 = scmp.ne.s32.totalorder %s112, %s114
      %p121 = scmp.eq.s32.totalorder %s29, 3
      %p122 = por %p120, %p121
      %p123 = scmp.ne.s32.totalorder %s114, %s115
      %p124 = scmp.eq.s32.totalorder %s29, 0
      %p125 = por %p123, %p124
      %p126 = scmp.ne.s32.totalorder %s114, %s115
      %p127 = scmp.eq.s32.totalorder %s30, 3
      %p128 = por %p126, %p127
      %p130 = scmp.ne.s32.totalorder %s115, %s129
      %p131 = scmp.eq.s32.totalorder %s30, 0
      %p132 = por %p130, %p131
      %s133 = ssub.s32 %s31, %s43
      %s134 = ssub.s32 %s32, %s39
      %s135 = sor.u32 %s133, %s134
      %p136 = scmp.eq.s32.totalorder %s135, 0
      %s138 = sadd.s32 %s137, 1
      %s139 = scalar_select %p136, %s137, %s138
      %p142 = pneg %p136
      %p143 = scmp.eq.s32.totalorder %s24, 3
      %p144 = por %p142, %p143
      %p145 = scmp.ne.s32.totalorder %s137, %s140
      %p146 = scmp.eq.s32.totalorder %s24, 0
      %p147 = por %p145, %p146
      %p148 = scmp.ne.s32.totalorder %s137, %s140
      %p149 = scmp.eq.s32.totalorder %s29, 3
      %p150 = por %p148, %p149
      %p151 = scmp.ne.s32.totalorder %s140, %s141
      %p152 = scmp.eq.s32.totalorder %s29, 0
      %p153 = por %p151, %p152
      %p154 = scmp.ne.s32.totalorder %s140, %s141
      %p155 = scmp.eq.s32.totalorder %s30, 3
      %p156 = por %p154, %p155
      %p158 = scmp.ne.s32.totalorder %s141, %s157
      %p159 = scmp.eq.s32.totalorder %s30, 0
      %p160 = por %p158, %p159
      %s161 = smul.u32 %s31, 2
      %s162 = sadd.s32 %s161, %s32
      %s163 = smul.u32 %s43, 2
      %s164 = sadd.s32 %s163, %s39
      %s165 = ssub.s32 %s162, %s164
      %p166 = scmp.eq.s32.totalorder %s165, 0
      %s168 = sadd.s32 %s167, 1
      %s169 = scalar_select %p166, %s167, %s168
      %p172 = pneg %p166
      %p173 = scmp.eq.s32.totalorder %s24, 3
      %p174 = por %p172, %p173
      %p175 = scmp.ne.s32.totalorder %s167, %s170
      %p176 = scmp.eq.s32.totalorder %s24, 0
      %p177 = por %p175, %p176
      %p178 = scmp.ne.s32.totalorder %s167, %s170
      %p179 = scmp.eq.s32.totalorder %s29, 3
      %p180 = por %p178, %p179
      %p181 = scmp.ne.s32.totalorder %s170, %s171
      %p182 = scmp.eq.s32.totalorder %s29, 0
      %p183 = por %p181, %p182
      %p184 = scmp.ne.s32.totalorder %s170, %s171
      %p185 = scmp.eq.s32.totalorder %s30, 3
      %p186 = por %p184, %p185
      %p188 = scmp.ne.s32.totalorder %s171, %s187
      %p189 = scmp.eq.s32.totalorder %s30, 0
      %p190 = por %p188, %p189
      %s191 = smul.u32 %s31, 2
      %s192 = sadd.s32 %s191, %s32
      %s193 = smul.u32 %s43, 2
      %s194 = sadd.s32 %s193, %s39
      %s195 = ssub.s32 %s192, %s194
      %p196 = scmp.eq.s32.totalorder %s195, 0
      %s198 = sadd.s32 %s197, 1
      %s199 = scalar_select %p196, %s197, %s198
      %p202 = pneg %p196
      %p203 = scmp.eq.s32.totalorder %s24, 3
      %p204 = por %p202, %p203
      %p205 = scmp.ne.s32.totalorder %s197, %s200
      %p206 = scmp.eq.s32.totalorder %s24, 0
      %p207 = por %p205, %p206
      %p208 = scmp.ne.s32.totalorder %s197, %s200
      %p209 = scmp.eq.s32.totalorder %s29, 3
      %p210 = por %p208, %p209
      %p211 = scmp.ne.s32.totalorder %s200, %s201
      %p212 = scmp.eq.s32.totalorder %s29, 0
      %p213 = por %p211, %p212
      %p214 = scmp.ne.s32.totalorder %s200, %s201
      %p215 = scmp.eq.s32.totalorder %s30, 3
      %p216 = por %p214, %p215
      %p218 = scmp.ne.s32.totalorder %s201, %s217
      %p219 = scmp.eq.s32.totalorder %s30, 0
      %p220 = por %p218, %p219
      %p221 = scmp.le.s32.totalorder 1, %s24
      %p222 = scmp.lt.s32.totalorder %s24, 5
      %p223 = pnand %p221, %p222
      %p224 = pneg %p223
      // Predicated region
      $region9: #{_lambda_.7} parent=5 // pred_check
        _
      $region10: #{_lambda_.7} parent=5 // pred_check_branch
        %226 = sbr.rel (%p223) target = $region12
      $region11: #{_lambda_.7} parent=5 // pred_region
        %s227 = ssub.s32 %s24, 1
        // Predicated region
        $region13: #{_lambda_.7} parent=11 // pred_check
          %p228 = pneg %p83
        $region14: #{_lambda_.7} parent=11 // pred_check_branch
          %230 = sbr.rel (%p228) target = $region16
        $region15: #{_lambda_.7} parent=11 // pred_region
          %s232 = ssub.s32 16, 16
          %233 = vsyncadd [#allocation7], %s232
          %s235 = sshll.u32 [#allocation6], 4
          %s236 = int_to_ptr.vmem [resolvable:$true] %s235
          %238 = dma.hbm_to_vmem [thread:$0]  %s1, 16, %s236, [#allocation7]
        $region16: #{_lambda_.7} parent=11 // pred_fallthru
          _
        // Predicated region
        $region17: #{_lambda_.7} parent=11 // pred_check
          %p239 = pneg %p104
        $region18: #{_lambda_.7} parent=11 // pred_check_branch
          %241 = sbr.rel (%p239) target = $region20
        $region19: #{_lambda_.7} parent=11 // pred_region
          %s243 = ssub.s32 16, 16
          %244 = vsyncadd [#allocation7], %s243
          %s246 = sshll.u32 [#allocation8], 4
          %s247 = int_to_ptr.vmem [resolvable:$true] %s246
          %249 = dma.hbm_to_vmem [thread:$0]  %s2, 16, %s247, [#allocation7]
        $region20: #{_lambda_.7} parent=11 // pred_fallthru
          _
        // Predicated region
        $region21: #{_lambda_.7} parent=11 // pred_check
          %p250 = pneg %p125
        $region22: #{_lambda_.7} parent=11 // pred_check_branch
          %252 = sbr.rel (%p250) target = $region24
        $region23: #{_lambda_.7} parent=11 // pred_region
          %s254 = ssub.s32 9216, 9216
          %255 = vsyncadd [#allocation10], %s254
          %s256 = sshll.u32 [#allocation9], 4
          %s257 = int_to_ptr.vmem [resolvable:$true] %s256
          %262 = dma.hbm_to_vmem [thread:$0]  %s3, 9216, %s257, [#allocation10], 64, 64, 4
        $region24: #{_lambda_.7} parent=11 // pred_fallthru
          _
      $region12: #{_lambda_.7} parent=5 // pred_fallthru
        _
      %p263 = scmp.lt.s32.totalorder %s24, 4
      // Predicated region
      $region25: #{_lambda_.7} parent=5 // pred_check
        %p264 = pneg %p263
      $region26: #{_lambda_.7} parent=5 // pred_check_branch
        %266 = sbr.rel (%p264) target = $region28
      $region27: #{_lambda_.7} parent=5 // pred_region
        // Predicated region
        $region29: #{_lambda_.7} parent=27 // pred_check
          %p267 = pneg %p56
        $region30: #{_lambda_.7} parent=27 // pred_check_branch
          %269 = sbr.rel (%p267) target = $region32
        $region31: #{_lambda_.7} parent=27 // pred_region
          %s270 = sand.u32 %s46, 1
          %s271 = scalar_lea.sflag [#allocation4], %s270
          %s272 = sand.u32 %s46, 1
          %s273 = smul.addr %s272, 128
          %s274 = scalar_lea.vmem [#allocation3], %s273
          %s276 = ssub.s32 2048, 2048
          %277 = vsyncadd %s271, %s276
          %s278 = smul.addr %s31, 32
          %s279 = smul.addr %s278, 64
          %s280 = scalar_lea.hbm %s0, %s279
          %s281 = sshll.u32 %s274, 4
          %s282 = int_to_ptr.vmem [resolvable:$true] %s281
          %287 = dma.hbm_to_vmem [thread:$0]  %s280, 2048, %s282, %s271, 64, 64, 4
        $region32: #{_lambda_.7} parent=27 // pred_fallthru
          _
      $region28: #{_lambda_.7} parent=5 // pred_fallthru
        _
      %p288 = scmp.le.s32.totalorder 1, %s24
      %p289 = scmp.lt.s32.totalorder %s24, 5
      %p290 = pnand %p288, %p289
      %p291 = pneg %p290
      // Predicated region
      $region33: #{_lambda_.7} parent=5 // pred_check
        _
      $region34: #{_lambda_.7} parent=5 // pred_check_branch
        %293 = sbr.rel (%p290) target = $region36
      $region35: #{_lambda_.7} parent=5 // pred_region
        %s294 = ssub.s32 %s24, 1
        %s295 = sand.u32 %s49, 1
        %s296 = scalar_lea.sflag [#allocation4], %s295
        %s297 = sand.u32 %s49, 1
        %s298 = smul.addr %s297, 128
        %s299 = scalar_lea.vmem [#allocation3], %s298
        // Predicated region
        $region37: #{_lambda_.7} parent=35 // pred_check
          %p300 = pneg %p62
        $region38: #{_lambda_.7} parent=35 // pred_check_branch
          %302 = sbr.rel (%p300) target = $region40
        $region39: #{_lambda_.7} parent=35 // pred_region
          %303 = dma.done %s296, 2048
        $region40: #{_lambda_.7} parent=35 // pred_fallthru
          _
        // Predicated region
        $region41: #{_lambda_.7} parent=35 // pred_check
          %p304 = pneg %p83
        $region42: #{_lambda_.7} parent=35 // pred_check_branch
          %306 = sbr.rel (%p304) target = $region44
        $region43: #{_lambda_.7} parent=35 // pred_region
          %307 = dma.done [#allocation7], 16
        $region44: #{_lambda_.7} parent=35 // pred_fallthru
          _
        // Predicated region
        $region45: #{_lambda_.7} parent=35 // pred_check
          %p308 = pneg %p104
        $region46: #{_lambda_.7} parent=35 // pred_check_branch
          %310 = sbr.rel (%p308) target = $region48
        $region47: #{_lambda_.7} parent=35 // pred_region
          %311 = dma.done [#allocation7], 16
        $region48: #{_lambda_.7} parent=35 // pred_fallthru
          _
        // Predicated region
        $region49: #{_lambda_.7} parent=35 // pred_check
          %p312 = pneg %p125
        $region50: #{_lambda_.7} parent=35 // pred_check_branch
          %314 = sbr.rel (%p312) target = $region52
        $region51: #{_lambda_.7} parent=35 // pred_region
          %315 = dma.done [#allocation10], 9216
        $region52: #{_lambda_.7} parent=35 // pred_fallthru
          _
        %s316 = sand.u32 %s49, 1
        %s317 = scalar_lea.sflag [#allocation4], %s316
        %s318 = sand.u32 %s49, 1
        %s319 = smul.addr %s318, 128
        %s320 = scalar_lea.vmem [#allocation3], %s319
        %p321 = pneg %p62
        %p322 = pneg %p59
        %p323 = pneg %p83
        %p324 = pneg %p80
        %p325 = pneg %p104
        %p326 = pneg %p101
        %p327 = pneg %p125
        %p328 = pneg %p122
        %p329 = pneg %p153
        %p330 = pneg %p150
        %s331 = sand.u32 %s140, 1
        %s332 = scalar_lea.sflag [#allocation5], %s331
        %s333 = sand.u32 %s140, 1
        %s334 = smul.addr %s333, 64
        %s335 = scalar_lea.vmem [#allocation11], %s334
        %p336 = pneg %p183
        %p337 = pneg %p180
        %s338 = sand.u32 %s29, 1
        %s339 = scalar_lea.sflag [#allocation13], %s338
        %s340 = sand.u32 %s170, 1
        %s341 = scalar_lea.vmem [#allocation12], %s340
        %p342 = pneg %p213
        %p343 = pneg %p210
        %s344 = sand.u32 %s29, 1
        %s345 = scalar_lea.sflag [#allocation13], %s344
        %s346 = sand.u32 %s200, 1
        %s347 = scalar_lea.vmem [#allocation14], %s346
        %s348 = smul.u32 8, %s34
        %s349 = smul.u32 %s33, 2
        %s350 = sadd.s32 %s349, %s34
        %s351 = smul.u32 %s33, 2
        %s352 = sadd.s32 %s351, %s34
        %s354 = smul.u32 %s34, 8
        %s355 = smul.u32 %s354, 2
        %s356 = smul.addr %s355, 4
        %s357 = scalar_lea.vmem %s299, %s356 [#allocation3]
        %v358 = vld [vmem:[%s357] sm:$0xf]
        %v359 = vld [vmem:[%s357 + $0x4] sm:$0xf]
        %v360 = vld [vmem:[%s357 + $0x8] sm:$0xf]
        %v361 = vld [vmem:[%s357 + $0xc] sm:$0xf]
        %v362 = vld [vmem:[%s357 + $0x10] sm:$0xf]
        %v363 = vld [vmem:[%s357 + $0x14] sm:$0xf]
        %v364 = vld [vmem:[%s357 + $0x18] sm:$0xf]
        %v365 = vld [vmem:[%s357 + $0x1c] sm:$0xf]
        %v366 = vld [vmem:[%s357 + $0x20] sm:$0xf]
        %v367 = vld [vmem:[%s357 + $0x24] sm:$0xf]
        %v368 = vld [vmem:[%s357 + $0x28] sm:$0xf]
        %v369 = vld [vmem:[%s357 + $0x2c] sm:$0xf]
        %v370 = vld [vmem:[%s357 + $0x30] sm:$0xf]
        %v371 = vld [vmem:[%s357 + $0x34] sm:$0xf]
        %v372 = vld [vmem:[%s357 + $0x38] sm:$0xf]
        %v373 = vld [vmem:[%s357 + $0x3c] sm:$0xf]
        %v374 = vunpack.c.l.bf16 %v358
        %v375 = vunpack.c.l.bf16 %v359
        %v376 = vunpack.c.l.bf16 %v360
        %v377 = vunpack.c.l.bf16 %v361
        %v378 = vunpack.c.l.bf16 %v362
        %v379 = vunpack.c.l.bf16 %v363
        %v380 = vunpack.c.l.bf16 %v364
        %v381 = vunpack.c.l.bf16 %v365
        %v382 = vunpack.c.l.bf16 %v366
        %v383 = vunpack.c.l.bf16 %v367
        %v384 = vunpack.c.l.bf16 %v368
        %v385 = vunpack.c.l.bf16 %v369
        %v386 = vunpack.c.l.bf16 %v370
        %v387 = vunpack.c.l.bf16 %v371
        %v388 = vunpack.c.l.bf16 %v372
        %v389 = vunpack.c.l.bf16 %v373
        %v390 = vld [vmem:[#allocation6] sm:$0x1]
        %v392 = vlaneseq
        %v393 = vshrl.u32 %v392, 7
        %v394 = vsub.s32 0, %v393
        %v395 = vrot.slane %v390, %v394
        %v397 = vmul.f32 %v374, %v395
        %v398 = vmul.f32 %v375, %v395
        %v399 = vmul.f32 %v376, %v395
        %v400 = vmul.f32 %v377, %v395
        %v401 = vmul.f32 %v378, %v395
        %v402 = vmul.f32 %v379, %v395
        %v403 = vmul.f32 %v380, %v395
        %v404 = vmul.f32 %v381, %v395
        %v405 = vmul.f32 %v382, %v395
        %v406 = vmul.f32 %v383, %v395
        %v407 = vmul.f32 %v384, %v395
        %v408 = vmul.f32 %v385, %v395
        %v409 = vmul.f32 %v386, %v395
        %v410 = vmul.f32 %v387, %v395
        %v411 = vmul.f32 %v388, %v395
        %v412 = vmul.f32 %v389, %v395
        %v413 = vld [vmem:[#allocation8] sm:$0x1]
        %v415 = vlaneseq
        %v416 = vshrl.u32 %v415, 7
        %v417 = vsub.s32 0, %v416
        %v418 = vrot.slane %v413, %v417
        %v420 = vadd.f32 %v397, %v418
        %v421 = vadd.f32 %v398, %v418
        %v422 = vadd.f32 %v399, %v418
        %v423 = vadd.f32 %v400, %v418
        %v424 = vadd.f32 %v401, %v418
        %v425 = vadd.f32 %v402, %v418
        %v426 = vadd.f32 %v403, %v418
        %v427 = vadd.f32 %v404, %v418
        %v428 = vadd.f32 %v405, %v418
        %v429 = vadd.f32 %v406, %v418
        %v430 = vadd.f32 %v407, %v418
        %v431 = vadd.f32 %v408, %v418
        %v432 = vadd.f32 %v409, %v418
        %v433 = vadd.f32 %v410, %v418
        %v434 = vadd.f32 %v411, %v418
        %v435 = vadd.f32 %v412, %v418
        %vm436 = vcmp.gt.f32.partialorder %v420, 0.0
        %vm437 = vcmp.gt.f32.partialorder %v421, 0.0
        %vm438 = vcmp.gt.f32.partialorder %v422, 0.0
        %vm439 = vcmp.gt.f32.partialorder %v423, 0.0
        %vm440 = vcmp.gt.f32.partialorder %v424, 0.0
        %vm441 = vcmp.gt.f32.partialorder %v425, 0.0
        %vm442 = vcmp.gt.f32.partialorder %v426, 0.0
        %vm443 = vcmp.gt.f32.partialorder %v427, 0.0
        %vm444 = vcmp.gt.f32.partialorder %v428, 0.0
        %vm445 = vcmp.gt.f32.partialorder %v429, 0.0
        %vm446 = vcmp.gt.f32.partialorder %v430, 0.0
        %vm447 = vcmp.gt.f32.partialorder %v431, 0.0
        %vm448 = vcmp.gt.f32.partialorder %v432, 0.0
        %vm449 = vcmp.gt.f32.partialorder %v433, 0.0
        %vm450 = vcmp.gt.f32.partialorder %v434, 0.0
        %vm451 = vcmp.gt.f32.partialorder %v435, 0.0
        %v452 = vmul.f32 %v420, 0.1
        %v453 = vmul.f32 %v421, 0.1
        %v454 = vmul.f32 %v422, 0.1
        %v455 = vmul.f32 %v423, 0.1
        %v456 = vmul.f32 %v424, 0.1
        %v457 = vmul.f32 %v425, 0.1
        %v458 = vmul.f32 %v426, 0.1
        %v459 = vmul.f32 %v427, 0.1
        %v460 = vmul.f32 %v428, 0.1
        %v461 = vmul.f32 %v429, 0.1
        %v462 = vmul.f32 %v430, 0.1
        %v463 = vmul.f32 %v431, 0.1
        %v464 = vmul.f32 %v432, 0.1
        %v465 = vmul.f32 %v433, 0.1
        %v466 = vmul.f32 %v434, 0.1
        %v467 = vmul.f32 %v435, 0.1
        %v468 = vsel %vm436, %v420, %v452
        %v469 = vsel %vm437, %v421, %v453
        %v470 = vsel %vm438, %v422, %v454
        %v471 = vsel %vm439, %v423, %v455
        %v472 = vsel %vm440, %v424, %v456
        %v473 = vsel %vm441, %v425, %v457
        %v474 = vsel %vm442, %v426, %v458
        %v475 = vsel %vm443, %v427, %v459
        %v476 = vsel %vm444, %v428, %v460
        %v477 = vsel %vm445, %v429, %v461
        %v478 = vsel %vm446, %v430, %v462
        %v479 = vsel %vm447, %v431, %v463
        %v480 = vsel %vm448, %v432, %v464
        %v481 = vsel %vm449, %v433, %v465
        %v482 = vsel %vm450, %v434, %v466
        %v483 = vsel %vm451, %v435, %v467
        %vm500 = vcmask 1040384
        %v501 = vrot.slane %v468, 7
        %v502 = vrot.slane %v469, 7
        %v503 = vsel %vm500, %v501, %v502
        %v504 = vrot.slane %v470, 7
        %v505 = vrot.slane %v471, 7
        %v506 = vsel %vm500, %v504, %v505
        %v507 = vrot.slane %v472, 7
        %v508 = vrot.slane %v473, 7
        %v509 = vsel %vm500, %v507, %v508
        %v510 = vrot.slane %v474, 7
        %v511 = vrot.slane %v475, 7
        %v512 = vsel %vm500, %v510, %v511
        %v513 = vrot.slane %v476, 7
        %v514 = vrot.slane %v477, 7
        %v515 = vsel %vm500, %v513, %v514
        %v516 = vrot.slane %v478, 7
        %v517 = vrot.slane %v479, 7
        %v518 = vsel %vm500, %v516, %v517
        %v519 = vrot.slane %v480, 7
        %v520 = vrot.slane %v481, 7
        %v521 = vsel %vm500, %v519, %v520
        %v522 = vrot.slane %v482, 7
        %v523 = vrot.slane %v483, 7
        %v524 = vsel %vm500, %v522, %v523
        %s549 = scalar_lea.vmem [#allocation2], 72
        %550 = vst [vmem:[%s549] sm:$0xfe] %v501
        %551 = vst [vmem:[%s549 + $0x18] sm:$0xff] %v503
        %552 = vst [vmem:[%s549 + $0x30] sm:$0x1] %v502
        %553 = vst [vmem:[%s549 + $0x48] sm:$0xfe] %v504
        %554 = vst [vmem:[%s549 + $0x60] sm:$0xff] %v506
        %555 = vst [vmem:[%s549 + $0x78] sm:$0x1] %v505
        %556 = vst [vmem:[%s549 + $0x90] sm:$0xfe] %v507
        %557 = vst [vmem:[%s549 + $0xa8] sm:$0xff] %v509
        %558 = vst [vmem:[%s549 + $0xc0] sm:$0x1] %v508
        %559 = vst [vmem:[%s549 + $0xd8] sm:$0xfe] %v510
        %560 = vst [vmem:[%s549 + $0xf0] sm:$0xff] %v512
        %561 = vst [vmem:[%s549 + $0x108] sm:$0x1] %v511
        %562 = vst [vmem:[%s549 + $0x120] sm:$0xfe] %v513
        %563 = vst [vmem:[%s549 + $0x138] sm:$0xff] %v515
        %564 = vst [vmem:[%s549 + $0x150] sm:$0x1] %v514
        %565 = vst [vmem:[%s549 + $0x168] sm:$0xfe] %v516
        %566 = vst [vmem:[%s549 + $0x180] sm:$0xff] %v518
        %567 = vst [vmem:[%s549 + $0x198] sm:$0x1] %v517
        %568 = vst [vmem:[%s549 + $0x1b0] sm:$0xfe] %v519
        %569 = vst [vmem:[%s549 + $0x1c8] sm:$0xff] %v521
        %570 = vst [vmem:[%s549 + $0x1e0] sm:$0x1] %v520
        %571 = vst [vmem:[%s549 + $0x1f8] sm:$0xfe] %v522
        %572 = vst [vmem:[%s549 + $0x210] sm:$0xff] %v524
        %573 = vst [vmem:[%s549 + $0x228] sm:$0x1] %v523
        %574 = vst [vmem:[%s549 + $0x8] sm:$0xff] %v468
        %575 = vst [vmem:[%s549 + $0x20] sm:$0xff] %v469
        %576 = vst [vmem:[%s549 + $0x50] sm:$0xff] %v470
        %577 = vst [vmem:[%s549 + $0x68] sm:$0xff] %v471
        %578 = vst [vmem:[%s549 + $0x98] sm:$0xff] %v472
        %579 = vst [vmem:[%s549 + $0xb0] sm:$0xff] %v473
        %580 = vst [vmem:[%s549 + $0xe0] sm:$0xff] %v474
        %581 = vst [vmem:[%s549 + $0xf8] sm:$0xff] %v475
        %582 = vst [vmem:[%s549 + $0x128] sm:$0xff] %v476
        %583 = vst [vmem:[%s549 + $0x140] sm:$0xff] %v477
        %584 = vst [vmem:[%s549 + $0x170] sm:$0xff] %v478
        %585 = vst [vmem:[%s549 + $0x188] sm:$0xff] %v479
        %586 = vst [vmem:[%s549 + $0x1b8] sm:$0xff] %v480
        %587 = vst [vmem:[%s549 + $0x1d0] sm:$0xff] %v481
        %588 = vst [vmem:[%s549 + $0x200] sm:$0xff] %v482
        %589 = vst [vmem:[%s549 + $0x218] sm:$0xff] %v483
        %vm590 = vcmask 1046528
        %v591 = vrot.slane %v468, 1
        %v592 = vrot.slane %v469, 1
        %v593 = vsel %vm590, %v591, %v592
        %v594 = vrot.slane %v470, 1
        %v595 = vrot.slane %v471, 1
        %v596 = vsel %vm590, %v594, %v595
        %v597 = vrot.slane %v472, 1
        %v598 = vrot.slane %v473, 1
        %v599 = vsel %vm590, %v597, %v598
        %v600 = vrot.slane %v474, 1
        %v601 = vrot.slane %v475, 1
        %v602 = vsel %vm590, %v600, %v601
        %v603 = vrot.slane %v476, 1
        %v604 = vrot.slane %v477, 1
        %v605 = vsel %vm590, %v603, %v604
        %v606 = vrot.slane %v478, 1
        %v607 = vrot.slane %v479, 1
        %v608 = vsel %vm590, %v606, %v607
        %v609 = vrot.slane %v480, 1
        %v610 = vrot.slane %v481, 1
        %v611 = vsel %vm590, %v609, %v610
        %v612 = vrot.slane %v482, 1
        %v613 = vrot.slane %v483, 1
        %v614 = vsel %vm590, %v612, %v613
        %631 = vst [vmem:[%s549 + $0x10] sm:$0xff] %v593
        %632 = vst [vmem:[%s549 + $0x28] sm:$0x7f] %v592
        %633 = vst [vmem:[%s549 + $0x58] sm:$0xff] %v596
        %634 = vst [vmem:[%s549 + $0x70] sm:$0x7f] %v595
        %635 = vst [vmem:[%s549 + $0xa0] sm:$0xff] %v599
        %636 = vst [vmem:[%s549 + $0xb8] sm:$0x7f] %v598
        %637 = vst [vmem:[%s549 + $0xe8] sm:$0xff] %v602
        %638 = vst [vmem:[%s549 + $0x100] sm:$0x7f] %v601
        %639 = vst [vmem:[%s549 + $0x130] sm:$0xff] %v605
        %640 = vst [vmem:[%s549 + $0x148] sm:$0x7f] %v604
        %641 = vst [vmem:[%s549 + $0x178] sm:$0xff] %v608
        %642 = vst [vmem:[%s549 + $0x190] sm:$0x7f] %v607
        %643 = vst [vmem:[%s549 + $0x1c0] sm:$0xff] %v611
        %644 = vst [vmem:[%s549 + $0x1d8] sm:$0x7f] %v610
        %645 = vst [vmem:[%s549 + $0x208] sm:$0xff] %v614
        %646 = vst [vmem:[%s549 + $0x220] sm:$0x7f] %v613
        %s647 = ssub.s32 %s354, 1
        %p648 = scmp.gt.s32.totalorder %s647, 0
        %s649 = scalar_select %p648, %s647, 0
        %s650 = smul.u32 %s649, 2
        %s651 = smul.addr %s650, 4
        %s652 = scalar_lea.vmem %s299, %s651 [#allocation3]
        %v653 = vld [vmem:[%s652] sm:$0xf]
        %v654 = vld [vmem:[%s652 + $0x4] sm:$0xf]
        %v655 = vunpack.c.l.bf16 %v653
        %v656 = vunpack.c.l.bf16 %v654
        %v657 = vld [vmem:[#allocation6] sm:$0x1]
        %v659 = vlaneseq
        %v660 = vshrl.u32 %v659, 7
        %v661 = vsub.s32 0, %v660
        %v662 = vrot.slane %v657, %v661
        %v664 = vmul.f32 %v655, %v662
        %v665 = vmul.f32 %v656, %v662
        %v666 = vld [vmem:[#allocation8] sm:$0x1]
        %v668 = vlaneseq
        %v669 = vshrl.u32 %v668, 7
        %v670 = vsub.s32 0, %v669
        %v671 = vrot.slane %v666, %v670
        %v673 = vadd.f32 %v664, %v671
        %v674 = vadd.f32 %v665, %v671
        %vm675 = vcmp.gt.f32.partialorder %v673, 0.0
        %vm676 = vcmp.gt.f32.partialorder %v674, 0.0
        %v677 = vmul.f32 %v673, 0.1
        %v678 = vmul.f32 %v674, 0.1
        %v679 = vsel %vm675, %v673, %v677
        %v680 = vsel %vm676, %v674, %v678
        %v683 = vrot.slane %v679, 7
        %v684 = vrot.slane %v680, 7
        %v685 = vsel %vm500, %v683, %v684
        %689 = vst [vmem:[#allocation2] sm:$0xfe] %v683
        %690 = vst [vmem:[#allocation2 + $0x18] sm:$0xff] %v685
        %691 = vst [vmem:[#allocation2 + $0x30] sm:$0x1] %v684
        %692 = vst [vmem:[#allocation2 + $0x8] sm:$0xff] %v679
        %693 = vst [vmem:[#allocation2 + $0x20] sm:$0xff] %v680
        %v694 = vrot.slane %v679, 1
        %v695 = vrot.slane %v680, 1
        %v696 = vsel %vm590, %v694, %v695
        %699 = vst [vmem:[#allocation2 + $0x10] sm:$0xff] %v696
        %700 = vst [vmem:[#allocation2 + $0x28] sm:$0x7f] %v695
        %s701 = sadd.s32 %s354, 8
        %p702 = scmp.lt.s32.totalorder %s701, 15
        %s703 = scalar_select %p702, %s701, 15
        %s704 = smul.u32 %s703, 2
        %s705 = smul.addr %s704, 4
        %s706 = scalar_lea.vmem %s299, %s705 [#allocation3]
        %v707 = vld [vmem:[%s706] sm:$0xf]
        %v708 = vld [vmem:[%s706 + $0x4] sm:$0xf]
        %v709 = vunpack.c.l.bf16 %v707
        %v710 = vunpack.c.l.bf16 %v708
        %v711 = vld [vmem:[#allocation6] sm:$0x1]
        %v713 = vlaneseq
        %v714 = vshrl.u32 %v713, 7
        %v715 = vsub.s32 0, %v714
        %v716 = vrot.slane %v711, %v715
        %v718 = vmul.f32 %v709, %v716
        %v719 = vmul.f32 %v710, %v716
        %v720 = vld [vmem:[#allocation8] sm:$0x1]
        %v722 = vlaneseq
        %v723 = vshrl.u32 %v722, 7
        %v724 = vsub.s32 0, %v723
        %v725 = vrot.slane %v720, %v724
        %v727 = vadd.f32 %v718, %v725
        %v728 = vadd.f32 %v719, %v725
        %vm729 = vcmp.gt.f32.partialorder %v727, 0.0
        %vm730 = vcmp.gt.f32.partialorder %v728, 0.0
        %v731 = vmul.f32 %v727, 0.1
        %v732 = vmul.f32 %v728, 0.1
        %v733 = vsel %vm729, %v727, %v731
        %v734 = vsel %vm730, %v728, %v732
        %v737 = vrot.slane %v733, 7
        %v738 = vrot.slane %v734, 7
        %v739 = vsel %vm500, %v737, %v738
        %s743 = scalar_lea.vmem [#allocation2], 648
        %744 = vst [vmem:[%s743] sm:$0xfe] %v737
        %745 = vst [vmem:[%s743 + $0x18] sm:$0xff] %v739
        %746 = vst [vmem:[%s743 + $0x30] sm:$0x1] %v738
        %747 = vst [vmem:[%s743 + $0x8] sm:$0xff] %v733
        %748 = vst [vmem:[%s743 + $0x20] sm:$0xff] %v734
        %v749 = vrot.slane %v733, 1
        %v750 = vrot.slane %v734, 1
        %v751 = vsel %vm590, %v749, %v750
        %754 = vst [vmem:[%s743 + $0x10] sm:$0xff] %v751
        %755 = vst [vmem:[%s743 + $0x28] sm:$0x7f] %v750
        %p756 = scmp.eq.s32.totalorder %s354, 0
        // Predicated region
        $region53: #{_lambda_.7} parent=35 // pred_check
          %p757 = pneg %p756
        $region54: #{_lambda_.7} parent=35 // pred_check_branch
          %759 = sbr.rel (%p757) target = $region56
        $region55: #{_lambda_.7} parent=35 // pred_region
          %760 = vst [vmem:[#allocation2] sm:$0xff] 0.0
          %761 = vst [vmem:[#allocation2 + $0x8] sm:$0xff] 0.0
          %762 = vst [vmem:[#allocation2 + $0x10] sm:$0xff] 0.0
          %763 = vst [vmem:[#allocation2 + $0x18] sm:$0xff] 0.0
          %764 = vst [vmem:[#allocation2 + $0x20] sm:$0xff] 0.0
          %765 = vst [vmem:[#allocation2 + $0x28] sm:$0xff] 0.0
          %766 = vst [vmem:[#allocation2 + $0x30] sm:$0xff] 0.0
          %767 = vst [vmem:[#allocation2 + $0x38] sm:$0xff] 0.0
          %768 = vst [vmem:[#allocation2 + $0x40] sm:$0xff] 0.0
        $region56: #{_lambda_.7} parent=35 // pred_fallthru
          _
        %p769 = scmp.eq.s32.totalorder %s701, 16
        // Predicated region
        $region57: #{_lambda_.7} parent=35 // pred_check
          %p770 = pneg %p769
        $region58: #{_lambda_.7} parent=35 // pred_check_branch
          %772 = sbr.rel (%p770) target = $region60
        $region59: #{_lambda_.7} parent=35 // pred_region
          %773 = vst [vmem:[%s743] sm:$0xff] 0.0
          %774 = vst [vmem:[%s743 + $0x8] sm:$0xff] 0.0
          %775 = vst [vmem:[%s743 + $0x10] sm:$0xff] 0.0
          %776 = vst [vmem:[%s743 + $0x18] sm:$0xff] 0.0
          %777 = vst [vmem:[%s743 + $0x20] sm:$0xff] 0.0
          %778 = vst [vmem:[%s743 + $0x28] sm:$0xff] 0.0
          %779 = vst [vmem:[%s743 + $0x30] sm:$0xff] 0.0
          %780 = vst [vmem:[%s743 + $0x38] sm:$0xff] 0.0
          %781 = vst [vmem:[%s743 + $0x40] sm:$0xff] 0.0
        $region60: #{_lambda_.7} parent=35 // pred_fallthru
          _
        %782 = vst [vmem:[#allocation2] sm:$0x1] 0.0
        %783 = vst [vmem:[#allocation2 + $0x48] sm:$0x1] 0.0
        %784 = vst [vmem:[#allocation2 + $0x90] sm:$0x1] 0.0
        %785 = vst [vmem:[#allocation2 + $0xd8] sm:$0x1] 0.0
        %786 = vst [vmem:[#allocation2 + $0x120] sm:$0x1] 0.0
        %787 = vst [vmem:[#allocation2 + $0x168] sm:$0x1] 0.0
        %788 = vst [vmem:[#allocation2 + $0x1b0] sm:$0x1] 0.0
        %789 = vst [vmem:[#allocation2 + $0x1f8] sm:$0x1] 0.0
        %790 = vst [vmem:[#allocation2 + $0x240] sm:$0x1] 0.0
        %791 = vst [vmem:[#allocation2 + $0x288] sm:$0x1] 0.0
        %792 = vst [vmem:[#allocation2 + $0x2f] sm:$0x1] 0.0
        %793 = vst [vmem:[#allocation2 + $0x77] sm:$0x1] 0.0
        %794 = vst [vmem:[#allocation2 + $0xbf] sm:$0x1] 0.0
        %795 = vst [vmem:[#allocation2 + $0x107] sm:$0x1] 0.0
        %796 = vst [vmem:[#allocation2 + $0x14f] sm:$0x1] 0.0
        %797 = vst [vmem:[#allocation2 + $0x197] sm:$0x1] 0.0
        %798 = vst [vmem:[#allocation2 + $0x1df] sm:$0x1] 0.0
        %799 = vst [vmem:[#allocation2 + $0x227] sm:$0x1] 0.0
        %800 = vst [vmem:[#allocation2 + $0x26f] sm:$0x1] 0.0
        %801 = vst [vmem:[#allocation2 + $0x2b7] sm:$0x1] 0.0
        %v802 = vld [vmem:[#allocation2] sm:$0xff]
        %v803 = vld [vmem:[#allocation2 + $0x8] sm:$0xff]
        %v804 = vld [vmem:[#allocation2 + $0x10] sm:$0xff]
        %v805 = vld [vmem:[#allocation2 + $0x18] sm:$0xff]
        %v806 = vld [vmem:[#allocation2 + $0x20] sm:$0xff]
        %v807 = vld [vmem:[#allocation2 + $0x28] sm:$0xff]
        %v808 = vld [vmem:[#allocation2 + $0x30] sm:$0xff]
        %v809 = vld [vmem:[#allocation2 + $0x38] sm:$0xff]
        %v810 = vld [vmem:[#allocation2 + $0x40] sm:$0xff]
        %v811 = vld [vmem:[#allocation2 + $0x48] sm:$0xff]
        %v812 = vld [vmem:[#allocation2 + $0x50] sm:$0xff]
        %v813 = vld [vmem:[#allocation2 + $0x58] sm:$0xff]
        %v814 = vld [vmem:[#allocation2 + $0x60] sm:$0xff]
        %v815 = vld [vmem:[#allocation2 + $0x68] sm:$0xff]
        %v816 = vld [vmem:[#allocation2 + $0x70] sm:$0xff]
        %v817 = vld [vmem:[#allocation2 + $0x78] sm:$0xff]
        %v818 = vld [vmem:[#allocation2 + $0x80] sm:$0xff]
        %v819 = vld [vmem:[#allocation2 + $0x88] sm:$0xff]
        %v820 = vld [vmem:[#allocation2 + $0x90] sm:$0xff]
        %v821 = vld [vmem:[#allocation2 + $0x98] sm:$0xff]
        %v822 = vld [vmem:[#allocation2 + $0xa0] sm:$0xff]
        %v823 = vld [vmem:[#allocation2 + $0xa8] sm:$0xff]
        %v824 = vld [vmem:[#allocation2 + $0xb0] sm:$0xff]
        %v825 = vld [vmem:[#allocation2 + $0xb8] sm:$0xff]
        %v826 = vld [vmem:[#allocation2 + $0xc0] sm:$0xff]
        %v827 = vld [vmem:[#allocation2 + $0xc8] sm:$0xff]
        %v828 = vld [vmem:[#allocation2 + $0xd0] sm:$0xff]
        %v829 = vld [vmem:[#allocation2 + $0xd8] sm:$0xff]
        %v830 = vld [vmem:[#allocation2 + $0xe0] sm:$0xff]
        %v831 = vld [vmem:[#allocation2 + $0xe8] sm:$0xff]
        %v832 = vld [vmem:[#allocation2 + $0xf0] sm:$0xff]
        %v833 = vld [vmem:[#allocation2 + $0xf8] sm:$0xff]
        %v834 = vld [vmem:[#allocation2 + $0x100] sm:$0xff]
        %v835 = vld [vmem:[#allocation2 + $0x108] sm:$0xff]
        %v836 = vld [vmem:[#allocation2 + $0x110] sm:$0xff]
        %v837 = vld [vmem:[#allocation2 + $0x118] sm:$0xff]
        %v838 = vld [vmem:[#allocation2 + $0x120] sm:$0xff]
        %v839 = vld [vmem:[#allocation2 + $0x128] sm:$0xff]
        %v840 = vld [vmem:[#allocation2 + $0x130] sm:$0xff]
        %v841 = vld [vmem:[#allocation2 + $0x138] sm:$0xff]
        %v842 = vld [vmem:[#allocation2 + $0x140] sm:$0xff]
        %v843 = vld [vmem:[#allocation2 + $0x148] sm:$0xff]
        %v844 = vld [vmem:[#allocation2 + $0x150] sm:$0xff]
        %v845 = vld [vmem:[#allocation2 + $0x158] sm:$0xff]
        %v846 = vld [vmem:[#allocation2 + $0x160] sm:$0xff]
        %v847 = vld [vmem:[#allocation2 + $0x168] sm:$0xff]
        %v848 = vld [vmem:[#allocation2 + $0x170] sm:$0xff]
        %v849 = vld [vmem:[#allocation2 + $0x178] sm:$0xff]
        %v850 = vld [vmem:[#allocation2 + $0x180] sm:$0xff]
        %v851 = vld [vmem:[#allocation2 + $0x188] sm:$0xff]
        %v852 = vld [vmem:[#allocation2 + $0x190] sm:$0xff]
        %v853 = vld [vmem:[#allocation2 + $0x198] sm:$0xff]
        %v854 = vld [vmem:[#allocation2 + $0x1a0] sm:$0xff]
        %v855 = vld [vmem:[#allocation2 + $0x1a8] sm:$0xff]
        %v856 = vld [vmem:[#allocation2 + $0x1b0] sm:$0xff]
        %v857 = vld [vmem:[#allocation2 + $0x1b8] sm:$0xff]
        %v858 = vld [vmem:[#allocation2 + $0x1c0] sm:$0xff]
        %v859 = vld [vmem:[#allocation2 + $0x1c8] sm:$0xff]
        %v860 = vld [vmem:[#allocation2 + $0x1d0] sm:$0xff]
        %v861 = vld [vmem:[#allocation2 + $0x1d8] sm:$0xff]
        %v862 = vld [vmem:[#allocation2 + $0x1e0] sm:$0xff]
        %v863 = vld [vmem:[#allocation2 + $0x1e8] sm:$0xff]
        %v864 = vld [vmem:[#allocation2 + $0x1f0] sm:$0xff]
        %v865 = vld [vmem:[#allocation2 + $0x1f8] sm:$0xff]
        %v866 = vld [vmem:[#allocation2 + $0x200] sm:$0xff]
        %v867 = vld [vmem:[#allocation2 + $0x208] sm:$0xff]
        %v868 = vld [vmem:[#allocation2 + $0x210] sm:$0xff]
        %v869 = vld [vmem:[#allocation2 + $0x218] sm:$0xff]
        %v870 = vld [vmem:[#allocation2 + $0x220] sm:$0xff]
        %v871 = vld [vmem:[#allocation2 + $0x228] sm:$0xff]
        %v872 = vld [vmem:[#allocation2 + $0x230] sm:$0xff]
        %v873 = vld [vmem:[#allocation2 + $0x238] sm:$0xff]
        %v874 = vpack.c.bf16 %v805, %v802
        %v875 = vpack.c.bf16 %v806, %v803
        %v876 = vpack.c.bf16 %v807, %v804
        %v877 = vpack.c.bf16 %v811, %v808
        %v878 = vpack.c.bf16 %v812, %v809
        %v879 = vpack.c.bf16 %v813, %v810
        %v880 = vpack.c.bf16 %v817, %v814
        %v881 = vpack.c.bf16 %v818, %v815
        %v882 = vpack.c.bf16 %v819, %v816
        %v883 = vpack.c.bf16 %v823, %v820
        %v884 = vpack.c.bf16 %v824, %v821
        %v885 = vpack.c.bf16 %v825, %v822
        %v886 = vpack.c.bf16 %v829, %v826
        %v887 = vpack.c.bf16 %v830, %v827
        %v888 = vpack.c.bf16 %v831, %v828
        %v889 = vpack.c.bf16 %v835, %v832
        %v890 = vpack.c.bf16 %v836, %v833
        %v891 = vpack.c.bf16 %v837, %v834
        %v892 = vpack.c.bf16 %v841, %v838
        %v893 = vpack.c.bf16 %v842, %v839
        %v894 = vpack.c.bf16 %v843, %v840
        %v895 = vpack.c.bf16 %v847, %v844
        %v896 = vpack.c.bf16 %v848, %v845
        %v897 = vpack.c.bf16 %v849, %v846
        %v898 = vpack.c.bf16 %v853, %v850
        %v899 = vpack.c.bf16 %v854, %v851
        %v900 = vpack.c.bf16 %v855, %v852
        %v901 = vpack.c.bf16 %v859, %v856
        %v902 = vpack.c.bf16 %v860, %v857
        %v903 = vpack.c.bf16 %v861, %v858
        %v904 = vpack.c.bf16 %v865, %v862
        %v905 = vpack.c.bf16 %v866, %v863
        %v906 = vpack.c.bf16 %v867, %v864
        %v907 = vpack.c.bf16 %v871, %v868
        %v908 = vpack.c.bf16 %v872, %v869
        %v909 = vpack.c.bf16 %v873, %v870
        %v910 = vld [vmem:[#allocation9] sm:$0xf]
        %v911 = vld [vmem:[#allocation9 + $0x4] sm:$0xf]
        %v912 = vld [vmem:[#allocation9 + $0x8] sm:$0xf]
        %v913 = vld [vmem:[#allocation9 + $0xc] sm:$0xf]
        %v914 = vld [vmem:[#allocation9 + $0x10] sm:$0xf]
        %v915 = vld [vmem:[#allocation9 + $0x14] sm:$0xf]
        %v916 = vld [vmem:[#allocation9 + $0x18] sm:$0xf]
        %v917 = vld [vmem:[#allocation9 + $0x1c] sm:$0xf]
        %v918 = vld [vmem:[#allocation9 + $0x20] sm:$0xf]
        %v919 = vld [vmem:[#allocation9 + $0x24] sm:$0xf]
        %v920 = vld [vmem:[#allocation9 + $0x28] sm:$0xf]
        %v921 = vld [vmem:[#allocation9 + $0x2c] sm:$0xf]
        %v922 = vld [vmem:[#allocation9 + $0x30] sm:$0xf]
        %v923 = vld [vmem:[#allocation9 + $0x34] sm:$0xf]
        %v924 = vld [vmem:[#allocation9 + $0x38] sm:$0xf]
        %v925 = vld [vmem:[#allocation9 + $0x3c] sm:$0xf]
        %v926 = vld [vmem:[#allocation9 + $0x40] sm:$0xf]
        %v927 = vld [vmem:[#allocation9 + $0x44] sm:$0xf]
        %v928 = vld [vmem:[#allocation9 + $0x48] sm:$0xf]
        %v929 = vld [vmem:[#allocation9 + $0x4c] sm:$0xf]
        %v930 = vld [vmem:[#allocation9 + $0x50] sm:$0xf]
        %v931 = vld [vmem:[#allocation9 + $0x54] sm:$0xf]
        %v932 = vld [vmem:[#allocation9 + $0x58] sm:$0xf]
        %v933 = vld [vmem:[#allocation9 + $0x5c] sm:$0xf]
        %v934 = vld [vmem:[#allocation9 + $0x60] sm:$0xf]
        %v935 = vld [vmem:[#allocation9 + $0x64] sm:$0xf]
        %v936 = vld [vmem:[#allocation9 + $0x68] sm:$0xf]
        %v937 = vld [vmem:[#allocation9 + $0x6c] sm:$0xf]
        %v938 = vld [vmem:[#allocation9 + $0x70] sm:$0xf]
        %v939 = vld [vmem:[#allocation9 + $0x74] sm:$0xf]
        %v940 = vld [vmem:[#allocation9 + $0x78] sm:$0xf]
        %v941 = vld [vmem:[#allocation9 + $0x7c] sm:$0xf]
        %v942 = vld [vmem:[#allocation9 + $0x80] sm:$0xf]
        %v943 = vld [vmem:[#allocation9 + $0x84] sm:$0xf]
        %v944 = vld [vmem:[#allocation9 + $0x88] sm:$0xf]
        %v945 = vld [vmem:[#allocation9 + $0x8c] sm:$0xf]
        %v946 = vld [vmem:[#allocation9 + $0x90] sm:$0xf]
        %v947 = vld [vmem:[#allocation9 + $0x94] sm:$0xf]
        %v948 = vld [vmem:[#allocation9 + $0x98] sm:$0xf]
        %v949 = vld [vmem:[#allocation9 + $0x9c] sm:$0xf]
        %v950 = vld [vmem:[#allocation9 + $0xa0] sm:$0xf]
        %v951 = vld [vmem:[#allocation9 + $0xa4] sm:$0xf]
        %v952 = vld [vmem:[#allocation9 + $0xa8] sm:$0xf]
        %v953 = vld [vmem:[#allocation9 + $0xac] sm:$0xf]
        %v954 = vld [vmem:[#allocation9 + $0xb0] sm:$0xf]
        %v955 = vld [vmem:[#allocation9 + $0xb4] sm:$0xf]
        %v956 = vld [vmem:[#allocation9 + $0xb8] sm:$0xf]
        %v957 = vld [vmem:[#allocation9 + $0xbc] sm:$0xf]
        %v958 = vld [vmem:[%s549] sm:$0xff]
        %v959 = vld [vmem:[%s549 + $0x8] sm:$0xff]
        %v960 = vld [vmem:[%s549 + $0x10] sm:$0xff]
        %v961 = vld [vmem:[%s549 + $0x18] sm:$0xff]
        %v962 = vld [vmem:[%s549 + $0x20] sm:$0xff]
        %v963 = vld [vmem:[%s549 + $0x28] sm:$0xff]
        %v964 = vld [vmem:[%s549 + $0x30] sm:$0xff]
        %v965 = vld [vmem:[%s549 + $0x38] sm:$0xff]
        %v966 = vld [vmem:[%s549 + $0x40] sm:$0xff]
        %v967 = vld [vmem:[%s549 + $0x48] sm:$0xff]
        %v968 = vld [vmem:[%s549 + $0x50] sm:$0xff]
        %v969 = vld [vmem:[%s549 + $0x58] sm:$0xff]
        %v970 = vld [vmem:[%s549 + $0x60] sm:$0xff]
        %v971 = vld [vmem:[%s549 + $0x68] sm:$0xff]
        %v972 = vld [vmem:[%s549 + $0x70] sm:$0xff]
        %v973 = vld [vmem:[%s549 + $0x78] sm:$0xff]
        %v974 = vld [vmem:[%s549 + $0x80] sm:$0xff]
        %v975 = vld [vmem:[%s549 + $0x88] sm:$0xff]
        %v976 = vld [vmem:[%s549 + $0x90] sm:$0xff]
        %v977 = vld [vmem:[%s549 + $0x98] sm:$0xff]
        %v978 = vld [vmem:[%s549 + $0xa0] sm:$0xff]
        %v979 = vld [vmem:[%s549 + $0xa8] sm:$0xff]
        %v980 = vld [vmem:[%s549 + $0xb0] sm:$0xff]
        %v981 = vld [vmem:[%s549 + $0xb8] sm:$0xff]
        %v982 = vld [vmem:[%s549 + $0xc0] sm:$0xff]
        %v983 = vld [vmem:[%s549 + $0xc8] sm:$0xff]
        %v984 = vld [vmem:[%s549 + $0xd0] sm:$0xff]
        %v985 = vld [vmem:[%s549 + $0xd8] sm:$0xff]
        %v986 = vld [vmem:[%s549 + $0xe0] sm:$0xff]
        %v987 = vld [vmem:[%s549 + $0xe8] sm:$0xff]
        %v988 = vld [vmem:[%s549 + $0xf0] sm:$0xff]
        %v989 = vld [vmem:[%s549 + $0xf8] sm:$0xff]
        %v990 = vld [vmem:[%s549 + $0x100] sm:$0xff]
        %v991 = vld [vmem:[%s549 + $0x108] sm:$0xff]
        %v992 = vld [vmem:[%s549 + $0x110] sm:$0xff]
        %v993 = vld [vmem:[%s549 + $0x118] sm:$0xff]
        %v994 = vld [vmem:[%s549 + $0x120] sm:$0xff]
        %v995 = vld [vmem:[%s549 + $0x128] sm:$0xff]
        %v996 = vld [vmem:[%s549 + $0x130] sm:$0xff]
        %v997 = vld [vmem:[%s549 + $0x138] sm:$0xff]
        %v998 = vld [vmem:[%s549 + $0x140] sm:$0xff]
        %v999 = vld [vmem:[%s549 + $0x148] sm:$0xff]
        %v1000 = vld [vmem:[%s549 + $0x150] sm:$0xff]
        %v1001 = vld [vmem:[%s549 + $0x158] sm:$0xff]
        %v1002 = vld [vmem:[%s549 + $0x160] sm:$0xff]
        %v1003 = vld [vmem:[%s549 + $0x168] sm:$0xff]
        %v1004 = vld [vmem:[%s549 + $0x170] sm:$0xff]
        %v1005 = vld [vmem:[%s549 + $0x178] sm:$0xff]
        %v1006 = vld [vmem:[%s549 + $0x180] sm:$0xff]
        %v1007 = vld [vmem:[%s549 + $0x188] sm:$0xff]
        %v1008 = vld [vmem:[%s549 + $0x190] sm:$0xff]
        %v1009 = vld [vmem:[%s549 + $0x198] sm:$0xff]
        %v1010 = vld [vmem:[%s549 + $0x1a0] sm:$0xff]
        %v1011 = vld [vmem:[%s549 + $0x1a8] sm:$0xff]
        %v1012 = vld [vmem:[%s549 + $0x1b0] sm:$0xff]
        %v1013 = vld [vmem:[%s549 + $0x1b8] sm:$0xff]
        %v1014 = vld [vmem:[%s549 + $0x1c0] sm:$0xff]
        %v1015 = vld [vmem:[%s549 + $0x1c8] sm:$0xff]
        %v1016 = vld [vmem:[%s549 + $0x1d0] sm:$0xff]
        %v1017 = vld [vmem:[%s549 + $0x1d8] sm:$0xff]
        %v1018 = vld [vmem:[%s549 + $0x1e0] sm:$0xff]
        %v1019 = vld [vmem:[%s549 + $0x1e8] sm:$0xff]
        %v1020 = vld [vmem:[%s549 + $0x1f0] sm:$0xff]
        %v1021 = vld [vmem:[%s549 + $0x1f8] sm:$0xff]
        %v1022 = vld [vmem:[%s549 + $0x200] sm:$0xff]
        %v1023 = vld [vmem:[%s549 + $0x208] sm:$0xff]
        %v1024 = vld [vmem:[%s549 + $0x210] sm:$0xff]
        %v1025 = vld [vmem:[%s549 + $0x218] sm:$0xff]
        %v1026 = vld [vmem:[%s549 + $0x220] sm:$0xff]
        %v1027 = vld [vmem:[%s549 + $0x228] sm:$0xff]
        %v1028 = vld [vmem:[%s549 + $0x230] sm:$0xff]
        %v1029 = vld [vmem:[%s549 + $0x238] sm:$0xff]
        %v1030 = vpack.c.bf16 %v961, %v958
        %v1031 = vpack.c.bf16 %v962, %v959
        %v1032 = vpack.c.bf16 %v963, %v960
        %v1033 = vpack.c.bf16 %v967, %v964
        %v1034 = vpack.c.bf16 %v968, %v965
        %v1035 = vpack.c.bf16 %v969, %v966
        %v1036 = vpack.c.bf16 %v973, %v970
        %v1037 = vpack.c.bf16 %v974, %v971
        %v1038 = vpack.c.bf16 %v975, %v972
        %v1039 = vpack.c.bf16 %v979, %v976
        %v1040 = vpack.c.bf16 %v980, %v977
        %v1041 = vpack.c.bf16 %v981, %v978
        %v1042 = vpack.c.bf16 %v985, %v982
        %v1043 = vpack.c.bf16 %v986, %v983
        %v1044 = vpack.c.bf16 %v987, %v984
        %v1045 = vpack.c.bf16 %v991, %v988
        %v1046 = vpack.c.bf16 %v992, %v989
        %v1047 = vpack.c.bf16 %v993, %v990
        %v1048 = vpack.c.bf16 %v997, %v994
        %v1049 = vpack.c.bf16 %v998, %v995
        %v1050 = vpack.c.bf16 %v999, %v996
        %v1051 = vpack.c.bf16 %v1003, %v1000
        %v1052 = vpack.c.bf16 %v1004, %v1001
        %v1053 = vpack.c.bf16 %v1005, %v1002
        %v1054 = vpack.c.bf16 %v1009, %v1006
        %v1055 = vpack.c.bf16 %v1010, %v1007
        %v1056 = vpack.c.bf16 %v1011, %v1008
        %v1057 = vpack.c.bf16 %v1015, %v1012
        %v1058 = vpack.c.bf16 %v1016, %v1013
        %v1059 = vpack.c.bf16 %v1017, %v1014
        %v1060 = vpack.c.bf16 %v1021, %v1018
        %v1061 = vpack.c.bf16 %v1022, %v1019
        %v1062 = vpack.c.bf16 %v1023, %v1020
        %v1063 = vpack.c.bf16 %v1027, %v1024
        %v1064 = vpack.c.bf16 %v1028, %v1025
        %v1065 = vpack.c.bf16 %v1029, %v1026
        %s1066 = scalar_lea.vmem [#allocation9], 192
        %v1067 = vld [vmem:[%s1066] sm:$0xf]
        %v1068 = vld [vmem:[%s1066 + $0x4] sm:$0xf]
        %v1069 = vld [vmem:[%s1066 + $0x8] sm:$0xf]
        %v1070 = vld [vmem:[%s1066 + $0xc] sm:$0xf]
        %v1071 = vld [vmem:[%s1066 + $0x10] sm:$0xf]
        %v1072 = vld [vmem:[%s1066 + $0x14] sm:$0xf]
        %v1073 = vld [vmem:[%s1066 + $0x18] sm:$0xf]
        %v1074 = vld [vmem:[%s1066 + $0x1c] sm:$0xf]
        %v1075 = vld [vmem:[%s1066 + $0x20] sm:$0xf]
        %v1076 = vld [vmem:[%s1066 + $0x24] sm:$0xf]
        %v1077 = vld [vmem:[%s1066 + $0x28] sm:$0xf]
        %v1078 = vld [vmem:[%s1066 + $0x2c] sm:$0xf]
        %v1079 = vld [vmem:[%s1066 + $0x30] sm:$0xf]
        %v1080 = vld [vmem:[%s1066 + $0x34] sm:$0xf]
        %v1081 = vld [vmem:[%s1066 + $0x38] sm:$0xf]
        %v1082 = vld [vmem:[%s1066 + $0x3c] sm:$0xf]
        %v1083 = vld [vmem:[%s1066 + $0x40] sm:$0xf]
        %v1084 = vld [vmem:[%s1066 + $0x44] sm:$0xf]
        %v1085 = vld [vmem:[%s1066 + $0x48] sm:$0xf]
        %v1086 = vld [vmem:[%s1066 + $0x4c] sm:$0xf]
        %v1087 = vld [vmem:[%s1066 + $0x50] sm:$0xf]
        %v1088 = vld [vmem:[%s1066 + $0x54] sm:$0xf]
        %v1089 = vld [vmem:[%s1066 + $0x58] sm:$0xf]
        %v1090 = vld [vmem:[%s1066 + $0x5c] sm:$0xf]
        %v1091 = vld [vmem:[%s1066 + $0x60] sm:$0xf]
        %v1092 = vld [vmem:[%s1066 + $0x64] sm:$0xf]
        %v1093 = vld [vmem:[%s1066 + $0x68] sm:$0xf]
        %v1094 = vld [vmem:[%s1066 + $0x6c] sm:$0xf]
        %v1095 = vld [vmem:[%s1066 + $0x70] sm:$0xf]
        %v1096 = vld [vmem:[%s1066 + $0x74] sm:$0xf]
        %v1097 = vld [vmem:[%s1066 + $0x78] sm:$0xf]
        %v1098 = vld [vmem:[%s1066 + $0x7c] sm:$0xf]
        %v1099 = vld [vmem:[%s1066 + $0x80] sm:$0xf]
        %v1100 = vld [vmem:[%s1066 + $0x84] sm:$0xf]
        %v1101 = vld [vmem:[%s1066 + $0x88] sm:$0xf]
        %v1102 = vld [vmem:[%s1066 + $0x8c] sm:$0xf]
        %v1103 = vld [vmem:[%s1066 + $0x90] sm:$0xf]
        %v1104 = vld [vmem:[%s1066 + $0x94] sm:$0xf]
        %v1105 = vld [vmem:[%s1066 + $0x98] sm:$0xf]
        %v1106 = vld [vmem:[%s1066 + $0x9c] sm:$0xf]
        %v1107 = vld [vmem:[%s1066 + $0xa0] sm:$0xf]
        %v1108 = vld [vmem:[%s1066 + $0xa4] sm:$0xf]
        %v1109 = vld [vmem:[%s1066 + $0xa8] sm:$0xf]
        %v1110 = vld [vmem:[%s1066 + $0xac] sm:$0xf]
        %v1111 = vld [vmem:[%s1066 + $0xb0] sm:$0xf]
        %v1112 = vld [vmem:[%s1066 + $0xb4] sm:$0xf]
        %v1113 = vld [vmem:[%s1066 + $0xb8] sm:$0xf]
        %v1114 = vld [vmem:[%s1066 + $0xbc] sm:$0xf]
        %v1163 = vunpack.c.l.b16 %v1067
        %v1164 = vunpack.c.l.b16 %v1068
        %v1165 = vunpack.c.l.b16 %v1069
        %v1166 = vunpack.c.l.b16 %v1070
        %v1167 = vunpack.c.l.b16 %v1071
        %v1168 = vunpack.c.l.b16 %v1072
        %v1169 = vunpack.c.l.b16 %v1073
        %v1170 = vunpack.c.l.b16 %v1074
        %v1171 = vunpack.c.l.b16 %v1075
        %v1172 = vunpack.c.l.b16 %v1076
        %v1173 = vunpack.c.l.b16 %v1077
        %v1174 = vunpack.c.l.b16 %v1078
        %v1175 = vunpack.c.l.b16 %v1079
        %v1176 = vunpack.c.l.b16 %v1080
        %v1177 = vunpack.c.l.b16 %v1081
        %v1178 = vunpack.c.l.b16 %v1082
        %v1179 = vunpack.c.l.b16 %v1083
        %v1180 = vunpack.c.l.b16 %v1084
        %v1181 = vunpack.c.l.b16 %v1085
        %v1182 = vunpack.c.l.b16 %v1086
        %v1183 = vunpack.c.l.b16 %v1087
        %v1184 = vunpack.c.l.b16 %v1088
        %v1185 = vunpack.c.l.b16 %v1089
        %v1186 = vunpack.c.l.b16 %v1090
        %v1187 = vunpack.c.l.b16 %v1091
        %v1188 = vunpack.c.l.b16 %v1092
        %v1189 = vunpack.c.l.b16 %v1093
        %v1190 = vunpack.c.l.b16 %v1094
        %v1191 = vunpack.c.l.b16 %v1095
        %v1192 = vunpack.c.l.b16 %v1096
        %v1193 = vunpack.c.l.b16 %v1097
        %v1194 = vunpack.c.l.b16 %v1098
        %v1195 = vunpack.c.l.b16 %v1099
        %v1196 = vunpack.c.l.b16 %v1100
        %v1197 = vunpack.c.l.b16 %v1101
        %v1198 = vunpack.c.l.b16 %v1102
        %v1199 = vunpack.c.l.b16 %v1103
        %v1200 = vunpack.c.l.b16 %v1104
        %v1201 = vunpack.c.l.b16 %v1105
        %v1202 = vunpack.c.l.b16 %v1106
        %v1203 = vunpack.c.l.b16 %v1107
        %v1204 = vunpack.c.l.b16 %v1108
        %v1205 = vunpack.c.l.b16 %v1109
        %v1206 = vunpack.c.l.b16 %v1110
        %v1207 = vunpack.c.l.b16 %v1111
        %v1208 = vunpack.c.l.b16 %v1112
        %v1209 = vunpack.c.l.b16 %v1113
        %v1210 = vunpack.c.l.b16 %v1114
        %v1211 = vpack.c.b16 %v1164, %v1163
        %v1212 = vpack.c.b16 %v1166, %v1165
        %v1213 = vpack.c.b16 %v1168, %v1167
        %v1214 = vpack.c.b16 %v1170, %v1169
        %v1215 = vpack.c.b16 %v1172, %v1171
        %v1216 = vpack.c.b16 %v1174, %v1173
        %v1217 = vpack.c.b16 %v1176, %v1175
        %v1218 = vpack.c.b16 %v1178, %v1177
        %v1219 = vpack.c.b16 %v1180, %v1179
        %v1220 = vpack.c.b16 %v1182, %v1181
        %v1221 = vpack.c.b16 %v1184, %v1183
        %v1222 = vpack.c.b16 %v1186, %v1185
        %v1223 = vpack.c.b16 %v1188, %v1187
        %v1224 = vpack.c.b16 %v1190, %v1189
        %v1225 = vpack.c.b16 %v1192, %v1191
        %v1226 = vpack.c.b16 %v1194, %v1193
        %v1227 = vpack.c.b16 %v1196, %v1195
        %v1228 = vpack.c.b16 %v1198, %v1197
        %v1229 = vpack.c.b16 %v1200, %v1199
        %v1230 = vpack.c.b16 %v1202, %v1201
        %v1231 = vpack.c.b16 %v1204, %v1203
        %v1232 = vpack.c.b16 %v1206, %v1205
        %v1233 = vpack.c.b16 %v1208, %v1207
        %v1234 = vpack.c.b16 %v1210, %v1209
        %1259 = vmatprep.subr.bf16.mxu0 0
        %1260 = vmatpush1.bf16.msra.mxu0 %v1211
        %1261 = vmatprep.subr.bf16.mxu0 0
        %1262 = vmatpush1.bf16.msra.mxu0 %v1212
        %1263 = vmatprep.subr.bf16.mxu0 0
        %1264 = vmatpush1.bf16.msra.mxu0 %v1213
        %1265 = vmatprep.subr.bf16.mxu0 0
        %1266 = vmatpush1.bf16.msra.mxu0 %v1214
        %1267 = vmatprep.subr.bf16.mxu0 0
        %1268 = vmatpush1.bf16.msra.mxu0 %v1215
        %1269 = vmatprep.subr.bf16.mxu0 0
        %1270 = vmatpush1.bf16.msra.mxu0 %v1216
        %1271 = vmatprep.subr.bf16.mxu0 0
        %1272 = vmatpush1.bf16.msra.mxu0 %v1217
        %1273 = vmatprep.subr.bf16.mxu0 0
        %1274 = vmatpush1.bf16.msra.mxu0 %v1218
        %1275 = vmatprep.subr.bf16.mxu0 0
        %1276 = vmatpush1.bf16.msra.mxu0 %v1219
        %1277 = vmatprep.subr.bf16.mxu0 0
        %1278 = vmatpush1.bf16.msra.mxu0 %v1220
        %1279 = vmatprep.subr.bf16.mxu0 0
        %1280 = vmatpush1.bf16.msra.mxu0 %v1221
        %1281 = vmatprep.subr.bf16.mxu0 0
        %1282 = vmatpush1.bf16.msra.mxu0 %v1222
        %1283 = vmatprep.subr.bf16.mxu0 0
        %1284 = vmatpush1.bf16.msra.mxu0 %v1223
        %1285 = vmatprep.subr.bf16.mxu0 0
        %1286 = vmatpush1.bf16.msra.mxu0 %v1224
        %1287 = vmatprep.subr.bf16.mxu0 0
        %1288 = vmatpush1.bf16.msra.mxu0 %v1225
        %1289 = vmatprep.subr.bf16.mxu0 0
        %1290 = vmatpush1.bf16.msra.mxu0 %v1226
        %1291 = vmatprep.mubr.bf16.mxu0 %v1031
        %1292 = vmatmul.mubr.bf16.gmra.mrb[0].mxu0 %v1030
        %v1293 = vpop.f32.mrb[0].mxu0
        %v1294 = vadd.f32 0.0, %v1293
        %v1295 = vpop.f32.mrb[0].mxu0
        %v1296 = vpop.f32.mrb[0].mxu0
        %v1297 = vadd.f32 0.0, %v1296
        %v1298 = vpop.f32.mrb[0].mxu0
        %1299 = vmatprep.mubr.bf16.mxu0 %v1034
        %1300 = vmatmul.mubr.bf16.gmra.mrb[0].mxu0 %v1033
        %v1301 = vpop.f32.mrb[0].mxu0
        %v1302 = vpop.f32.mrb[0].mxu0
        %v1303 = vpop.f32.mrb[0].mxu0
        %v1304 = vadd.f32 0.0, %v1303
        %v1305 = vpop.f32.mrb[0].mxu0
        %1306 = vmatprep.mubr.bf16.mxu0 %v1037
        %1307 = vmatmul.mubr.bf16.gmra.mrb[0].mxu0 %v1036
        %v1308 = vpop.f32.mrb[0].mxu0
        %v1309 = vadd.f32 0.0, %v1308
        %v1310 = vpop.f32.mrb[0].mxu0
        %v1311 = vpop.f32.mrb[0].mxu0
        %v1312 = vpop.f32.mrb[0].mxu0
        %1313 = vmatprep.mubr.bf16.mxu0 %v1040
        %1314 = vmatmul.mubr.bf16.gmra.mrb[0].mxu0 %v1039
        %v1315 = vpop.f32.mrb[0].mxu0
        %v1316 = vadd.f32 0.0, %v1315
        %v1317 = vpop.f32.mrb[0].mxu0
        %v1318 = vpop.f32.mrb[0].mxu0
        %v1319 = vadd.f32 0.0, %v1318
        %v1320 = vpop.f32.mrb[0].mxu0
        %1321 = vmatprep.mubr.bf16.mxu0 %v1043
        %1322 = vmatmul.mubr.bf16.gmra.mrb[0].mxu0 %v1042
        %v1323 = vpop.f32.mrb[0].mxu0
        %v1324 = vpop.f32.mrb[0].mxu0
        %v1325 = vpop.f32.mrb[0].mxu0
        %v1326 = vadd.f32 0.0, %v1325
        %v1327 = vpop.f32.mrb[0].mxu0
        %1328 = vmatprep.mubr.bf16.mxu0 %v1046
        %1329 = vmatmul.mubr.bf16.gmra.mrb[0].mxu0 %v1045
        %v1330 = vpop.f32.mrb[0].mxu0
        %v1331 = vadd.f32 0.0, %v1330
        %v1332 = vpop.f32.mrb[0].mxu0
        %v1333 = vpop.f32.mrb[0].mxu0
        %v1334 = vpop.f32.mrb[0].mxu0
        %1335 = vmatprep.mubr.bf16.mxu0 %v1049
        %1336 = vmatmul.mubr.bf16.gmra.mrb[0].mxu0 %v1048
        %v1337 = vpop.f32.mrb[0].mxu0
        %v1338 = vadd.f32 0.0, %v1337
        %v1339 = vpop.f32.mrb[0].mxu0
        %v1340 = vpop.f32.mrb[0].mxu0
        %v1341 = vadd.f32 0.0, %v1340
        %v1342 = vpop.f32.mrb[0].mxu0
        %1343 = vmatprep.mubr.bf16.mxu0 %v1052
        %1344 = vmatmul.mubr.bf16.gmra.mrb[0].mxu0 %v1051
        %v1345 = vpop.f32.mrb[0].mxu0
        %v1346 = vpop.f32.mrb[0].mxu0
        %v1347 = vpop.f32.mrb[0].mxu0
        %v1348 = vadd.f32 0.0, %v1347
        %v1349 = vpop.f32.mrb[0].mxu0
        %1350 = vmatprep.mubr.bf16.mxu0 %v1055
        %1351 = vmatmul.mubr.bf16.gmra.mrb[0].mxu0 %v1054
        %v1352 = vpop.f32.mrb[0].mxu0
        %v1353 = vadd.f32 0.0, %v1352
        %v1354 = vpop.f32.mrb[0].mxu0
        %v1355 = vpop.f32.mrb[0].mxu0
        %v1356 = vpop.f32.mrb[0].mxu0
        %1357 = vmatprep.mubr.bf16.mxu0 %v1058
        %1358 = vmatmul.mubr.bf16.gmra.mrb[0].mxu0 %v1057
        %v1359 = vpop.f32.mrb[0].mxu0
        %v1360 = vadd.f32 0.0, %v1359
        %v1361 = vpop.f32.mrb[0].mxu0
        %v1362 = vpop.f32.mrb[0].mxu0
        %v1363 = vadd.f32 0.0, %v1362
        %v1364 = vpop.f32.mrb[0].mxu0
        %1365 = vmatprep.mubr.bf16.mxu0 %v1061
        %1366 = vmatmul.mubr.bf16.gmra.mrb[0].mxu0 %v1060
        %v1367 = vpop.f32.mrb[0].mxu0
        %v1368 = vpop.f32.mrb[0].mxu0
        %v1369 = vpop.f32.mrb[0].mxu0
        %v1370 = vadd.f32 0.0, %v1369
        %v1371 = vpop.f32.mrb[0].mxu0
        %1372 = vmatprep.mubr.bf16.mxu0 %v1064
        %1373 = vmatmul.mubr.bf16.gmra.mrb[0].mxu0 %v1063
        %v1374 = vpop.f32.mrb[0].mxu0
        %v1375 = vadd.f32 0.0, %v1374
        %v1376 = vpop.f32.mrb[0].mxu0
        %v1377 = vpop.f32.mrb[0].mxu0
        %v1378 = vpop.f32.mrb[0].mxu0
        %1379 = vdwg.mxu0
        %1380 = vmatprep.subr.bf16.mxu0 0
        %1381 = vmatpush1.bf16.msra.mxu0 %v1227
        %1382 = vmatprep.subr.bf16.mxu0 0
        %1383 = vmatpush1.bf16.msra.mxu0 %v1228
        %1384 = vmatprep.subr.bf16.mxu0 0
        %1385 = vmatpush1.bf16.msra.mxu0 %v1229
        %1386 = vmatprep.subr.bf16.mxu0 0
        %1387 = vmatpush1.bf16.msra.mxu0 %v1230
        %1388 = vmatprep.subr.bf16.mxu0 0
        %1389 = vmatpush1.bf16.msra.mxu0 %v1231
        %1390 = vmatprep.subr.bf16.mxu0 0
        %1391 = vmatpush1.bf16.msra.mxu0 %v1232
        %1392 = vmatprep.subr.bf16.mxu0 0
        %1393 = vmatpush1.bf16.msra.mxu0 %v1233
        %1394 = vmatprep.subr.bf16.mxu0 0
        %1395 = vmatpush1.bf16.msra.mxu0 %v1234
        %1396 = vmatprep.subr.bf16.mxu0 0
        %1397 = vmatpush1.bf16.msra.mxu0 0
        %1398 = vmatprep.subr.bf16.mxu0 0
        %1399 = vmatpush1.bf16.msra.mxu0 0
        %1400 = vmatprep.subr.bf16.mxu0 0
        %1401 = vmatpush1.bf16.msra.mxu0 0
        %1402 = vmatprep.subr.bf16.mxu0 0
        %1403 = vmatpush1.bf16.msra.mxu0 0
        %1404 = vmatprep.subr.bf16.mxu0 0
        %1405 = vmatpush1.bf16.msra.mxu0 0
        %1406 = vmatprep.subr.bf16.mxu0 0
        %1407 = vmatpush1.bf16.msra.mxu0 0
        %1408 = vmatprep.subr.bf16.mxu0 0
        %1409 = vmatpush1.bf16.msra.mxu0 0
        %1410 = vmatprep.subr.bf16.mxu0 0
        %1411 = vmatpush1.bf16.msra.mxu0 0
        %1412 = vmatprep.mubr.bf16.mxu0 0
        %1413 = vmatmul.mubr.bf16.gmra.mrb[0].mxu0 %v1032
        %v1414 = vpop.f32.mrb[0].mxu0
        %v1415 = vadd.f32 %v1294, %v1414
        %v1416 = vpop.f32.mrb[0].mxu0
        %v1417 = vpop.f32.mrb[0].mxu0
        %v1418 = vadd.f32 %v1297, %v1417
        %v1419 = vpop.f32.mrb[0].mxu0
        %1420 = vmatprep.mubr.bf16.mxu0 0
        %1421 = vmatmul.mubr.bf16.gmra.mrb[0].mxu0 %v1035
        %v1422 = vpop.f32.mrb[0].mxu0
        %v1423 = vpop.f32.mrb[0].mxu0
        %v1424 = vpop.f32.mrb[0].mxu0
        %v1425 = vadd.f32 %v1304, %v1424
        %v1426 = vpop.f32.mrb[0].mxu0
        %1427 = vmatprep.mubr.bf16.mxu0 0
        %1428 = vmatmul.mubr.bf16.gmra.mrb[0].mxu0 %v1038
        %v1429 = vpop.f32.mrb[0].mxu0
        %v1430 = vadd.f32 %v1309, %v1429
        %v1431 = vpop.f32.mrb[0].mxu0
        %v1432 = vpop.f32.mrb[0].mxu0
        %v1433 = vpop.f32.mrb[0].mxu0
        %1434 = vmatprep.mubr.bf16.mxu0 0
        %1435 = vmatmul.mubr.bf16.gmra.mrb[0].mxu0 %v1041
        %v1436 = vpop.f32.mrb[0].mxu0
        %v1437 = vadd.f32 %v1316, %v1436
        %v1438 = vpop.f32.mrb[0].mxu0
        %v1439 = vpop.f32.mrb[0].mxu0
        %v1440 = vadd.f32 %v1319, %v1439
        %v1441 = vpop.f32.mrb[0].mxu0
        %1442 = vmatprep.mubr.bf16.mxu0 0
        %1443 = vmatmul.mubr.bf16.gmra.mrb[0].mxu0 %v1044
        %v1444 = vpop.f32.mrb[0].mxu0
        %v1445 = vpop.f32.mrb[0].mxu0
        %v1446 = vpop.f32.mrb[0].mxu0
        %v1447 = vadd.f32 %v1326, %v1446
        %v1448 = vpop.f32.mrb[0].mxu0
        %1449 = vmatprep.mubr.bf16.mxu0 0
        %1450 = vmatmul.mubr.bf16.gmra.mrb[0].mxu0 %v1047
        %v1451 = vpop.f32.mrb[0].mxu0
        %v1452 = vadd.f32 %v1331, %v1451
        %v1453 = vpop.f32.mrb[0].mxu0
        %v1454 = vpop.f32.mrb[0].mxu0
        %v1455 = vpop.f32.mrb[0].mxu0
        %1456 = vmatprep.mubr.bf16.mxu0 0
        %1457 = vmatmul.mubr.bf16.gmra.mrb[0].mxu0 %v1050
        %v1458 = vpop.f32.mrb[0].mxu0
        %v1459 = vadd.f32 %v1338, %v1458
        %v1460 = vpop.f32.mrb[0].mxu0
        %v1461 = vpop.f32.mrb[0].mxu0
        %v1462 = vadd.f32 %v1341, %v1461
        %v1463 = vpop.f32.mrb[0].mxu0
        %1464 = vmatprep.mubr.bf16.mxu0 0
        %1465 = vmatmul.mubr.bf16.gmra.mrb[0].mxu0 %v1053
        %v1466 = vpop.f32.mrb[0].mxu0
        %v1467 = vpop.f32.mrb[0].mxu0
        %v1468 = vpop.f32.mrb[0].mxu0
        %v1469 = vadd.f32 %v1348, %v1468
        %v1470 = vpop.f32.mrb[0].mxu0
        %1471 = vmatprep.mubr.bf16.mxu0 0
        %1472 = vmatmul.mubr.bf16.gmra.mrb[0].mxu0 %v1056
        %v1473 = vpop.f32.mrb[0].mxu0
        %v1474 = vadd.f32 %v1353, %v1473
        %v1475 = vpop.f32.mrb[0].mxu0
        %v1476 = vpop.f32.mrb[0].mxu0
        %v1477 = vpop.f32.mrb[0].mxu0
        %1478 = vmatprep.mubr.bf16.mxu0 0
        %1479 = vmatmul.mubr.bf16.gmra.mrb[0].mxu0 %v1059
        %v1480 = vpop.f32.mrb[0].mxu0
        %v1481 = vadd.f32 %v1360, %v1480
        %v1482 = vpop.f32.mrb[0].mxu0
        %v1483 = vpop.f32.mrb[0].mxu0
        %v1484 = vadd.f32 %v1363, %v1483
        %v1485 = vpop.f32.mrb[0].mxu0
        %1486 = vmatprep.mubr.bf16.mxu0 0
        %1487 = vmatmul.mubr.bf16.gmra.mrb[0].mxu0 %v1062
        %v1488 = vpop.f32.mrb[0].mxu0
        %v1489 = vpop.f32.mrb[0].mxu0
        %v1490 = vpop.f32.mrb[0].mxu0
        %v1491 = vadd.f32 %v1370, %v1490
        %v1492 = vpop.f32.mrb[0].mxu0
        %1493 = vmatprep.mubr.bf16.mxu0 0
        %1494 = vmatmul.mubr.bf16.gmra.mrb[0].mxu0 %v1065
        %v1495 = vpop.f32.mrb[0].mxu0
        %v1496 = vadd.f32 %v1375, %v1495
        %v1497 = vpop.f32.mrb[0].mxu0
        %v1498 = vpop.f32.mrb[0].mxu0
        %v1499 = vpop.f32.mrb[0].mxu0
        %1500 = vdwg.mxu0
        %v1549 = vunpack.c.l.b16 %v910
        %v1550 = vunpack.c.l.b16 %v911
        %v1551 = vunpack.c.l.b16 %v912
        %v1552 = vunpack.c.l.b16 %v913
        %v1553 = vunpack.c.l.b16 %v914
        %v1554 = vunpack.c.l.b16 %v915
        %v1555 = vunpack.c.l.b16 %v916
        %v1556 = vunpack.c.l.b16 %v917
        %v1557 = vunpack.c.l.b16 %v918
        %v1558 = vunpack.c.l.b16 %v919
        %v1559 = vunpack.c.l.b16 %v920
        %v1560 = vunpack.c.l.b16 %v921
        %v1561 = vunpack.c.l.b16 %v922
        %v1562 = vunpack.c.l.b16 %v923
        %v1563 = vunpack.c.l.b16 %v924
        %v1564 = vunpack.c.l.b16 %v925
        %v1565 = vunpack.c.l.b16 %v926
        %v1566 = vunpack.c.l.b16 %v927
        %v1567 = vunpack.c.l.b16 %v928
        %v1568 = vunpack.c.l.b16 %v929
        %v1569 = vunpack.c.l.b16 %v930
        %v1570 = vunpack.c.l.b16 %v931
        %v1571 = vunpack.c.l.b16 %v932
        %v1572 = vunpack.c.l.b16 %v933
        %v1573 = vunpack.c.l.b16 %v934
        %v1574 = vunpack.c.l.b16 %v935
        %v1575 = vunpack.c.l.b16 %v936
        %v1576 = vunpack.c.l.b16 %v937
        %v1577 = vunpack.c.l.b16 %v938
        %v1578 = vunpack.c.l.b16 %v939
        %v1579 = vunpack.c.l.b16 %v940
        %v1580 = vunpack.c.l.b16 %v941
        %v1581 = vunpack.c.l.b16 %v942
        %v1582 = vunpack.c.l.b16 %v943
        %v1583 = vunpack.c.l.b16 %v944
        %v1584 = vunpack.c.l.b16 %v945
        %v1585 = vunpack.c.l.b16 %v946
        %v1586 = vunpack.c.l.b16 %v947
        %v1587 = vunpack.c.l.b16 %v948
        %v1588 = vunpack.c.l.b16 %v949
        %v1589 = vunpack.c.l.b16 %v950
        %v1590 = vunpack.c.l.b16 %v951
        %v1591 = vunpack.c.l.b16 %v952
        %v1592 = vunpack.c.l.b16 %v953
        %v1593 = vunpack.c.l.b16 %v954
        %v1594 = vunpack.c.l.b16 %v955
        %v1595 = vunpack.c.l.b16 %v956
        %v1596 = vunpack.c.l.b16 %v957
        %v1597 = vpack.c.b16 %v1550, %v1549
        %v1598 = vpack.c.b16 %v1552, %v1551
        %v1599 = vpack.c.b16 %v1554, %v1553
        %v1600 = vpack.c.b16 %v1556, %v1555
        %v1601 = vpack.c.b16 %v1558, %v1557
        %v1602 = vpack.c.b16 %v1560, %v1559
        %v1603 = vpack.c.b16 %v1562, %v1561
        %v1604 = vpack.c.b16 %v1564, %v1563
        %v1605 = vpack.c.b16 %v1566, %v1565
        %v1606 = vpack.c.b16 %v1568, %v1567
        %v1607 = vpack.c.b16 %v1570, %v1569
        %v1608 = vpack.c.b16 %v1572, %v1571
        %v1609 = vpack.c.b16 %v1574, %v1573
        %v1610 = vpack.c.b16 %v1576, %v1575
        %v1611 = vpack.c.b16 %v1578, %v1577
        %v1612 = vpack.c.b16 %v1580, %v1579
        %v1613 = vpack.c.b16 %v1582, %v1581
        %v1614 = vpack.c.b16 %v1584, %v1583
        %v1615 = vpack.c.b16 %v1586, %v1585
        %v1616 = vpack.c.b16 %v1588, %v1587
        %v1617 = vpack.c.b16 %v1590, %v1589
        %v1618 = vpack.c.b16 %v1592, %v1591
        %v1619 = vpack.c.b16 %v1594, %v1593
        %v1620 = vpack.c.b16 %v1596, %v1595
        %1645 = vmatprep.subr.bf16.mxu0 0
        %1646 = vmatpush1.bf16.msra.mxu0 %v1597
        %1647 = vmatprep.subr.bf16.mxu0 0
        %1648 = vmatpush1.bf16.msra.mxu0 %v1598
        %1649 = vmatprep.subr.bf16.mxu0 0
        %1650 = vmatpush1.bf16.msra.mxu0 %v1599
        %1651 = vmatprep.subr.bf16.mxu0 0
        %1652 = vmatpush1.bf16.msra.mxu0 %v1600
        %1653 = vmatprep.subr.bf16.mxu0 0
        %1654 = vmatpush1.bf16.msra.mxu0 %v1601
        %1655 = vmatprep.subr.bf16.mxu0 0
        %1656 = vmatpush1.bf16.msra.mxu0 %v1602
        %1657 = vmatprep.subr.bf16.mxu0 0
        %1658 = vmatpush1.bf16.msra.mxu0 %v1603
        %1659 = vmatprep.subr.bf16.mxu0 0
        %1660 = vmatpush1.bf16.msra.mxu0 %v1604
        %1661 = vmatprep.subr.bf16.mxu0 0
        %1662 = vmatpush1.bf16.msra.mxu0 %v1605
        %1663 = vmatprep.subr.bf16.mxu0 0
        %1664 = vmatpush1.bf16.msra.mxu0 %v1606
        %1665 = vmatprep.subr.bf16.mxu0 0
        %1666 = vmatpush1.bf16.msra.mxu0 %v1607
        %1667 = vmatprep.subr.bf16.mxu0 0
        %1668 = vmatpush1.bf16.msra.mxu0 %v1608
        %1669 = vmatprep.subr.bf16.mxu0 0
        %1670 = vmatpush1.bf16.msra.mxu0 %v1609
        %1671 = vmatprep.subr.bf16.mxu0 0
        %1672 = vmatpush1.bf16.msra.mxu0 %v1610
        %1673 = vmatprep.subr.bf16.mxu0 0
        %1674 = vmatpush1.bf16.msra.mxu0 %v1611
        %1675 = vmatprep.subr.bf16.mxu0 0
        %1676 = vmatpush1.bf16.msra.mxu0 %v1612
        %1677 = vmatprep.mubr.bf16.mxu0 %v875
        %1678 = vmatmul.mubr.bf16.gmra.mrb[0].mxu0 %v874
        %v1679 = vpop.f32.mrb[0].mxu0
        %v1680 = vadd.f32 %v1415, %v1679
        %v1681 = vpop.f32.mrb[0].mxu0
        %v1682 = vpop.f32.mrb[0].mxu0
        %v1683 = vadd.f32 %v1418, %v1682
        %v1684 = vpop.f32.mrb[0].mxu0
        %1685 = vmatprep.mubr.bf16.mxu0 %v878
        %1686 = vmatmul.mubr.bf16.gmra.mrb[0].mxu0 %v877
        %v1687 = vpop.f32.mrb[0].mxu0
        %v1688 = vpop.f32.mrb[0].mxu0
        %v1689 = vpop.f32.mrb[0].mxu0
        %v1690 = vadd.f32 %v1425, %v1689
        %v1691 = vpop.f32.mrb[0].mxu0
        %1692 = vmatprep.mubr.bf16.mxu0 %v881
        %1693 = vmatmul.mubr.bf16.gmra.mrb[0].mxu0 %v880
        %v1694 = vpop.f32.mrb[0].mxu0
        %v1695 = vadd.f32 %v1430, %v1694
        %v1696 = vpop.f32.mrb[0].mxu0
        %v1697 = vpop.f32.mrb[0].mxu0
        %v1698 = vpop.f32.mrb[0].mxu0
        %1699 = vmatprep.mubr.bf16.mxu0 %v884
        %1700 = vmatmul.mubr.bf16.gmra.mrb[0].mxu0 %v883
        %v1701 = vpop.f32.mrb[0].mxu0
        %v1702 = vadd.f32 %v1437, %v1701
        %v1703 = vpop.f32.mrb[0].mxu0
        %v1704 = vpop.f32.mrb[0].mxu0
        %v1705 = vadd.f32 %v1440, %v1704
        %v1706 = vpop.f32.mrb[0].mxu0
        %1707 = vmatprep.mubr.bf16.mxu0 %v887
        %1708 = vmatmul.mubr.bf16.gmra.mrb[0].mxu0 %v886
        %v1709 = vpop.f32.mrb[0].mxu0
        %v1710 = vpop.f32.mrb[0].mxu0
        %v1711 = vpop.f32.mrb[0].mxu0
        %v1712 = vadd.f32 %v1447, %v1711
        %v1713 = vpop.f32.mrb[0].mxu0
        %1714 = vmatprep.mubr.bf16.mxu0 %v890
        %1715 = vmatmul.mubr.bf16.gmra.mrb[0].mxu0 %v889
        %v1716 = vpop.f32.mrb[0].mxu0
        %v1717 = vadd.f32 %v1452, %v1716
        %v1718 = vpop.f32.mrb[0].mxu0
        %v1719 = vpop.f32.mrb[0].mxu0
        %v1720 = vpop.f32.mrb[0].mxu0
        %1721 = vmatprep.mubr.bf16.mxu0 %v893
        %1722 = vmatmul.mubr.bf16.gmra.mrb[0].mxu0 %v892
        %v1723 = vpop.f32.mrb[0].mxu0
        %v1724 = vadd.f32 %v1459, %v1723
        %v1725 = vpop.f32.mrb[0].mxu0
        %v1726 = vpop.f32.mrb[0].mxu0
        %v1727 = vadd.f32 %v1462, %v1726
        %v1728 = vpop.f32.mrb[0].mxu0
        %1729 = vmatprep.mubr.bf16.mxu0 %v896
        %1730 = vmatmul.mubr.bf16.gmra.mrb[0].mxu0 %v895
        %v1731 = vpop.f32.mrb[0].mxu0
        %v1732 = vpop.f32.mrb[0].mxu0
        %v1733 = vpop.f32.mrb[0].mxu0
        %v1734 = vadd.f32 %v1469, %v1733
        %v1735 = vpop.f32.mrb[0].mxu0
        %1736 = vmatprep.mubr.bf16.mxu0 %v899
        %1737 = vmatmul.mubr.bf16.gmra.mrb[0].mxu0 %v898
        %v1738 = vpop.f32.mrb[0].mxu0
        %v1739 = vadd.f32 %v1474, %v1738
        %v1740 = vpop.f32.mrb[0].mxu0
        %v1741 = vpop.f32.mrb[0].mxu0
        %v1742 = vpop.f32.mrb[0].mxu0
        %1743 = vmatprep.mubr.bf16.mxu0 %v902
        %1744 = vmatmul.mubr.bf16.gmra.mrb[0].mxu0 %v901
        %v1745 = vpop.f32.mrb[0].mxu0
        %v1746 = vadd.f32 %v1481, %v1745
        %v1747 = vpop.f32.mrb[0].mxu0
        %v1748 = vpop.f32.mrb[0].mxu0
        %v1749 = vadd.f32 %v1484, %v1748
        %v1750 = vpop.f32.mrb[0].mxu0
        %1751 = vmatprep.mubr.bf16.mxu0 %v905
        %1752 = vmatmul.mubr.bf16.gmra.mrb[0].mxu0 %v904
        %v1753 = vpop.f32.mrb[0].mxu0
        %v1754 = vpop.f32.mrb[0].mxu0
        %v1755 = vpop.f32.mrb[0].mxu0
        %v1756 = vadd.f32 %v1491, %v1755
        %v1757 = vpop.f32.mrb[0].mxu0
        %1758 = vmatprep.mubr.bf16.mxu0 %v908
        %1759 = vmatmul.mubr.bf16.gmra.mrb[0].mxu0 %v907
        %v1760 = vpop.f32.mrb[0].mxu0
        %v1761 = vadd.f32 %v1496, %v1760
        %v1762 = vpop.f32.mrb[0].mxu0
        %v1763 = vpop.f32.mrb[0].mxu0
        %v1764 = vpop.f32.mrb[0].mxu0
        %1765 = vdwg.mxu0
        %1766 = vmatprep.subr.bf16.mxu0 0
        %1767 = vmatpush1.bf16.msra.mxu0 %v1613
        %1768 = vmatprep.subr.bf16.mxu0 0
        %1769 = vmatpush1.bf16.msra.mxu0 %v1614
        %1770 = vmatprep.subr.bf16.mxu0 0
        %1771 = vmatpush1.bf16.msra.mxu0 %v1615
        %1772 = vmatprep.subr.bf16.mxu0 0
        %1773 = vmatpush1.bf16.msra.mxu0 %v1616
        %1774 = vmatprep.subr.bf16.mxu0 0
        %1775 = vmatpush1.bf16.msra.mxu0 %v1617
        %1776 = vmatprep.subr.bf16.mxu0 0
        %1777 = vmatpush1.bf16.msra.mxu0 %v1618
        %1778 = vmatprep.subr.bf16.mxu0 0
        %1779 = vmatpush1.bf16.msra.mxu0 %v1619
        %1780 = vmatprep.subr.bf16.mxu0 0
        %1781 = vmatpush1.bf16.msra.mxu0 %v1620
        %1782 = vmatprep.subr.bf16.mxu0 0
        %1783 = vmatpush1.bf16.msra.mxu0 0
        %1784 = vmatprep.subr.bf16.mxu0 0
        %1785 = vmatpush1.bf16.msra.mxu0 0
        %1786 = vmatprep.subr.bf16.mxu0 0
        %1787 = vmatpush1.bf16.msra.mxu0 0
        %1788 = vmatprep.subr.bf16.mxu0 0
        %1789 = vmatpush1.bf16.msra.mxu0 0
        %1790 = vmatprep.subr.bf16.mxu0 0
        %1791 = vmatpush1.bf16.msra.mxu0 0
        %1792 = vmatprep.subr.bf16.mxu0 0
        %1793 = vmatpush1.bf16.msra.mxu0 0
        %1794 = vmatprep.subr.bf16.mxu0 0
        %1795 = vmatpush1.bf16.msra.mxu0 0
        %1796 = vmatprep.subr.bf16.mxu0 0
        %1797 = vmatpush1.bf16.msra.mxu0 0
        %1798 = vmatprep.mubr.bf16.mxu0 0
        %1799 = vmatmul.mubr.bf16.gmra.mrb[0].mxu0 %v876
        %v1800 = vpop.f32.mrb[0].mxu0
        %v1801 = vadd.f32 %v1680, %v1800
        %v1802 = vpop.f32.mrb[0].mxu0
        %v1803 = vpop.f32.mrb[0].mxu0
        %v1804 = vadd.f32 %v1683, %v1803
        %v1805 = vpop.f32.mrb[0].mxu0
        %1806 = vmatprep.mubr.bf16.mxu0 0
        %1807 = vmatmul.mubr.bf16.gmra.mrb[0].mxu0 %v879
        %v1808 = vpop.f32.mrb[0].mxu0
        %v1809 = vpop.f32.mrb[0].mxu0
        %v1810 = vpop.f32.mrb[0].mxu0
        %v1811 = vadd.f32 %v1690, %v1810
        %v1812 = vpop.f32.mrb[0].mxu0
        %1813 = vmatprep.mubr.bf16.mxu0 0
        %1814 = vmatmul.mubr.bf16.gmra.mrb[0].mxu0 %v882
        %v1815 = vpop.f32.mrb[0].mxu0
        %v1816 = vadd.f32 %v1695, %v1815
        %v1817 = vpop.f32.mrb[0].mxu0
        %v1818 = vpop.f32.mrb[0].mxu0
        %v1819 = vpop.f32.mrb[0].mxu0
        %1820 = vmatprep.mubr.bf16.mxu0 0
        %1821 = vmatmul.mubr.bf16.gmra.mrb[0].mxu0 %v885
        %v1822 = vpop.f32.mrb[0].mxu0
        %v1823 = vadd.f32 %v1702, %v1822
        %v1824 = vpop.f32.mrb[0].mxu0
        %v1825 = vpop.f32.mrb[0].mxu0
        %v1826 = vadd.f32 %v1705, %v1825
        %v1827 = vpop.f32.mrb[0].mxu0
        %1828 = vmatprep.mubr.bf16.mxu0 0
        %1829 = vmatmul.mubr.bf16.gmra.mrb[0].mxu0 %v888
        %v1830 = vpop.f32.mrb[0].mxu0
        %v1831 = vpop.f32.mrb[0].mxu0
        %v1832 = vpop.f32.mrb[0].mxu0
        %v1833 = vadd.f32 %v1712, %v1832
        %v1834 = vpop.f32.mrb[0].mxu0
        %1835 = vmatprep.mubr.bf16.mxu0 0
        %1836 = vmatmul.mubr.bf16.gmra.mrb[0].mxu0 %v891
        %v1837 = vpop.f32.mrb[0].mxu0
        %v1838 = vadd.f32 %v1717, %v1837
        %v1839 = vpop.f32.mrb[0].mxu0
        %v1840 = vpop.f32.mrb[0].mxu0
        %v1841 = vpop.f32.mrb[0].mxu0
        %1842 = vmatprep.mubr.bf16.mxu0 0
        %1843 = vmatmul.mubr.bf16.gmra.mrb[0].mxu0 %v894
        %v1844 = vpop.f32.mrb[0].mxu0
        %v1845 = vadd.f32 %v1724, %v1844
        %v1846 = vpop.f32.mrb[0].mxu0
        %v1847 = vpop.f32.mrb[0].mxu0
        %v1848 = vadd.f32 %v1727, %v1847
        %v1849 = vpop.f32.mrb[0].mxu0
        %1850 = vmatprep.mubr.bf16.mxu0 0
        %1851 = vmatmul.mubr.bf16.gmra.mrb[0].mxu0 %v897
        %v1852 = vpop.f32.mrb[0].mxu0
        %v1853 = vpop.f32.mrb[0].mxu0
        %v1854 = vpop.f32.mrb[0].mxu0
        %v1855 = vadd.f32 %v1734, %v1854
        %v1856 = vpop.f32.mrb[0].mxu0
        %1857 = vmatprep.mubr.bf16.mxu0 0
        %1858 = vmatmul.mubr.bf16.gmra.mrb[0].mxu0 %v900
        %v1859 = vpop.f32.mrb[0].mxu0
        %v1860 = vadd.f32 %v1739, %v1859
        %v1861 = vpop.f32.mrb[0].mxu0
        %v1862 = vpop.f32.mrb[0].mxu0
        %v1863 = vpop.f32.mrb[0].mxu0
        %1864 = vmatprep.mubr.bf16.mxu0 0
        %1865 = vmatmul.mubr.bf16.gmra.mrb[0].mxu0 %v903
        %v1866 = vpop.f32.mrb[0].mxu0
        %v1867 = vadd.f32 %v1746, %v1866
        %v1868 = vpop.f32.mrb[0].mxu0
        %v1869 = vpop.f32.mrb[0].mxu0
        %v1870 = vadd.f32 %v1749, %v1869
        %v1871 = vpop.f32.mrb[0].mxu0
        %1872 = vmatprep.mubr.bf16.mxu0 0
        %1873 = vmatmul.mubr.bf16.gmra.mrb[0].mxu0 %v906
        %v1874 = vpop.f32.mrb[0].mxu0
        %v1875 = vpop.f32.mrb[0].mxu0
        %v1876 = vpop.f32.mrb[0].mxu0
        %v1877 = vadd.f32 %v1756, %v1876
        %v1878 = vpop.f32.mrb[0].mxu0
        %1879 = vmatprep.mubr.bf16.mxu0 0
        %1880 = vmatmul.mubr.bf16.gmra.mrb[0].mxu0 %v909
        %v1881 = vpop.f32.mrb[0].mxu0
        %v1882 = vadd.f32 %v1761, %v1881
        %v1883 = vpop.f32.mrb[0].mxu0
        %v1884 = vpop.f32.mrb[0].mxu0
        %v1885 = vpop.f32.mrb[0].mxu0
        %1886 = vdwg.mxu0
        %s1887 = scalar_lea.vmem [#allocation2], 144
        %v1888 = vld [vmem:[%s1887] sm:$0xff]
        %v1889 = vld [vmem:[%s1887 + $0x8] sm:$0xff]
        %v1890 = vld [vmem:[%s1887 + $0x10] sm:$0xff]
        %v1891 = vld [vmem:[%s1887 + $0x18] sm:$0xff]
        %v1892 = vld [vmem:[%s1887 + $0x20] sm:$0xff]
        %v1893 = vld [vmem:[%s1887 + $0x28] sm:$0xff]
        %v1894 = vld [vmem:[%s1887 + $0x30] sm:$0xff]
        %v1895 = vld [vmem:[%s1887 + $0x38] sm:$0xff]
        %v1896 = vld [vmem:[%s1887 + $0x40] sm:$0xff]
        %v1897 = vld [vmem:[%s1887 + $0x48] sm:$0xff]
        %v1898 = vld [vmem:[%s1887 + $0x50] sm:$0xff]
        %v1899 = vld [vmem:[%s1887 + $0x58] sm:$0xff]
        %v1900 = vld [vmem:[%s1887 + $0x60] sm:$0xff]
        %v1901 = vld [vmem:[%s1887 + $0x68] sm:$0xff]
        %v1902 = vld [vmem:[%s1887 + $0x70] sm:$0xff]
        %v1903 = vld [vmem:[%s1887 + $0x78] sm:$0xff]
        %v1904 = vld [vmem:[%s1887 + $0x80] sm:$0xff]
        %v1905 = vld [vmem:[%s1887 + $0x88] sm:$0xff]
        %v1906 = vld [vmem:[%s1887 + $0x90] sm:$0xff]
        %v1907 = vld [vmem:[%s1887 + $0x98] sm:$0xff]
        %v1908 = vld [vmem:[%s1887 + $0xa0] sm:$0xff]
        %v1909 = vld [vmem:[%s1887 + $0xa8] sm:$0xff]
        %v1910 = vld [vmem:[%s1887 + $0xb0] sm:$0xff]
        %v1911 = vld [vmem:[%s1887 + $0xb8] sm:$0xff]
        %v1912 = vld [vmem:[%s1887 + $0xc0] sm:$0xff]
        %v1913 = vld [vmem:[%s1887 + $0xc8] sm:$0xff]
        %v1914 = vld [vmem:[%s1887 + $0xd0] sm:$0xff]
        %v1915 = vld [vmem:[%s1887 + $0xd8] sm:$0xff]
        %v1916 = vld [vmem:[%s1887 + $0xe0] sm:$0xff]
        %v1917 = vld [vmem:[%s1887 + $0xe8] sm:$0xff]
        %v1918 = vld [vmem:[%s1887 + $0xf0] sm:$0xff]
        %v1919 = vld [vmem:[%s1887 + $0xf8] sm:$0xff]
        %v1920 = vld [vmem:[%s1887 + $0x100] sm:$0xff]
        %v1921 = vld [vmem:[%s1887 + $0x108] sm:$0xff]
        %v1922 = vld [vmem:[%s1887 + $0x110] sm:$0xff]
        %v1923 = vld [vmem:[%s1887 + $0x118] sm:$0xff]
        %v1924 = vld [vmem:[%s1887 + $0x120] sm:$0xff]
        %v1925 = vld [vmem:[%s1887 + $0x128] sm:$0xff]
        %v1926 = vld [vmem:[%s1887 + $0x130] sm:$0xff]
        %v1927 = vld [vmem:[%s1887 + $0x138] sm:$0xff]
        %v1928 = vld [vmem:[%s1887 + $0x140] sm:$0xff]
        %v1929 = vld [vmem:[%s1887 + $0x148] sm:$0xff]
        %v1930 = vld [vmem:[%s1887 + $0x150] sm:$0xff]
        %v1931 = vld [vmem:[%s1887 + $0x158] sm:$0xff]
        %v1932 = vld [vmem:[%s1887 + $0x160] sm:$0xff]
        %v1933 = vld [vmem:[%s1887 + $0x168] sm:$0xff]
        %v1934 = vld [vmem:[%s1887 + $0x170] sm:$0xff]
        %v1935 = vld [vmem:[%s1887 + $0x178] sm:$0xff]
        %v1936 = vld [vmem:[%s1887 + $0x180] sm:$0xff]
        %v1937 = vld [vmem:[%s1887 + $0x188] sm:$0xff]
        %v1938 = vld [vmem:[%s1887 + $0x190] sm:$0xff]
        %v1939 = vld [vmem:[%s1887 + $0x198] sm:$0xff]
        %v1940 = vld [vmem:[%s1887 + $0x1a0] sm:$0xff]
        %v1941 = vld [vmem:[%s1887 + $0x1a8] sm:$0xff]
        %v1942 = vld [vmem:[%s1887 + $0x1b0] sm:$0xff]
        %v1943 = vld [vmem:[%s1887 + $0x1b8] sm:$0xff]
        %v1944 = vld [vmem:[%s1887 + $0x1c0] sm:$0xff]
        %v1945 = vld [vmem:[%s1887 + $0x1c8] sm:$0xff]
        %v1946 = vld [vmem:[%s1887 + $0x1d0] sm:$0xff]
        %v1947 = vld [vmem:[%s1887 + $0x1d8] sm:$0xff]
        %v1948 = vld [vmem:[%s1887 + $0x1e0] sm:$0xff]
        %v1949 = vld [vmem:[%s1887 + $0x1e8] sm:$0xff]
        %v1950 = vld [vmem:[%s1887 + $0x1f0] sm:$0xff]
        %v1951 = vld [vmem:[%s1887 + $0x1f8] sm:$0xff]
        %v1952 = vld [vmem:[%s1887 + $0x200] sm:$0xff]
        %v1953 = vld [vmem:[%s1887 + $0x208] sm:$0xff]
        %v1954 = vld [vmem:[%s1887 + $0x210] sm:$0xff]
        %v1955 = vld [vmem:[%s1887 + $0x218] sm:$0xff]
        %v1956 = vld [vmem:[%s1887 + $0x220] sm:$0xff]
        %v1957 = vld [vmem:[%s1887 + $0x228] sm:$0xff]
        %v1958 = vld [vmem:[%s1887 + $0x230] sm:$0xff]
        %v1959 = vld [vmem:[%s1887 + $0x238] sm:$0xff]
        %v1960 = vpack.c.bf16 %v1891, %v1888
        %v1961 = vpack.c.bf16 %v1892, %v1889
        %v1962 = vpack.c.bf16 %v1893, %v1890
        %v1963 = vpack.c.bf16 %v1897, %v1894
        %v1964 = vpack.c.bf16 %v1898, %v1895
        %v1965 = vpack.c.bf16 %v1899, %v1896
        %v1966 = vpack.c.bf16 %v1903, %v1900
        %v1967 = vpack.c.bf16 %v1904, %v1901
        %v1968 = vpack.c.bf16 %v1905, %v1902
        %v1969 = vpack.c.bf16 %v1909, %v1906
        %v1970 = vpack.c.bf16 %v1910, %v1907
        %v1971 = vpack.c.bf16 %v1911, %v1908
        %v1972 = vpack.c.bf16 %v1915, %v1912
        %v1973 = vpack.c.bf16 %v1916, %v1913
        %v1974 = vpack.c.bf16 %v1917, %v1914
        %v1975 = vpack.c.bf16 %v1921, %v1918
        %v1976 = vpack.c.bf16 %v1922, %v1919
        %v1977 = vpack.c.bf16 %v1923, %v1920
        %v1978 = vpack.c.bf16 %v1927, %v1924
        %v1979 = vpack.c.bf16 %v1928, %v1925
        %v1980 = vpack.c.bf16 %v1929, %v1926
        %v1981 = vpack.c.bf16 %v1933, %v1930
        %v1982 = vpack.c.bf16 %v1934, %v1931
        %v1983 = vpack.c.bf16 %v1935, %v1932
        %v1984 = vpack.c.bf16 %v1939, %v1936
        %v1985 = vpack.c.bf16 %v1940, %v1937
        %v1986 = vpack.c.bf16 %v1941, %v1938
        %v1987 = vpack.c.bf16 %v1945, %v1942
        %v1988 = vpack.c.bf16 %v1946, %v1943
        %v1989 = vpack.c.bf16 %v1947, %v1944
        %v1990 = vpack.c.bf16 %v1951, %v1948
        %v1991 = vpack.c.bf16 %v1952, %v1949
        %v1992 = vpack.c.bf16 %v1953, %v1950
        %v1993 = vpack.c.bf16 %v1957, %v1954
        %v1994 = vpack.c.bf16 %v1958, %v1955
        %v1995 = vpack.c.bf16 %v1959, %v1956
        %s1996 = scalar_lea.vmem [#allocation9], 384
        %v1997 = vld [vmem:[%s1996] sm:$0xf]
        %v1998 = vld [vmem:[%s1996 + $0x4] sm:$0xf]
        %v1999 = vld [vmem:[%s1996 + $0x8] sm:$0xf]
        %v2000 = vld [vmem:[%s1996 + $0xc] sm:$0xf]
        %v2001 = vld [vmem:[%s1996 + $0x10] sm:$0xf]
        %v2002 = vld [vmem:[%s1996 + $0x14] sm:$0xf]
        %v2003 = vld [vmem:[%s1996 + $0x18] sm:$0xf]
        %v2004 = vld [vmem:[%s1996 + $0x1c] sm:$0xf]
        %v2005 = vld [vmem:[%s1996 + $0x20] sm:$0xf]
        %v2006 = vld [vmem:[%s1996 + $0x24] sm:$0xf]
        %v2007 = vld [vmem:[%s1996 + $0x28] sm:$0xf]
        %v2008 = vld [vmem:[%s1996 + $0x2c] sm:$0xf]
        %v2009 = vld [vmem:[%s1996 + $0x30] sm:$0xf]
        %v2010 = vld [vmem:[%s1996 + $0x34] sm:$0xf]
        %v2011 = vld [vmem:[%s1996 + $0x38] sm:$0xf]
        %v2012 = vld [vmem:[%s1996 + $0x3c] sm:$0xf]
        %v2013 = vld [vmem:[%s1996 + $0x40] sm:$0xf]
        %v2014 = vld [vmem:[%s1996 + $0x44] sm:$0xf]
        %v2015 = vld [vmem:[%s1996 + $0x48] sm:$0xf]
        %v2016 = vld [vmem:[%s1996 + $0x4c] sm:$0xf]
        %v2017 = vld [vmem:[%s1996 + $0x50] sm:$0xf]
        %v2018 = vld [vmem:[%s1996 + $0x54] sm:$0xf]
        %v2019 = vld [vmem:[%s1996 + $0x58] sm:$0xf]
        %v2020 = vld [vmem:[%s1996 + $0x5c] sm:$0xf]
        %v2021 = vld [vmem:[%s1996 + $0x60] sm:$0xf]
        %v2022 = vld [vmem:[%s1996 + $0x64] sm:$0xf]
        %v2023 = vld [vmem:[%s1996 + $0x68] sm:$0xf]
        %v2024 = vld [vmem:[%s1996 + $0x6c] sm:$0xf]
        %v2025 = vld [vmem:[%s1996 + $0x70] sm:$0xf]
        %v2026 = vld [vmem:[%s1996 + $0x74] sm:$0xf]
        %v2027 = vld [vmem:[%s1996 + $0x78] sm:$0xf]
        %v2028 = vld [vmem:[%s1996 + $0x7c] sm:$0xf]
        %v2029 = vld [vmem:[%s1996 + $0x80] sm:$0xf]
        %v2030 = vld [vmem:[%s1996 + $0x84] sm:$0xf]
        %v2031 = vld [vmem:[%s1996 + $0x88] sm:$0xf]
        %v2032 = vld [vmem:[%s1996 + $0x8c] sm:$0xf]
        %v2033 = vld [vmem:[%s1996 + $0x90] sm:$0xf]
        %v2034 = vld [vmem:[%s1996 + $0x94] sm:$0xf]
        %v2035 = vld [vmem:[%s1996 + $0x98] sm:$0xf]
        %v2036 = vld [vmem:[%s1996 + $0x9c] sm:$0xf]
        %v2037 = vld [vmem:[%s1996 + $0xa0] sm:$0xf]
        %v2038 = vld [vmem:[%s1996 + $0xa4] sm:$0xf]
        %v2039 = vld [vmem:[%s1996 + $0xa8] sm:$0xf]
        %v2040 = vld [vmem:[%s1996 + $0xac] sm:$0xf]
        %v2041 = vld [vmem:[%s1996 + $0xb0] sm:$0xf]
        %v2042 = vld [vmem:[%s1996 + $0xb4] sm:$0xf]
        %v2043 = vld [vmem:[%s1996 + $0xb8] sm:$0xf]
        %v2044 = vld [vmem:[%s1996 + $0xbc] sm:$0xf]
        %v2093 = vunpack.c.l.b16 %v1997
        %v2094 = vunpack.c.l.b16 %v1998
        %v2095 = vunpack.c.l.b16 %v1999
        %v2096 = vunpack.c.l.b16 %v2000
        %v2097 = vunpack.c.l.b16 %v2001
        %v2098 = vunpack.c.l.b16 %v2002
        %v2099 = vunpack.c.l.b16 %v2003
        %v2100 = vunpack.c.l.b16 %v2004
        %v2101 = vunpack.c.l.b16 %v2005
        %v2102 = vunpack.c.l.b16 %v2006
        %v2103 = vunpack.c.l.b16 %v2007
        %v2104 = vunpack.c.l.b16 %v2008
        %v2105 = vunpack.c.l.b16 %v2009
        %v2106 = vunpack.c.l.b16 %v2010
        %v2107 = vunpack.c.l.b16 %v2011
        %v2108 = vunpack.c.l.b16 %v2012
        %v2109 = vunpack.c.l.b16 %v2013
        %v2110 = vunpack.c.l.b16 %v2014
        %v2111 = vunpack.c.l.b16 %v2015
        %v2112 = vunpack.c.l.b16 %v2016
        %v2113 = vunpack.c.l.b16 %v2017
        %v2114 = vunpack.c.l.b16 %v2018
        %v2115 = vunpack.c.l.b16 %v2019
        %v2116 = vunpack.c.l.b16 %v2020
        %v2117 = vunpack.c.l.b16 %v2021
        %v2118 = vunpack.c.l.b16 %v2022
        %v2119 = vunpack.c.l.b16 %v2023
        %v2120 = vunpack.c.l.b16 %v2024
        %v2121 = vunpack.c.l.b16 %v2025
        %v2122 = vunpack.c.l.b16 %v2026
        %v2123 = vunpack.c.l.b16 %v2027
        %v2124 = vunpack.c.l.b16 %v2028
        %v2125 = vunpack.c.l.b16 %v2029
        %v2126 = vunpack.c.l.b16 %v2030
        %v2127 = vunpack.c.l.b16 %v2031
        %v2128 = vunpack.c.l.b16 %v2032
        %v2129 = vunpack.c.l.b16 %v2033
        %v2130 = vunpack.c.l.b16 %v2034
        %v2131 = vunpack.c.l.b16 %v2035
        %v2132 = vunpack.c.l.b16 %v2036
        %v2133 = vunpack.c.l.b16 %v2037
        %v2134 = vunpack.c.l.b16 %v2038
        %v2135 = vunpack.c.l.b16 %v2039
        %v2136 = vunpack.c.l.b16 %v2040
        %v2137 = vunpack.c.l.b16 %v2041
        %v2138 = vunpack.c.l.b16 %v2042
        %v2139 = vunpack.c.l.b16 %v2043
        %v2140 = vunpack.c.l.b16 %v2044
        %v2141 = vpack.c.b16 %v2094, %v2093
        %v2142 = vpack.c.b16 %v2096, %v2095
        %v2143 = vpack.c.b16 %v2098, %v2097
        %v2144 = vpack.c.b16 %v2100, %v2099
        %v2145 = vpack.c.b16 %v2102, %v2101
        %v2146 = vpack.c.b16 %v2104, %v2103
        %v2147 = vpack.c.b16 %v2106, %v2105
        %v2148 = vpack.c.b16 %v2108, %v2107
        %v2149 = vpack.c.b16 %v2110, %v2109
        %v2150 = vpack.c.b16 %v2112, %v2111
        %v2151 = vpack.c.b16 %v2114, %v2113
        %v2152 = vpack.c.b16 %v2116, %v2115
        %v2153 = vpack.c.b16 %v2118, %v2117
        %v2154 = vpack.c.b16 %v2120, %v2119
        %v2155 = vpack.c.b16 %v2122, %v2121
        %v2156 = vpack.c.b16 %v2124, %v2123
        %v2157 = vpack.c.b16 %v2126, %v2125
        %v2158 = vpack.c.b16 %v2128, %v2127
        %v2159 = vpack.c.b16 %v2130, %v2129
        %v2160 = vpack.c.b16 %v2132, %v2131
        %v2161 = vpack.c.b16 %v2134, %v2133
        %v2162 = vpack.c.b16 %v2136, %v2135
        %v2163 = vpack.c.b16 %v2138, %v2137
        %v2164 = vpack.c.b16 %v2140, %v2139
        %2189 = vmatprep.subr.bf16.mxu0 0
        %2190 = vmatpush1.bf16.msra.mxu0 %v2141
        %2191 = vmatprep.subr.bf16.mxu0 0
        %2192 = vmatpush1.bf16.msra.mxu0 %v2142
        %2193 = vmatprep.subr.bf16.mxu0 0
        %2194 = vmatpush1.bf16.msra.mxu0 %v2143
        %2195 = vmatprep.subr.bf16.mxu0 0
        %2196 = vmatpush1.bf16.msra.mxu0 %v2144
        %2197 = vmatprep.subr.bf16.mxu0 0
        %2198 = vmatpush1.bf16.msra.mxu0 %v2145
        %2199 = vmatprep.subr.bf16.mxu0 0
        %2200 = vmatpush1.bf16.msra.mxu0 %v2146
        %2201 = vmatprep.subr.bf16.mxu0 0
        %2202 = vmatpush1.bf16.msra.mxu0 %v2147
        %2203 = vmatprep.subr.bf16.mxu0 0
        %2204 = vmatpush1.bf16.msra.mxu0 %v2148
        %2205 = vmatprep.subr.bf16.mxu0 0
        %2206 = vmatpush1.bf16.msra.mxu0 %v2149
        %2207 = vmatprep.subr.bf16.mxu0 0
        %2208 = vmatpush1.bf16.msra.mxu0 %v2150
        %2209 = vmatprep.subr.bf16.mxu0 0
        %2210 = vmatpush1.bf16.msra.mxu0 %v2151
        %2211 = vmatprep.subr.bf16.mxu0 0
        %2212 = vmatpush1.bf16.msra.mxu0 %v2152
        %2213 = vmatprep.subr.bf16.mxu0 0
        %2214 = vmatpush1.bf16.msra.mxu0 %v2153
        %2215 = vmatprep.subr.bf16.mxu0 0
        %2216 = vmatpush1.bf16.msra.mxu0 %v2154
        %2217 = vmatprep.subr.bf16.mxu0 0
        %2218 = vmatpush1.bf16.msra.mxu0 %v2155
        %2219 = vmatprep.subr.bf16.mxu0 0
        %2220 = vmatpush1.bf16.msra.mxu0 %v2156
        %2221 = vmatprep.mubr.bf16.mxu0 %v1961
        %2222 = vmatmul.mubr.bf16.gmra.mrb[0].mxu0 %v1960
        %v2223 = vpop.f32.mrb[0].mxu0
        %v2224 = vadd.f32 0.0, %v2223
        %v2225 = vpop.f32.mrb[0].mxu0
        %v2226 = vpop.f32.mrb[0].mxu0
        %v2227 = vadd.f32 0.0, %v2226
        %v2228 = vpop.f32.mrb[0].mxu0
        %2229 = vmatprep.mubr.bf16.mxu0 %v1964
        %2230 = vmatmul.mubr.bf16.gmra.mrb[0].mxu0 %v1963
        %v2231 = vpop.f32.mrb[0].mxu0
        %v2232 = vpop.f32.mrb[0].mxu0
        %v2233 = vpop.f32.mrb[0].mxu0
        %v2234 = vadd.f32 0.0, %v2233
        %v2235 = vpop.f32.mrb[0].mxu0
        %2236 = vmatprep.mubr.bf16.mxu0 %v1967
        %2237 = vmatmul.mubr.bf16.gmra.mrb[0].mxu0 %v1966
        %v2238 = vpop.f32.mrb[0].mxu0
        %v2239 = vadd.f32 0.0, %v2238
        %v2240 = vpop.f32.mrb[0].mxu0
        %v2241 = vpop.f32.mrb[0].mxu0
        %v2242 = vpop.f32.mrb[0].mxu0
        %2243 = vmatprep.mubr.bf16.mxu0 %v1970
        %2244 = vmatmul.mubr.bf16.gmra.mrb[0].mxu0 %v1969
        %v2245 = vpop.f32.mrb[0].mxu0
        %v2246 = vadd.f32 0.0, %v2245
        %v2247 = vpop.f32.mrb[0].mxu0
        %v2248 = vpop.f32.mrb[0].mxu0
        %v2249 = vadd.f32 0.0, %v2248
        %v2250 = vpop.f32.mrb[0].mxu0
        %2251 = vmatprep.mubr.bf16.mxu0 %v1973
        %2252 = vmatmul.mubr.bf16.gmra.mrb[0].mxu0 %v1972
        %v2253 = vpop.f32.mrb[0].mxu0
        %v2254 = vpop.f32.mrb[0].mxu0
        %v2255 = vpop.f32.mrb[0].mxu0
        %v2256 = vadd.f32 0.0, %v2255
        %v2257 = vpop.f32.mrb[0].mxu0
        %2258 = vmatprep.mubr.bf16.mxu0 %v1976
        %2259 = vmatmul.mubr.bf16.gmra.mrb[0].mxu0 %v1975
        %v2260 = vpop.f32.mrb[0].mxu0
        %v2261 = vadd.f32 0.0, %v2260
        %v2262 = vpop.f32.mrb[0].mxu0
        %v2263 = vpop.f32.mrb[0].mxu0
        %v2264 = vpop.f32.mrb[0].mxu0
        %2265 = vmatprep.mubr.bf16.mxu0 %v1979
        %2266 = vmatmul.mubr.bf16.gmra.mrb[0].mxu0 %v1978
        %v2267 = vpop.f32.mrb[0].mxu0
        %v2268 = vadd.f32 0.0, %v2267
        %v2269 = vpop.f32.mrb[0].mxu0
        %v2270 = vpop.f32.mrb[0].mxu0
        %v2271 = vadd.f32 0.0, %v2270
        %v2272 = vpop.f32.mrb[0].mxu0
        %2273 = vmatprep.mubr.bf16.mxu0 %v1982
        %2274 = vmatmul.mubr.bf16.gmra.mrb[0].mxu0 %v1981
        %v2275 = vpop.f32.mrb[0].mxu0
        %v2276 = vpop.f32.mrb[0].mxu0
        %v2277 = vpop.f32.mrb[0].mxu0
        %v2278 = vadd.f32 0.0, %v2277
        %v2279 = vpop.f32.mrb[0].mxu0
        %2280 = vmatprep.mubr.bf16.mxu0 %v1985
        %2281 = vmatmul.mubr.bf16.gmra.mrb[0].mxu0 %v1984
        %v2282 = vpop.f32.mrb[0].mxu0
        %v2283 = vadd.f32 0.0, %v2282
        %v2284 = vpop.f32.mrb[0].mxu0
        %v2285 = vpop.f32.mrb[0].mxu0
        %v2286 = vpop.f32.mrb[0].mxu0
        %2287 = vmatprep.mubr.bf16.mxu0 %v1988
        %2288 = vmatmul.mubr.bf16.gmra.mrb[0].mxu0 %v1987
        %v2289 = vpop.f32.mrb[0].mxu0
        %v2290 = vadd.f32 0.0, %v2289
        %v2291 = vpop.f32.mrb[0].mxu0
        %v2292 = vpop.f32.mrb[0].mxu0
        %v2293 = vadd.f32 0.0, %v2292
        %v2294 = vpop.f32.mrb[0].mxu0
        %2295 = vmatprep.mubr.bf16.mxu0 %v1991
        %2296 = vmatmul.mubr.bf16.gmra.mrb[0].mxu0 %v1990
        %v2297 = vpop.f32.mrb[0].mxu0
        %v2298 = vpop.f32.mrb[0].mxu0
        %v2299 = vpop.f32.mrb[0].mxu0
        %v2300 = vadd.f32 0.0, %v2299
        %v2301 = vpop.f32.mrb[0].mxu0
        %2302 = vmatprep.mubr.bf16.mxu0 %v1994
        %2303 = vmatmul.mubr.bf16.gmra.mrb[0].mxu0 %v1993
        %v2304 = vpop.f32.mrb[0].mxu0
        %v2305 = vadd.f32 0.0, %v2304
        %v2306 = vpop.f32.mrb[0].mxu0
        %v2307 = vpop.f32.mrb[0].mxu0
        %v2308 = vpop.f32.mrb[0].mxu0
        %2309 = vdwg.mxu0
        %2310 = vmatprep.subr.bf16.mxu0 0
        %2311 = vmatpush1.bf16.msra.mxu0 %v2157
        %2312 = vmatprep.subr.bf16.mxu0 0
        %2313 = vmatpush1.bf16.msra.mxu0 %v2158
        %2314 = vmatprep.subr.bf16.mxu0 0
        %2315 = vmatpush1.bf16.msra.mxu0 %v2159
        %2316 = vmatprep.subr.bf16.mxu0 0
        %2317 = vmatpush1.bf16.msra.mxu0 %v2160
        %2318 = vmatprep.subr.bf16.mxu0 0
        %2319 = vmatpush1.bf16.msra.mxu0 %v2161
        %2320 = vmatprep.subr.bf16.mxu0 0
        %2321 = vmatpush1.bf16.msra.mxu0 %v2162
        %2322 = vmatprep.subr.bf16.mxu0 0
        %2323 = vmatpush1.bf16.msra.mxu0 %v2163
        %2324 = vmatprep.subr.bf16.mxu0 0
        %2325 = vmatpush1.bf16.msra.mxu0 %v2164
        %2326 = vmatprep.subr.bf16.mxu0 0
        %2327 = vmatpush1.bf16.msra.mxu0 0
        %2328 = vmatprep.subr.bf16.mxu0 0
        %2329 = vmatpush1.bf16.msra.mxu0 0
        %2330 = vmatprep.subr.bf16.mxu0 0
        %2331 = vmatpush1.bf16.msra.mxu0 0
        %2332 = vmatprep.subr.bf16.mxu0 0
        %2333 = vmatpush1.bf16.msra.mxu0 0
        %2334 = vmatprep.subr.bf16.mxu0 0
        %2335 = vmatpush1.bf16.msra.mxu0 0
        %2336 = vmatprep.subr.bf16.mxu0 0
        %2337 = vmatpush1.bf16.msra.mxu0 0
        %2338 = vmatprep.subr.bf16.mxu0 0
        %2339 = vmatpush1.bf16.msra.mxu0 0
        %2340 = vmatprep.subr.bf16.mxu0 0
        %2341 = vmatpush1.bf16.msra.mxu0 0
        %2342 = vmatprep.mubr.bf16.mxu0 0
        %2343 = vmatmul.mubr.bf16.gmra.mrb[0].mxu0 %v1962
        %v2344 = vpop.f32.mrb[0].mxu0
        %v2345 = vadd.f32 %v2224, %v2344
        %v2346 = vpop.f32.mrb[0].mxu0
        %v2347 = vpop.f32.mrb[0].mxu0
        %v2348 = vadd.f32 %v2227, %v2347
        %v2349 = vpop.f32.mrb[0].mxu0
        %2350 = vmatprep.mubr.bf16.mxu0 0
        %2351 = vmatmul.mubr.bf16.gmra.mrb[0].mxu0 %v1965
        %v2352 = vpop.f32.mrb[0].mxu0
        %v2353 = vpop.f32.mrb[0].mxu0
        %v2354 = vpop.f32.mrb[0].mxu0
        %v2355 = vadd.f32 %v2234, %v2354
        %v2356 = vpop.f32.mrb[0].mxu0
        %2357 = vmatprep.mubr.bf16.mxu0 0
        %2358 = vmatmul.mubr.bf16.gmra.mrb[0].mxu0 %v1968
        %v2359 = vpop.f32.mrb[0].mxu0
        %v2360 = vadd.f32 %v2239, %v2359
        %v2361 = vpop.f32.mrb[0].mxu0
        %v2362 = vpop.f32.mrb[0].mxu0
        %v2363 = vpop.f32.mrb[0].mxu0
        %2364 = vmatprep.mubr.bf16.mxu0 0
        %2365 = vmatmul.mubr.bf16.gmra.mrb[0].mxu0 %v1971
        %v2366 = vpop.f32.mrb[0].mxu0
        %v2367 = vadd.f32 %v2246, %v2366
        %v2368 = vpop.f32.mrb[0].mxu0
        %v2369 = vpop.f32.mrb[0].mxu0
        %v2370 = vadd.f32 %v2249, %v2369
        %v2371 = vpop.f32.mrb[0].mxu0
        %2372 = vmatprep.mubr.bf16.mxu0 0
        %2373 = vmatmul.mubr.bf16.gmra.mrb[0].mxu0 %v1974
        %v2374 = vpop.f32.mrb[0].mxu0
        %v2375 = vpop.f32.mrb[0].mxu0
        %v2376 = vpop.f32.mrb[0].mxu0
        %v2377 = vadd.f32 %v2256, %v2376
        %v2378 = vpop.f32.mrb[0].mxu0
        %2379 = vmatprep.mubr.bf16.mxu0 0
        %2380 = vmatmul.mubr.bf16.gmra.mrb[0].mxu0 %v1977
        %v2381 = vpop.f32.mrb[0].mxu0
        %v2382 = vadd.f32 %v2261, %v2381
        %v2383 = vpop.f32.mrb[0].mxu0
        %v2384 = vpop.f32.mrb[0].mxu0
        %v2385 = vpop.f32.mrb[0].mxu0
        %2386 = vmatprep.mubr.bf16.mxu0 0
        %2387 = vmatmul.mubr.bf16.gmra.mrb[0].mxu0 %v1980
        %v2388 = vpop.f32.mrb[0].mxu0
        %v2389 = vadd.f32 %v2268, %v2388
        %v2390 = vpop.f32.mrb[0].mxu0
        %v2391 = vpop.f32.mrb[0].mxu0
        %v2392 = vadd.f32 %v2271, %v2391
        %v2393 = vpop.f32.mrb[0].mxu0
        %2394 = vmatprep.mubr.bf16.mxu0 0
        %2395 = vmatmul.mubr.bf16.gmra.mrb[0].mxu0 %v1983
        %v2396 = vpop.f32.mrb[0].mxu0
        %v2397 = vpop.f32.mrb[0].mxu0
        %v2398 = vpop.f32.mrb[0].mxu0
        %v2399 = vadd.f32 %v2278, %v2398
        %v2400 = vpop.f32.mrb[0].mxu0
        %2401 = vmatprep.mubr.bf16.mxu0 0
        %2402 = vmatmul.mubr.bf16.gmra.mrb[0].mxu0 %v1986
        %v2403 = vpop.f32.mrb[0].mxu0
        %v2404 = vadd.f32 %v2283, %v2403
        %v2405 = vpop.f32.mrb[0].mxu0
        %v2406 = vpop.f32.mrb[0].mxu0
        %v2407 = vpop.f32.mrb[0].mxu0
        %2408 = vmatprep.mubr.bf16.mxu0 0
        %2409 = vmatmul.mubr.bf16.gmra.mrb[0].mxu0 %v1989
        %v2410 = vpop.f32.mrb[0].mxu0
        %v2411 = vadd.f32 %v2290, %v2410
        %v2412 = vpop.f32.mrb[0].mxu0
        %v2413 = vpop.f32.mrb[0].mxu0
        %v2414 = vadd.f32 %v2293, %v2413
        %v2415 = vpop.f32.mrb[0].mxu0
        %2416 = vmatprep.mubr.bf16.mxu0 0
        %2417 = vmatmul.mubr.bf16.gmra.mrb[0].mxu0 %v1992
        %v2418 = vpop.f32.mrb[0].mxu0
        %v2419 = vpop.f32.mrb[0].mxu0
        %v2420 = vpop.f32.mrb[0].mxu0
        %v2421 = vadd.f32 %v2300, %v2420
        %v2422 = vpop.f32.mrb[0].mxu0
        %2423 = vmatprep.mubr.bf16.mxu0 0
        %2424 = vmatmul.mubr.bf16.gmra.mrb[0].mxu0 %v1995
        %v2425 = vpop.f32.mrb[0].mxu0
        %v2426 = vadd.f32 %v2305, %v2425
        %v2427 = vpop.f32.mrb[0].mxu0
        %v2428 = vpop.f32.mrb[0].mxu0
        %v2429 = vpop.f32.mrb[0].mxu0
        %2430 = vdwg.mxu0
        %v2431 = vadd.f32 %v1801, %v2345
        %v2432 = vadd.f32 %v1804, %v2348
        %v2433 = vadd.f32 %v1811, %v2355
        %v2434 = vadd.f32 %v1816, %v2360
        %v2435 = vadd.f32 %v1823, %v2367
        %v2436 = vadd.f32 %v1826, %v2370
        %v2437 = vadd.f32 %v1833, %v2377
        %v2438 = vadd.f32 %v1838, %v2382
        %v2439 = vadd.f32 %v1845, %v2389
        %v2440 = vadd.f32 %v1848, %v2392
        %v2441 = vadd.f32 %v1855, %v2399
        %v2442 = vadd.f32 %v1860, %v2404
        %v2443 = vadd.f32 %v1867, %v2411
        %v2444 = vadd.f32 %v1870, %v2414
        %v2445 = vadd.f32 %v1877, %v2421
        %v2446 = vadd.f32 %v1882, %v2426
        %v2447 = vpack.c.bf16 %v2432, %v2431
        %v2448 = vpack.c.bf16 %v2434, %v2433
        %v2449 = vpack.c.bf16 %v2436, %v2435
        %v2450 = vpack.c.bf16 %v2438, %v2437
        %v2451 = vpack.c.bf16 %v2440, %v2439
        %v2452 = vpack.c.bf16 %v2442, %v2441
        %v2453 = vpack.c.bf16 %v2444, %v2443
        %v2454 = vpack.c.bf16 %v2446, %v2445
        %v2463 = vunpack.c.l.b16 %v2447
        %v2464 = vunpack.c.h.b16 %v2447
        %v2465 = vunpack.c.l.b16 %v2448
        %v2466 = vunpack.c.h.b16 %v2448
        %v2467 = vunpack.c.l.b16 %v2449
        %v2468 = vunpack.c.h.b16 %v2449
        %v2469 = vunpack.c.l.b16 %v2450
        %v2470 = vunpack.c.h.b16 %v2450
        %v2471 = vunpack.c.l.b16 %v2451
        %v2472 = vunpack.c.h.b16 %v2451
        %v2473 = vunpack.c.l.b16 %v2452
        %v2474 = vunpack.c.h.b16 %v2452
        %v2475 = vunpack.c.l.b16 %v2453
        %v2476 = vunpack.c.h.b16 %v2453
        %v2477 = vunpack.c.l.b16 %v2454
        %v2478 = vunpack.c.h.b16 %v2454
        %v2479 = vpack.c.b16 %v2463, %v2463
        %v2480 = vpack.c.b16 %v2464, %v2464
        %v2481 = vpack.c.b16 %v2465, %v2465
        %v2482 = vpack.c.b16 %v2466, %v2466
        %v2483 = vpack.c.b16 %v2467, %v2467
        %v2484 = vpack.c.b16 %v2468, %v2468
        %v2485 = vpack.c.b16 %v2469, %v2469
        %v2486 = vpack.c.b16 %v2470, %v2470
        %v2487 = vpack.c.b16 %v2471, %v2471
        %v2488 = vpack.c.b16 %v2472, %v2472
        %v2489 = vpack.c.b16 %v2473, %v2473
        %v2490 = vpack.c.b16 %v2474, %v2474
        %v2491 = vpack.c.b16 %v2475, %v2475
        %v2492 = vpack.c.b16 %v2476, %v2476
        %v2493 = vpack.c.b16 %v2477, %v2477
        %v2494 = vpack.c.b16 %v2478, %v2478
        %2511 = vst [vmem:[%s335] sm:$0xf] %v2479
        %2512 = vst [vmem:[%s335 + $0x4] sm:$0xf] %v2480
        %2513 = vst [vmem:[%s335 + $0x8] sm:$0xf] %v2481
        %2514 = vst [vmem:[%s335 + $0xc] sm:$0xf] %v2482
        %2515 = vst [vmem:[%s335 + $0x10] sm:$0xf] %v2483
        %2516 = vst [vmem:[%s335 + $0x14] sm:$0xf] %v2484
        %2517 = vst [vmem:[%s335 + $0x18] sm:$0xf] %v2485
        %2518 = vst [vmem:[%s335 + $0x1c] sm:$0xf] %v2486
        %2519 = vst [vmem:[%s335 + $0x20] sm:$0xf] %v2487
        %2520 = vst [vmem:[%s335 + $0x24] sm:$0xf] %v2488
        %2521 = vst [vmem:[%s335 + $0x28] sm:$0xf] %v2489
        %2522 = vst [vmem:[%s335 + $0x2c] sm:$0xf] %v2490
        %2523 = vst [vmem:[%s335 + $0x30] sm:$0xf] %v2491
        %2524 = vst [vmem:[%s335 + $0x34] sm:$0xf] %v2492
        %2525 = vst [vmem:[%s335 + $0x38] sm:$0xf] %v2493
        %2526 = vst [vmem:[%s335 + $0x3c] sm:$0xf] %v2494
        %v2527 = vadd.f32 %v2431, %v2432
        %v2528 = vadd.f32 %v2527, %v2433
        %v2529 = vadd.f32 %v2528, %v2434
        %v2530 = vadd.f32 %v2529, %v2435
        %v2531 = vadd.f32 %v2530, %v2436
        %v2532 = vadd.f32 %v2531, %v2437
        %v2533 = vadd.f32 %v2532, %v2438
        %v2534 = vadd.f32 %v2533, %v2439
        %v2535 = vadd.f32 %v2534, %v2440
        %v2536 = vadd.f32 %v2535, %v2441
        %v2537 = vadd.f32 %v2536, %v2442
        %v2538 = vadd.f32 %v2537, %v2443
        %v2539 = vadd.f32 %v2538, %v2444
        %v2540 = vadd.f32 %v2539, %v2445
        %v2541 = vadd.f32 %v2540, %v2446
        %v2542 = vrot.slane %v2541, 4
        %v2543 = vadd.f32 %v2541, %v2542
        %v2544 = vrot.slane %v2543, 2
        %v2545 = vadd.f32 %v2543, %v2544
        %v2546 = vrot.slane %v2545, 1
        %v2547 = vadd.f32 %v2545, %v2546
        %2548 = vst [vmem:[%s341] sm:$0x1] %v2547
        %v2549 = vmul.f32 %v2431, %v2431
        %v2550 = vmul.f32 %v2432, %v2432
        %v2551 = vmul.f32 %v2433, %v2433
        %v2552 = vmul.f32 %v2434, %v2434
        %v2553 = vmul.f32 %v2435, %v2435
        %v2554 = vmul.f32 %v2436, %v2436
        %v2555 = vmul.f32 %v2437, %v2437
        %v2556 = vmul.f32 %v2438, %v2438
        %v2557 = vmul.f32 %v2439, %v2439
        %v2558 = vmul.f32 %v2440, %v2440
        %v2559 = vmul.f32 %v2441, %v2441
        %v2560 = vmul.f32 %v2442, %v2442
        %v2561 = vmul.f32 %v2443, %v2443
        %v2562 = vmul.f32 %v2444, %v2444
        %v2563 = vmul.f32 %v2445, %v2445
        %v2564 = vmul.f32 %v2446, %v2446
        %v2565 = vadd.f32 %v2549, %v2550
        %v2566 = vadd.f32 %v2565, %v2551
        %v2567 = vadd.f32 %v2566, %v2552
        %v2568 = vadd.f32 %v2567, %v2553
        %v2569 = vadd.f32 %v2568, %v2554
        %v2570 = vadd.f32 %v2569, %v2555
        %v2571 = vadd.f32 %v2570, %v2556
        %v2572 = vadd.f32 %v2571, %v2557
        %v2573 = vadd.f32 %v2572, %v2558
        %v2574 = vadd.f32 %v2573, %v2559
        %v2575 = vadd.f32 %v2574, %v2560
        %v2576 = vadd.f32 %v2575, %v2561
        %v2577 = vadd.f32 %v2576, %v2562
        %v2578 = vadd.f32 %v2577, %v2563
        %v2579 = vadd.f32 %v2578, %v2564
        %v2580 = vrot.slane %v2579, 4
        %v2581 = vadd.f32 %v2579, %v2580
        %v2582 = vrot.slane %v2581, 2
        %v2583 = vadd.f32 %v2581, %v2582
        %v2584 = vrot.slane %v2583, 1
        %v2585 = vadd.f32 %v2583, %v2584
        %2586 = vst [vmem:[%s347] sm:$0x1] %v2585
        %s2587 = sand.u32 %s140, 1
        %s2588 = scalar_lea.sflag [#allocation5], %s2587
        %s2589 = sand.u32 %s140, 1
        %s2590 = smul.addr %s2589, 64
        %s2591 = scalar_lea.vmem [#allocation11], %s2590
        %s2592 = sand.u32 %s29, 1
        %s2593 = scalar_lea.sflag [#allocation13], %s2592
        %s2594 = sand.u32 %s170, 1
        %s2595 = scalar_lea.vmem [#allocation12], %s2594
        %s2596 = sand.u32 %s29, 1
        %s2597 = scalar_lea.sflag [#allocation13], %s2596
        %s2598 = sand.u32 %s200, 1
        %s2599 = scalar_lea.vmem [#allocation14], %s2598
        // Predicated region
        $region61: #{_lambda_.7} parent=35 // pred_check
          %p2600 = pneg %p150
        $region62: #{_lambda_.7} parent=35 // pred_check_branch
          %2602 = sbr.rel (%p2600) target = $region64
        $region63: #{_lambda_.7} parent=35 // pred_region
          %s2603 = smul.u32 8, %s34
          %s2605 = ssub.s32 1024, 1024
          %2606 = vsyncadd %s2588, %s2605
          %s2607 = smul.addr %s2603, 2
          %s2608 = smul.addr %s33, 32
          %s2609 = sadd.s32 %s2607, %s2608
          %s2610 = smul.addr %s2609, 64
          %s2611 = scalar_lea.hbm %s4, %s2610
          %s2612 = sshll.u32 %s2591, 4
          %s2613 = int_to_ptr.vmem [resolvable:$true] %s2612
          %2618 = dma.vmem_to_hbm [thread:$0]  %s2613, 1024, %s2611, %s2588, 64, 64, 4
        $region64: #{_lambda_.7} parent=35 // pred_fallthru
          _
        // Predicated region
        $region65: #{_lambda_.7} parent=35 // pred_check
          %p2619 = pneg %p180
        $region66: #{_lambda_.7} parent=35 // pred_check_branch
          %2621 = sbr.rel (%p2619) target = $region68
        $region67: #{_lambda_.7} parent=35 // pred_region
          %s2622 = smul.u32 %s33, 2
          %s2623 = sadd.s32 %s2622, %s34
          %s2625 = ssub.s32 16, 16
          %2626 = vsyncadd %s2593, %s2625
          %s2627 = smul.addr %s2623, 16
          %s2628 = scalar_lea.hbm %s5, %s2627
          %s2630 = sshll.u32 %s2595, 4
          %s2631 = int_to_ptr.vmem [resolvable:$true] %s2630
          %2633 = dma.vmem_to_hbm [thread:$0]  %s2631, 16, %s2628, %s2593
        $region68: #{_lambda_.7} parent=35 // pred_fallthru
          _
        // Predicated region
        $region69: #{_lambda_.7} parent=35 // pred_check
          %p2634 = pneg %p210
        $region70: #{_lambda_.7} parent=35 // pred_check_branch
          %2636 = sbr.rel (%p2634) target = $region72
        $region71: #{_lambda_.7} parent=35 // pred_region
          %s2637 = smul.u32 %s33, 2
          %s2638 = sadd.s32 %s2637, %s34
          %s2640 = ssub.s32 16, 16
          %2641 = vsyncadd %s2597, %s2640
          %s2642 = smul.addr %s2638, 16
          %s2643 = scalar_lea.hbm %s6, %s2642
          %s2645 = sshll.u32 %s2599, 4
          %s2646 = int_to_ptr.vmem [resolvable:$true] %s2645
          %2648 = dma.vmem_to_hbm [thread:$0]  %s2646, 16, %s2643, %s2597
        $region72: #{_lambda_.7} parent=35 // pred_fallthru
          _
      $region36: #{_lambda_.7} parent=5 // pred_fallthru
        _
      %p2649 = scmp.le.s32.totalorder 2, %s24
      // Predicated region
      $region73: #{_lambda_.7} parent=5 // pred_check
        %p2650 = pneg %p2649
      $region74: #{_lambda_.7} parent=5 // pred_check_branch
        %2652 = sbr.rel (%p2650) target = $region76
      $region75: #{_lambda_.7} parent=5 // pred_region
        %s2653 = ssub.s32 %s24, 2
        // Predicated region
        $region77: #{_lambda_.7} parent=75 // pred_check
          %p2654 = pneg %p156
        $region78: #{_lambda_.7} parent=75 // pred_check_branch
          %2656 = sbr.rel (%p2654) target = $region80
        $region79: #{_lambda_.7} parent=75 // pred_region
          %s2657 = sand.u32 %s141, 1
          %s2658 = scalar_lea.sflag [#allocation5], %s2657
          %s2659 = sand.u32 %s141, 1
          %s2660 = smul.addr %s2659, 64
          %s2661 = scalar_lea.vmem [#allocation11], %s2660
          %2662 = dma.done %s2658, 1024
        $region80: #{_lambda_.7} parent=75 // pred_fallthru
          _
        // Predicated region
        $region81: #{_lambda_.7} parent=75 // pred_check
          %p2663 = pneg %p186
        $region82: #{_lambda_.7} parent=75 // pred_check_branch
          %2665 = sbr.rel (%p2663) target = $region84
        $region83: #{_lambda_.7} parent=75 // pred_region
          %s2666 = sand.u32 %s30, 1
          %s2667 = scalar_lea.sflag [#allocation13], %s2666
          %s2668 = sand.u32 %s171, 1
          %s2669 = scalar_lea.vmem [#allocation12], %s2668
          %2670 = dma.done %s2667, 16
        $region84: #{_lambda_.7} parent=75 // pred_fallthru
          _
        // Predicated region
        $region85: #{_lambda_.7} parent=75 // pred_check
          %p2671 = pneg %p216
        $region86: #{_lambda_.7} parent=75 // pred_check_branch
          %2673 = sbr.rel (%p2671) target = $region88
        $region87: #{_lambda_.7} parent=75 // pred_region
          %s2674 = sand.u32 %s30, 1
          %s2675 = scalar_lea.sflag [#allocation13], %s2674
          %s2676 = sand.u32 %s201, 1
          %s2677 = scalar_lea.vmem [#allocation14], %s2676
          %2678 = dma.done %s2675, 16
        $region88: #{_lambda_.7} parent=75 // pred_fallthru
          _
      $region76: #{_lambda_.7} parent=5 // pred_fallthru
        _
    $region6: #{_lambda_.7} parent=1 // loop_footer
      %s28 = sadd.s32 1, %s24
    $region7: #{_lambda_.7} parent=1 // loop_footer_branch
      %23 = sbr.rel target = $region3
    $region8: #{_lambda_.7} parent=1 // loop_exit
      _
    %2679 = vsyncpa [#allocation4], 1
    %s2680 = scalar_lea.sflag [#allocation4], 1
    %2681 = vsyncpa %s2680, 1
    %2682 = vsyncpa [#allocation7], 1
    %2683 = vsyncpa [#allocation10], 1
    %2684 = vsyncpa [#allocation5], 1
    %s2685 = scalar_lea.sflag [#allocation5], 1
    %2686 = vsyncpa %s2685, 1
    %2687 = vsyncpa [#allocation13], 1
    %s2688 = scalar_lea.sflag [#allocation13], 1
    %2689 = vsyncpa %s2688, 1

</llo_original>
